<compile_context>
chip_gen: v7x
topology: tpu7x:2x2x1
jax: 0.10.0
libtpu: 0.0.40
codegen_flags: <defaults>
</compile_context>

<pallas_src>
import functools

import jax
import jax.numpy as jnp
import numpy as np
from jax.experimental import pallas as pl
from jax.experimental.pallas import tpu as pltpu


# ---------------------------------------------------------------------------
# Constant matrices (built once in make_params, numpy)
# ---------------------------------------------------------------------------

def _pad_scatter(h, w):
    """(h*w, (h+2)*(w+2)) one-hot: dense pixel -> interior of padded-flat image."""
    wp = w + 2
    p = np.zeros((h * w, (h + 2) * wp), np.float32)
    for i in range(h):
        for j in range(w):
            p[i * w + j, (i + 1) * wp + (j + 1)] = 1.0
    return p


def _interior_mask(h, w):
    """(1, (h+2)*(w+2)) 0/1 mask of interior positions of the padded-flat image."""
    wp = w + 2
    m = np.zeros((1, (h + 2) * wp), np.float32)
    for i in range(h):
        m[0, (i + 1) * wp + 1:(i + 1) * wp + 1 + w] = 1.0
    return m


def _deconv2x2_scatter(h5, w5):
    """(4*(h5+2)*(w5+2), (2h5+2)*(2w5+2)) one-hot pixel-shuffle scatter.

    Sub-pixel block t = dy*2+dx at padded-flat source (i+1, j+1) goes to the
    padded-flat target (2i+dy+1, 2j+dx+1).  Non-interior source rows are zero,
    which also drops the conv border garbage of the previous layer."""
    wp5 = w5 + 2
    l5 = (h5 + 2) * wp5
    h4, w4 = 2 * h5, 2 * w5
    wp4 = w4 + 2
    s = np.zeros((4 * l5, (h4 + 2) * wp4), np.float32)
    for dy in range(2):
        for dx in range(2):
            t = dy * 2 + dx
            for i in range(h5):
                for j in range(w5):
                    q = (i + 1) * wp5 + (j + 1)
                    p = (2 * i + dy + 1) * wp4 + (2 * j + dx + 1)
                    s[t * l5 + q, p] = 1.0
    return s


def _bilinear_1d(n_in, n_out):
    """(n_out, n_in) PyTorch F.interpolate bilinear matrix, align_corners=False."""
    m = np.zeros((n_out, n_in), np.float32)
    scale = n_in / n_out
    for o in range(n_out):
        src = max((o + 0.5) * scale - 0.5, 0.0)
        i0 = min(int(np.floor(src)), n_in - 1)
        i1 = min(i0 + 1, n_in - 1)
        lam = src - i0
        m[o, i0] += 1.0 - lam
        m[o, i1] += lam
    return m


def _bilinear_pad_matrix(h_in, w_in, h_out, w_out):
    """(h_in*w_in, (h_out+2)*(w_out+2)): bilinear resize + scatter into padded-flat."""
    rh = _bilinear_1d(h_in, h_out)      # (h_out, h_in)
    rw = _bilinear_1d(w_in, w_out)      # (w_out, w_in)
    k = np.einsum("ya,xb->abyx", rh, rw).reshape(h_in * w_in, h_out * w_out)
    return (k @ _pad_scatter(h_out, w_out)).astype(np.float32)


# ---------------------------------------------------------------------------
# In-kernel helpers
# ---------------------------------------------------------------------------

def _conv3x3(x, w, b, h, w_sp, mask=None):
    """3x3 'same' conv + folded BN/bias + ReLU on a padded-flat image.

    x: (Cin, Lp) zero-bordered padded-flat, Lp = (h+2)*(w_sp+2)
    w: (Cout, 9*Cin) taps stacked (dy, dx)-major / cin-minor, BN scale folded in
    b: (Cout, 1) folded bias
    Result border lanes hold garbage unless `mask` (1, Lp) is supplied.
    """
    wp = w_sp + 2
    lp = (h + 2) * wp
    taps = []
    for dy in (-1, 0, 1):
        for dx in (-1, 0, 1):
            k = (dy * wp + dx) % lp
            if k == 0:
                taps.append(x)
            else:  # lane rotation: shifted[:, p] = x[:, p + off]
                taps.append(jnp.concatenate([x[:, k:], x[:, :k]], axis=1))
    patches = jnp.concatenate(taps, axis=0)                       # (9*Cin, Lp)
    y = jnp.dot(w, patches, preferred_element_type=jnp.float32) + b
    y = jnp.maximum(y, 0.0)
    if mask is not None:
        y = y * mask
    return y


# ---------------------------------------------------------------------------
# Pallas kernels
# ---------------------------------------------------------------------------

def _lyt_module_kernel(x4_ref, x5_ref, wd0_ref, bd0_ref,
                       wb1a_ref, bb1a_ref, wb1b_ref, bb1b_ref,
                       wdc_ref, bdc_ref,
                       wb0a_ref, bb0a_ref, wb0b_ref, bb0b_ref,
                       p4_ref, p5_ref, sup_ref, g4_ref, m4_ref, m5_ref,
                       o_ref, *, h4, w4, h5, w5):
    """Full BaseBEVBackboneV1LYT forward for one batch element of one scale."""
    f32 = jnp.float32
    x4 = x4_ref[0]                                   # (C1, h4*w4)
    x5 = x5_ref[0]                                   # (C2, h5*w5)

    # deblocks[0]: ConvTranspose2d(k=1, s=1) == 1x1 conv, BN folded, ReLU.
    d0 = jnp.maximum(jnp.dot(wd0_ref[...], x4, preferred_element_type=f32)
                     + bd0_ref[...], 0.0)            # (U0, h4*w4)
    d0p = jnp.dot(d0, p4_ref[...], preferred_element_type=f32)     # (U0, L4) padded

    # blocks[1] on x_conv5 (two 3x3 conv + BN + ReLU layers).
    h = jnp.dot(x5, p5_ref[...], preferred_element_type=f32)       # (C2, L5) padded
    h = _conv3x3(h, wb1a_ref[...], bb1a_ref[...], h5, w5, mask=m5_ref[...])
    h = _conv3x3(h, wb1b_ref[...], bb1b_ref[...], h5, w5)

    # deblocks[1]: ConvTranspose2d(k=2, s=2) as a single stacked matmul + scatter.
    u1 = wdc_ref.shape[0] // 4
    y = jnp.maximum(jnp.dot(wdc_ref[...], h, preferred_element_type=f32)
                    + bdc_ref[...], 0.0)             # (4*U1, L5)
    y = jnp.concatenate([y[t * u1:(t + 1) * u1, :] for t in range(4)],
                        axis=1)                      # (U1, 4*L5)
    d1p = jnp.dot(y, sup_ref[...], preferred_element_type=f32)     # (U1, L4) padded

    # cat([deblock0, deblock1], channel) then blocks[0] (two 3x3 conv layers).
    z = jnp.concatenate([d0p, d1p], axis=0)          # (C1, L4)
    z = _conv3x3(z, wb0a_ref[...], bb0a_ref[...], h4, w4, mask=m4_ref[...])
    z = _conv3x3(z, wb0b_ref[...], bb0b_ref[...], h4, w4)

    # gather interior -> dense lane-dense (C1, h4*w4) output store.
    o_ref[0] = jnp.dot(z, g4_ref[...], preferred_element_type=f32).astype(o_ref.dtype)


def _fusion_kernel(xf_ref, xc_ref, kup_ref, wdn_ref, bdn_ref,
                   wa1_ref, ba1_ref, wa2_ref, ba2_ref, g4_ref, o_ref,
                   *, h, w):
    """Bilinear upsample of coarse fused features + down_conv + attention + residual."""
    f32 = jnp.float32
    xf = xf_ref[0]                                   # (C1, h*w)   fine-scale x
    xc = xc_ref[0]                                   # (C1, hc*wc) coarse fused features
    up = jnp.dot(xc, kup_ref[...], preferred_element_type=f32)     # bilinear + pad
    d = _conv3x3(up, wdn_ref[...], bdn_ref[...], h, w)             # down_conv
    d = jnp.dot(d, g4_ref[...], preferred_element_type=f32)        # (C1, h*w) interior
    comb = jnp.concatenate([xf, d], axis=0)                        # (2*C1, h*w)
    a = jnp.maximum(jnp.dot(wa1_ref[...], comb, preferred_element_type=f32)
                    + ba1_ref[...], 0.0)
    a = jnp.dot(wa2_ref[...], a, preferred_element_type=f32) + ba2_ref[...]
    att = 1.0 / (1.0 + jnp.exp(-a))                                # sigmoid
    o_ref[0] = (comb * att + comb).astype(o_ref.dtype)


# ---------------------------------------------------------------------------
# pallas_call wrappers
# ---------------------------------------------------------------------------

def _full_specs(arrays):
    return [pl.BlockSpec(a.shape, lambda b, nd=a.ndim: (0,) * nd) for a in arrays]


def lyt_module_forward(x_conv4, x_conv5, sp):
    """BaseBEVBackboneV1LYT forward for one scale. NCHW in, (N, C1, H4*W4) out."""
    n, c1, h4, w4 = x_conv4.shape
    _, c2, h5, w5 = x_conv5.shape
    assert h4 == 2 * h5 and w4 == 2 * w5
    x4 = x_conv4.reshape(n, c1, h4 * w4)
    x5 = x_conv5.reshape(n, c2, h5 * w5)
    consts = [sp[k] for k in ("wd0", "bd0", "wb1a", "bb1a", "wb1b", "bb1b",
                              "wdc", "bdc", "wb0a", "bb0a", "wb0b", "bb0b",
                              "p4", "p5", "sup", "g4", "m4", "m5")]
    kernel = functools.partial(_lyt_module_kernel, h4=h4, w4=w4, h5=h5, w5=w5)
    return pl.pallas_call(
        kernel,
        out_shape=jax.ShapeDtypeStruct((n, c1, h4 * w4), jnp.float32),
        grid=(n,),
        in_specs=[pl.BlockSpec((1, c1, h4 * w4), lambda b: (b, 0, 0)),
                  pl.BlockSpec((1, c2, h5 * w5), lambda b: (b, 0, 0))]
                 + _full_specs(consts),
        out_specs=pl.BlockSpec((1, c1, h4 * w4), lambda b: (b, 0, 0)),
        compiler_params=pltpu.CompilerParams(dimension_semantics=("parallel",)),
    )(x4, x5, *consts)


def fusion_forward(x_fine, fused_coarse, shared, h, w):
    n, c1, _ = x_fine.shape
    consts = [shared[k] for k in ("kup", "wdn", "bdn", "wa1", "ba1", "wa2", "ba2", "g4")]
    kernel = functools.partial(_fusion_kernel, h=h, w=w)
    return pl.pallas_call(
        kernel,
        out_shape=jax.ShapeDtypeStruct((n, 2 * c1, h * w), jnp.float32),
        grid=(n,),
        in_specs=[pl.BlockSpec((1, c1, h * w), lambda b: (b, 0, 0)),
                  pl.BlockSpec((1,) + fused_coarse.shape[1:], lambda b: (b, 0, 0))]
                 + _full_specs(consts),
        out_specs=pl.BlockSpec((1, 2 * c1, h * w), lambda b: (b, 0, 0)),
        compiler_params=pltpu.CompilerParams(dimension_semantics=("parallel",)),
    )(x_fine, fused_coarse, *consts)


def down_atten_forward(multi_scale_2d_features, kparams):
    """Mirrors BaseBEVBackboneV1LYTDownAttenAddRes.forward (eval-mode BN)."""
    scale_ids = list(range(len(multi_scale_2d_features)))
    scale_ids.reverse()
    fused, fh, fw = None, None, None
    for idx in scale_ids:
        sf = multi_scale_2d_features[idx]
        sp = kparams["scales"][idx]
        x = lyt_module_forward(sf["x_conv4"], sf["x_conv5"], sp)     # (N, C1, H*W)
        h, w = sp["h4"], sp["w4"]
        if fused is None:
            fused, fh, fw = x, h, w
        else:
            fused = fusion_forward(x, fused, kparams["shared"], h, w)
            fh, fw = h, w
    n = fused.shape[0]
    return {"spatial_features_2d": fused.reshape(n, -1, fh, fw)}


# ---------------------------------------------------------------------------
# Parameter construction (deterministic) + folding into kernel layouts
# ---------------------------------------------------------------------------

def _bn_params(key, c):
    k1, k2, k3, k4 = jax.random.split(key, 4)
    gamma = 0.8 + 0.4 * jax.random.uniform(k1, (c,), jnp.float32)
    beta = 0.1 * jax.random.normal(k2, (c,), jnp.float32)
    mean = 0.1 * jax.random.normal(k3, (c,), jnp.float32)
    var = 0.5 + jax.random.uniform(k4, (c,), jnp.float32)
    return gamma, beta, mean, var


def _fold(bn, eps, conv_bias=None):
    gamma, beta, mean, var = bn
    s = gamma / jnp.sqrt(var + eps)
    b0 = conv_bias if conv_bias is not None else jnp.zeros_like(mean)
    return s, (b0 - mean) * s + beta


def _prep_scale_kernel_params(raw_s, h4, w4, h5, w5, eps=1e-3):
    def conv_k(layer):
        s, b = _fold(layer["bn"], eps, layer["b"])
        wf = layer["w"] * s[:, None, None, None]
        cout, cin = layer["w"].shape[0], layer["w"].shape[1]
        return jnp.transpose(wf, (0, 2, 3, 1)).reshape(cout, 9 * cin), b.reshape(cout, 1)

    wb0a, bb0a = conv_k(raw_s["block0"][0])
    wb0b, bb0b = conv_k(raw_s["block0"][1])
    wb1a, bb1a = conv_k(raw_s["block1"][0])
    wb1b, bb1b = conv_k(raw_s["block1"][1])

    # deblock0: ConvTranspose2d(k=1, s=1), torch weight (Cin, U0, 1, 1)
    s0, b0 = _fold(raw_s["deblock0"]["bn"], eps)
    wd0 = raw_s["deblock0"]["w"][:, :, 0, 0].T * s0[:, None]          # (U0, Cin)
    bd0 = b0.reshape(-1, 1)

    # deblock1: ConvTranspose2d(k=2, s=2), torch weight (Cin, U1, 2, 2)
    s1, b1 = _fold(raw_s["deblock1"]["bn"], eps)
    wt1 = raw_s["deblock1"]["w"] * s1[None, :, None, None]
    wdc = jnp.transpose(wt1, (2, 3, 1, 0)).reshape(-1, wt1.shape[0])   # (4*U1, Cin)
    bdc = jnp.tile(b1, 4).reshape(-1, 1)

    return {"h4": h4, "w4": w4, "h5": h5, "w5": w5,
            "wd0": wd0, "bd0": bd0,
            "wb1a": wb1a, "bb1a": bb1a, "wb1b": wb1b, "bb1b": bb1b,
            "wdc": wdc, "bdc": bdc,
            "wb0a": wb0a, "bb0a": bb0a, "wb0b": wb0b, "bb0b": bb0b,
            "p4": jnp.asarray(_pad_scatter(h4, w4)),
            "p5": jnp.asarray(_pad_scatter(h5, w5)),
            "sup": jnp.asarray(_deconv2x2_scatter(h5, w5)),
            "g4": jnp.asarray(_pad_scatter(h4, w4).T),
            "m4": jnp.asarray(_interior_mask(h4, w4)),
            "m5": jnp.asarray(_interior_mask(h5, w5))}


def _prep_shared_kernel_params(shared_raw, hc, wc, hf, wf, eps=1e-5):
    down = shared_raw["down_conv"]
    s, b = _fold(down["bn"], eps, down["b"])
    cout, cin = down["w"].shape[0], down["w"].shape[1]
    wdn = jnp.transpose(down["w"] * s[:, None, None, None], (0, 2, 3, 1)).reshape(cout, 9 * cin)
    bdn = b.reshape(-1, 1)

    att1 = shared_raw["att1"]
    s1, b1 = _fold(att1["bn"], eps, att1["b"])
    wa1 = att1["w"][:, :, 0, 0] * s1[:, None]
    ba1 = b1.reshape(-1, 1)

    att2 = shared_raw["att2"]
    wa2 = att2["w"][:, :, 0, 0]
    ba2 = att2["b"].reshape(-1, 1)

    return {"kup": jnp.asarray(_bilinear_pad_matrix(hc, wc, hf, wf)),
            "wdn": wdn, "bdn": bdn,
            "wa1": wa1, "ba1": ba1, "wa2": wa2, "ba2": ba2,
            "g4": jnp.asarray(_pad_scatter(hf, wf).T)}


def make_params(key, cfg, scale_shapes):
    c1, c2 = cfg["NUM_FILTERS"]
    u0, u1 = cfg["NUM_UPSAMPLE_FILTERS"]
    assert cfg["LAYER_NUMS"] == [1, 1]
    assert cfg["UPSAMPLE_STRIDES"] == [1, 2]
    assert u0 + u1 == c1                      # required by blocks[0](cat(...))
    assert len(cfg["VOXEL_SIZES"]) == 2

    def conv3x3_raw(k, cin, cout, bias):
        k1, k2, k3 = jax.random.split(k, 3)
        w = 0.1 * jax.random.normal(k1, (cout, cin, 3, 3), jnp.float32)
        b = 0.1 * jax.random.normal(k3, (cout,), jnp.float32) if bias else None
        return {"w": w, "b": b, "bn": _bn_params(k2, cout)}

    def conv1x1_raw(k, cin, cout, with_bn):
        k1, k2, k3 = jax.random.split(k, 3)
        w = 0.1 * jax.random.normal(k1, (cout, cin, 1, 1), jnp.float32)
        b = 0.1 * jax.random.normal(k2, (cout,), jnp.float32)
        return {"w": w, "b": b, "bn": _bn_params(k3, cout) if with_bn else None}

    raw = {"scales": [], "shared": {}}
    kern = {"scales": [], "shared": {}}
    for (h4, w4, h5, w5) in scale_shapes:
        key, kb0a, kb0b, kb1a, kb1b, kd0, kd0bn, kd1, kd1bn = jax.random.split(key, 9)
        raw_s = {
            "block0": [conv3x3_raw(kb0a, c1, c1, False), conv3x3_raw(kb0b, c1, c1, False)],
            "block1": [conv3x3_raw(kb1a, c2, c2, False), conv3x3_raw(kb1b, c2, c2, False)],
            "deblock0": {"w": 0.1 * jax.random.normal(kd0, (c1, u0, 1, 1), jnp.float32),
                         "bn": _bn_params(kd0bn, u0)},
            "deblock1": {"w": 0.1 * jax.random.normal(kd1, (c2, u1, 2, 2), jnp.float32),
                         "bn": _bn_params(kd1bn, u1)},
        }
        raw["scales"].append(raw_s)
        kern["scales"].append(_prep_scale_kernel_params(raw_s, h4, w4, h5, w5))

    key, kdn, ka1, ka2 = jax.random.split(key, 4)
    raw["shared"] = {"down_conv": conv3x3_raw(kdn, c1, c1, True),
                     "att1": conv1x1_raw(ka1, 2 * c1, 2 * c1, True),
                     "att2": conv1x1_raw(ka2, 2 * c1, 2 * c1, False)}
    # fusion: coarse scale (index 1, processed first) -> fine scale (index 0)
    kern["shared"] = _prep_shared_kernel_params(
        raw["shared"], scale_shapes[1][0], scale_shapes[1][1],
        scale_shapes[0][0], scale_shapes[0][1])
    return raw, kern


# ---------------------------------------------------------------------------
# Pure-JAX reference (correctness check only)
# ---------------------------------------------------------------------------

def _ref_bn(x, bn, eps):
    gamma, beta, mean, var = bn
    return ((x - mean[None, :, None, None]) / jnp.sqrt(var[None, :, None, None] + eps)
            * gamma[None, :, None, None] + beta[None, :, None, None])


def _ref_conv3x3(x, layer, eps):
    y = jax.lax.conv_general_dilated(x, layer["w"], (1, 1), ((1, 1), (1, 1)),
                                     dimension_numbers=("NCHW", "OIHW", "NCHW"))
    if layer["b"] is not None:
        y = y + layer["b"][None, :, None, None]
    return jnp.maximum(_ref_bn(y, layer["bn"], eps), 0.0)


def _ref_conv1x1(x, layer, eps, relu):
    y = jnp.einsum("nchw,oc->nohw", x, layer["w"][:, :, 0, 0]) + layer["b"][None, :, None, None]
    if layer["bn"] is not None:
        y = _ref_bn(y, layer["bn"], eps)
    return jnp.maximum(y, 0.0) if relu else y


def _ref_lyt_module(x4, x5, raw_s):
    eps = 1e-3
    d0 = jnp.einsum("nchw,co->nohw", x4, raw_s["deblock0"]["w"][:, :, 0, 0])
    d0 = jnp.maximum(_ref_bn(d0, raw_s["deblock0"]["bn"], eps), 0.0)
    h = x5
    for lay in raw_s["block1"]:
        h = _ref_conv3x3(h, lay, eps)
    wt = raw_s["deblock1"]["w"]                                  # (Cin, U1, 2, 2)
    n, _, hh, ww = h.shape
    y = jnp.einsum("nchw,cokl->nohwkl", h, wt)
    y = y.transpose(0, 1, 2, 4, 3, 5).reshape(n, wt.shape[1], 2 * hh, 2 * ww)
    d1 = jnp.maximum(_ref_bn(y, raw_s["deblock1"]["bn"], eps), 0.0)
    z = jnp.concatenate([d0, d1], axis=1)
    for lay in raw_s["block0"]:
        z = _ref_conv3x3(z, lay, eps)
    return z


def ref_forward(multi_scale_2d_features, raw):
    ids = list(range(len(multi_scale_2d_features)))
    ids.reverse()
    fused = None
    for idx in ids:
        sf = multi_scale_2d_features[idx]
        x = _ref_lyt_module(sf["x_conv4"], sf["x_conv5"], raw["scales"][idx])
        if fused is None:
            fused = x
        else:
            rh = jnp.asarray(_bilinear_1d(fused.shape[2], x.shape[2]))
            rw = jnp.asarray(_bilinear_1d(fused.shape[3], x.shape[3]))
            down0 = jnp.einsum("nchw,Hh,Ww->ncHW", fused, rh, rw)
            down1 = _ref_conv3x3(down0, raw["shared"]["down_conv"], 1e-5)
            comb = jnp.concatenate([x, down1], axis=1)
            a = _ref_conv1x1(comb, raw["shared"]["att1"], 1e-5, relu=True)
            a = _ref_conv1x1(a, raw["shared"]["att2"], 1e-5, relu=False)
            fused = comb * jax.nn.sigmoid(a) + comb
    return fused


# ---------------------------------------------------------------------------
# Main
# ---------------------------------------------------------------------------

if __name__ == "__main__":
    jax.config.update("jax_default_matmul_precision", "highest")

    cfg = {
        "LAYER_NUMS": [1, 1],
        "NUM_FILTERS": [16, 32],
        "UPSAMPLE_STRIDES": [1, 2],
        "NUM_UPSAMPLE_FILTERS": [8, 8],
        "VOXEL_SIZES": [0.1, 0.2],
    }
    n = 2
    # (h4, w4, h5, w5) per scale; h4 = 2*h5 so the two deblock outputs cat cleanly.
    scale_shapes = [(16, 16, 8, 8), (8, 8, 4, 4)]

    key = jax.random.PRNGKey(0)
    key, kp = jax.random.split(key)
    raw_params, kern_params = make_params(kp, cfg, scale_shapes)

    c1, c2 = cfg["NUM_FILTERS"]
    ms_features = []
    for (h4, w4, h5, w5) in scale_shapes:
        key, k4, k5 = jax.random.split(key, 3)
        ms_features.append({
            "x_conv4": jax.random.normal(k4, (n, c1, h4, w4), jnp.float32),
            "x_conv5": jax.random.normal(k5, (n, c2, h5, w5), jnp.float32),
        })

    out = down_atten_forward(ms_features, kern_params)
    out_2d = jax.block_until_ready(out["spatial_features_2d"])
    assert out_2d.shape == (n, 2 * c1, 16, 16), out_2d.shape

    ref = jax.block_until_ready(ref_forward(ms_features, raw_params))
    np.testing.assert_allclose(np.asarray(out_2d), np.asarray(ref),
                               atol=5e-3, rtol=5e-3)
    print("KERNEL_OK")
</pallas_src>

<mosaic_0001>
module attributes {stable_mosaic.version = 11 : i64} {
  func.func @_lyt_module_kernel(%arg0: i32, %arg1: memref<1x16x64xf32, #tpu.memory_space<vmem>>, %arg2: memref<1x32x16xf32, #tpu.memory_space<vmem>>, %arg3: memref<8x16xf32, #tpu.memory_space<vmem>>, %arg4: memref<8x1xf32, #tpu.memory_space<vmem>>, %arg5: memref<32x288xf32, #tpu.memory_space<vmem>>, %arg6: memref<32x1xf32, #tpu.memory_space<vmem>>, %arg7: memref<32x288xf32, #tpu.memory_space<vmem>>, %arg8: memref<32x1xf32, #tpu.memory_space<vmem>>, %arg9: memref<32x32xf32, #tpu.memory_space<vmem>>, %arg10: memref<32x1xf32, #tpu.memory_space<vmem>>, %arg11: memref<16x144xf32, #tpu.memory_space<vmem>>, %arg12: memref<16x1xf32, #tpu.memory_space<vmem>>, %arg13: memref<16x144xf32, #tpu.memory_space<vmem>>, %arg14: memref<16x1xf32, #tpu.memory_space<vmem>>, %arg15: memref<64x100xf32, #tpu.memory_space<vmem>>, %arg16: memref<16x36xf32, #tpu.memory_space<vmem>>, %arg17: memref<144x100xf32, #tpu.memory_space<vmem>>, %arg18: memref<100x64xf32, #tpu.memory_space<vmem>>, %arg19: memref<1x100xf32, #tpu.memory_space<vmem>>, %arg20: memref<1x36xf32, #tpu.memory_space<vmem>>, %arg21: memref<1x16x64xf32, #tpu.memory_space<vmem>>) attributes {dimension_semantics = [#tpu.dimension_semantics<parallel>], iteration_bounds = array<i64: 2>, scalar_prefetch = 0 : i64, scratch_operands = 0 : i64, tpu.core_type = #tpu.core_type<tc>, window_params = [{transform_indices = @transform_0, window_bounds = array<i64: 1, 16, 64>}, {transform_indices = @transform_1, window_bounds = array<i64: 1, 32, 16>}, {pipeline_mode = #tpu.pipeline_mode<synchronous>, transform_indices = @transform_2, window_bounds = array<i64: 8, 16>}, {pipeline_mode = #tpu.pipeline_mode<synchronous>, transform_indices = @transform_3, window_bounds = array<i64: 8, 1>}, {pipeline_mode = #tpu.pipeline_mode<synchronous>, transform_indices = @transform_4, window_bounds = array<i64: 32, 288>}, {pipeline_mode = #tpu.pipeline_mode<synchronous>, transform_indices = @transform_5, window_bounds = array<i64: 32, 1>}, {pipeline_mode = #tpu.pipeline_mode<synchronous>, transform_indices = @transform_6, window_bounds = array<i64: 32, 288>}, {pipeline_mode = #tpu.pipeline_mode<synchronous>, transform_indices = @transform_7, window_bounds = array<i64: 32, 1>}, {pipeline_mode = #tpu.pipeline_mode<synchronous>, transform_indices = @transform_8, window_bounds = array<i64: 32, 32>}, {pipeline_mode = #tpu.pipeline_mode<synchronous>, transform_indices = @transform_9, window_bounds = array<i64: 32, 1>}, {pipeline_mode = #tpu.pipeline_mode<synchronous>, transform_indices = @transform_10, window_bounds = array<i64: 16, 144>}, {pipeline_mode = #tpu.pipeline_mode<synchronous>, transform_indices = @transform_11, window_bounds = array<i64: 16, 1>}, {pipeline_mode = #tpu.pipeline_mode<synchronous>, transform_indices = @transform_12, window_bounds = array<i64: 16, 144>}, {pipeline_mode = #tpu.pipeline_mode<synchronous>, transform_indices = @transform_13, window_bounds = array<i64: 16, 1>}, {pipeline_mode = #tpu.pipeline_mode<synchronous>, transform_indices = @transform_14, window_bounds = array<i64: 64, 100>}, {pipeline_mode = #tpu.pipeline_mode<synchronous>, transform_indices = @transform_15, window_bounds = array<i64: 16, 36>}, {pipeline_mode = #tpu.pipeline_mode<synchronous>, transform_indices = @transform_16, window_bounds = array<i64: 144, 100>}, {pipeline_mode = #tpu.pipeline_mode<synchronous>, transform_indices = @transform_17, window_bounds = array<i64: 100, 64>}, {pipeline_mode = #tpu.pipeline_mode<synchronous>, transform_indices = @transform_18, window_bounds = array<i64: 1, 100>}, {pipeline_mode = #tpu.pipeline_mode<synchronous>, transform_indices = @transform_19, window_bounds = array<i64: 1, 36>}, {transform_indices = @transform_20, window_bounds = array<i64: 1, 16, 64>}]} {
    %c0 = arith.constant 0 : index
    %c0_0 = arith.constant 0 : index
    %c0_1 = arith.constant 0 : index
    %0 = vector.load %arg1[%c0, %c0_0, %c0_1] : memref<1x16x64xf32, #tpu.memory_space<vmem>>, vector<1x16x64xf32>
    %1 = vector.shape_cast %0 : vector<1x16x64xf32> to vector<16x64xf32>
    %c0_2 = arith.constant 0 : index
    %c0_3 = arith.constant 0 : index
    %c0_4 = arith.constant 0 : index
    %2 = vector.load %arg2[%c0_2, %c0_3, %c0_4] : memref<1x32x16xf32, #tpu.memory_space<vmem>>, vector<1x32x16xf32>
    %3 = vector.shape_cast %2 : vector<1x32x16xf32> to vector<32x16xf32>
    %c0_5 = arith.constant 0 : index
    %c0_6 = arith.constant 0 : index
    %4 = vector.load %arg3[%c0_5, %c0_6] : memref<8x16xf32, #tpu.memory_space<vmem>>, vector<8x16xf32>
    %cst = arith.constant dense<0.000000e+00> : vector<8x64xf32>
    %5 = tpu.matmul %4, %1, %cst {dimension_numbers = #tpu.dot_dimension_numbers<[1], [0], [0], [1], [0, 0, 1, 1], [], []>, precision = #tpu.contract_precision<fp32>} : vector<8x16xf32>, vector<16x64xf32>, vector<8x64xf32> -> vector<8x64xf32>
    %c0_7 = arith.constant 0 : index
    %c0_8 = arith.constant 0 : index
    %6 = vector.load %arg4[%c0_7, %c0_8] : memref<8x1xf32, #tpu.memory_space<vmem>>, vector<8x1xf32>
    %7 = vector.broadcast %6 : vector<8x1xf32> to vector<8x64xf32>
    %8 = arith.addf %5, %7 : vector<8x64xf32>
    %cst_9 = arith.constant 0.000000e+00 : f32
    %9 = vector.broadcast %cst_9 : f32 to vector<8x64xf32>
    %10 = arith.maximumf %8, %9 : vector<8x64xf32>
    %c0_10 = arith.constant 0 : index
    %c0_11 = arith.constant 0 : index
    %11 = vector.load %arg15[%c0_10, %c0_11] : memref<64x100xf32, #tpu.memory_space<vmem>>, vector<64x100xf32>
    %cst_12 = arith.constant dense<0.000000e+00> : vector<8x100xf32>
    %12 = tpu.matmul %10, %11, %cst_12 {dimension_numbers = #tpu.dot_dimension_numbers<[1], [0], [0], [1], [0, 0, 1, 1], [], []>, precision = #tpu.contract_precision<fp32>} : vector<8x64xf32>, vector<64x100xf32>, vector<8x100xf32> -> vector<8x100xf32>
    %c0_13 = arith.constant 0 : index
    %c0_14 = arith.constant 0 : index
    %13 = vector.load %arg16[%c0_13, %c0_14] : memref<16x36xf32, #tpu.memory_space<vmem>>, vector<16x36xf32>
    %cst_15 = arith.constant dense<0.000000e+00> : vector<32x36xf32>
    %14 = tpu.matmul %3, %13, %cst_15 {dimension_numbers = #tpu.dot_dimension_numbers<[1], [0], [0], [1], [0, 0, 1, 1], [], []>, precision = #tpu.contract_precision<fp32>} : vector<32x16xf32>, vector<16x36xf32>, vector<32x36xf32> -> vector<32x36xf32>
    %c0_16 = arith.constant 0 : index
    %c0_17 = arith.constant 0 : index
    %15 = vector.load %arg5[%c0_16, %c0_17] : memref<32x288xf32, #tpu.memory_space<vmem>>, vector<32x288xf32>
    %c0_18 = arith.constant 0 : index
    %c0_19 = arith.constant 0 : index
    %16 = vector.load %arg6[%c0_18, %c0_19] : memref<32x1xf32, #tpu.memory_space<vmem>>, vector<32x1xf32>
    %c0_20 = arith.constant 0 : index
    %c0_21 = arith.constant 0 : index
    %17 = vector.load %arg20[%c0_20, %c0_21] : memref<1x36xf32, #tpu.memory_space<vmem>>, vector<1x36xf32>
    %18 = vector.extract_strided_slice %14 {offsets = [0, 29], sizes = [32, 7], strides = [1, 1]} : vector<32x36xf32> to vector<32x7xf32>
    %19 = vector.extract_strided_slice %14 {offsets = [0, 0], sizes = [32, 29], strides = [1, 1]} : vector<32x36xf32> to vector<32x29xf32>
    %20 = tpu.concatenate %18, %19 in 1 : vector<32x7xf32>, vector<32x29xf32> -> vector<32x36xf32>
    %21 = vector.extract_strided_slice %14 {offsets = [0, 30], sizes = [32, 6], strides = [1, 1]} : vector<32x36xf32> to vector<32x6xf32>
    %22 = vector.extract_strided_slice %14 {offsets = [0, 0], sizes = [32, 30], strides = [1, 1]} : vector<32x36xf32> to vector<32x30xf32>
    %23 = tpu.concatenate %21, %22 in 1 : vector<32x6xf32>, vector<32x30xf32> -> vector<32x36xf32>
    %24 = vector.extract_strided_slice %14 {offsets = [0, 31], sizes = [32, 5], strides = [1, 1]} : vector<32x36xf32> to vector<32x5xf32>
    %25 = vector.extract_strided_slice %14 {offsets = [0, 0], sizes = [32, 31], strides = [1, 1]} : vector<32x36xf32> to vector<32x31xf32>
    %26 = tpu.concatenate %24, %25 in 1 : vector<32x5xf32>, vector<32x31xf32> -> vector<32x36xf32>
    %27 = vector.extract_strided_slice %14 {offsets = [0, 35], sizes = [32, 1], strides = [1, 1]} : vector<32x36xf32> to vector<32x1xf32>
    %28 = vector.extract_strided_slice %14 {offsets = [0, 0], sizes = [32, 35], strides = [1, 1]} : vector<32x36xf32> to vector<32x35xf32>
    %29 = tpu.concatenate %27, %28 in 1 : vector<32x1xf32>, vector<32x35xf32> -> vector<32x36xf32>
    %30 = vector.extract_strided_slice %14 {offsets = [0, 1], sizes = [32, 35], strides = [1, 1]} : vector<32x36xf32> to vector<32x35xf32>
    %31 = vector.extract_strided_slice %14 {offsets = [0, 0], sizes = [32, 1], strides = [1, 1]} : vector<32x36xf32> to vector<32x1xf32>
    %32 = tpu.concatenate %30, %31 in 1 : vector<32x35xf32>, vector<32x1xf32> -> vector<32x36xf32>
    %33 = vector.extract_strided_slice %14 {offsets = [0, 5], sizes = [32, 31], strides = [1, 1]} : vector<32x36xf32> to vector<32x31xf32>
    %34 = vector.extract_strided_slice %14 {offsets = [0, 0], sizes = [32, 5], strides = [1, 1]} : vector<32x36xf32> to vector<32x5xf32>
    %35 = tpu.concatenate %33, %34 in 1 : vector<32x31xf32>, vector<32x5xf32> -> vector<32x36xf32>
    %36 = vector.extract_strided_slice %14 {offsets = [0, 6], sizes = [32, 30], strides = [1, 1]} : vector<32x36xf32> to vector<32x30xf32>
    %37 = vector.extract_strided_slice %14 {offsets = [0, 0], sizes = [32, 6], strides = [1, 1]} : vector<32x36xf32> to vector<32x6xf32>
    %38 = tpu.concatenate %36, %37 in 1 : vector<32x30xf32>, vector<32x6xf32> -> vector<32x36xf32>
    %39 = vector.extract_strided_slice %14 {offsets = [0, 7], sizes = [32, 29], strides = [1, 1]} : vector<32x36xf32> to vector<32x29xf32>
    %40 = vector.extract_strided_slice %14 {offsets = [0, 0], sizes = [32, 7], strides = [1, 1]} : vector<32x36xf32> to vector<32x7xf32>
    %41 = tpu.concatenate %39, %40 in 1 : vector<32x29xf32>, vector<32x7xf32> -> vector<32x36xf32>
    %42 = tpu.concatenate %20, %23, %26, %29, %14, %32, %35, %38, %41 in 0 : vector<32x36xf32>, vector<32x36xf32>, vector<32x36xf32>, vector<32x36xf32>, vector<32x36xf32>, vector<32x36xf32>, vector<32x36xf32>, vector<32x36xf32>, vector<32x36xf32> -> vector<288x36xf32>
    %cst_22 = arith.constant dense<0.000000e+00> : vector<32x36xf32>
    %43 = tpu.matmul %15, %42, %cst_22 {dimension_numbers = #tpu.dot_dimension_numbers<[1], [0], [0], [1], [0, 0, 1, 1], [], []>, precision = #tpu.contract_precision<fp32>} : vector<32x288xf32>, vector<288x36xf32>, vector<32x36xf32> -> vector<32x36xf32>
    %44 = vector.broadcast %16 : vector<32x1xf32> to vector<32x36xf32>
    %45 = arith.addf %43, %44 : vector<32x36xf32>
    %cst_23 = arith.constant 0.000000e+00 : f32
    %46 = vector.broadcast %cst_23 : f32 to vector<32x36xf32>
    %47 = arith.maximumf %45, %46 : vector<32x36xf32>
    %48 = vector.broadcast %17 : vector<1x36xf32> to vector<32x36xf32>
    %49 = arith.mulf %47, %48 : vector<32x36xf32>
    %c0_24 = arith.constant 0 : index
    %c0_25 = arith.constant 0 : index
    %50 = vector.load %arg7[%c0_24, %c0_25] : memref<32x288xf32, #tpu.memory_space<vmem>>, vector<32x288xf32>
    %c0_26 = arith.constant 0 : index
    %c0_27 = arith.constant 0 : index
    %51 = vector.load %arg8[%c0_26, %c0_27] : memref<32x1xf32, #tpu.memory_space<vmem>>, vector<32x1xf32>
    %52 = vector.extract_strided_slice %49 {offsets = [0, 29], sizes = [32, 7], strides = [1, 1]} : vector<32x36xf32> to vector<32x7xf32>
    %53 = vector.extract_strided_slice %49 {offsets = [0, 0], sizes = [32, 29], strides = [1, 1]} : vector<32x36xf32> to vector<32x29xf32>
    %54 = tpu.concatenate %52, %53 in 1 : vector<32x7xf32>, vector<32x29xf32> -> vector<32x36xf32>
    %55 = vector.extract_strided_slice %49 {offsets = [0, 30], sizes = [32, 6], strides = [1, 1]} : vector<32x36xf32> to vector<32x6xf32>
    %56 = vector.extract_strided_slice %49 {offsets = [0, 0], sizes = [32, 30], strides = [1, 1]} : vector<32x36xf32> to vector<32x30xf32>
    %57 = tpu.concatenate %55, %56 in 1 : vector<32x6xf32>, vector<32x30xf32> -> vector<32x36xf32>
    %58 = vector.extract_strided_slice %49 {offsets = [0, 31], sizes = [32, 5], strides = [1, 1]} : vector<32x36xf32> to vector<32x5xf32>
    %59 = vector.extract_strided_slice %49 {offsets = [0, 0], sizes = [32, 31], strides = [1, 1]} : vector<32x36xf32> to vector<32x31xf32>
    %60 = tpu.concatenate %58, %59 in 1 : vector<32x5xf32>, vector<32x31xf32> -> vector<32x36xf32>
    %61 = vector.extract_strided_slice %49 {offsets = [0, 35], sizes = [32, 1], strides = [1, 1]} : vector<32x36xf32> to vector<32x1xf32>
    %62 = vector.extract_strided_slice %49 {offsets = [0, 0], sizes = [32, 35], strides = [1, 1]} : vector<32x36xf32> to vector<32x35xf32>
    %63 = tpu.concatenate %61, %62 in 1 : vector<32x1xf32>, vector<32x35xf32> -> vector<32x36xf32>
    %64 = vector.extract_strided_slice %49 {offsets = [0, 1], sizes = [32, 35], strides = [1, 1]} : vector<32x36xf32> to vector<32x35xf32>
    %65 = vector.extract_strided_slice %49 {offsets = [0, 0], sizes = [32, 1], strides = [1, 1]} : vector<32x36xf32> to vector<32x1xf32>
    %66 = tpu.concatenate %64, %65 in 1 : vector<32x35xf32>, vector<32x1xf32> -> vector<32x36xf32>
    %67 = vector.extract_strided_slice %49 {offsets = [0, 5], sizes = [32, 31], strides = [1, 1]} : vector<32x36xf32> to vector<32x31xf32>
    %68 = vector.extract_strided_slice %49 {offsets = [0, 0], sizes = [32, 5], strides = [1, 1]} : vector<32x36xf32> to vector<32x5xf32>
    %69 = tpu.concatenate %67, %68 in 1 : vector<32x31xf32>, vector<32x5xf32> -> vector<32x36xf32>
    %70 = vector.extract_strided_slice %49 {offsets = [0, 6], sizes = [32, 30], strides = [1, 1]} : vector<32x36xf32> to vector<32x30xf32>
    %71 = vector.extract_strided_slice %49 {offsets = [0, 0], sizes = [32, 6], strides = [1, 1]} : vector<32x36xf32> to vector<32x6xf32>
    %72 = tpu.concatenate %70, %71 in 1 : vector<32x30xf32>, vector<32x6xf32> -> vector<32x36xf32>
    %73 = vector.extract_strided_slice %49 {offsets = [0, 7], sizes = [32, 29], strides = [1, 1]} : vector<32x36xf32> to vector<32x29xf32>
    %74 = vector.extract_strided_slice %49 {offsets = [0, 0], sizes = [32, 7], strides = [1, 1]} : vector<32x36xf32> to vector<32x7xf32>
    %75 = tpu.concatenate %73, %74 in 1 : vector<32x29xf32>, vector<32x7xf32> -> vector<32x36xf32>
    %76 = tpu.concatenate %54, %57, %60, %63, %49, %66, %69, %72, %75 in 0 : vector<32x36xf32>, vector<32x36xf32>, vector<32x36xf32>, vector<32x36xf32>, vector<32x36xf32>, vector<32x36xf32>, vector<32x36xf32>, vector<32x36xf32>, vector<32x36xf32> -> vector<288x36xf32>
    %cst_28 = arith.constant dense<0.000000e+00> : vector<32x36xf32>
    %77 = tpu.matmul %50, %76, %cst_28 {dimension_numbers = #tpu.dot_dimension_numbers<[1], [0], [0], [1], [0, 0, 1, 1], [], []>, precision = #tpu.contract_precision<fp32>} : vector<32x288xf32>, vector<288x36xf32>, vector<32x36xf32> -> vector<32x36xf32>
    %78 = vector.broadcast %51 : vector<32x1xf32> to vector<32x36xf32>
    %79 = arith.addf %77, %78 : vector<32x36xf32>
    %cst_29 = arith.constant 0.000000e+00 : f32
    %80 = vector.broadcast %cst_29 : f32 to vector<32x36xf32>
    %81 = arith.maximumf %79, %80 : vector<32x36xf32>
    %c0_30 = arith.constant 0 : index
    %c0_31 = arith.constant 0 : index
    %82 = vector.load %arg9[%c0_30, %c0_31] : memref<32x32xf32, #tpu.memory_space<vmem>>, vector<32x32xf32>
    %cst_32 = arith.constant dense<0.000000e+00> : vector<32x36xf32>
    %83 = tpu.matmul %82, %81, %cst_32 {dimension_numbers = #tpu.dot_dimension_numbers<[1], [0], [0], [1], [0, 0, 1, 1], [], []>, precision = #tpu.contract_precision<fp32>} : vector<32x32xf32>, vector<32x36xf32>, vector<32x36xf32> -> vector<32x36xf32>
    %c0_33 = arith.constant 0 : index
    %c0_34 = arith.constant 0 : index
    %84 = vector.load %arg10[%c0_33, %c0_34] : memref<32x1xf32, #tpu.memory_space<vmem>>, vector<32x1xf32>
    %85 = vector.broadcast %84 : vector<32x1xf32> to vector<32x36xf32>
    %86 = arith.addf %83, %85 : vector<32x36xf32>
    %cst_35 = arith.constant 0.000000e+00 : f32
    %87 = vector.broadcast %cst_35 : f32 to vector<32x36xf32>
    %88 = arith.maximumf %86, %87 : vector<32x36xf32>
    %89 = vector.extract_strided_slice %88 {offsets = [0, 0], sizes = [8, 36], strides = [1, 1]} : vector<32x36xf32> to vector<8x36xf32>
    %90 = vector.extract_strided_slice %88 {offsets = [8, 0], sizes = [8, 36], strides = [1, 1]} : vector<32x36xf32> to vector<8x36xf32>
    %91 = vector.extract_strided_slice %88 {offsets = [16, 0], sizes = [8, 36], strides = [1, 1]} : vector<32x36xf32> to vector<8x36xf32>
    %92 = vector.extract_strided_slice %88 {offsets = [24, 0], sizes = [8, 36], strides = [1, 1]} : vector<32x36xf32> to vector<8x36xf32>
    %93 = tpu.concatenate %89, %90, %91, %92 in 1 : vector<8x36xf32>, vector<8x36xf32>, vector<8x36xf32>, vector<8x36xf32> -> vector<8x144xf32>
    %c0_36 = arith.constant 0 : index
    %c0_37 = arith.constant 0 : index
    %94 = vector.load %arg17[%c0_36, %c0_37] : memref<144x100xf32, #tpu.memory_space<vmem>>, vector<144x100xf32>
    %cst_38 = arith.constant dense<0.000000e+00> : vector<8x100xf32>
    %95 = tpu.matmul %93, %94, %cst_38 {dimension_numbers = #tpu.dot_dimension_numbers<[1], [0], [0], [1], [0, 0, 1, 1], [], []>, precision = #tpu.contract_precision<fp32>} : vector<8x144xf32>, vector<144x100xf32>, vector<8x100xf32> -> vector<8x100xf32>
    %96 = tpu.concatenate %12, %95 in 0 : vector<8x100xf32>, vector<8x100xf32> -> vector<16x100xf32>
    %c0_39 = arith.constant 0 : index
    %c0_40 = arith.constant 0 : index
    %97 = vector.load %arg11[%c0_39, %c0_40] : memref<16x144xf32, #tpu.memory_space<vmem>>, vector<16x144xf32>
    %c0_41 = arith.constant 0 : index
    %c0_42 = arith.constant 0 : index
    %98 = vector.load %arg12[%c0_41, %c0_42] : memref<16x1xf32, #tpu.memory_space<vmem>>, vector<16x1xf32>
    %c0_43 = arith.constant 0 : index
    %c0_44 = arith.constant 0 : index
    %99 = vector.load %arg19[%c0_43, %c0_44] : memref<1x100xf32, #tpu.memory_space<vmem>>, vector<1x100xf32>
    %100 = vector.extract_strided_slice %96 {offsets = [0, 89], sizes = [16, 11], strides = [1, 1]} : vector<16x100xf32> to vector<16x11xf32>
    %101 = vector.extract_strided_slice %96 {offsets = [0, 0], sizes = [16, 89], strides = [1, 1]} : vector<16x100xf32> to vector<16x89xf32>
    %102 = tpu.concatenate %100, %101 in 1 : vector<16x11xf32>, vector<16x89xf32> -> vector<16x100xf32>
    %103 = vector.extract_strided_slice %96 {offsets = [0, 90], sizes = [16, 10], strides = [1, 1]} : vector<16x100xf32> to vector<16x10xf32>
    %104 = vector.extract_strided_slice %96 {offsets = [0, 0], sizes = [16, 90], strides = [1, 1]} : vector<16x100xf32> to vector<16x90xf32>
    %105 = tpu.concatenate %103, %104 in 1 : vector<16x10xf32>, vector<16x90xf32> -> vector<16x100xf32>
    %106 = vector.extract_strided_slice %96 {offsets = [0, 91], sizes = [16, 9], strides = [1, 1]} : vector<16x100xf32> to vector<16x9xf32>
    %107 = vector.extract_strided_slice %96 {offsets = [0, 0], sizes = [16, 91], strides = [1, 1]} : vector<16x100xf32> to vector<16x91xf32>
    %108 = tpu.concatenate %106, %107 in 1 : vector<16x9xf32>, vector<16x91xf32> -> vector<16x100xf32>
    %109 = vector.extract_strided_slice %96 {offsets = [0, 99], sizes = [16, 1], strides = [1, 1]} : vector<16x100xf32> to vector<16x1xf32>
    %110 = vector.extract_strided_slice %96 {offsets = [0, 0], sizes = [16, 99], strides = [1, 1]} : vector<16x100xf32> to vector<16x99xf32>
    %111 = tpu.concatenate %109, %110 in 1 : vector<16x1xf32>, vector<16x99xf32> -> vector<16x100xf32>
    %112 = vector.extract_strided_slice %96 {offsets = [0, 1], sizes = [16, 99], strides = [1, 1]} : vector<16x100xf32> to vector<16x99xf32>
    %113 = vector.extract_strided_slice %96 {offsets = [0, 0], sizes = [16, 1], strides = [1, 1]} : vector<16x100xf32> to vector<16x1xf32>
    %114 = tpu.concatenate %112, %113 in 1 : vector<16x99xf32>, vector<16x1xf32> -> vector<16x100xf32>
    %115 = vector.extract_strided_slice %96 {offsets = [0, 9], sizes = [16, 91], strides = [1, 1]} : vector<16x100xf32> to vector<16x91xf32>
    %116 = vector.extract_strided_slice %96 {offsets = [0, 0], sizes = [16, 9], strides = [1, 1]} : vector<16x100xf32> to vector<16x9xf32>
    %117 = tpu.concatenate %115, %116 in 1 : vector<16x91xf32>, vector<16x9xf32> -> vector<16x100xf32>
    %118 = vector.extract_strided_slice %96 {offsets = [0, 10], sizes = [16, 90], strides = [1, 1]} : vector<16x100xf32> to vector<16x90xf32>
    %119 = vector.extract_strided_slice %96 {offsets = [0, 0], sizes = [16, 10], strides = [1, 1]} : vector<16x100xf32> to vector<16x10xf32>
    %120 = tpu.concatenate %118, %119 in 1 : vector<16x90xf32>, vector<16x10xf32> -> vector<16x100xf32>
    %121 = vector.extract_strided_slice %96 {offsets = [0, 11], sizes = [16, 89], strides = [1, 1]} : vector<16x100xf32> to vector<16x89xf32>
    %122 = vector.extract_strided_slice %96 {offsets = [0, 0], sizes = [16, 11], strides = [1, 1]} : vector<16x100xf32> to vector<16x11xf32>
    %123 = tpu.concatenate %121, %122 in 1 : vector<16x89xf32>, vector<16x11xf32> -> vector<16x100xf32>
    %124 = tpu.concatenate %102, %105, %108, %111, %96, %114, %117, %120, %123 in 0 : vector<16x100xf32>, vector<16x100xf32>, vector<16x100xf32>, vector<16x100xf32>, vector<16x100xf32>, vector<16x100xf32>, vector<16x100xf32>, vector<16x100xf32>, vector<16x100xf32> -> vector<144x100xf32>
    %cst_45 = arith.constant dense<0.000000e+00> : vector<16x100xf32>
    %125 = tpu.matmul %97, %124, %cst_45 {dimension_numbers = #tpu.dot_dimension_numbers<[1], [0], [0], [1], [0, 0, 1, 1], [], []>, precision = #tpu.contract_precision<fp32>} : vector<16x144xf32>, vector<144x100xf32>, vector<16x100xf32> -> vector<16x100xf32>
    %126 = vector.broadcast %98 : vector<16x1xf32> to vector<16x100xf32>
    %127 = arith.addf %125, %126 : vector<16x100xf32>
    %cst_46 = arith.constant 0.000000e+00 : f32
    %128 = vector.broadcast %cst_46 : f32 to vector<16x100xf32>
    %129 = arith.maximumf %127, %128 : vector<16x100xf32>
    %130 = vector.broadcast %99 : vector<1x100xf32> to vector<16x100xf32>
    %131 = arith.mulf %129, %130 : vector<16x100xf32>
    %c0_47 = arith.constant 0 : index
    %c0_48 = arith.constant 0 : index
    %132 = vector.load %arg13[%c0_47, %c0_48] : memref<16x144xf32, #tpu.memory_space<vmem>>, vector<16x144xf32>
    %c0_49 = arith.constant 0 : index
    %c0_50 = arith.constant 0 : index
    %133 = vector.load %arg14[%c0_49, %c0_50] : memref<16x1xf32, #tpu.memory_space<vmem>>, vector<16x1xf32>
    %134 = vector.extract_strided_slice %131 {offsets = [0, 89], sizes = [16, 11], strides = [1, 1]} : vector<16x100xf32> to vector<16x11xf32>
    %135 = vector.extract_strided_slice %131 {offsets = [0, 0], sizes = [16, 89], strides = [1, 1]} : vector<16x100xf32> to vector<16x89xf32>
    %136 = tpu.concatenate %134, %135 in 1 : vector<16x11xf32>, vector<16x89xf32> -> vector<16x100xf32>
    %137 = vector.extract_strided_slice %131 {offsets = [0, 90], sizes = [16, 10], strides = [1, 1]} : vector<16x100xf32> to vector<16x10xf32>
    %138 = vector.extract_strided_slice %131 {offsets = [0, 0], sizes = [16, 90], strides = [1, 1]} : vector<16x100xf32> to vector<16x90xf32>
    %139 = tpu.concatenate %137, %138 in 1 : vector<16x10xf32>, vector<16x90xf32> -> vector<16x100xf32>
    %140 = vector.extract_strided_slice %131 {offsets = [0, 91], sizes = [16, 9], strides = [1, 1]} : vector<16x100xf32> to vector<16x9xf32>
    %141 = vector.extract_strided_slice %131 {offsets = [0, 0], sizes = [16, 91], strides = [1, 1]} : vector<16x100xf32> to vector<16x91xf32>
    %142 = tpu.concatenate %140, %141 in 1 : vector<16x9xf32>, vector<16x91xf32> -> vector<16x100xf32>
    %143 = vector.extract_strided_slice %131 {offsets = [0, 99], sizes = [16, 1], strides = [1, 1]} : vector<16x100xf32> to vector<16x1xf32>
    %144 = vector.extract_strided_slice %131 {offsets = [0, 0], sizes = [16, 99], strides = [1, 1]} : vector<16x100xf32> to vector<16x99xf32>
    %145 = tpu.concatenate %143, %144 in 1 : vector<16x1xf32>, vector<16x99xf32> -> vector<16x100xf32>
    %146 = vector.extract_strided_slice %131 {offsets = [0, 1], sizes = [16, 99], strides = [1, 1]} : vector<16x100xf32> to vector<16x99xf32>
    %147 = vector.extract_strided_slice %131 {offsets = [0, 0], sizes = [16, 1], strides = [1, 1]} : vector<16x100xf32> to vector<16x1xf32>
    %148 = tpu.concatenate %146, %147 in 1 : vector<16x99xf32>, vector<16x1xf32> -> vector<16x100xf32>
    %149 = vector.extract_strided_slice %131 {offsets = [0, 9], sizes = [16, 91], strides = [1, 1]} : vector<16x100xf32> to vector<16x91xf32>
    %150 = vector.extract_strided_slice %131 {offsets = [0, 0], sizes = [16, 9], strides = [1, 1]} : vector<16x100xf32> to vector<16x9xf32>
    %151 = tpu.concatenate %149, %150 in 1 : vector<16x91xf32>, vector<16x9xf32> -> vector<16x100xf32>
    %152 = vector.extract_strided_slice %131 {offsets = [0, 10], sizes = [16, 90], strides = [1, 1]} : vector<16x100xf32> to vector<16x90xf32>
    %153 = vector.extract_strided_slice %131 {offsets = [0, 0], sizes = [16, 10], strides = [1, 1]} : vector<16x100xf32> to vector<16x10xf32>
    %154 = tpu.concatenate %152, %153 in 1 : vector<16x90xf32>, vector<16x10xf32> -> vector<16x100xf32>
    %155 = vector.extract_strided_slice %131 {offsets = [0, 11], sizes = [16, 89], strides = [1, 1]} : vector<16x100xf32> to vector<16x89xf32>
    %156 = vector.extract_strided_slice %131 {offsets = [0, 0], sizes = [16, 11], strides = [1, 1]} : vector<16x100xf32> to vector<16x11xf32>
    %157 = tpu.concatenate %155, %156 in 1 : vector<16x89xf32>, vector<16x11xf32> -> vector<16x100xf32>
    %158 = tpu.concatenate %136, %139, %142, %145, %131, %148, %151, %154, %157 in 0 : vector<16x100xf32>, vector<16x100xf32>, vector<16x100xf32>, vector<16x100xf32>, vector<16x100xf32>, vector<16x100xf32>, vector<16x100xf32>, vector<16x100xf32>, vector<16x100xf32> -> vector<144x100xf32>
    %cst_51 = arith.constant dense<0.000000e+00> : vector<16x100xf32>
    %159 = tpu.matmul %132, %158, %cst_51 {dimension_numbers = #tpu.dot_dimension_numbers<[1], [0], [0], [1], [0, 0, 1, 1], [], []>, precision = #tpu.contract_precision<fp32>} : vector<16x144xf32>, vector<144x100xf32>, vector<16x100xf32> -> vector<16x100xf32>
    %160 = vector.broadcast %133 : vector<16x1xf32> to vector<16x100xf32>
    %161 = arith.addf %159, %160 : vector<16x100xf32>
    %cst_52 = arith.constant 0.000000e+00 : f32
    %162 = vector.broadcast %cst_52 : f32 to vector<16x100xf32>
    %163 = arith.maximumf %161, %162 : vector<16x100xf32>
    %c0_53 = arith.constant 0 : index
    %c0_54 = arith.constant 0 : index
    %164 = vector.load %arg18[%c0_53, %c0_54] : memref<100x64xf32, #tpu.memory_space<vmem>>, vector<100x64xf32>
    %cst_55 = arith.constant dense<0.000000e+00> : vector<16x64xf32>
    %165 = tpu.matmul %163, %164, %cst_55 {dimension_numbers = #tpu.dot_dimension_numbers<[1], [0], [0], [1], [0, 0, 1, 1], [], []>, precision = #tpu.contract_precision<fp32>} : vector<16x100xf32>, vector<100x64xf32>, vector<16x64xf32> -> vector<16x64xf32>
    %c0_56 = arith.constant 0 : index
    %c0_57 = arith.constant 0 : index
    %c0_58 = arith.constant 0 : index
    %166 = vector.load %arg21[%c0_56, %c0_57, %c0_58] : memref<1x16x64xf32, #tpu.memory_space<vmem>>, vector<1x16x64xf32>
    %167 = vector.shape_cast %166 : vector<1x16x64xf32> to vector<16x64xf32>
    %168 = vector.shape_cast %165 : vector<16x64xf32> to vector<1x16x64xf32>
    tpu.vector_store %arg21[%c0_56, %c0_57, %c0_58], %168 {strides = array<i32>} : memref<1x16x64xf32, #tpu.memory_space<vmem>>, vector<1x16x64xf32>,
    return
  }
  func.func @transform_0(%arg0: i32) -> (i32, i32, i32) {
    %c0_i32 = arith.constant 0 : i32
    %c0_i32_0 = arith.constant 0 : i32
    %c0_i32_1 = arith.constant 0 : i32
    return %arg0, %c0_i32, %c0_i32_0 : i32, i32, i32
  }
  func.func @transform_1(%arg0: i32) -> (i32, i32, i32) {
    %c0_i32 = arith.constant 0 : i32
    %c0_i32_0 = arith.constant 0 : i32
    %c0_i32_1 = arith.constant 0 : i32
    return %arg0, %c0_i32, %c0_i32_0 : i32, i32, i32
  }
  func.func @transform_2(%arg0: i32) -> (i32, i32) {
    %c0_i32 = arith.constant 0 : i32
    %c0_i32_0 = arith.constant 0 : i32
    %c0_i32_1 = arith.constant 0 : i32
    return %c0_i32, %c0_i32_0 : i32, i32
  }
  func.func @transform_3(%arg0: i32) -> (i32, i32) {
    %c0_i32 = arith.constant 0 : i32
    %c0_i32_0 = arith.constant 0 : i32
    %c0_i32_1 = arith.constant 0 : i32
    return %c0_i32, %c0_i32_0 : i32, i32
  }
  func.func @transform_4(%arg0: i32) -> (i32, i32) {
    %c0_i32 = arith.constant 0 : i32
    %c0_i32_0 = arith.constant 0 : i32
    %c0_i32_1 = arith.constant 0 : i32
    return %c0_i32, %c0_i32_0 : i32, i32
  }
  func.func @transform_5(%arg0: i32) -> (i32, i32) {
    %c0_i32 = arith.constant 0 : i32
    %c0_i32_0 = arith.constant 0 : i32
    %c0_i32_1 = arith.constant 0 : i32
    return %c0_i32, %c0_i32_0 : i32, i32
  }
  func.func @transform_6(%arg0: i32) -> (i32, i32) {
    %c0_i32 = arith.constant 0 : i32
    %c0_i32_0 = arith.constant 0 : i32
    %c0_i32_1 = arith.constant 0 : i32
    return %c0_i32, %c0_i32_0 : i32, i32
  }
  func.func @transform_7(%arg0: i32) -> (i32, i32) {
    %c0_i32 = arith.constant 0 : i32
    %c0_i32_0 = arith.constant 0 : i32
    %c0_i32_1 = arith.constant 0 : i32
    return %c0_i32, %c0_i32_0 : i32, i32
  }
  func.func @transform_8(%arg0: i32) -> (i32, i32) {
    %c0_i32 = arith.constant 0 : i32
    %c0_i32_0 = arith.constant 0 : i32
    %c0_i32_1 = arith.constant 0 : i32
    return %c0_i32, %c0_i32_0 : i32, i32
  }
  func.func @transform_9(%arg0: i32) -> (i32, i32) {
    %c0_i32 = arith.constant 0 : i32
    %c0_i32_0 = arith.constant 0 : i32
    %c0_i32_1 = arith.constant 0 : i32
    return %c0_i32, %c0_i32_0 : i32, i32
  }
  func.func @transform_10(%arg0: i32) -> (i32, i32) {
    %c0_i32 = arith.constant 0 : i32
    %c0_i32_0 = arith.constant 0 : i32
    %c0_i32_1 = arith.constant 0 : i32
    return %c0_i32, %c0_i32_0 : i32, i32
  }
  func.func @transform_11(%arg0: i32) -> (i32, i32) {
    %c0_i32 = arith.constant 0 : i32
    %c0_i32_0 = arith.constant 0 : i32
    %c0_i32_1 = arith.constant 0 : i32
    return %c0_i32, %c0_i32_0 : i32, i32
  }
  func.func @transform_12(%arg0: i32) -> (i32, i32) {
    %c0_i32 = arith.constant 0 : i32
    %c0_i32_0 = arith.constant 0 : i32
    %c0_i32_1 = arith.constant 0 : i32
    return %c0_i32, %c0_i32_0 : i32, i32
  }
  func.func @transform_13(%arg0: i32) -> (i32, i32) {
    %c0_i32 = arith.constant 0 : i32
    %c0_i32_0 = arith.constant 0 : i32
    %c0_i32_1 = arith.constant 0 : i32
    return %c0_i32, %c0_i32_0 : i32, i32
  }
  func.func @transform_14(%arg0: i32) -> (i32, i32) {
    %c0_i32 = arith.constant 0 : i32
    %c0_i32_0 = arith.constant 0 : i32
    %c0_i32_1 = arith.constant 0 : i32
    return %c0_i32, %c0_i32_0 : i32, i32
  }
  func.func @transform_15(%arg0: i32) -> (i32, i32) {
    %c0_i32 = arith.constant 0 : i32
    %c0_i32_0 = arith.constant 0 : i32
    %c0_i32_1 = arith.constant 0 : i32
    return %c0_i32, %c0_i32_0 : i32, i32
  }
  func.func @transform_16(%arg0: i32) -> (i32, i32) {
    %c0_i32 = arith.constant 0 : i32
    %c0_i32_0 = arith.constant 0 : i32
    %c0_i32_1 = arith.constant 0 : i32
    return %c0_i32, %c0_i32_0 : i32, i32
  }
  func.func @transform_17(%arg0: i32) -> (i32, i32) {
    %c0_i32 = arith.constant 0 : i32
    %c0_i32_0 = arith.constant 0 : i32
    %c0_i32_1 = arith.constant 0 : i32
    return %c0_i32, %c0_i32_0 : i32, i32
  }
  func.func @transform_18(%arg0: i32) -> (i32, i32) {
    %c0_i32 = arith.constant 0 : i32
    %c0_i32_0 = arith.constant 0 : i32
    %c0_i32_1 = arith.constant 0 : i32
    return %c0_i32, %c0_i32_0 : i32, i32
  }
  func.func @transform_19(%arg0: i32) -> (i32, i32) {
    %c0_i32 = arith.constant 0 : i32
    %c0_i32_0 = arith.constant 0 : i32
    %c0_i32_1 = arith.constant 0 : i32
    return %c0_i32, %c0_i32_0 : i32, i32
  }
  func.func @transform_20(%arg0: i32) -> (i32, i32, i32) {
    %c0_i32 = arith.constant 0 : i32
    %c0_i32_0 = arith.constant 0 : i32
    %c0_i32_1 = arith.constant 0 : i32
    return %arg0, %c0_i32, %c0_i32_0 : i32, i32, i32
  }
}

</mosaic_0001>

<llo_original>
// kernel: tpu_custom_call.1
$region0: #{tpu_custom_call.1}
  #allocation0 [shape = 'u32[]', space=smem, size = 0x4, offset = 0x4, fixed_abs, tag = 'smem constant byte address 0x4 - core index']
  #allocation1 [shape = 'u32[144,128]{1,0:T(1,128)}', space=vmem, size = 0x12000, scoped, tag = 'internal scratch']
  %s0 = inlined_call_operand.hbm [shape: f32[2,16,64], index: 0, kind: input, shape index: {}]
  %s1 = inlined_call_operand.vmem [shape: f32[2,32,16], index: 1, kind: input, shape index: {}]
  %s2 = inlined_call_operand.hbm [shape: f32[8,16], index: 2, kind: input, shape index: {}]
  %s3 = inlined_call_operand.vmem [shape: f32[8,1], index: 3, kind: input, shape index: {}]
  %s4 = inlined_call_operand.vmem [shape: f32[32,288], index: 4, kind: input, shape index: {}]
  %s5 = inlined_call_operand.vmem [shape: f32[32,1], index: 5, kind: input, shape index: {}]
  %s6 = inlined_call_operand.vmem [shape: f32[32,288], index: 6, kind: input, shape index: {}]
  %s7 = inlined_call_operand.vmem [shape: f32[32,1], index: 7, kind: input, shape index: {}]
  %s8 = inlined_call_operand.hbm [shape: f32[32,32], index: 8, kind: input, shape index: {}]
  %s9 = inlined_call_operand.vmem [shape: f32[32,1], index: 9, kind: input, shape index: {}]
  %s10 = inlined_call_operand.hbm [shape: f32[16,144], index: 10, kind: input, shape index: {}]
  %s11 = inlined_call_operand.vmem [shape: f32[16,1], index: 11, kind: input, shape index: {}]
  %s12 = inlined_call_operand.hbm [shape: f32[16,144], index: 12, kind: input, shape index: {}]
  %s13 = inlined_call_operand.vmem [shape: f32[16,1], index: 13, kind: input, shape index: {}]
  %s14 = inlined_call_operand.vmem [shape: f32[64,100], index: 14, kind: input, shape index: {}]
  %s15 = inlined_call_operand.hbm [shape: f32[16,36], index: 15, kind: input, shape index: {}]
  %s16 = inlined_call_operand.vmem [shape: f32[144,100], index: 16, kind: input, shape index: {}]
  %s17 = inlined_call_operand.vmem [shape: f32[100,64], index: 17, kind: input, shape index: {}]
  %s18 = inlined_call_operand.vmem [shape: f32[1,100], index: 18, kind: input, shape index: {}]
  %s19 = inlined_call_operand.vmem [shape: f32[1,36], index: 19, kind: input, shape index: {}]
  %s20 = inlined_call_operand.hbm [shape: f32[2,16,64], index: 20, kind: output, shape index: {}]
  %s21 = sld [smem:[#allocation0]]
  $region137: #{tpu_custom_call.1} parent=0
    _
  %s23 = ssub.s32 1, %s21
  %s24 = scalar_select 0, %s23, %s21
  $region1: #{tpu_custom_call.1} parent=0
    #allocation2 [shape = 'u8[16384]{0}', space=vmem, size = 0x4000, scoped, tag = 'input window, operand 0']
    #allocation3 [shape = 's32[2]{0}', space=sflag, size = 0x8, scoped, tag = 'scoped memory for tpu_custom_call.1']
    #allocation4 [shape = 's32[2]{0}', space=sflag, size = 0x8, scoped, tag = 'scoped memory for tpu_custom_call.1']
    #allocation5 [shape = 'u8[4096]{0}', space=vmem, size = 0x1000, scoped, tag = 'input window, operand 2, single buffered']
    #allocation6 [shape = 's32[1]{0}', space=sflag, size = 0x4, scoped, tag = 'scoped memory for tpu_custom_call.1']
    #allocation7 [shape = 'u8[16384]{0}', space=vmem, size = 0x4000, scoped, tag = 'input window, operand 8, single buffered']
    #allocation8 [shape = 'u8[16384]{0}', space=vmem, size = 0x4000, scoped, tag = 'input window, operand 10, single buffered']
    #allocation9 [shape = 's32[1]{0}', space=sflag, size = 0x4, scoped, tag = 'scoped memory for tpu_custom_call.1']
    #allocation10 [shape = 'u8[16384]{0}', space=vmem, size = 0x4000, scoped, tag = 'input window, operand 12, single buffered']
    #allocation11 [shape = 'u8[8192]{0}', space=vmem, size = 0x2000, scoped, tag = 'input window, operand 15, single buffered']
    #allocation12 [shape = 's32[1]{0}', space=sflag, size = 0x4, scoped, tag = 'scoped memory for tpu_custom_call.1']
    #allocation13 [shape = 'u8[16384]{0}', space=vmem, size = 0x4000, scoped, tag = 'output window, operand 0']
    %25 = vsyncpa [#allocation3], 0
    %s26 = scalar_lea.sflag [#allocation3], 1
    %27 = vsyncpa %s26, 0
    %28 = vsyncpa [#allocation6], 0
    %29 = vsyncpa [#allocation9], 0
    %30 = vsyncpa [#allocation12], 0
    %31 = vsyncpa [#allocation4], 0
    %s32 = scalar_lea.sflag [#allocation4], 1
    %33 = vsyncpa %s32, 0
    loop: start=0, step=1, limit=4
    $region2: #{tpu_custom_call.1} parent=1 // loop_pre_header
      _
    $region3: #{tpu_custom_call.1} parent=1 // loop_header
      %s35 = sphi 0, %s39
      %p36 = scmp.ge.s32.totalorder %s35, 4
      %s45 = sphi 0, %s47
      %s48 = sphi 0, %s45
      %s49 = sphi 0, %s48
      %s65 = sphi 0, %s49
      %s71 = sphi 0, %s73
      %s74 = sphi 0, %s71
      %s75 = sphi 0, %s74
      %s91 = sphi 0, %s75
      %s95 = sphi 0, %s95
      %s97 = sphi 0, %s95
      %s98 = sphi 0, %s97
      %s112 = sphi 0, %s98
      %s116 = sphi 0, %s116
      %s118 = sphi 0, %s116
      %s119 = sphi 0, %s118
      %s133 = sphi 0, %s119
      %s137 = sphi 0, %s137
      %s139 = sphi 0, %s137
      %s140 = sphi 0, %s139
      %s154 = sphi 0, %s140
      %s158 = sphi 0, %s158
      %s160 = sphi 0, %s158
      %s161 = sphi 0, %s160
      %s175 = sphi 0, %s161
      %s179 = sphi 0, %s179
      %s181 = sphi 0, %s179
      %s182 = sphi 0, %s181
      %s196 = sphi 0, %s182
      %s200 = sphi 0, %s200
      %s202 = sphi 0, %s200
      %s203 = sphi 0, %s202
      %s217 = sphi 0, %s203
      %s221 = sphi 0, %s221
      %s223 = sphi 0, %s221
      %s224 = sphi 0, %s223
      %s238 = sphi 0, %s224
      %s242 = sphi 0, %s242
      %s244 = sphi 0, %s242
      %s245 = sphi 0, %s244
      %s259 = sphi 0, %s245
      %s263 = sphi 0, %s263
      %s265 = sphi 0, %s263
      %s266 = sphi 0, %s265
      %s280 = sphi 0, %s266
      %s284 = sphi 0, %s284
      %s286 = sphi 0, %s284
      %s287 = sphi 0, %s286
      %s301 = sphi 0, %s287
      %s305 = sphi 0, %s305
      %s307 = sphi 0, %s305
      %s308 = sphi 0, %s307
      %s322 = sphi 0, %s308
      %s326 = sphi 0, %s326
      %s328 = sphi 0, %s326
      %s329 = sphi 0, %s328
      %s343 = sphi 0, %s329
      %s347 = sphi 0, %s347
      %s349 = sphi 0, %s347
      %s350 = sphi 0, %s349
      %s364 = sphi 0, %s350
      %s368 = sphi 0, %s368
      %s370 = sphi 0, %s368
      %s371 = sphi 0, %s370
      %s385 = sphi 0, %s371
      %s389 = sphi 0, %s389
      %s391 = sphi 0, %s389
      %s392 = sphi 0, %s391
      %s406 = sphi 0, %s392
      %s410 = sphi 0, %s410
      %s412 = sphi 0, %s410
      %s413 = sphi 0, %s412
      %s427 = sphi 0, %s413
      %s431 = sphi 0, %s431
      %s433 = sphi 0, %s431
      %s434 = sphi 0, %s433
      %s448 = sphi 0, %s434
      %s452 = sphi 0, %s452
      %s454 = sphi 0, %s452
      %s455 = sphi 0, %s454
      %s469 = sphi 0, %s455
      %s475 = sphi 0, %s477
      %s478 = sphi 0, %s475
      %s479 = sphi 0, %s478
      %s495 = sphi 0, %s479
    $region4: #{tpu_custom_call.1} parent=1 // loop_header_branch
      %38 = sbr.rel (%p36) target = $region8
    $region5: #{tpu_custom_call.1} parent=1 // loop_body
      %s40 = ssub.s32 %s35, 1
      %s41 = ssub.s32 %s35, 2
      %s42 = sadd.s32 %s35, 1
      %s43 = ssub.s32 %s35, %s42
      %p44 = scmp.eq.s32.totalorder %s43, 0
      %s46 = sadd.s32 %s45, 1
      %s47 = scalar_select %p44, %s45, %s46
      %p50 = pneg %p44
      %p51 = scmp.eq.s32.totalorder %s35, 1
      %p52 = por %p50, %p51
      %p53 = scmp.ne.s32.totalorder %s45, %s48
      %p54 = scmp.eq.s32.totalorder %s35, 0
      %p55 = por %p53, %p54
      %p56 = scmp.ne.s32.totalorder %s45, %s48
      %p57 = scmp.eq.s32.totalorder %s40, 1
      %p58 = por %p56, %p57
      %p59 = scmp.ne.s32.totalorder %s48, %s49
      %p60 = scmp.eq.s32.totalorder %s40, 0
      %p61 = por %p59, %p60
      %p62 = scmp.ne.s32.totalorder %s48, %s49
      %p63 = scmp.eq.s32.totalorder %s41, 1
      %p64 = por %p62, %p63
      %p66 = scmp.ne.s32.totalorder %s49, %s65
      %p67 = scmp.eq.s32.totalorder %s41, 0
      %p68 = por %p66, %p67
      %s69 = ssub.s32 %s35, %s42
      %p70 = scmp.eq.s32.totalorder %s69, 0
      %s72 = sadd.s32 %s71, 1
      %s73 = scalar_select %p70, %s71, %s72
      %p76 = pneg %p70
      %p77 = scmp.eq.s32.totalorder %s35, 1
      %p78 = por %p76, %p77
      %p79 = scmp.ne.s32.totalorder %s71, %s74
      %p80 = scmp.eq.s32.totalorder %s35, 0
      %p81 = por %p79, %p80
      %p82 = scmp.ne.s32.totalorder %s71, %s74
      %p83 = scmp.eq.s32.totalorder %s40, 1
      %p84 = por %p82, %p83
      %p85 = scmp.ne.s32.totalorder %s74, %s75
      %p86 = scmp.eq.s32.totalorder %s40, 0
      %p87 = por %p85, %p86
      %p88 = scmp.ne.s32.totalorder %s74, %s75
      %p89 = scmp.eq.s32.totalorder %s41, 1
      %p90 = por %p88, %p89
      %p92 = scmp.ne.s32.totalorder %s75, %s91
      %p93 = scmp.eq.s32.totalorder %s41, 0
      %p94 = por %p92, %p93
      %s96 = sadd.s32 %s95, 1
      %p99 = scmp.eq.s32.totalorder %s35, 1
      %p100 = scmp.ne.s32.totalorder %s95, %s97
      %p101 = scmp.eq.s32.totalorder %s35, 0
      %p102 = por %p100, %p101
      %p103 = scmp.ne.s32.totalorder %s95, %s97
      %p104 = scmp.eq.s32.totalorder %s40, 1
      %p105 = por %p103, %p104
      %p106 = scmp.ne.s32.totalorder %s97, %s98
      %p107 = scmp.eq.s32.totalorder %s40, 0
      %p108 = por %p106, %p107
      %p109 = scmp.ne.s32.totalorder %s97, %s98
      %p110 = scmp.eq.s32.totalorder %s41, 1
      %p111 = por %p109, %p110
      %p113 = scmp.ne.s32.totalorder %s98, %s112
      %p114 = scmp.eq.s32.totalorder %s41, 0
      %p115 = por %p113, %p114
      %s117 = sadd.s32 %s116, 1
      %p120 = scmp.eq.s32.totalorder %s35, 1
      %p121 = scmp.ne.s32.totalorder %s116, %s118
      %p122 = scmp.eq.s32.totalorder %s35, 0
      %p123 = por %p121, %p122
      %p124 = scmp.ne.s32.totalorder %s116, %s118
      %p125 = scmp.eq.s32.totalorder %s40, 1
      %p126 = por %p124, %p125
      %p127 = scmp.ne.s32.totalorder %s118, %s119
      %p128 = scmp.eq.s32.totalorder %s40, 0
      %p129 = por %p127, %p128
      %p130 = scmp.ne.s32.totalorder %s118, %s119
      %p131 = scmp.eq.s32.totalorder %s41, 1
      %p132 = por %p130, %p131
      %p134 = scmp.ne.s32.totalorder %s119, %s133
      %p135 = scmp.eq.s32.totalorder %s41, 0
      %p136 = por %p134, %p135
      %s138 = sadd.s32 %s137, 1
      %p141 = scmp.eq.s32.totalorder %s35, 1
      %p142 = scmp.ne.s32.totalorder %s137, %s139
      %p143 = scmp.eq.s32.totalorder %s35, 0
      %p144 = por %p142, %p143
      %p145 = scmp.ne.s32.totalorder %s137, %s139
      %p146 = scmp.eq.s32.totalorder %s40, 1
      %p147 = por %p145, %p146
      %p148 = scmp.ne.s32.totalorder %s139, %s140
      %p149 = scmp.eq.s32.totalorder %s40, 0
      %p150 = por %p148, %p149
      %p151 = scmp.ne.s32.totalorder %s139, %s140
      %p152 = scmp.eq.s32.totalorder %s41, 1
      %p153 = por %p151, %p152
      %p155 = scmp.ne.s32.totalorder %s140, %s154
      %p156 = scmp.eq.s32.totalorder %s41, 0
      %p157 = por %p155, %p156
      %s159 = sadd.s32 %s158, 1
      %p162 = scmp.eq.s32.totalorder %s35, 1
      %p163 = scmp.ne.s32.totalorder %s158, %s160
      %p164 = scmp.eq.s32.totalorder %s35, 0
      %p165 = por %p163, %p164
      %p166 = scmp.ne.s32.totalorder %s158, %s160
      %p167 = scmp.eq.s32.totalorder %s40, 1
      %p168 = por %p166, %p167
      %p169 = scmp.ne.s32.totalorder %s160, %s161
      %p170 = scmp.eq.s32.totalorder %s40, 0
      %p171 = por %p169, %p170
      %p172 = scmp.ne.s32.totalorder %s160, %s161
      %p173 = scmp.eq.s32.totalorder %s41, 1
      %p174 = por %p172, %p173
      %p176 = scmp.ne.s32.totalorder %s161, %s175
      %p177 = scmp.eq.s32.totalorder %s41, 0
      %p178 = por %p176, %p177
      %s180 = sadd.s32 %s179, 1
      %p183 = scmp.eq.s32.totalorder %s35, 1
      %p184 = scmp.ne.s32.totalorder %s179, %s181
      %p185 = scmp.eq.s32.totalorder %s35, 0
      %p186 = por %p184, %p185
      %p187 = scmp.ne.s32.totalorder %s179, %s181
      %p188 = scmp.eq.s32.totalorder %s40, 1
      %p189 = por %p187, %p188
      %p190 = scmp.ne.s32.totalorder %s181, %s182
      %p191 = scmp.eq.s32.totalorder %s40, 0
      %p192 = por %p190, %p191
      %p193 = scmp.ne.s32.totalorder %s181, %s182
      %p194 = scmp.eq.s32.totalorder %s41, 1
      %p195 = por %p193, %p194
      %p197 = scmp.ne.s32.totalorder %s182, %s196
      %p198 = scmp.eq.s32.totalorder %s41, 0
      %p199 = por %p197, %p198
      %s201 = sadd.s32 %s200, 1
      %p204 = scmp.eq.s32.totalorder %s35, 1
      %p205 = scmp.ne.s32.totalorder %s200, %s202
      %p206 = scmp.eq.s32.totalorder %s35, 0
      %p207 = por %p205, %p206
      %p208 = scmp.ne.s32.totalorder %s200, %s202
      %p209 = scmp.eq.s32.totalorder %s40, 1
      %p210 = por %p208, %p209
      %p211 = scmp.ne.s32.totalorder %s202, %s203
      %p212 = scmp.eq.s32.totalorder %s40, 0
      %p213 = por %p211, %p212
      %p214 = scmp.ne.s32.totalorder %s202, %s203
      %p215 = scmp.eq.s32.totalorder %s41, 1
      %p216 = por %p214, %p215
      %p218 = scmp.ne.s32.totalorder %s203, %s217
      %p219 = scmp.eq.s32.totalorder %s41, 0
      %p220 = por %p218, %p219
      %s222 = sadd.s32 %s221, 1
      %p225 = scmp.eq.s32.totalorder %s35, 1
      %p226 = scmp.ne.s32.totalorder %s221, %s223
      %p227 = scmp.eq.s32.totalorder %s35, 0
      %p228 = por %p226, %p227
      %p229 = scmp.ne.s32.totalorder %s221, %s223
      %p230 = scmp.eq.s32.totalorder %s40, 1
      %p231 = por %p229, %p230
      %p232 = scmp.ne.s32.totalorder %s223, %s224
      %p233 = scmp.eq.s32.totalorder %s40, 0
      %p234 = por %p232, %p233
      %p235 = scmp.ne.s32.totalorder %s223, %s224
      %p236 = scmp.eq.s32.totalorder %s41, 1
      %p237 = por %p235, %p236
      %p239 = scmp.ne.s32.totalorder %s224, %s238
      %p240 = scmp.eq.s32.totalorder %s41, 0
      %p241 = por %p239, %p240
      %s243 = sadd.s32 %s242, 1
      %p246 = scmp.eq.s32.totalorder %s35, 1
      %p247 = scmp.ne.s32.totalorder %s242, %s244
      %p248 = scmp.eq.s32.totalorder %s35, 0
      %p249 = por %p247, %p248
      %p250 = scmp.ne.s32.totalorder %s242, %s244
      %p251 = scmp.eq.s32.totalorder %s40, 1
      %p252 = por %p250, %p251
      %p253 = scmp.ne.s32.totalorder %s244, %s245
      %p254 = scmp.eq.s32.totalorder %s40, 0
      %p255 = por %p253, %p254
      %p256 = scmp.ne.s32.totalorder %s244, %s245
      %p257 = scmp.eq.s32.totalorder %s41, 1
      %p258 = por %p256, %p257
      %p260 = scmp.ne.s32.totalorder %s245, %s259
      %p261 = scmp.eq.s32.totalorder %s41, 0
      %p262 = por %p260, %p261
      %s264 = sadd.s32 %s263, 1
      %p267 = scmp.eq.s32.totalorder %s35, 1
      %p268 = scmp.ne.s32.totalorder %s263, %s265
      %p269 = scmp.eq.s32.totalorder %s35, 0
      %p270 = por %p268, %p269
      %p271 = scmp.ne.s32.totalorder %s263, %s265
      %p272 = scmp.eq.s32.totalorder %s40, 1
      %p273 = por %p271, %p272
      %p274 = scmp.ne.s32.totalorder %s265, %s266
      %p275 = scmp.eq.s32.totalorder %s40, 0
      %p276 = por %p274, %p275
      %p277 = scmp.ne.s32.totalorder %s265, %s266
      %p278 = scmp.eq.s32.totalorder %s41, 1
      %p279 = por %p277, %p278
      %p281 = scmp.ne.s32.totalorder %s266, %s280
      %p282 = scmp.eq.s32.totalorder %s41, 0
      %p283 = por %p281, %p282
      %s285 = sadd.s32 %s284, 1
      %p288 = scmp.eq.s32.totalorder %s35, 1
      %p289 = scmp.ne.s32.totalorder %s284, %s286
      %p290 = scmp.eq.s32.totalorder %s35, 0
      %p291 = por %p289, %p290
      %p292 = scmp.ne.s32.totalorder %s284, %s286
      %p293 = scmp.eq.s32.totalorder %s40, 1
      %p294 = por %p292, %p293
      %p295 = scmp.ne.s32.totalorder %s286, %s287
      %p296 = scmp.eq.s32.totalorder %s40, 0
      %p297 = por %p295, %p296
      %p298 = scmp.ne.s32.totalorder %s286, %s287
      %p299 = scmp.eq.s32.totalorder %s41, 1
      %p300 = por %p298, %p299
      %p302 = scmp.ne.s32.totalorder %s287, %s301
      %p303 = scmp.eq.s32.totalorder %s41, 0
      %p304 = por %p302, %p303
      %s306 = sadd.s32 %s305, 1
      %p309 = scmp.eq.s32.totalorder %s35, 1
      %p310 = scmp.ne.s32.totalorder %s305, %s307
      %p311 = scmp.eq.s32.totalorder %s35, 0
      %p312 = por %p310, %p311
      %p313 = scmp.ne.s32.totalorder %s305, %s307
      %p314 = scmp.eq.s32.totalorder %s40, 1
      %p315 = por %p313, %p314
      %p316 = scmp.ne.s32.totalorder %s307, %s308
      %p317 = scmp.eq.s32.totalorder %s40, 0
      %p318 = por %p316, %p317
      %p319 = scmp.ne.s32.totalorder %s307, %s308
      %p320 = scmp.eq.s32.totalorder %s41, 1
      %p321 = por %p319, %p320
      %p323 = scmp.ne.s32.totalorder %s308, %s322
      %p324 = scmp.eq.s32.totalorder %s41, 0
      %p325 = por %p323, %p324
      %s327 = sadd.s32 %s326, 1
      %p330 = scmp.eq.s32.totalorder %s35, 1
      %p331 = scmp.ne.s32.totalorder %s326, %s328
      %p332 = scmp.eq.s32.totalorder %s35, 0
      %p333 = por %p331, %p332
      %p334 = scmp.ne.s32.totalorder %s326, %s328
      %p335 = scmp.eq.s32.totalorder %s40, 1
      %p336 = por %p334, %p335
      %p337 = scmp.ne.s32.totalorder %s328, %s329
      %p338 = scmp.eq.s32.totalorder %s40, 0
      %p339 = por %p337, %p338
      %p340 = scmp.ne.s32.totalorder %s328, %s329
      %p341 = scmp.eq.s32.totalorder %s41, 1
      %p342 = por %p340, %p341
      %p344 = scmp.ne.s32.totalorder %s329, %s343
      %p345 = scmp.eq.s32.totalorder %s41, 0
      %p346 = por %p344, %p345
      %s348 = sadd.s32 %s347, 1
      %p351 = scmp.eq.s32.totalorder %s35, 1
      %p352 = scmp.ne.s32.totalorder %s347, %s349
      %p353 = scmp.eq.s32.totalorder %s35, 0
      %p354 = por %p352, %p353
      %p355 = scmp.ne.s32.totalorder %s347, %s349
      %p356 = scmp.eq.s32.totalorder %s40, 1
      %p357 = por %p355, %p356
      %p358 = scmp.ne.s32.totalorder %s349, %s350
      %p359 = scmp.eq.s32.totalorder %s40, 0
      %p360 = por %p358, %p359
      %p361 = scmp.ne.s32.totalorder %s349, %s350
      %p362 = scmp.eq.s32.totalorder %s41, 1
      %p363 = por %p361, %p362
      %p365 = scmp.ne.s32.totalorder %s350, %s364
      %p366 = scmp.eq.s32.totalorder %s41, 0
      %p367 = por %p365, %p366
      %s369 = sadd.s32 %s368, 1
      %p372 = scmp.eq.s32.totalorder %s35, 1
      %p373 = scmp.ne.s32.totalorder %s368, %s370
      %p374 = scmp.eq.s32.totalorder %s35, 0
      %p375 = por %p373, %p374
      %p376 = scmp.ne.s32.totalorder %s368, %s370
      %p377 = scmp.eq.s32.totalorder %s40, 1
      %p378 = por %p376, %p377
      %p379 = scmp.ne.s32.totalorder %s370, %s371
      %p380 = scmp.eq.s32.totalorder %s40, 0
      %p381 = por %p379, %p380
      %p382 = scmp.ne.s32.totalorder %s370, %s371
      %p383 = scmp.eq.s32.totalorder %s41, 1
      %p384 = por %p382, %p383
      %p386 = scmp.ne.s32.totalorder %s371, %s385
      %p387 = scmp.eq.s32.totalorder %s41, 0
      %p388 = por %p386, %p387
      %s390 = sadd.s32 %s389, 1
      %p393 = scmp.eq.s32.totalorder %s35, 1
      %p394 = scmp.ne.s32.totalorder %s389, %s391
      %p395 = scmp.eq.s32.totalorder %s35, 0
      %p396 = por %p394, %p395
      %p397 = scmp.ne.s32.totalorder %s389, %s391
      %p398 = scmp.eq.s32.totalorder %s40, 1
      %p399 = por %p397, %p398
      %p400 = scmp.ne.s32.totalorder %s391, %s392
      %p401 = scmp.eq.s32.totalorder %s40, 0
      %p402 = por %p400, %p401
      %p403 = scmp.ne.s32.totalorder %s391, %s392
      %p404 = scmp.eq.s32.totalorder %s41, 1
      %p405 = por %p403, %p404
      %p407 = scmp.ne.s32.totalorder %s392, %s406
      %p408 = scmp.eq.s32.totalorder %s41, 0
      %p409 = por %p407, %p408
      %s411 = sadd.s32 %s410, 1
      %p414 = scmp.eq.s32.totalorder %s35, 1
      %p415 = scmp.ne.s32.totalorder %s410, %s412
      %p416 = scmp.eq.s32.totalorder %s35, 0
      %p417 = por %p415, %p416
      %p418 = scmp.ne.s32.totalorder %s410, %s412
      %p419 = scmp.eq.s32.totalorder %s40, 1
      %p420 = por %p418, %p419
      %p421 = scmp.ne.s32.totalorder %s412, %s413
      %p422 = scmp.eq.s32.totalorder %s40, 0
      %p423 = por %p421, %p422
      %p424 = scmp.ne.s32.totalorder %s412, %s413
      %p425 = scmp.eq.s32.totalorder %s41, 1
      %p426 = por %p424, %p425
      %p428 = scmp.ne.s32.totalorder %s413, %s427
      %p429 = scmp.eq.s32.totalorder %s41, 0
      %p430 = por %p428, %p429
      %s432 = sadd.s32 %s431, 1
      %p435 = scmp.eq.s32.totalorder %s35, 1
      %p436 = scmp.ne.s32.totalorder %s431, %s433
      %p437 = scmp.eq.s32.totalorder %s35, 0
      %p438 = por %p436, %p437
      %p439 = scmp.ne.s32.totalorder %s431, %s433
      %p440 = scmp.eq.s32.totalorder %s40, 1
      %p441 = por %p439, %p440
      %p442 = scmp.ne.s32.totalorder %s433, %s434
      %p443 = scmp.eq.s32.totalorder %s40, 0
      %p444 = por %p442, %p443
      %p445 = scmp.ne.s32.totalorder %s433, %s434
      %p446 = scmp.eq.s32.totalorder %s41, 1
      %p447 = por %p445, %p446
      %p449 = scmp.ne.s32.totalorder %s434, %s448
      %p450 = scmp.eq.s32.totalorder %s41, 0
      %p451 = por %p449, %p450
      %s453 = sadd.s32 %s452, 1
      %p456 = scmp.eq.s32.totalorder %s35, 1
      %p457 = scmp.ne.s32.totalorder %s452, %s454
      %p458 = scmp.eq.s32.totalorder %s35, 0
      %p459 = por %p457, %p458
      %p460 = scmp.ne.s32.totalorder %s452, %s454
      %p461 = scmp.eq.s32.totalorder %s40, 1
      %p462 = por %p460, %p461
      %p463 = scmp.ne.s32.totalorder %s454, %s455
      %p464 = scmp.eq.s32.totalorder %s40, 0
      %p465 = por %p463, %p464
      %p466 = scmp.ne.s32.totalorder %s454, %s455
      %p467 = scmp.eq.s32.totalorder %s41, 1
      %p468 = por %p466, %p467
      %p470 = scmp.ne.s32.totalorder %s455, %s469
      %p471 = scmp.eq.s32.totalorder %s41, 0
      %p472 = por %p470, %p471
      %s473 = ssub.s32 %s35, %s42
      %p474 = scmp.eq.s32.totalorder %s473, 0
      %s476 = sadd.s32 %s475, 1
      %s477 = scalar_select %p474, %s475, %s476
      %p480 = pneg %p474
      %p481 = scmp.eq.s32.totalorder %s35, 1
      %p482 = por %p480, %p481
      %p483 = scmp.ne.s32.totalorder %s475, %s478
      %p484 = scmp.eq.s32.totalorder %s35, 0
      %p485 = por %p483, %p484
      %p486 = scmp.ne.s32.totalorder %s475, %s478
      %p487 = scmp.eq.s32.totalorder %s40, 1
      %p488 = por %p486, %p487
      %p489 = scmp.ne.s32.totalorder %s478, %s479
      %p490 = scmp.eq.s32.totalorder %s40, 0
      %p491 = por %p489, %p490
      %p492 = scmp.ne.s32.totalorder %s478, %s479
      %p493 = scmp.eq.s32.totalorder %s41, 1
      %p494 = por %p492, %p493
      %p496 = scmp.ne.s32.totalorder %s479, %s495
      %p497 = scmp.eq.s32.totalorder %s41, 0
      %p498 = por %p496, %p497
      %p499 = scmp.le.s32.totalorder 1, %s35
      %p500 = scmp.lt.s32.totalorder %s35, 3
      %p501 = pnand %p499, %p500
      %p502 = pneg %p501
      // Predicated region
      $region9: #{tpu_custom_call.1} parent=5 // pred_check
        _
      $region10: #{tpu_custom_call.1} parent=5 // pred_check_branch
        %504 = sbr.rel (%p501) target = $region12
      $region11: #{tpu_custom_call.1} parent=5 // pred_region
        %s505 = ssub.s32 %s35, 1
        // Predicated region
        $region13: #{tpu_custom_call.1} parent=11 // pred_check
          %p506 = pneg %p108
        $region14: #{tpu_custom_call.1} parent=11 // pred_check_branch
          %508 = sbr.rel (%p506) target = $region16
        $region15: #{tpu_custom_call.1} parent=11 // pred_region
          %s510 = ssub.s32 128, 128
          %511 = vsyncadd [#allocation6], %s510
          %s513 = sshll.u32 [#allocation5], 4
          %s514 = int_to_ptr.vmem [resolvable:$true] %s513
          %516 = dma.hbm_to_vmem [thread:$0]  %s2, 128, %s514, [#allocation6]
        $region16: #{tpu_custom_call.1} parent=11 // pred_fallthru
          _
        // Predicated region
        $region17: #{tpu_custom_call.1} parent=11 // pred_check
          %p517 = pneg %p129
        $region18: #{tpu_custom_call.1} parent=11 // pred_check_branch
          %519 = sbr.rel (%p517) target = $region20
        $region19: #{tpu_custom_call.1} parent=11 // pred_region
          _
        $region20: #{tpu_custom_call.1} parent=11 // pred_fallthru
          _
        // Predicated region
        $region21: #{tpu_custom_call.1} parent=11 // pred_check
          %p520 = pneg %p150
        $region22: #{tpu_custom_call.1} parent=11 // pred_check_branch
          %522 = sbr.rel (%p520) target = $region24
        $region23: #{tpu_custom_call.1} parent=11 // pred_region
          _
        $region24: #{tpu_custom_call.1} parent=11 // pred_fallthru
          _
        // Predicated region
        $region25: #{tpu_custom_call.1} parent=11 // pred_check
          %p523 = pneg %p171
        $region26: #{tpu_custom_call.1} parent=11 // pred_check_branch
          %525 = sbr.rel (%p523) target = $region28
        $region27: #{tpu_custom_call.1} parent=11 // pred_region
          _
        $region28: #{tpu_custom_call.1} parent=11 // pred_fallthru
          _
        // Predicated region
        $region29: #{tpu_custom_call.1} parent=11 // pred_check
          %p526 = pneg %p192
        $region30: #{tpu_custom_call.1} parent=11 // pred_check_branch
          %528 = sbr.rel (%p526) target = $region32
        $region31: #{tpu_custom_call.1} parent=11 // pred_region
          _
        $region32: #{tpu_custom_call.1} parent=11 // pred_fallthru
          _
        // Predicated region
        $region33: #{tpu_custom_call.1} parent=11 // pred_check
          %p529 = pneg %p213
        $region34: #{tpu_custom_call.1} parent=11 // pred_check_branch
          %531 = sbr.rel (%p529) target = $region36
        $region35: #{tpu_custom_call.1} parent=11 // pred_region
          _
        $region36: #{tpu_custom_call.1} parent=11 // pred_fallthru
          _
        // Predicated region
        $region37: #{tpu_custom_call.1} parent=11 // pred_check
          %p532 = pneg %p234
        $region38: #{tpu_custom_call.1} parent=11 // pred_check_branch
          %534 = sbr.rel (%p532) target = $region40
        $region39: #{tpu_custom_call.1} parent=11 // pred_region
          %s536 = ssub.s32 512, 512
          %537 = vsyncadd [#allocation6], %s536
          %s538 = sshll.u32 [#allocation7], 4
          %s539 = int_to_ptr.vmem [resolvable:$true] %s538
          %544 = dma.hbm_to_vmem [thread:$0]  %s8, 512, %s539, [#allocation6], 128, 128, 8
        $region40: #{tpu_custom_call.1} parent=11 // pred_fallthru
          _
        // Predicated region
        $region41: #{tpu_custom_call.1} parent=11 // pred_check
          %p545 = pneg %p255
        $region42: #{tpu_custom_call.1} parent=11 // pred_check_branch
          %547 = sbr.rel (%p545) target = $region44
        $region43: #{tpu_custom_call.1} parent=11 // pred_region
          _
        $region44: #{tpu_custom_call.1} parent=11 // pred_fallthru
          _
        // Predicated region
        $region45: #{tpu_custom_call.1} parent=11 // pred_check
          %p548 = pneg %p276
        $region46: #{tpu_custom_call.1} parent=11 // pred_check_branch
          %550 = sbr.rel (%p548) target = $region48
        $region47: #{tpu_custom_call.1} parent=11 // pred_region
          %s552 = ssub.s32 512, 512
          %553 = vsyncadd [#allocation9], %s552
          %s554 = sshll.u32 [#allocation8], 4
          %s555 = int_to_ptr.vmem [resolvable:$true] %s554
          %560 = dma.hbm_to_vmem [thread:$0]  %s10, 512, %s555, [#allocation9], 256, 256, 16
        $region48: #{tpu_custom_call.1} parent=11 // pred_fallthru
          _
        // Predicated region
        $region49: #{tpu_custom_call.1} parent=11 // pred_check
          %p561 = pneg %p297
        $region50: #{tpu_custom_call.1} parent=11 // pred_check_branch
          %563 = sbr.rel (%p561) target = $region52
        $region51: #{tpu_custom_call.1} parent=11 // pred_region
          _
        $region52: #{tpu_custom_call.1} parent=11 // pred_fallthru
          _
        // Predicated region
        $region53: #{tpu_custom_call.1} parent=11 // pred_check
          %p564 = pneg %p318
        $region54: #{tpu_custom_call.1} parent=11 // pred_check_branch
          %566 = sbr.rel (%p564) target = $region56
        $region55: #{tpu_custom_call.1} parent=11 // pred_region
          %s568 = ssub.s32 512, 512
          %569 = vsyncadd [#allocation9], %s568
          %s570 = sshll.u32 [#allocation10], 4
          %s571 = int_to_ptr.vmem [resolvable:$true] %s570
          %576 = dma.hbm_to_vmem [thread:$0]  %s12, 512, %s571, [#allocation9], 256, 256, 16
        $region56: #{tpu_custom_call.1} parent=11 // pred_fallthru
          _
        // Predicated region
        $region57: #{tpu_custom_call.1} parent=11 // pred_check
          %p577 = pneg %p339
        $region58: #{tpu_custom_call.1} parent=11 // pred_check_branch
          %579 = sbr.rel (%p577) target = $region60
        $region59: #{tpu_custom_call.1} parent=11 // pred_region
          _
        $region60: #{tpu_custom_call.1} parent=11 // pred_fallthru
          _
        // Predicated region
        $region61: #{tpu_custom_call.1} parent=11 // pred_check
          %p580 = pneg %p360
        $region62: #{tpu_custom_call.1} parent=11 // pred_check_branch
          %582 = sbr.rel (%p580) target = $region64
        $region63: #{tpu_custom_call.1} parent=11 // pred_region
          _
        $region64: #{tpu_custom_call.1} parent=11 // pred_fallthru
          _
        // Predicated region
        $region65: #{tpu_custom_call.1} parent=11 // pred_check
          %p583 = pneg %p381
        $region66: #{tpu_custom_call.1} parent=11 // pred_check_branch
          %585 = sbr.rel (%p583) target = $region68
        $region67: #{tpu_custom_call.1} parent=11 // pred_region
          %s587 = ssub.s32 256, 256
          %588 = vsyncadd [#allocation12], %s587
          %s589 = sshll.u32 [#allocation11], 4
          %s590 = int_to_ptr.vmem [resolvable:$true] %s589
          %595 = dma.hbm_to_vmem [thread:$0]  %s15, 256, %s590, [#allocation12], 128, 128, 8
        $region68: #{tpu_custom_call.1} parent=11 // pred_fallthru
          _
        // Predicated region
        $region69: #{tpu_custom_call.1} parent=11 // pred_check
          %p596 = pneg %p402
        $region70: #{tpu_custom_call.1} parent=11 // pred_check_branch
          %598 = sbr.rel (%p596) target = $region72
        $region71: #{tpu_custom_call.1} parent=11 // pred_region
          _
        $region72: #{tpu_custom_call.1} parent=11 // pred_fallthru
          _
        // Predicated region
        $region73: #{tpu_custom_call.1} parent=11 // pred_check
          %p599 = pneg %p423
        $region74: #{tpu_custom_call.1} parent=11 // pred_check_branch
          %601 = sbr.rel (%p599) target = $region76
        $region75: #{tpu_custom_call.1} parent=11 // pred_region
          _
        $region76: #{tpu_custom_call.1} parent=11 // pred_fallthru
          _
        // Predicated region
        $region77: #{tpu_custom_call.1} parent=11 // pred_check
          %p602 = pneg %p444
        $region78: #{tpu_custom_call.1} parent=11 // pred_check_branch
          %604 = sbr.rel (%p602) target = $region80
        $region79: #{tpu_custom_call.1} parent=11 // pred_region
          _
        $region80: #{tpu_custom_call.1} parent=11 // pred_fallthru
          _
        // Predicated region
        $region81: #{tpu_custom_call.1} parent=11 // pred_check
          %p605 = pneg %p465
        $region82: #{tpu_custom_call.1} parent=11 // pred_check_branch
          %607 = sbr.rel (%p605) target = $region84
        $region83: #{tpu_custom_call.1} parent=11 // pred_region
          _
        $region84: #{tpu_custom_call.1} parent=11 // pred_fallthru
          _
      $region12: #{tpu_custom_call.1} parent=5 // pred_fallthru
        _
      %p608 = scmp.lt.s32.totalorder %s35, 2
      // Predicated region
      $region85: #{tpu_custom_call.1} parent=5 // pred_check
        %p609 = pneg %p608
      $region86: #{tpu_custom_call.1} parent=5 // pred_check_branch
        %611 = sbr.rel (%p609) target = $region88
      $region87: #{tpu_custom_call.1} parent=5 // pred_region
        // Predicated region
        $region89: #{tpu_custom_call.1} parent=87 // pred_check
          %p612 = pneg %p55
        $region90: #{tpu_custom_call.1} parent=87 // pred_check_branch
          %614 = sbr.rel (%p612) target = $region92
        $region91: #{tpu_custom_call.1} parent=87 // pred_region
          %s615 = sand.u32 %s45, 1
          %s616 = scalar_lea.sflag [#allocation3], %s615
          %s617 = sand.u32 %s45, 1
          %s618 = smul.addr %s617, 16
          %s619 = scalar_lea.vmem [#allocation2], %s618
          %s621 = ssub.s32 256, 256
          %622 = vsyncadd %s616, %s621
          %s623 = smul.addr %s35, 2
          %s624 = smul.addr %s623, 128
          %s625 = scalar_lea.hbm %s0, %s624
          %s626 = sshll.u32 %s619, 4
          %s627 = int_to_ptr.vmem [resolvable:$true] %s626
          %632 = dma.hbm_to_vmem [thread:$0]  %s625, 256, %s627, %s616, 128, 128, 8
        $region92: #{tpu_custom_call.1} parent=87 // pred_fallthru
          _
        // Predicated region
        $region93: #{tpu_custom_call.1} parent=87 // pred_check
          %p633 = pneg %p81
        $region94: #{tpu_custom_call.1} parent=87 // pred_check_branch
          %635 = sbr.rel (%p633) target = $region96
        $region95: #{tpu_custom_call.1} parent=87 // pred_region
          %p636 = scmp.lt.s32.totalorder %s35, 1
          %s637 = scalar_select %p636, %s35, 1
          %s638 = smul.addr %s637, 4
          %s639 = smul.addr %s638, 8
          %s640 = scalar_lea.vmem %s1, %s639
        $region96: #{tpu_custom_call.1} parent=87 // pred_fallthru
          _
      $region88: #{tpu_custom_call.1} parent=5 // pred_fallthru
        _
      %p641 = scmp.le.s32.totalorder 1, %s35
      %p642 = scmp.lt.s32.totalorder %s35, 3
      %p643 = pnand %p641, %p642
      %p644 = pneg %p643
      // Predicated region
      $region97: #{tpu_custom_call.1} parent=5 // pred_check
        _
      $region98: #{tpu_custom_call.1} parent=5 // pred_check_branch
        %646 = sbr.rel (%p643) target = $region100
      $region99: #{tpu_custom_call.1} parent=5 // pred_region
        %s647 = ssub.s32 %s35, 1
        %s648 = sand.u32 %s48, 1
        %s649 = scalar_lea.sflag [#allocation3], %s648
        %s650 = sand.u32 %s48, 1
        %s651 = smul.addr %s650, 16
        %s652 = scalar_lea.vmem [#allocation2], %s651
        // Predicated region
        $region101: #{tpu_custom_call.1} parent=99 // pred_check
          %p653 = pneg %p61
        $region102: #{tpu_custom_call.1} parent=99 // pred_check_branch
          %655 = sbr.rel (%p653) target = $region104
        $region103: #{tpu_custom_call.1} parent=99 // pred_region
          %656 = dma.done %s649, 256
        $region104: #{tpu_custom_call.1} parent=99 // pred_fallthru
          _
        // Predicated region
        $region105: #{tpu_custom_call.1} parent=99 // pred_check
          %p657 = pneg %p108
        $region106: #{tpu_custom_call.1} parent=99 // pred_check_branch
          %659 = sbr.rel (%p657) target = $region108
        $region107: #{tpu_custom_call.1} parent=99 // pred_region
          %660 = dma.done [#allocation6], 128
        $region108: #{tpu_custom_call.1} parent=99 // pred_fallthru
          _
        // Predicated region
        $region109: #{tpu_custom_call.1} parent=99 // pred_check
          %p661 = pneg %p234
        $region110: #{tpu_custom_call.1} parent=99 // pred_check_branch
          %663 = sbr.rel (%p661) target = $region112
        $region111: #{tpu_custom_call.1} parent=99 // pred_region
          %664 = dma.done [#allocation6], 512
        $region112: #{tpu_custom_call.1} parent=99 // pred_fallthru
          _
        // Predicated region
        $region113: #{tpu_custom_call.1} parent=99 // pred_check
          %p665 = pneg %p276
        $region114: #{tpu_custom_call.1} parent=99 // pred_check_branch
          %667 = sbr.rel (%p665) target = $region116
        $region115: #{tpu_custom_call.1} parent=99 // pred_region
          %668 = dma.done [#allocation9], 512
        $region116: #{tpu_custom_call.1} parent=99 // pred_fallthru
          _
        // Predicated region
        $region117: #{tpu_custom_call.1} parent=99 // pred_check
          %p669 = pneg %p318
        $region118: #{tpu_custom_call.1} parent=99 // pred_check_branch
          %671 = sbr.rel (%p669) target = $region120
        $region119: #{tpu_custom_call.1} parent=99 // pred_region
          %672 = dma.done [#allocation9], 512
        $region120: #{tpu_custom_call.1} parent=99 // pred_fallthru
          _
        // Predicated region
        $region121: #{tpu_custom_call.1} parent=99 // pred_check
          %p673 = pneg %p381
        $region122: #{tpu_custom_call.1} parent=99 // pred_check_branch
          %675 = sbr.rel (%p673) target = $region124
        $region123: #{tpu_custom_call.1} parent=99 // pred_region
          %676 = dma.done [#allocation12], 256
        $region124: #{tpu_custom_call.1} parent=99 // pred_fallthru
          _
        %s677 = sand.u32 %s48, 1
        %s678 = scalar_lea.sflag [#allocation3], %s677
        %s679 = sand.u32 %s48, 1
        %s680 = smul.addr %s679, 16
        %s681 = scalar_lea.vmem [#allocation2], %s680
        %p682 = pneg %p61
        %p683 = pneg %p58
        %p684 = scmp.lt.s32.totalorder %s40, 1
        %s685 = scalar_select %p684, %s40, 1
        %s686 = smul.addr %s685, 4
        %s687 = smul.addr %s686, 8
        %s688 = scalar_lea.vmem %s1, %s687
        %p689 = pneg %p87
        %p690 = pneg %p84
        %p691 = pneg %p108
        %p692 = pneg %p105
        %p693 = pneg %p129
        %p694 = pneg %p126
        %p695 = pneg %p150
        %p696 = pneg %p147
        %p697 = pneg %p171
        %p698 = pneg %p168
        %p699 = pneg %p192
        %p700 = pneg %p189
        %p701 = pneg %p213
        %p702 = pneg %p210
        %p703 = pneg %p234
        %p704 = pneg %p231
        %p705 = pneg %p255
        %p706 = pneg %p252
        %p707 = pneg %p276
        %p708 = pneg %p273
        %p709 = pneg %p297
        %p710 = pneg %p294
        %p711 = pneg %p318
        %p712 = pneg %p315
        %p713 = pneg %p339
        %p714 = pneg %p336
        %p715 = pneg %p360
        %p716 = pneg %p357
        %p717 = pneg %p381
        %p718 = pneg %p378
        %p719 = pneg %p402
        %p720 = pneg %p399
        %p721 = pneg %p423
        %p722 = pneg %p420
        %p723 = pneg %p444
        %p724 = pneg %p441
        %p725 = pneg %p465
        %p726 = pneg %p462
        %p727 = pneg %p491
        %p728 = pneg %p488
        %s729 = sand.u32 %s478, 1
        %s730 = scalar_lea.sflag [#allocation4], %s729
        %s731 = sand.u32 %s478, 1
        %s732 = smul.addr %s731, 16
        %s733 = scalar_lea.vmem [#allocation13], %s732
        %p734 = scmp.lt.s32.totalorder %s40, 1
        %s735 = scalar_select %p734, %s40, 1
        %s736 = smul.addr %s735, 4
        %s737 = smul.addr %s736, 8
        %s738 = scalar_lea.vmem %s1, %s737
        %v739 = vld [vmem:[%s652] sm:$0xff]
        %v740 = vld [vmem:[%s652 + $0x8] sm:$0xff]
        %v741 = vld [vmem:[%s738] sm:$0xff]
        %v742 = vld [vmem:[%s738 + $0x8] sm:$0xff]
        %v743 = vld [vmem:[%s738 + $0x10] sm:$0xff]
        %v744 = vld [vmem:[%s738 + $0x18] sm:$0xff]
        %v745 = vld [vmem:[#allocation5] sm:$0xff]
        %v746 = vld [vmem:[%s3] sm:$0xff]
        %748 = vset.pattern.permute.xlu0 0
        %749 = vperm.xlu0 %748, %v746
        %v750 = vpop.permute.xlu0 %749
        %vm752 = vcmask 130048
        %v754 = vsel %vm752, %v745, 0
        %756 = vmatprep.subr.mxu0 0.0
        %v757 = vand.u32 %v739, 4294901760
        %758 = vmatpush1.msra.mxu0 %v757
        %759 = vmatprep.subr.mxu0 0.0
        %v760 = vand.u32 %v740, 4294901760
        %761 = vmatpush1.msra.mxu0 %v760
        %762 = vmatprep.subr.mxu0 0.0
        %763 = vmatpush1.msra.mxu0 0.0
        %764 = vmatprep.subr.mxu0 0.0
        %765 = vmatpush1.msra.mxu0 0.0
        %766 = vmatprep.subr.mxu0 0.0
        %767 = vmatpush1.msra.mxu0 0.0
        %768 = vmatprep.subr.mxu0 0.0
        %769 = vmatpush1.msra.mxu0 0.0
        %770 = vmatprep.subr.mxu0 0.0
        %771 = vmatpush1.msra.mxu0 0.0
        %772 = vmatprep.subr.mxu0 0.0
        %773 = vmatpush1.msra.mxu0 0.0
        %774 = vmatprep.subr.mxu0 0.0
        %775 = vmatpush1.msra.mxu0 0.0
        %776 = vmatprep.subr.mxu0 0.0
        %777 = vmatpush1.msra.mxu0 0.0
        %778 = vmatprep.subr.mxu0 0.0
        %779 = vmatpush1.msra.mxu0 0.0
        %780 = vmatprep.subr.mxu0 0.0
        %781 = vmatpush1.msra.mxu0 0.0
        %782 = vmatprep.subr.mxu0 0.0
        %783 = vmatpush1.msra.mxu0 0.0
        %784 = vmatprep.subr.mxu0 0.0
        %785 = vmatpush1.msra.mxu0 0.0
        %786 = vmatprep.subr.mxu0 0.0
        %787 = vmatpush1.msra.mxu0 0.0
        %788 = vmatprep.subr.mxu0 0.0
        %789 = vmatpush1.msra.mxu0 0.0
        %790 = vmatprep.subr.mxu0 0.0
        %791 = vmatpush1.msra.mxu0 0.0
        %792 = vmatprep.subr.mxu0 0.0
        %793 = vmatpush1.msra.mxu0 0.0
        %794 = vmatprep.subr.mxu0 0.0
        %795 = vmatpush1.msra.mxu0 0.0
        %796 = vmatprep.subr.mxu0 0.0
        %797 = vmatpush1.msra.mxu0 0.0
        %798 = vmatprep.subr.mxu0 0.0
        %799 = vmatpush1.msra.mxu0 0.0
        %800 = vmatprep.subr.mxu0 0.0
        %801 = vmatpush1.msra.mxu0 0.0
        %802 = vmatprep.subr.mxu0 0.0
        %803 = vmatpush1.msra.mxu0 0.0
        %804 = vmatprep.subr.mxu0 0.0
        %805 = vmatpush1.msra.mxu0 0.0
        %806 = vmatprep.subr.mxu0 0.0
        %807 = vmatpush1.msra.mxu0 0.0
        %808 = vmatprep.subr.mxu0 0.0
        %809 = vmatpush1.msra.mxu0 0.0
        %810 = vmatprep.subr.mxu0 0.0
        %811 = vmatpush1.msra.mxu0 0.0
        %812 = vmatprep.subr.mxu0 0.0
        %813 = vmatpush1.msra.mxu0 0.0
        %814 = vmatprep.subr.mxu0 0.0
        %815 = vmatpush1.msra.mxu0 0.0
        %816 = vmatprep.subr.mxu0 0.0
        %817 = vmatpush1.msra.mxu0 0.0
        %818 = vmatprep.subr.mxu0 0.0
        %819 = vmatpush1.msra.mxu0 0.0
        %820 = vmatprep.subr.mxu0 0.0
        %821 = vmatpush1.msra.mxu0 0.0
        %822 = vmatprep.mubr.f32.mxu0 0.0
        %v823 = vand.u32 %v754, 4294901760
        %v824 = vsub.f32 %v754, %v823
        %v825 = vand.u32 %v824, 4294901760
        %v826 = vsub.f32 %v824, %v825
        %v827 = vand.u32 %v826, 4294901760
        %828 = vmatmul.mubr.f32.gmra.mrb[0].mxu0 %v827
        %v829 = vpop.f32.mrb[0].mxu0
        %v830 = vadd.f32 %v750, %v829
        %v831 = vpop.f32.mrb[0].mxu0
        %832 = vdwg.mxu0
        %833 = vmatprep.subr.mxu0 0.0
        %v834 = vand.u32 %v739, 4294901760
        %v835 = vsub.f32 %v739, %v834
        %v836 = vand.u32 %v835, 4294901760
        %v837 = vsub.f32 %v835, %v836
        %v838 = vand.u32 %v837, 4294901760
        %839 = vmatpush1.msra.mxu0 %v838
        %840 = vmatprep.subr.mxu0 0.0
        %v841 = vand.u32 %v740, 4294901760
        %v842 = vsub.f32 %v740, %v841
        %v843 = vand.u32 %v842, 4294901760
        %v844 = vsub.f32 %v842, %v843
        %v845 = vand.u32 %v844, 4294901760
        %846 = vmatpush1.msra.mxu0 %v845
        %847 = vmatprep.subr.mxu0 0.0
        %848 = vmatpush1.msra.mxu0 0.0
        %849 = vmatprep.subr.mxu0 0.0
        %850 = vmatpush1.msra.mxu0 0.0
        %851 = vmatprep.subr.mxu0 0.0
        %852 = vmatpush1.msra.mxu0 0.0
        %853 = vmatprep.subr.mxu0 0.0
        %854 = vmatpush1.msra.mxu0 0.0
        %855 = vmatprep.subr.mxu0 0.0
        %856 = vmatpush1.msra.mxu0 0.0
        %857 = vmatprep.subr.mxu0 0.0
        %858 = vmatpush1.msra.mxu0 0.0
        %859 = vmatprep.subr.mxu0 0.0
        %860 = vmatpush1.msra.mxu0 0.0
        %861 = vmatprep.subr.mxu0 0.0
        %862 = vmatpush1.msra.mxu0 0.0
        %863 = vmatprep.subr.mxu0 0.0
        %864 = vmatpush1.msra.mxu0 0.0
        %865 = vmatprep.subr.mxu0 0.0
        %866 = vmatpush1.msra.mxu0 0.0
        %867 = vmatprep.subr.mxu0 0.0
        %868 = vmatpush1.msra.mxu0 0.0
        %869 = vmatprep.subr.mxu0 0.0
        %870 = vmatpush1.msra.mxu0 0.0
        %871 = vmatprep.subr.mxu0 0.0
        %872 = vmatpush1.msra.mxu0 0.0
        %873 = vmatprep.subr.mxu0 0.0
        %874 = vmatpush1.msra.mxu0 0.0
        %875 = vmatprep.subr.mxu0 0.0
        %876 = vmatpush1.msra.mxu0 0.0
        %877 = vmatprep.subr.mxu0 0.0
        %878 = vmatpush1.msra.mxu0 0.0
        %879 = vmatprep.subr.mxu0 0.0
        %880 = vmatpush1.msra.mxu0 0.0
        %881 = vmatprep.subr.mxu0 0.0
        %882 = vmatpush1.msra.mxu0 0.0
        %883 = vmatprep.subr.mxu0 0.0
        %884 = vmatpush1.msra.mxu0 0.0
        %885 = vmatprep.subr.mxu0 0.0
        %886 = vmatpush1.msra.mxu0 0.0
        %887 = vmatprep.subr.mxu0 0.0
        %888 = vmatpush1.msra.mxu0 0.0
        %889 = vmatprep.subr.mxu0 0.0
        %890 = vmatpush1.msra.mxu0 0.0
        %891 = vmatprep.subr.mxu0 0.0
        %892 = vmatpush1.msra.mxu0 0.0
        %893 = vmatprep.subr.mxu0 0.0
        %894 = vmatpush1.msra.mxu0 0.0
        %895 = vmatprep.subr.mxu0 0.0
        %896 = vmatpush1.msra.mxu0 0.0
        %897 = vmatprep.subr.mxu0 0.0
        %898 = vmatpush1.msra.mxu0 0.0
        %899 = vmatprep.subr.mxu0 0.0
        %900 = vmatpush1.msra.mxu0 0.0
        %901 = vmatprep.subr.mxu0 0.0
        %902 = vmatpush1.msra.mxu0 0.0
        %903 = vmatprep.subr.mxu0 0.0
        %904 = vmatpush1.msra.mxu0 0.0
        %905 = vmatprep.subr.mxu0 0.0
        %906 = vmatpush1.msra.mxu0 0.0
        %907 = vmatprep.mubr.f32.mxu0 0.0
        %v908 = vand.u32 %v754, 4294901760
        %909 = vmatmul.mubr.f32.gmra.mrb[0].mxu0 %v908
        %v910 = vpop.f32.mrb[0].mxu0
        %v911 = vadd.f32 %v830, %v910
        %v912 = vpop.f32.mrb[0].mxu0
        %913 = vdwg.mxu0
        %914 = vmatprep.subr.mxu0 0.0
        %v915 = vand.u32 %v739, 4294901760
        %v916 = vsub.f32 %v739, %v915
        %917 = vmatpush1.msra.mxu0 %v916
        %918 = vmatprep.subr.mxu0 0.0
        %v919 = vand.u32 %v740, 4294901760
        %v920 = vsub.f32 %v740, %v919
        %921 = vmatpush1.msra.mxu0 %v920
        %922 = vmatprep.subr.mxu0 0.0
        %923 = vmatpush1.msra.mxu0 0.0
        %924 = vmatprep.subr.mxu0 0.0
        %925 = vmatpush1.msra.mxu0 0.0
        %926 = vmatprep.subr.mxu0 0.0
        %927 = vmatpush1.msra.mxu0 0.0
        %928 = vmatprep.subr.mxu0 0.0
        %929 = vmatpush1.msra.mxu0 0.0
        %930 = vmatprep.subr.mxu0 0.0
        %931 = vmatpush1.msra.mxu0 0.0
        %932 = vmatprep.subr.mxu0 0.0
        %933 = vmatpush1.msra.mxu0 0.0
        %934 = vmatprep.subr.mxu0 0.0
        %935 = vmatpush1.msra.mxu0 0.0
        %936 = vmatprep.subr.mxu0 0.0
        %937 = vmatpush1.msra.mxu0 0.0
        %938 = vmatprep.subr.mxu0 0.0
        %939 = vmatpush1.msra.mxu0 0.0
        %940 = vmatprep.subr.mxu0 0.0
        %941 = vmatpush1.msra.mxu0 0.0
        %942 = vmatprep.subr.mxu0 0.0
        %943 = vmatpush1.msra.mxu0 0.0
        %944 = vmatprep.subr.mxu0 0.0
        %945 = vmatpush1.msra.mxu0 0.0
        %946 = vmatprep.subr.mxu0 0.0
        %947 = vmatpush1.msra.mxu0 0.0
        %948 = vmatprep.subr.mxu0 0.0
        %949 = vmatpush1.msra.mxu0 0.0
        %950 = vmatprep.subr.mxu0 0.0
        %951 = vmatpush1.msra.mxu0 0.0
        %952 = vmatprep.subr.mxu0 0.0
        %953 = vmatpush1.msra.mxu0 0.0
        %954 = vmatprep.subr.mxu0 0.0
        %955 = vmatpush1.msra.mxu0 0.0
        %956 = vmatprep.subr.mxu0 0.0
        %957 = vmatpush1.msra.mxu0 0.0
        %958 = vmatprep.subr.mxu0 0.0
        %959 = vmatpush1.msra.mxu0 0.0
        %960 = vmatprep.subr.mxu0 0.0
        %961 = vmatpush1.msra.mxu0 0.0
        %962 = vmatprep.subr.mxu0 0.0
        %963 = vmatpush1.msra.mxu0 0.0
        %964 = vmatprep.subr.mxu0 0.0
        %965 = vmatpush1.msra.mxu0 0.0
        %966 = vmatprep.subr.mxu0 0.0
        %967 = vmatpush1.msra.mxu0 0.0
        %968 = vmatprep.subr.mxu0 0.0
        %969 = vmatpush1.msra.mxu0 0.0
        %970 = vmatprep.subr.mxu0 0.0
        %971 = vmatpush1.msra.mxu0 0.0
        %972 = vmatprep.subr.mxu0 0.0
        %973 = vmatpush1.msra.mxu0 0.0
        %974 = vmatprep.subr.mxu0 0.0
        %975 = vmatpush1.msra.mxu0 0.0
        %976 = vmatprep.subr.mxu0 0.0
        %977 = vmatpush1.msra.mxu0 0.0
        %978 = vmatprep.subr.mxu0 0.0
        %979 = vmatpush1.msra.mxu0 0.0
        %980 = vmatprep.subr.mxu0 0.0
        %981 = vmatpush1.msra.mxu0 0.0
        %982 = vmatprep.mubr.f32.mxu0 0.0
        %v983 = vand.u32 %v754, 4294901760
        %v984 = vsub.f32 %v754, %v983
        %985 = vmatmul.mubr.f32.gmra.mrb[0].mxu0 %v984
        %v986 = vpop.f32.mrb[0].mxu0
        %v987 = vadd.f32 %v911, %v986
        %v988 = vpop.f32.mrb[0].mxu0
        %989 = vdwg.mxu0
        %990 = vmatprep.subr.mxu0 0.0
        %v991 = vand.u32 %v739, 4294901760
        %992 = vmatpush1.msra.mxu0 %v991
        %993 = vmatprep.subr.mxu0 0.0
        %v994 = vand.u32 %v740, 4294901760
        %995 = vmatpush1.msra.mxu0 %v994
        %996 = vmatprep.subr.mxu0 0.0
        %997 = vmatpush1.msra.mxu0 0.0
        %998 = vmatprep.subr.mxu0 0.0
        %999 = vmatpush1.msra.mxu0 0.0
        %1000 = vmatprep.subr.mxu0 0.0
        %1001 = vmatpush1.msra.mxu0 0.0
        %1002 = vmatprep.subr.mxu0 0.0
        %1003 = vmatpush1.msra.mxu0 0.0
        %1004 = vmatprep.subr.mxu0 0.0
        %1005 = vmatpush1.msra.mxu0 0.0
        %1006 = vmatprep.subr.mxu0 0.0
        %1007 = vmatpush1.msra.mxu0 0.0
        %1008 = vmatprep.subr.mxu0 0.0
        %1009 = vmatpush1.msra.mxu0 0.0
        %1010 = vmatprep.subr.mxu0 0.0
        %1011 = vmatpush1.msra.mxu0 0.0
        %1012 = vmatprep.subr.mxu0 0.0
        %1013 = vmatpush1.msra.mxu0 0.0
        %1014 = vmatprep.subr.mxu0 0.0
        %1015 = vmatpush1.msra.mxu0 0.0
        %1016 = vmatprep.subr.mxu0 0.0
        %1017 = vmatpush1.msra.mxu0 0.0
        %1018 = vmatprep.subr.mxu0 0.0
        %1019 = vmatpush1.msra.mxu0 0.0
        %1020 = vmatprep.subr.mxu0 0.0
        %1021 = vmatpush1.msra.mxu0 0.0
        %1022 = vmatprep.subr.mxu0 0.0
        %1023 = vmatpush1.msra.mxu0 0.0
        %1024 = vmatprep.subr.mxu0 0.0
        %1025 = vmatpush1.msra.mxu0 0.0
        %1026 = vmatprep.subr.mxu0 0.0
        %1027 = vmatpush1.msra.mxu0 0.0
        %1028 = vmatprep.subr.mxu0 0.0
        %1029 = vmatpush1.msra.mxu0 0.0
        %1030 = vmatprep.subr.mxu0 0.0
        %1031 = vmatpush1.msra.mxu0 0.0
        %1032 = vmatprep.subr.mxu0 0.0
        %1033 = vmatpush1.msra.mxu0 0.0
        %1034 = vmatprep.subr.mxu0 0.0
        %1035 = vmatpush1.msra.mxu0 0.0
        %1036 = vmatprep.subr.mxu0 0.0
        %1037 = vmatpush1.msra.mxu0 0.0
        %1038 = vmatprep.subr.mxu0 0.0
        %1039 = vmatpush1.msra.mxu0 0.0
        %1040 = vmatprep.subr.mxu0 0.0
        %1041 = vmatpush1.msra.mxu0 0.0
        %1042 = vmatprep.subr.mxu0 0.0
        %1043 = vmatpush1.msra.mxu0 0.0
        %1044 = vmatprep.subr.mxu0 0.0
        %1045 = vmatpush1.msra.mxu0 0.0
        %1046 = vmatprep.subr.mxu0 0.0
        %1047 = vmatpush1.msra.mxu0 0.0
        %1048 = vmatprep.subr.mxu0 0.0
        %1049 = vmatpush1.msra.mxu0 0.0
        %1050 = vmatprep.subr.mxu0 0.0
        %1051 = vmatpush1.msra.mxu0 0.0
        %1052 = vmatprep.subr.mxu0 0.0
        %1053 = vmatpush1.msra.mxu0 0.0
        %1054 = vmatprep.subr.mxu0 0.0
        %1055 = vmatpush1.msra.mxu0 0.0
        %1056 = vmatprep.mubr.f32.mxu0 0.0
        %v1057 = vand.u32 %v754, 4294901760
        %v1058 = vsub.f32 %v754, %v1057
        %v1059 = vand.u32 %v1058, 4294901760
        %1060 = vmatmul.mubr.f32.gmra.mrb[0].mxu0 %v1059
        %v1061 = vpop.f32.mrb[0].mxu0
        %v1062 = vadd.f32 %v987, %v1061
        %v1063 = vpop.f32.mrb[0].mxu0
        %1064 = vdwg.mxu0
        %1065 = vmatprep.subr.mxu0 0.0
        %v1066 = vand.u32 %v739, 4294901760
        %v1067 = vsub.f32 %v739, %v1066
        %v1068 = vand.u32 %v1067, 4294901760
        %1069 = vmatpush1.msra.mxu0 %v1068
        %1070 = vmatprep.subr.mxu0 0.0
        %v1071 = vand.u32 %v740, 4294901760
        %v1072 = vsub.f32 %v740, %v1071
        %v1073 = vand.u32 %v1072, 4294901760
        %1074 = vmatpush1.msra.mxu0 %v1073
        %1075 = vmatprep.subr.mxu0 0.0
        %1076 = vmatpush1.msra.mxu0 0.0
        %1077 = vmatprep.subr.mxu0 0.0
        %1078 = vmatpush1.msra.mxu0 0.0
        %1079 = vmatprep.subr.mxu0 0.0
        %1080 = vmatpush1.msra.mxu0 0.0
        %1081 = vmatprep.subr.mxu0 0.0
        %1082 = vmatpush1.msra.mxu0 0.0
        %1083 = vmatprep.subr.mxu0 0.0
        %1084 = vmatpush1.msra.mxu0 0.0
        %1085 = vmatprep.subr.mxu0 0.0
        %1086 = vmatpush1.msra.mxu0 0.0
        %1087 = vmatprep.subr.mxu0 0.0
        %1088 = vmatpush1.msra.mxu0 0.0
        %1089 = vmatprep.subr.mxu0 0.0
        %1090 = vmatpush1.msra.mxu0 0.0
        %1091 = vmatprep.subr.mxu0 0.0
        %1092 = vmatpush1.msra.mxu0 0.0
        %1093 = vmatprep.subr.mxu0 0.0
        %1094 = vmatpush1.msra.mxu0 0.0
        %1095 = vmatprep.subr.mxu0 0.0
        %1096 = vmatpush1.msra.mxu0 0.0
        %1097 = vmatprep.subr.mxu0 0.0
        %1098 = vmatpush1.msra.mxu0 0.0
        %1099 = vmatprep.subr.mxu0 0.0
        %1100 = vmatpush1.msra.mxu0 0.0
        %1101 = vmatprep.subr.mxu0 0.0
        %1102 = vmatpush1.msra.mxu0 0.0
        %1103 = vmatprep.subr.mxu0 0.0
        %1104 = vmatpush1.msra.mxu0 0.0
        %1105 = vmatprep.subr.mxu0 0.0
        %1106 = vmatpush1.msra.mxu0 0.0
        %1107 = vmatprep.subr.mxu0 0.0
        %1108 = vmatpush1.msra.mxu0 0.0
        %1109 = vmatprep.subr.mxu0 0.0
        %1110 = vmatpush1.msra.mxu0 0.0
        %1111 = vmatprep.subr.mxu0 0.0
        %1112 = vmatpush1.msra.mxu0 0.0
        %1113 = vmatprep.subr.mxu0 0.0
        %1114 = vmatpush1.msra.mxu0 0.0
        %1115 = vmatprep.subr.mxu0 0.0
        %1116 = vmatpush1.msra.mxu0 0.0
        %1117 = vmatprep.subr.mxu0 0.0
        %1118 = vmatpush1.msra.mxu0 0.0
        %1119 = vmatprep.subr.mxu0 0.0
        %1120 = vmatpush1.msra.mxu0 0.0
        %1121 = vmatprep.subr.mxu0 0.0
        %1122 = vmatpush1.msra.mxu0 0.0
        %1123 = vmatprep.subr.mxu0 0.0
        %1124 = vmatpush1.msra.mxu0 0.0
        %1125 = vmatprep.subr.mxu0 0.0
        %1126 = vmatpush1.msra.mxu0 0.0
        %1127 = vmatprep.subr.mxu0 0.0
        %1128 = vmatpush1.msra.mxu0 0.0
        %1129 = vmatprep.subr.mxu0 0.0
        %1130 = vmatpush1.msra.mxu0 0.0
        %1131 = vmatprep.subr.mxu0 0.0
        %1132 = vmatpush1.msra.mxu0 0.0
        %1133 = vmatprep.subr.mxu0 0.0
        %1134 = vmatpush1.msra.mxu0 0.0
        %1135 = vmatprep.mubr.f32.mxu0 0.0
        %v1136 = vand.u32 %v754, 4294901760
        %1137 = vmatmul.mubr.f32.gmra.mrb[0].mxu0 %v1136
        %v1138 = vpop.f32.mrb[0].mxu0
        %v1139 = vadd.f32 %v1062, %v1138
        %v1140 = vpop.f32.mrb[0].mxu0
        %1141 = vdwg.mxu0
        %1142 = vmatprep.subr.mxu0 0.0
        %v1143 = vand.u32 %v739, 4294901760
        %1144 = vmatpush1.msra.mxu0 %v1143
        %1145 = vmatprep.subr.mxu0 0.0
        %v1146 = vand.u32 %v740, 4294901760
        %1147 = vmatpush1.msra.mxu0 %v1146
        %1148 = vmatprep.subr.mxu0 0.0
        %1149 = vmatpush1.msra.mxu0 0.0
        %1150 = vmatprep.subr.mxu0 0.0
        %1151 = vmatpush1.msra.mxu0 0.0
        %1152 = vmatprep.subr.mxu0 0.0
        %1153 = vmatpush1.msra.mxu0 0.0
        %1154 = vmatprep.subr.mxu0 0.0
        %1155 = vmatpush1.msra.mxu0 0.0
        %1156 = vmatprep.subr.mxu0 0.0
        %1157 = vmatpush1.msra.mxu0 0.0
        %1158 = vmatprep.subr.mxu0 0.0
        %1159 = vmatpush1.msra.mxu0 0.0
        %1160 = vmatprep.subr.mxu0 0.0
        %1161 = vmatpush1.msra.mxu0 0.0
        %1162 = vmatprep.subr.mxu0 0.0
        %1163 = vmatpush1.msra.mxu0 0.0
        %1164 = vmatprep.subr.mxu0 0.0
        %1165 = vmatpush1.msra.mxu0 0.0
        %1166 = vmatprep.subr.mxu0 0.0
        %1167 = vmatpush1.msra.mxu0 0.0
        %1168 = vmatprep.subr.mxu0 0.0
        %1169 = vmatpush1.msra.mxu0 0.0
        %1170 = vmatprep.subr.mxu0 0.0
        %1171 = vmatpush1.msra.mxu0 0.0
        %1172 = vmatprep.subr.mxu0 0.0
        %1173 = vmatpush1.msra.mxu0 0.0
        %1174 = vmatprep.subr.mxu0 0.0
        %1175 = vmatpush1.msra.mxu0 0.0
        %1176 = vmatprep.subr.mxu0 0.0
        %1177 = vmatpush1.msra.mxu0 0.0
        %1178 = vmatprep.subr.mxu0 0.0
        %1179 = vmatpush1.msra.mxu0 0.0
        %1180 = vmatprep.subr.mxu0 0.0
        %1181 = vmatpush1.msra.mxu0 0.0
        %1182 = vmatprep.subr.mxu0 0.0
        %1183 = vmatpush1.msra.mxu0 0.0
        %1184 = vmatprep.subr.mxu0 0.0
        %1185 = vmatpush1.msra.mxu0 0.0
        %1186 = vmatprep.subr.mxu0 0.0
        %1187 = vmatpush1.msra.mxu0 0.0
        %1188 = vmatprep.subr.mxu0 0.0
        %1189 = vmatpush1.msra.mxu0 0.0
        %1190 = vmatprep.subr.mxu0 0.0
        %1191 = vmatpush1.msra.mxu0 0.0
        %1192 = vmatprep.subr.mxu0 0.0
        %1193 = vmatpush1.msra.mxu0 0.0
        %1194 = vmatprep.subr.mxu0 0.0
        %1195 = vmatpush1.msra.mxu0 0.0
        %1196 = vmatprep.subr.mxu0 0.0
        %1197 = vmatpush1.msra.mxu0 0.0
        %1198 = vmatprep.subr.mxu0 0.0
        %1199 = vmatpush1.msra.mxu0 0.0
        %1200 = vmatprep.subr.mxu0 0.0
        %1201 = vmatpush1.msra.mxu0 0.0
        %1202 = vmatprep.subr.mxu0 0.0
        %1203 = vmatpush1.msra.mxu0 0.0
        %1204 = vmatprep.subr.mxu0 0.0
        %1205 = vmatpush1.msra.mxu0 0.0
        %1206 = vmatprep.subr.mxu0 0.0
        %1207 = vmatpush1.msra.mxu0 0.0
        %1208 = vmatprep.mubr.f32.mxu0 0.0
        %v1209 = vand.u32 %v754, 4294901760
        %1210 = vmatmul.mubr.f32.gmra.mrb[0].mxu0 %v1209
        %v1211 = vpop.f32.mrb[0].mxu0
        %v1212 = vadd.f32 %v1139, %v1211
        %v1213 = vpop.f32.mrb[0].mxu0
        %1214 = vdwg.mxu0
        %v1215 = vmax.f32 %v1212, 0.0
        %v1216 = vld [vmem:[%s14] sm:$0xff]
        %v1217 = vld [vmem:[%s14 + $0x8] sm:$0xff]
        %v1218 = vld [vmem:[%s14 + $0x10] sm:$0xff]
        %v1219 = vld [vmem:[%s14 + $0x18] sm:$0xff]
        %v1220 = vld [vmem:[%s14 + $0x20] sm:$0xff]
        %v1221 = vld [vmem:[%s14 + $0x28] sm:$0xff]
        %v1222 = vld [vmem:[%s14 + $0x30] sm:$0xff]
        %v1223 = vld [vmem:[%s14 + $0x38] sm:$0xff]
        %vm1224 = vcmask 523264
        %v1226 = vsel %vm1224, %v1215, 0
        %1228 = vmatprep.subr.mxu0 0.0
        %v1229 = vand.u32 %v1216, 4294901760
        %1230 = vmatpush1.msra.mxu0 %v1229
        %1231 = vmatprep.subr.mxu0 0.0
        %v1232 = vand.u32 %v1217, 4294901760
        %1233 = vmatpush1.msra.mxu0 %v1232
        %1234 = vmatprep.subr.mxu0 0.0
        %v1235 = vand.u32 %v1218, 4294901760
        %1236 = vmatpush1.msra.mxu0 %v1235
        %1237 = vmatprep.subr.mxu0 0.0
        %v1238 = vand.u32 %v1219, 4294901760
        %1239 = vmatpush1.msra.mxu0 %v1238
        %1240 = vmatprep.subr.mxu0 0.0
        %v1241 = vand.u32 %v1220, 4294901760
        %1242 = vmatpush1.msra.mxu0 %v1241
        %1243 = vmatprep.subr.mxu0 0.0
        %v1244 = vand.u32 %v1221, 4294901760
        %1245 = vmatpush1.msra.mxu0 %v1244
        %1246 = vmatprep.subr.mxu0 0.0
        %v1247 = vand.u32 %v1222, 4294901760
        %1248 = vmatpush1.msra.mxu0 %v1247
        %1249 = vmatprep.subr.mxu0 0.0
        %v1250 = vand.u32 %v1223, 4294901760
        %1251 = vmatpush1.msra.mxu0 %v1250
        %1252 = vmatprep.subr.mxu0 0.0
        %1253 = vmatpush1.msra.mxu0 0.0
        %1254 = vmatprep.subr.mxu0 0.0
        %1255 = vmatpush1.msra.mxu0 0.0
        %1256 = vmatprep.subr.mxu0 0.0
        %1257 = vmatpush1.msra.mxu0 0.0
        %1258 = vmatprep.subr.mxu0 0.0
        %1259 = vmatpush1.msra.mxu0 0.0
        %1260 = vmatprep.subr.mxu0 0.0
        %1261 = vmatpush1.msra.mxu0 0.0
        %1262 = vmatprep.subr.mxu0 0.0
        %1263 = vmatpush1.msra.mxu0 0.0
        %1264 = vmatprep.subr.mxu0 0.0
        %1265 = vmatpush1.msra.mxu0 0.0
        %1266 = vmatprep.subr.mxu0 0.0
        %1267 = vmatpush1.msra.mxu0 0.0
        %1268 = vmatprep.subr.mxu0 0.0
        %1269 = vmatpush1.msra.mxu0 0.0
        %1270 = vmatprep.subr.mxu0 0.0
        %1271 = vmatpush1.msra.mxu0 0.0
        %1272 = vmatprep.subr.mxu0 0.0
        %1273 = vmatpush1.msra.mxu0 0.0
        %1274 = vmatprep.subr.mxu0 0.0
        %1275 = vmatpush1.msra.mxu0 0.0
        %1276 = vmatprep.subr.mxu0 0.0
        %1277 = vmatpush1.msra.mxu0 0.0
        %1278 = vmatprep.subr.mxu0 0.0
        %1279 = vmatpush1.msra.mxu0 0.0
        %1280 = vmatprep.subr.mxu0 0.0
        %1281 = vmatpush1.msra.mxu0 0.0
        %1282 = vmatprep.subr.mxu0 0.0
        %1283 = vmatpush1.msra.mxu0 0.0
        %1284 = vmatprep.subr.mxu0 0.0
        %1285 = vmatpush1.msra.mxu0 0.0
        %1286 = vmatprep.subr.mxu0 0.0
        %1287 = vmatpush1.msra.mxu0 0.0
        %1288 = vmatprep.subr.mxu0 0.0
        %1289 = vmatpush1.msra.mxu0 0.0
        %1290 = vmatprep.subr.mxu0 0.0
        %1291 = vmatpush1.msra.mxu0 0.0
        %1292 = vmatprep.subr.mxu0 0.0
        %1293 = vmatpush1.msra.mxu0 0.0
        %1294 = vmatprep.subr.mxu0 0.0
        %1295 = vmatpush1.msra.mxu0 0.0
        %1296 = vmatprep.subr.mxu0 0.0
        %1297 = vmatpush1.msra.mxu0 0.0
        %1298 = vmatprep.subr.mxu0 0.0
        %1299 = vmatpush1.msra.mxu0 0.0
        %1300 = vmatprep.mubr.f32.mxu0 0.0
        %v1301 = vand.u32 %v1226, 4294901760
        %v1302 = vsub.f32 %v1226, %v1301
        %v1303 = vand.u32 %v1302, 4294901760
        %v1304 = vsub.f32 %v1302, %v1303
        %v1305 = vand.u32 %v1304, 4294901760
        %1306 = vmatmul.mubr.f32.gmra.mrb[0].mxu0 %v1305
        %v1307 = vpop.f32.mrb[0].mxu0
        %v1308 = vadd.f32 0.0, %v1307
        %v1309 = vpop.f32.mrb[0].mxu0
        %1310 = vdwg.mxu0
        %1311 = vmatprep.subr.mxu0 0.0
        %v1312 = vand.u32 %v1216, 4294901760
        %v1313 = vsub.f32 %v1216, %v1312
        %v1314 = vand.u32 %v1313, 4294901760
        %v1315 = vsub.f32 %v1313, %v1314
        %v1316 = vand.u32 %v1315, 4294901760
        %1317 = vmatpush1.msra.mxu0 %v1316
        %1318 = vmatprep.subr.mxu0 0.0
        %v1319 = vand.u32 %v1217, 4294901760
        %v1320 = vsub.f32 %v1217, %v1319
        %v1321 = vand.u32 %v1320, 4294901760
        %v1322 = vsub.f32 %v1320, %v1321
        %v1323 = vand.u32 %v1322, 4294901760
        %1324 = vmatpush1.msra.mxu0 %v1323
        %1325 = vmatprep.subr.mxu0 0.0
        %v1326 = vand.u32 %v1218, 4294901760
        %v1327 = vsub.f32 %v1218, %v1326
        %v1328 = vand.u32 %v1327, 4294901760
        %v1329 = vsub.f32 %v1327, %v1328
        %v1330 = vand.u32 %v1329, 4294901760
        %1331 = vmatpush1.msra.mxu0 %v1330
        %1332 = vmatprep.subr.mxu0 0.0
        %v1333 = vand.u32 %v1219, 4294901760
        %v1334 = vsub.f32 %v1219, %v1333
        %v1335 = vand.u32 %v1334, 4294901760
        %v1336 = vsub.f32 %v1334, %v1335
        %v1337 = vand.u32 %v1336, 4294901760
        %1338 = vmatpush1.msra.mxu0 %v1337
        %1339 = vmatprep.subr.mxu0 0.0
        %v1340 = vand.u32 %v1220, 4294901760
        %v1341 = vsub.f32 %v1220, %v1340
        %v1342 = vand.u32 %v1341, 4294901760
        %v1343 = vsub.f32 %v1341, %v1342
        %v1344 = vand.u32 %v1343, 4294901760
        %1345 = vmatpush1.msra.mxu0 %v1344
        %1346 = vmatprep.subr.mxu0 0.0
        %v1347 = vand.u32 %v1221, 4294901760
        %v1348 = vsub.f32 %v1221, %v1347
        %v1349 = vand.u32 %v1348, 4294901760
        %v1350 = vsub.f32 %v1348, %v1349
        %v1351 = vand.u32 %v1350, 4294901760
        %1352 = vmatpush1.msra.mxu0 %v1351
        %1353 = vmatprep.subr.mxu0 0.0
        %v1354 = vand.u32 %v1222, 4294901760
        %v1355 = vsub.f32 %v1222, %v1354
        %v1356 = vand.u32 %v1355, 4294901760
        %v1357 = vsub.f32 %v1355, %v1356
        %v1358 = vand.u32 %v1357, 4294901760
        %1359 = vmatpush1.msra.mxu0 %v1358
        %1360 = vmatprep.subr.mxu0 0.0
        %v1361 = vand.u32 %v1223, 4294901760
        %v1362 = vsub.f32 %v1223, %v1361
        %v1363 = vand.u32 %v1362, 4294901760
        %v1364 = vsub.f32 %v1362, %v1363
        %v1365 = vand.u32 %v1364, 4294901760
        %1366 = vmatpush1.msra.mxu0 %v1365
        %1367 = vmatprep.subr.mxu0 0.0
        %1368 = vmatpush1.msra.mxu0 0.0
        %1369 = vmatprep.subr.mxu0 0.0
        %1370 = vmatpush1.msra.mxu0 0.0
        %1371 = vmatprep.subr.mxu0 0.0
        %1372 = vmatpush1.msra.mxu0 0.0
        %1373 = vmatprep.subr.mxu0 0.0
        %1374 = vmatpush1.msra.mxu0 0.0
        %1375 = vmatprep.subr.mxu0 0.0
        %1376 = vmatpush1.msra.mxu0 0.0
        %1377 = vmatprep.subr.mxu0 0.0
        %1378 = vmatpush1.msra.mxu0 0.0
        %1379 = vmatprep.subr.mxu0 0.0
        %1380 = vmatpush1.msra.mxu0 0.0
        %1381 = vmatprep.subr.mxu0 0.0
        %1382 = vmatpush1.msra.mxu0 0.0
        %1383 = vmatprep.subr.mxu0 0.0
        %1384 = vmatpush1.msra.mxu0 0.0
        %1385 = vmatprep.subr.mxu0 0.0
        %1386 = vmatpush1.msra.mxu0 0.0
        %1387 = vmatprep.subr.mxu0 0.0
        %1388 = vmatpush1.msra.mxu0 0.0
        %1389 = vmatprep.subr.mxu0 0.0
        %1390 = vmatpush1.msra.mxu0 0.0
        %1391 = vmatprep.subr.mxu0 0.0
        %1392 = vmatpush1.msra.mxu0 0.0
        %1393 = vmatprep.subr.mxu0 0.0
        %1394 = vmatpush1.msra.mxu0 0.0
        %1395 = vmatprep.subr.mxu0 0.0
        %1396 = vmatpush1.msra.mxu0 0.0
        %1397 = vmatprep.subr.mxu0 0.0
        %1398 = vmatpush1.msra.mxu0 0.0
        %1399 = vmatprep.subr.mxu0 0.0
        %1400 = vmatpush1.msra.mxu0 0.0
        %1401 = vmatprep.subr.mxu0 0.0
        %1402 = vmatpush1.msra.mxu0 0.0
        %1403 = vmatprep.subr.mxu0 0.0
        %1404 = vmatpush1.msra.mxu0 0.0
        %1405 = vmatprep.subr.mxu0 0.0
        %1406 = vmatpush1.msra.mxu0 0.0
        %1407 = vmatprep.subr.mxu0 0.0
        %1408 = vmatpush1.msra.mxu0 0.0
        %1409 = vmatprep.subr.mxu0 0.0
        %1410 = vmatpush1.msra.mxu0 0.0
        %1411 = vmatprep.subr.mxu0 0.0
        %1412 = vmatpush1.msra.mxu0 0.0
        %1413 = vmatprep.subr.mxu0 0.0
        %1414 = vmatpush1.msra.mxu0 0.0
        %1415 = vmatprep.mubr.f32.mxu0 0.0
        %v1416 = vand.u32 %v1226, 4294901760
        %1417 = vmatmul.mubr.f32.gmra.mrb[0].mxu0 %v1416
        %v1418 = vpop.f32.mrb[0].mxu0
        %v1419 = vadd.f32 %v1308, %v1418
        %v1420 = vpop.f32.mrb[0].mxu0
        %1421 = vdwg.mxu0
        %1422 = vmatprep.subr.mxu0 0.0
        %v1423 = vand.u32 %v1216, 4294901760
        %v1424 = vsub.f32 %v1216, %v1423
        %1425 = vmatpush1.msra.mxu0 %v1424
        %1426 = vmatprep.subr.mxu0 0.0
        %v1427 = vand.u32 %v1217, 4294901760
        %v1428 = vsub.f32 %v1217, %v1427
        %1429 = vmatpush1.msra.mxu0 %v1428
        %1430 = vmatprep.subr.mxu0 0.0
        %v1431 = vand.u32 %v1218, 4294901760
        %v1432 = vsub.f32 %v1218, %v1431
        %1433 = vmatpush1.msra.mxu0 %v1432
        %1434 = vmatprep.subr.mxu0 0.0
        %v1435 = vand.u32 %v1219, 4294901760
        %v1436 = vsub.f32 %v1219, %v1435
        %1437 = vmatpush1.msra.mxu0 %v1436
        %1438 = vmatprep.subr.mxu0 0.0
        %v1439 = vand.u32 %v1220, 4294901760
        %v1440 = vsub.f32 %v1220, %v1439
        %1441 = vmatpush1.msra.mxu0 %v1440
        %1442 = vmatprep.subr.mxu0 0.0
        %v1443 = vand.u32 %v1221, 4294901760
        %v1444 = vsub.f32 %v1221, %v1443
        %1445 = vmatpush1.msra.mxu0 %v1444
        %1446 = vmatprep.subr.mxu0 0.0
        %v1447 = vand.u32 %v1222, 4294901760
        %v1448 = vsub.f32 %v1222, %v1447
        %1449 = vmatpush1.msra.mxu0 %v1448
        %1450 = vmatprep.subr.mxu0 0.0
        %v1451 = vand.u32 %v1223, 4294901760
        %v1452 = vsub.f32 %v1223, %v1451
        %1453 = vmatpush1.msra.mxu0 %v1452
        %1454 = vmatprep.subr.mxu0 0.0
        %1455 = vmatpush1.msra.mxu0 0.0
        %1456 = vmatprep.subr.mxu0 0.0
        %1457 = vmatpush1.msra.mxu0 0.0
        %1458 = vmatprep.subr.mxu0 0.0
        %1459 = vmatpush1.msra.mxu0 0.0
        %1460 = vmatprep.subr.mxu0 0.0
        %1461 = vmatpush1.msra.mxu0 0.0
        %1462 = vmatprep.subr.mxu0 0.0
        %1463 = vmatpush1.msra.mxu0 0.0
        %1464 = vmatprep.subr.mxu0 0.0
        %1465 = vmatpush1.msra.mxu0 0.0
        %1466 = vmatprep.subr.mxu0 0.0
        %1467 = vmatpush1.msra.mxu0 0.0
        %1468 = vmatprep.subr.mxu0 0.0
        %1469 = vmatpush1.msra.mxu0 0.0
        %1470 = vmatprep.subr.mxu0 0.0
        %1471 = vmatpush1.msra.mxu0 0.0
        %1472 = vmatprep.subr.mxu0 0.0
        %1473 = vmatpush1.msra.mxu0 0.0
        %1474 = vmatprep.subr.mxu0 0.0
        %1475 = vmatpush1.msra.mxu0 0.0
        %1476 = vmatprep.subr.mxu0 0.0
        %1477 = vmatpush1.msra.mxu0 0.0
        %1478 = vmatprep.subr.mxu0 0.0
        %1479 = vmatpush1.msra.mxu0 0.0
        %1480 = vmatprep.subr.mxu0 0.0
        %1481 = vmatpush1.msra.mxu0 0.0
        %1482 = vmatprep.subr.mxu0 0.0
        %1483 = vmatpush1.msra.mxu0 0.0
        %1484 = vmatprep.subr.mxu0 0.0
        %1485 = vmatpush1.msra.mxu0 0.0
        %1486 = vmatprep.subr.mxu0 0.0
        %1487 = vmatpush1.msra.mxu0 0.0
        %1488 = vmatprep.subr.mxu0 0.0
        %1489 = vmatpush1.msra.mxu0 0.0
        %1490 = vmatprep.subr.mxu0 0.0
        %1491 = vmatpush1.msra.mxu0 0.0
        %1492 = vmatprep.subr.mxu0 0.0
        %1493 = vmatpush1.msra.mxu0 0.0
        %1494 = vmatprep.subr.mxu0 0.0
        %1495 = vmatpush1.msra.mxu0 0.0
        %1496 = vmatprep.subr.mxu0 0.0
        %1497 = vmatpush1.msra.mxu0 0.0
        %1498 = vmatprep.subr.mxu0 0.0
        %1499 = vmatpush1.msra.mxu0 0.0
        %1500 = vmatprep.subr.mxu0 0.0
        %1501 = vmatpush1.msra.mxu0 0.0
        %1502 = vmatprep.mubr.f32.mxu0 0.0
        %v1503 = vand.u32 %v1226, 4294901760
        %v1504 = vsub.f32 %v1226, %v1503
        %1505 = vmatmul.mubr.f32.gmra.mrb[0].mxu0 %v1504
        %v1506 = vpop.f32.mrb[0].mxu0
        %v1507 = vadd.f32 %v1419, %v1506
        %v1508 = vpop.f32.mrb[0].mxu0
        %1509 = vdwg.mxu0
        %1510 = vmatprep.subr.mxu0 0.0
        %v1511 = vand.u32 %v1216, 4294901760
        %1512 = vmatpush1.msra.mxu0 %v1511
        %1513 = vmatprep.subr.mxu0 0.0
        %v1514 = vand.u32 %v1217, 4294901760
        %1515 = vmatpush1.msra.mxu0 %v1514
        %1516 = vmatprep.subr.mxu0 0.0
        %v1517 = vand.u32 %v1218, 4294901760
        %1518 = vmatpush1.msra.mxu0 %v1517
        %1519 = vmatprep.subr.mxu0 0.0
        %v1520 = vand.u32 %v1219, 4294901760
        %1521 = vmatpush1.msra.mxu0 %v1520
        %1522 = vmatprep.subr.mxu0 0.0
        %v1523 = vand.u32 %v1220, 4294901760
        %1524 = vmatpush1.msra.mxu0 %v1523
        %1525 = vmatprep.subr.mxu0 0.0
        %v1526 = vand.u32 %v1221, 4294901760
        %1527 = vmatpush1.msra.mxu0 %v1526
        %1528 = vmatprep.subr.mxu0 0.0
        %v1529 = vand.u32 %v1222, 4294901760
        %1530 = vmatpush1.msra.mxu0 %v1529
        %1531 = vmatprep.subr.mxu0 0.0
        %v1532 = vand.u32 %v1223, 4294901760
        %1533 = vmatpush1.msra.mxu0 %v1532
        %1534 = vmatprep.subr.mxu0 0.0
        %1535 = vmatpush1.msra.mxu0 0.0
        %1536 = vmatprep.subr.mxu0 0.0
        %1537 = vmatpush1.msra.mxu0 0.0
        %1538 = vmatprep.subr.mxu0 0.0
        %1539 = vmatpush1.msra.mxu0 0.0
        %1540 = vmatprep.subr.mxu0 0.0
        %1541 = vmatpush1.msra.mxu0 0.0
        %1542 = vmatprep.subr.mxu0 0.0
        %1543 = vmatpush1.msra.mxu0 0.0
        %1544 = vmatprep.subr.mxu0 0.0
        %1545 = vmatpush1.msra.mxu0 0.0
        %1546 = vmatprep.subr.mxu0 0.0
        %1547 = vmatpush1.msra.mxu0 0.0
        %1548 = vmatprep.subr.mxu0 0.0
        %1549 = vmatpush1.msra.mxu0 0.0
        %1550 = vmatprep.subr.mxu0 0.0
        %1551 = vmatpush1.msra.mxu0 0.0
        %1552 = vmatprep.subr.mxu0 0.0
        %1553 = vmatpush1.msra.mxu0 0.0
        %1554 = vmatprep.subr.mxu0 0.0
        %1555 = vmatpush1.msra.mxu0 0.0
        %1556 = vmatprep.subr.mxu0 0.0
        %1557 = vmatpush1.msra.mxu0 0.0
        %1558 = vmatprep.subr.mxu0 0.0
        %1559 = vmatpush1.msra.mxu0 0.0
        %1560 = vmatprep.subr.mxu0 0.0
        %1561 = vmatpush1.msra.mxu0 0.0
        %1562 = vmatprep.subr.mxu0 0.0
        %1563 = vmatpush1.msra.mxu0 0.0
        %1564 = vmatprep.subr.mxu0 0.0
        %1565 = vmatpush1.msra.mxu0 0.0
        %1566 = vmatprep.subr.mxu0 0.0
        %1567 = vmatpush1.msra.mxu0 0.0
        %1568 = vmatprep.subr.mxu0 0.0
        %1569 = vmatpush1.msra.mxu0 0.0
        %1570 = vmatprep.subr.mxu0 0.0
        %1571 = vmatpush1.msra.mxu0 0.0
        %1572 = vmatprep.subr.mxu0 0.0
        %1573 = vmatpush1.msra.mxu0 0.0
        %1574 = vmatprep.subr.mxu0 0.0
        %1575 = vmatpush1.msra.mxu0 0.0
        %1576 = vmatprep.subr.mxu0 0.0
        %1577 = vmatpush1.msra.mxu0 0.0
        %1578 = vmatprep.subr.mxu0 0.0
        %1579 = vmatpush1.msra.mxu0 0.0
        %1580 = vmatprep.subr.mxu0 0.0
        %1581 = vmatpush1.msra.mxu0 0.0
        %1582 = vmatprep.mubr.f32.mxu0 0.0
        %v1583 = vand.u32 %v1226, 4294901760
        %v1584 = vsub.f32 %v1226, %v1583
        %v1585 = vand.u32 %v1584, 4294901760
        %1586 = vmatmul.mubr.f32.gmra.mrb[0].mxu0 %v1585
        %v1587 = vpop.f32.mrb[0].mxu0
        %v1588 = vadd.f32 %v1507, %v1587
        %v1589 = vpop.f32.mrb[0].mxu0
        %1590 = vdwg.mxu0
        %1591 = vmatprep.subr.mxu0 0.0
        %v1592 = vand.u32 %v1216, 4294901760
        %v1593 = vsub.f32 %v1216, %v1592
        %v1594 = vand.u32 %v1593, 4294901760
        %1595 = vmatpush1.msra.mxu0 %v1594
        %1596 = vmatprep.subr.mxu0 0.0
        %v1597 = vand.u32 %v1217, 4294901760
        %v1598 = vsub.f32 %v1217, %v1597
        %v1599 = vand.u32 %v1598, 4294901760
        %1600 = vmatpush1.msra.mxu0 %v1599
        %1601 = vmatprep.subr.mxu0 0.0
        %v1602 = vand.u32 %v1218, 4294901760
        %v1603 = vsub.f32 %v1218, %v1602
        %v1604 = vand.u32 %v1603, 4294901760
        %1605 = vmatpush1.msra.mxu0 %v1604
        %1606 = vmatprep.subr.mxu0 0.0
        %v1607 = vand.u32 %v1219, 4294901760
        %v1608 = vsub.f32 %v1219, %v1607
        %v1609 = vand.u32 %v1608, 4294901760
        %1610 = vmatpush1.msra.mxu0 %v1609
        %1611 = vmatprep.subr.mxu0 0.0
        %v1612 = vand.u32 %v1220, 4294901760
        %v1613 = vsub.f32 %v1220, %v1612
        %v1614 = vand.u32 %v1613, 4294901760
        %1615 = vmatpush1.msra.mxu0 %v1614
        %1616 = vmatprep.subr.mxu0 0.0
        %v1617 = vand.u32 %v1221, 4294901760
        %v1618 = vsub.f32 %v1221, %v1617
        %v1619 = vand.u32 %v1618, 4294901760
        %1620 = vmatpush1.msra.mxu0 %v1619
        %1621 = vmatprep.subr.mxu0 0.0
        %v1622 = vand.u32 %v1222, 4294901760
        %v1623 = vsub.f32 %v1222, %v1622
        %v1624 = vand.u32 %v1623, 4294901760
        %1625 = vmatpush1.msra.mxu0 %v1624
        %1626 = vmatprep.subr.mxu0 0.0
        %v1627 = vand.u32 %v1223, 4294901760
        %v1628 = vsub.f32 %v1223, %v1627
        %v1629 = vand.u32 %v1628, 4294901760
        %1630 = vmatpush1.msra.mxu0 %v1629
        %1631 = vmatprep.subr.mxu0 0.0
        %1632 = vmatpush1.msra.mxu0 0.0
        %1633 = vmatprep.subr.mxu0 0.0
        %1634 = vmatpush1.msra.mxu0 0.0
        %1635 = vmatprep.subr.mxu0 0.0
        %1636 = vmatpush1.msra.mxu0 0.0
        %1637 = vmatprep.subr.mxu0 0.0
        %1638 = vmatpush1.msra.mxu0 0.0
        %1639 = vmatprep.subr.mxu0 0.0
        %1640 = vmatpush1.msra.mxu0 0.0
        %1641 = vmatprep.subr.mxu0 0.0
        %1642 = vmatpush1.msra.mxu0 0.0
        %1643 = vmatprep.subr.mxu0 0.0
        %1644 = vmatpush1.msra.mxu0 0.0
        %1645 = vmatprep.subr.mxu0 0.0
        %1646 = vmatpush1.msra.mxu0 0.0
        %1647 = vmatprep.subr.mxu0 0.0
        %1648 = vmatpush1.msra.mxu0 0.0
        %1649 = vmatprep.subr.mxu0 0.0
        %1650 = vmatpush1.msra.mxu0 0.0
        %1651 = vmatprep.subr.mxu0 0.0
        %1652 = vmatpush1.msra.mxu0 0.0
        %1653 = vmatprep.subr.mxu0 0.0
        %1654 = vmatpush1.msra.mxu0 0.0
        %1655 = vmatprep.subr.mxu0 0.0
        %1656 = vmatpush1.msra.mxu0 0.0
        %1657 = vmatprep.subr.mxu0 0.0
        %1658 = vmatpush1.msra.mxu0 0.0
        %1659 = vmatprep.subr.mxu0 0.0
        %1660 = vmatpush1.msra.mxu0 0.0
        %1661 = vmatprep.subr.mxu0 0.0
        %1662 = vmatpush1.msra.mxu0 0.0
        %1663 = vmatprep.subr.mxu0 0.0
        %1664 = vmatpush1.msra.mxu0 0.0
        %1665 = vmatprep.subr.mxu0 0.0
        %1666 = vmatpush1.msra.mxu0 0.0
        %1667 = vmatprep.subr.mxu0 0.0
        %1668 = vmatpush1.msra.mxu0 0.0
        %1669 = vmatprep.subr.mxu0 0.0
        %1670 = vmatpush1.msra.mxu0 0.0
        %1671 = vmatprep.subr.mxu0 0.0
        %1672 = vmatpush1.msra.mxu0 0.0
        %1673 = vmatprep.subr.mxu0 0.0
        %1674 = vmatpush1.msra.mxu0 0.0
        %1675 = vmatprep.subr.mxu0 0.0
        %1676 = vmatpush1.msra.mxu0 0.0
        %1677 = vmatprep.subr.mxu0 0.0
        %1678 = vmatpush1.msra.mxu0 0.0
        %1679 = vmatprep.mubr.f32.mxu0 0.0
        %v1680 = vand.u32 %v1226, 4294901760
        %1681 = vmatmul.mubr.f32.gmra.mrb[0].mxu0 %v1680
        %v1682 = vpop.f32.mrb[0].mxu0
        %v1683 = vadd.f32 %v1588, %v1682
        %v1684 = vpop.f32.mrb[0].mxu0
        %1685 = vdwg.mxu0
        %1686 = vmatprep.subr.mxu0 0.0
        %v1687 = vand.u32 %v1216, 4294901760
        %1688 = vmatpush1.msra.mxu0 %v1687
        %1689 = vmatprep.subr.mxu0 0.0
        %v1690 = vand.u32 %v1217, 4294901760
        %1691 = vmatpush1.msra.mxu0 %v1690
        %1692 = vmatprep.subr.mxu0 0.0
        %v1693 = vand.u32 %v1218, 4294901760
        %1694 = vmatpush1.msra.mxu0 %v1693
        %1695 = vmatprep.subr.mxu0 0.0
        %v1696 = vand.u32 %v1219, 4294901760
        %1697 = vmatpush1.msra.mxu0 %v1696
        %1698 = vmatprep.subr.mxu0 0.0
        %v1699 = vand.u32 %v1220, 4294901760
        %1700 = vmatpush1.msra.mxu0 %v1699
        %1701 = vmatprep.subr.mxu0 0.0
        %v1702 = vand.u32 %v1221, 4294901760
        %1703 = vmatpush1.msra.mxu0 %v1702
        %1704 = vmatprep.subr.mxu0 0.0
        %v1705 = vand.u32 %v1222, 4294901760
        %1706 = vmatpush1.msra.mxu0 %v1705
        %1707 = vmatprep.subr.mxu0 0.0
        %v1708 = vand.u32 %v1223, 4294901760
        %1709 = vmatpush1.msra.mxu0 %v1708
        %1710 = vmatprep.subr.mxu0 0.0
        %1711 = vmatpush1.msra.mxu0 0.0
        %1712 = vmatprep.subr.mxu0 0.0
        %1713 = vmatpush1.msra.mxu0 0.0
        %1714 = vmatprep.subr.mxu0 0.0
        %1715 = vmatpush1.msra.mxu0 0.0
        %1716 = vmatprep.subr.mxu0 0.0
        %1717 = vmatpush1.msra.mxu0 0.0
        %1718 = vmatprep.subr.mxu0 0.0
        %1719 = vmatpush1.msra.mxu0 0.0
        %1720 = vmatprep.subr.mxu0 0.0
        %1721 = vmatpush1.msra.mxu0 0.0
        %1722 = vmatprep.subr.mxu0 0.0
        %1723 = vmatpush1.msra.mxu0 0.0
        %1724 = vmatprep.subr.mxu0 0.0
        %1725 = vmatpush1.msra.mxu0 0.0
        %1726 = vmatprep.subr.mxu0 0.0
        %1727 = vmatpush1.msra.mxu0 0.0
        %1728 = vmatprep.subr.mxu0 0.0
        %1729 = vmatpush1.msra.mxu0 0.0
        %1730 = vmatprep.subr.mxu0 0.0
        %1731 = vmatpush1.msra.mxu0 0.0
        %1732 = vmatprep.subr.mxu0 0.0
        %1733 = vmatpush1.msra.mxu0 0.0
        %1734 = vmatprep.subr.mxu0 0.0
        %1735 = vmatpush1.msra.mxu0 0.0
        %1736 = vmatprep.subr.mxu0 0.0
        %1737 = vmatpush1.msra.mxu0 0.0
        %1738 = vmatprep.subr.mxu0 0.0
        %1739 = vmatpush1.msra.mxu0 0.0
        %1740 = vmatprep.subr.mxu0 0.0
        %1741 = vmatpush1.msra.mxu0 0.0
        %1742 = vmatprep.subr.mxu0 0.0
        %1743 = vmatpush1.msra.mxu0 0.0
        %1744 = vmatprep.subr.mxu0 0.0
        %1745 = vmatpush1.msra.mxu0 0.0
        %1746 = vmatprep.subr.mxu0 0.0
        %1747 = vmatpush1.msra.mxu0 0.0
        %1748 = vmatprep.subr.mxu0 0.0
        %1749 = vmatpush1.msra.mxu0 0.0
        %1750 = vmatprep.subr.mxu0 0.0
        %1751 = vmatpush1.msra.mxu0 0.0
        %1752 = vmatprep.subr.mxu0 0.0
        %1753 = vmatpush1.msra.mxu0 0.0
        %1754 = vmatprep.subr.mxu0 0.0
        %1755 = vmatpush1.msra.mxu0 0.0
        %1756 = vmatprep.subr.mxu0 0.0
        %1757 = vmatpush1.msra.mxu0 0.0
        %1758 = vmatprep.mubr.f32.mxu0 0.0
        %v1759 = vand.u32 %v1226, 4294901760
        %1760 = vmatmul.mubr.f32.gmra.mrb[0].mxu0 %v1759
        %v1761 = vpop.f32.mrb[0].mxu0
        %v1762 = vadd.f32 %v1683, %v1761
        %v1763 = vpop.f32.mrb[0].mxu0
        %1764 = vdwg.mxu0
        %v1765 = vld [vmem:[#allocation11] sm:$0xff]
        %v1766 = vld [vmem:[#allocation11 + $0x8] sm:$0xff]
        %v1768 = vsel %vm752, %v741, 0
        %v1771 = vsel %vm752, %v742, 0
        %v1774 = vsel %vm752, %v743, 0
        %v1777 = vsel %vm752, %v744, 0
        %1779 = vmatprep.subr.mxu0 0.0
        %v1780 = vand.u32 %v1765, 4294901760
        %1781 = vmatpush1.msra.mxu0 %v1780
        %1782 = vmatprep.subr.mxu0 0.0
        %v1783 = vand.u32 %v1766, 4294901760
        %1784 = vmatpush1.msra.mxu0 %v1783
        %1785 = vmatprep.subr.mxu0 0.0
        %1786 = vmatpush1.msra.mxu0 0.0
        %1787 = vmatprep.subr.mxu0 0.0
        %1788 = vmatpush1.msra.mxu0 0.0
        %1789 = vmatprep.subr.mxu0 0.0
        %1790 = vmatpush1.msra.mxu0 0.0
        %1791 = vmatprep.subr.mxu0 0.0
        %1792 = vmatpush1.msra.mxu0 0.0
        %1793 = vmatprep.subr.mxu0 0.0
        %1794 = vmatpush1.msra.mxu0 0.0
        %1795 = vmatprep.subr.mxu0 0.0
        %1796 = vmatpush1.msra.mxu0 0.0
        %1797 = vmatprep.subr.mxu0 0.0
        %1798 = vmatpush1.msra.mxu0 0.0
        %1799 = vmatprep.subr.mxu0 0.0
        %1800 = vmatpush1.msra.mxu0 0.0
        %1801 = vmatprep.subr.mxu0 0.0
        %1802 = vmatpush1.msra.mxu0 0.0
        %1803 = vmatprep.subr.mxu0 0.0
        %1804 = vmatpush1.msra.mxu0 0.0
        %1805 = vmatprep.subr.mxu0 0.0
        %1806 = vmatpush1.msra.mxu0 0.0
        %1807 = vmatprep.subr.mxu0 0.0
        %1808 = vmatpush1.msra.mxu0 0.0
        %1809 = vmatprep.subr.mxu0 0.0
        %1810 = vmatpush1.msra.mxu0 0.0
        %1811 = vmatprep.subr.mxu0 0.0
        %1812 = vmatpush1.msra.mxu0 0.0
        %1813 = vmatprep.subr.mxu0 0.0
        %1814 = vmatpush1.msra.mxu0 0.0
        %1815 = vmatprep.subr.mxu0 0.0
        %1816 = vmatpush1.msra.mxu0 0.0
        %1817 = vmatprep.subr.mxu0 0.0
        %1818 = vmatpush1.msra.mxu0 0.0
        %1819 = vmatprep.subr.mxu0 0.0
        %1820 = vmatpush1.msra.mxu0 0.0
        %1821 = vmatprep.subr.mxu0 0.0
        %1822 = vmatpush1.msra.mxu0 0.0
        %1823 = vmatprep.subr.mxu0 0.0
        %1824 = vmatpush1.msra.mxu0 0.0
        %1825 = vmatprep.subr.mxu0 0.0
        %1826 = vmatpush1.msra.mxu0 0.0
        %1827 = vmatprep.subr.mxu0 0.0
        %1828 = vmatpush1.msra.mxu0 0.0
        %1829 = vmatprep.subr.mxu0 0.0
        %1830 = vmatpush1.msra.mxu0 0.0
        %1831 = vmatprep.subr.mxu0 0.0
        %1832 = vmatpush1.msra.mxu0 0.0
        %1833 = vmatprep.subr.mxu0 0.0
        %1834 = vmatpush1.msra.mxu0 0.0
        %1835 = vmatprep.subr.mxu0 0.0
        %1836 = vmatpush1.msra.mxu0 0.0
        %1837 = vmatprep.subr.mxu0 0.0
        %1838 = vmatpush1.msra.mxu0 0.0
        %1839 = vmatprep.subr.mxu0 0.0
        %1840 = vmatpush1.msra.mxu0 0.0
        %1841 = vmatprep.subr.mxu0 0.0
        %1842 = vmatpush1.msra.mxu0 0.0
        %1843 = vmatprep.subr.mxu0 0.0
        %1844 = vmatpush1.msra.mxu0 0.0
        %1845 = vmatprep.mubr.f32.mxu0 0.0
        %v1846 = vand.u32 %v1768, 4294901760
        %v1847 = vsub.f32 %v1768, %v1846
        %v1848 = vand.u32 %v1847, 4294901760
        %v1849 = vsub.f32 %v1847, %v1848
        %v1850 = vand.u32 %v1849, 4294901760
        %1851 = vmatmul.mubr.f32.gmra.mrb[0].mxu0 %v1850
        %v1852 = vpop.f32.mrb[0].mxu0
        %v1853 = vadd.f32 0.0, %v1852
        %v1854 = vpop.f32.mrb[0].mxu0
        %1855 = vmatprep.mubr.f32.mxu0 0.0
        %v1856 = vand.u32 %v1771, 4294901760
        %v1857 = vsub.f32 %v1771, %v1856
        %v1858 = vand.u32 %v1857, 4294901760
        %v1859 = vsub.f32 %v1857, %v1858
        %v1860 = vand.u32 %v1859, 4294901760
        %1861 = vmatmul.mubr.f32.gmra.mrb[0].mxu0 %v1860
        %v1862 = vpop.f32.mrb[0].mxu0
        %v1863 = vadd.f32 0.0, %v1862
        %v1864 = vpop.f32.mrb[0].mxu0
        %1865 = vmatprep.mubr.f32.mxu0 0.0
        %v1866 = vand.u32 %v1774, 4294901760
        %v1867 = vsub.f32 %v1774, %v1866
        %v1868 = vand.u32 %v1867, 4294901760
        %v1869 = vsub.f32 %v1867, %v1868
        %v1870 = vand.u32 %v1869, 4294901760
        %1871 = vmatmul.mubr.f32.gmra.mrb[0].mxu0 %v1870
        %v1872 = vpop.f32.mrb[0].mxu0
        %v1873 = vadd.f32 0.0, %v1872
        %v1874 = vpop.f32.mrb[0].mxu0
        %1875 = vmatprep.mubr.f32.mxu0 0.0
        %v1876 = vand.u32 %v1777, 4294901760
        %v1877 = vsub.f32 %v1777, %v1876
        %v1878 = vand.u32 %v1877, 4294901760
        %v1879 = vsub.f32 %v1877, %v1878
        %v1880 = vand.u32 %v1879, 4294901760
        %1881 = vmatmul.mubr.f32.gmra.mrb[0].mxu0 %v1880
        %v1882 = vpop.f32.mrb[0].mxu0
        %v1883 = vadd.f32 0.0, %v1882
        %v1884 = vpop.f32.mrb[0].mxu0
        %1885 = vdwg.mxu0
        %1886 = vmatprep.subr.mxu0 0.0
        %v1887 = vand.u32 %v1765, 4294901760
        %v1888 = vsub.f32 %v1765, %v1887
        %v1889 = vand.u32 %v1888, 4294901760
        %v1890 = vsub.f32 %v1888, %v1889
        %v1891 = vand.u32 %v1890, 4294901760
        %1892 = vmatpush1.msra.mxu0 %v1891
        %1893 = vmatprep.subr.mxu0 0.0
        %v1894 = vand.u32 %v1766, 4294901760
        %v1895 = vsub.f32 %v1766, %v1894
        %v1896 = vand.u32 %v1895, 4294901760
        %v1897 = vsub.f32 %v1895, %v1896
        %v1898 = vand.u32 %v1897, 4294901760
        %1899 = vmatpush1.msra.mxu0 %v1898
        %1900 = vmatprep.subr.mxu0 0.0
        %1901 = vmatpush1.msra.mxu0 0.0
        %1902 = vmatprep.subr.mxu0 0.0
        %1903 = vmatpush1.msra.mxu0 0.0
        %1904 = vmatprep.subr.mxu0 0.0
        %1905 = vmatpush1.msra.mxu0 0.0
        %1906 = vmatprep.subr.mxu0 0.0
        %1907 = vmatpush1.msra.mxu0 0.0
        %1908 = vmatprep.subr.mxu0 0.0
        %1909 = vmatpush1.msra.mxu0 0.0
        %1910 = vmatprep.subr.mxu0 0.0
        %1911 = vmatpush1.msra.mxu0 0.0
        %1912 = vmatprep.subr.mxu0 0.0
        %1913 = vmatpush1.msra.mxu0 0.0
        %1914 = vmatprep.subr.mxu0 0.0
        %1915 = vmatpush1.msra.mxu0 0.0
        %1916 = vmatprep.subr.mxu0 0.0
        %1917 = vmatpush1.msra.mxu0 0.0
        %1918 = vmatprep.subr.mxu0 0.0
        %1919 = vmatpush1.msra.mxu0 0.0
        %1920 = vmatprep.subr.mxu0 0.0
        %1921 = vmatpush1.msra.mxu0 0.0
        %1922 = vmatprep.subr.mxu0 0.0
        %1923 = vmatpush1.msra.mxu0 0.0
        %1924 = vmatprep.subr.mxu0 0.0
        %1925 = vmatpush1.msra.mxu0 0.0
        %1926 = vmatprep.subr.mxu0 0.0
        %1927 = vmatpush1.msra.mxu0 0.0
        %1928 = vmatprep.subr.mxu0 0.0
        %1929 = vmatpush1.msra.mxu0 0.0
        %1930 = vmatprep.subr.mxu0 0.0
        %1931 = vmatpush1.msra.mxu0 0.0
        %1932 = vmatprep.subr.mxu0 0.0
        %1933 = vmatpush1.msra.mxu0 0.0
        %1934 = vmatprep.subr.mxu0 0.0
        %1935 = vmatpush1.msra.mxu0 0.0
        %1936 = vmatprep.subr.mxu0 0.0
        %1937 = vmatpush1.msra.mxu0 0.0
        %1938 = vmatprep.subr.mxu0 0.0
        %1939 = vmatpush1.msra.mxu0 0.0
        %1940 = vmatprep.subr.mxu0 0.0
        %1941 = vmatpush1.msra.mxu0 0.0
        %1942 = vmatprep.subr.mxu0 0.0
        %1943 = vmatpush1.msra.mxu0 0.0
        %1944 = vmatprep.subr.mxu0 0.0
        %1945 = vmatpush1.msra.mxu0 0.0
        %1946 = vmatprep.subr.mxu0 0.0
        %1947 = vmatpush1.msra.mxu0 0.0
        %1948 = vmatprep.subr.mxu0 0.0
        %1949 = vmatpush1.msra.mxu0 0.0
        %1950 = vmatprep.subr.mxu0 0.0
        %1951 = vmatpush1.msra.mxu0 0.0
        %1952 = vmatprep.subr.mxu0 0.0
        %1953 = vmatpush1.msra.mxu0 0.0
        %1954 = vmatprep.subr.mxu0 0.0
        %1955 = vmatpush1.msra.mxu0 0.0
        %1956 = vmatprep.subr.mxu0 0.0
        %1957 = vmatpush1.msra.mxu0 0.0
        %1958 = vmatprep.subr.mxu0 0.0
        %1959 = vmatpush1.msra.mxu0 0.0
        %1960 = vmatprep.mubr.f32.mxu0 0.0
        %v1961 = vand.u32 %v1768, 4294901760
        %1962 = vmatmul.mubr.f32.gmra.mrb[0].mxu0 %v1961
        %v1963 = vpop.f32.mrb[0].mxu0
        %v1964 = vadd.f32 %v1853, %v1963
        %v1965 = vpop.f32.mrb[0].mxu0
        %1966 = vmatprep.mubr.f32.mxu0 0.0
        %v1967 = vand.u32 %v1771, 4294901760
        %1968 = vmatmul.mubr.f32.gmra.mrb[0].mxu0 %v1967
        %v1969 = vpop.f32.mrb[0].mxu0
        %v1970 = vadd.f32 %v1863, %v1969
        %v1971 = vpop.f32.mrb[0].mxu0
        %1972 = vmatprep.mubr.f32.mxu0 0.0
        %v1973 = vand.u32 %v1774, 4294901760
        %1974 = vmatmul.mubr.f32.gmra.mrb[0].mxu0 %v1973
        %v1975 = vpop.f32.mrb[0].mxu0
        %v1976 = vadd.f32 %v1873, %v1975
        %v1977 = vpop.f32.mrb[0].mxu0
        %1978 = vmatprep.mubr.f32.mxu0 0.0
        %v1979 = vand.u32 %v1777, 4294901760
        %1980 = vmatmul.mubr.f32.gmra.mrb[0].mxu0 %v1979
        %v1981 = vpop.f32.mrb[0].mxu0
        %v1982 = vadd.f32 %v1883, %v1981
        %v1983 = vpop.f32.mrb[0].mxu0
        %1984 = vdwg.mxu0
        %1985 = vmatprep.subr.mxu0 0.0
        %v1986 = vand.u32 %v1765, 4294901760
        %v1987 = vsub.f32 %v1765, %v1986
        %1988 = vmatpush1.msra.mxu0 %v1987
        %1989 = vmatprep.subr.mxu0 0.0
        %v1990 = vand.u32 %v1766, 4294901760
        %v1991 = vsub.f32 %v1766, %v1990
        %1992 = vmatpush1.msra.mxu0 %v1991
        %1993 = vmatprep.subr.mxu0 0.0
        %1994 = vmatpush1.msra.mxu0 0.0
        %1995 = vmatprep.subr.mxu0 0.0
        %1996 = vmatpush1.msra.mxu0 0.0
        %1997 = vmatprep.subr.mxu0 0.0
        %1998 = vmatpush1.msra.mxu0 0.0
        %1999 = vmatprep.subr.mxu0 0.0
        %2000 = vmatpush1.msra.mxu0 0.0
        %2001 = vmatprep.subr.mxu0 0.0
        %2002 = vmatpush1.msra.mxu0 0.0
        %2003 = vmatprep.subr.mxu0 0.0
        %2004 = vmatpush1.msra.mxu0 0.0
        %2005 = vmatprep.subr.mxu0 0.0
        %2006 = vmatpush1.msra.mxu0 0.0
        %2007 = vmatprep.subr.mxu0 0.0
        %2008 = vmatpush1.msra.mxu0 0.0
        %2009 = vmatprep.subr.mxu0 0.0
        %2010 = vmatpush1.msra.mxu0 0.0
        %2011 = vmatprep.subr.mxu0 0.0
        %2012 = vmatpush1.msra.mxu0 0.0
        %2013 = vmatprep.subr.mxu0 0.0
        %2014 = vmatpush1.msra.mxu0 0.0
        %2015 = vmatprep.subr.mxu0 0.0
        %2016 = vmatpush1.msra.mxu0 0.0
        %2017 = vmatprep.subr.mxu0 0.0
        %2018 = vmatpush1.msra.mxu0 0.0
        %2019 = vmatprep.subr.mxu0 0.0
        %2020 = vmatpush1.msra.mxu0 0.0
        %2021 = vmatprep.subr.mxu0 0.0
        %2022 = vmatpush1.msra.mxu0 0.0
        %2023 = vmatprep.subr.mxu0 0.0
        %2024 = vmatpush1.msra.mxu0 0.0
        %2025 = vmatprep.subr.mxu0 0.0
        %2026 = vmatpush1.msra.mxu0 0.0
        %2027 = vmatprep.subr.mxu0 0.0
        %2028 = vmatpush1.msra.mxu0 0.0
        %2029 = vmatprep.subr.mxu0 0.0
        %2030 = vmatpush1.msra.mxu0 0.0
        %2031 = vmatprep.subr.mxu0 0.0
        %2032 = vmatpush1.msra.mxu0 0.0
        %2033 = vmatprep.subr.mxu0 0.0
        %2034 = vmatpush1.msra.mxu0 0.0
        %2035 = vmatprep.subr.mxu0 0.0
        %2036 = vmatpush1.msra.mxu0 0.0
        %2037 = vmatprep.subr.mxu0 0.0
        %2038 = vmatpush1.msra.mxu0 0.0
        %2039 = vmatprep.subr.mxu0 0.0
        %2040 = vmatpush1.msra.mxu0 0.0
        %2041 = vmatprep.subr.mxu0 0.0
        %2042 = vmatpush1.msra.mxu0 0.0
        %2043 = vmatprep.subr.mxu0 0.0
        %2044 = vmatpush1.msra.mxu0 0.0
        %2045 = vmatprep.subr.mxu0 0.0
        %2046 = vmatpush1.msra.mxu0 0.0
        %2047 = vmatprep.subr.mxu0 0.0
        %2048 = vmatpush1.msra.mxu0 0.0
        %2049 = vmatprep.subr.mxu0 0.0
        %2050 = vmatpush1.msra.mxu0 0.0
        %2051 = vmatprep.subr.mxu0 0.0
        %2052 = vmatpush1.msra.mxu0 0.0
        %2053 = vmatprep.mubr.f32.mxu0 0.0
        %v2054 = vand.u32 %v1768, 4294901760
        %v2055 = vsub.f32 %v1768, %v2054
        %2056 = vmatmul.mubr.f32.gmra.mrb[0].mxu0 %v2055
        %v2057 = vpop.f32.mrb[0].mxu0
        %v2058 = vadd.f32 %v1964, %v2057
        %v2059 = vpop.f32.mrb[0].mxu0
        %2060 = vmatprep.mubr.f32.mxu0 0.0
        %v2061 = vand.u32 %v1771, 4294901760
        %v2062 = vsub.f32 %v1771, %v2061
        %2063 = vmatmul.mubr.f32.gmra.mrb[0].mxu0 %v2062
        %v2064 = vpop.f32.mrb[0].mxu0
        %v2065 = vadd.f32 %v1970, %v2064
        %v2066 = vpop.f32.mrb[0].mxu0
        %2067 = vmatprep.mubr.f32.mxu0 0.0
        %v2068 = vand.u32 %v1774, 4294901760
        %v2069 = vsub.f32 %v1774, %v2068
        %2070 = vmatmul.mubr.f32.gmra.mrb[0].mxu0 %v2069
        %v2071 = vpop.f32.mrb[0].mxu0
        %v2072 = vadd.f32 %v1976, %v2071
        %v2073 = vpop.f32.mrb[0].mxu0
        %2074 = vmatprep.mubr.f32.mxu0 0.0
        %v2075 = vand.u32 %v1777, 4294901760
        %v2076 = vsub.f32 %v1777, %v2075
        %2077 = vmatmul.mubr.f32.gmra.mrb[0].mxu0 %v2076
        %v2078 = vpop.f32.mrb[0].mxu0
        %v2079 = vadd.f32 %v1982, %v2078
        %v2080 = vpop.f32.mrb[0].mxu0
        %2081 = vdwg.mxu0
        %2082 = vmatprep.subr.mxu0 0.0
        %v2083 = vand.u32 %v1765, 4294901760
        %2084 = vmatpush1.msra.mxu0 %v2083
        %2085 = vmatprep.subr.mxu0 0.0
        %v2086 = vand.u32 %v1766, 4294901760
        %2087 = vmatpush1.msra.mxu0 %v2086
        %2088 = vmatprep.subr.mxu0 0.0
        %2089 = vmatpush1.msra.mxu0 0.0
        %2090 = vmatprep.subr.mxu0 0.0
        %2091 = vmatpush1.msra.mxu0 0.0
        %2092 = vmatprep.subr.mxu0 0.0
        %2093 = vmatpush1.msra.mxu0 0.0
        %2094 = vmatprep.subr.mxu0 0.0
        %2095 = vmatpush1.msra.mxu0 0.0
        %2096 = vmatprep.subr.mxu0 0.0
        %2097 = vmatpush1.msra.mxu0 0.0
        %2098 = vmatprep.subr.mxu0 0.0
        %2099 = vmatpush1.msra.mxu0 0.0
        %2100 = vmatprep.subr.mxu0 0.0
        %2101 = vmatpush1.msra.mxu0 0.0
        %2102 = vmatprep.subr.mxu0 0.0
        %2103 = vmatpush1.msra.mxu0 0.0
        %2104 = vmatprep.subr.mxu0 0.0
        %2105 = vmatpush1.msra.mxu0 0.0
        %2106 = vmatprep.subr.mxu0 0.0
        %2107 = vmatpush1.msra.mxu0 0.0
        %2108 = vmatprep.subr.mxu0 0.0
        %2109 = vmatpush1.msra.mxu0 0.0
        %2110 = vmatprep.subr.mxu0 0.0
        %2111 = vmatpush1.msra.mxu0 0.0
        %2112 = vmatprep.subr.mxu0 0.0
        %2113 = vmatpush1.msra.mxu0 0.0
        %2114 = vmatprep.subr.mxu0 0.0
        %2115 = vmatpush1.msra.mxu0 0.0
        %2116 = vmatprep.subr.mxu0 0.0
        %2117 = vmatpush1.msra.mxu0 0.0
        %2118 = vmatprep.subr.mxu0 0.0
        %2119 = vmatpush1.msra.mxu0 0.0
        %2120 = vmatprep.subr.mxu0 0.0
        %2121 = vmatpush1.msra.mxu0 0.0
        %2122 = vmatprep.subr.mxu0 0.0
        %2123 = vmatpush1.msra.mxu0 0.0
        %2124 = vmatprep.subr.mxu0 0.0
        %2125 = vmatpush1.msra.mxu0 0.0
        %2126 = vmatprep.subr.mxu0 0.0
        %2127 = vmatpush1.msra.mxu0 0.0
        %2128 = vmatprep.subr.mxu0 0.0
        %2129 = vmatpush1.msra.mxu0 0.0
        %2130 = vmatprep.subr.mxu0 0.0
        %2131 = vmatpush1.msra.mxu0 0.0
        %2132 = vmatprep.subr.mxu0 0.0
        %2133 = vmatpush1.msra.mxu0 0.0
        %2134 = vmatprep.subr.mxu0 0.0
        %2135 = vmatpush1.msra.mxu0 0.0
        %2136 = vmatprep.subr.mxu0 0.0
        %2137 = vmatpush1.msra.mxu0 0.0
        %2138 = vmatprep.subr.mxu0 0.0
        %2139 = vmatpush1.msra.mxu0 0.0
        %2140 = vmatprep.subr.mxu0 0.0
        %2141 = vmatpush1.msra.mxu0 0.0
        %2142 = vmatprep.subr.mxu0 0.0
        %2143 = vmatpush1.msra.mxu0 0.0
        %2144 = vmatprep.subr.mxu0 0.0
        %2145 = vmatpush1.msra.mxu0 0.0
        %2146 = vmatprep.subr.mxu0 0.0
        %2147 = vmatpush1.msra.mxu0 0.0
        %2148 = vmatprep.mubr.f32.mxu0 0.0
        %v2149 = vand.u32 %v1768, 4294901760
        %v2150 = vsub.f32 %v1768, %v2149
        %v2151 = vand.u32 %v2150, 4294901760
        %2152 = vmatmul.mubr.f32.gmra.mrb[0].mxu0 %v2151
        %v2153 = vpop.f32.mrb[0].mxu0
        %v2154 = vadd.f32 %v2058, %v2153
        %v2155 = vpop.f32.mrb[0].mxu0
        %2156 = vmatprep.mubr.f32.mxu0 0.0
        %v2157 = vand.u32 %v1771, 4294901760
        %v2158 = vsub.f32 %v1771, %v2157
        %v2159 = vand.u32 %v2158, 4294901760
        %2160 = vmatmul.mubr.f32.gmra.mrb[0].mxu0 %v2159
        %v2161 = vpop.f32.mrb[0].mxu0
        %v2162 = vadd.f32 %v2065, %v2161
        %v2163 = vpop.f32.mrb[0].mxu0
        %2164 = vmatprep.mubr.f32.mxu0 0.0
        %v2165 = vand.u32 %v1774, 4294901760
        %v2166 = vsub.f32 %v1774, %v2165
        %v2167 = vand.u32 %v2166, 4294901760
        %2168 = vmatmul.mubr.f32.gmra.mrb[0].mxu0 %v2167
        %v2169 = vpop.f32.mrb[0].mxu0
        %v2170 = vadd.f32 %v2072, %v2169
        %v2171 = vpop.f32.mrb[0].mxu0
        %2172 = vmatprep.mubr.f32.mxu0 0.0
        %v2173 = vand.u32 %v1777, 4294901760
        %v2174 = vsub.f32 %v1777, %v2173
        %v2175 = vand.u32 %v2174, 4294901760
        %2176 = vmatmul.mubr.f32.gmra.mrb[0].mxu0 %v2175
        %v2177 = vpop.f32.mrb[0].mxu0
        %v2178 = vadd.f32 %v2079, %v2177
        %v2179 = vpop.f32.mrb[0].mxu0
        %2180 = vdwg.mxu0
        %2181 = vmatprep.subr.mxu0 0.0
        %v2182 = vand.u32 %v1765, 4294901760
        %v2183 = vsub.f32 %v1765, %v2182
        %v2184 = vand.u32 %v2183, 4294901760
        %2185 = vmatpush1.msra.mxu0 %v2184
        %2186 = vmatprep.subr.mxu0 0.0
        %v2187 = vand.u32 %v1766, 4294901760
        %v2188 = vsub.f32 %v1766, %v2187
        %v2189 = vand.u32 %v2188, 4294901760
        %2190 = vmatpush1.msra.mxu0 %v2189
        %2191 = vmatprep.subr.mxu0 0.0
        %2192 = vmatpush1.msra.mxu0 0.0
        %2193 = vmatprep.subr.mxu0 0.0
        %2194 = vmatpush1.msra.mxu0 0.0
        %2195 = vmatprep.subr.mxu0 0.0
        %2196 = vmatpush1.msra.mxu0 0.0
        %2197 = vmatprep.subr.mxu0 0.0
        %2198 = vmatpush1.msra.mxu0 0.0
        %2199 = vmatprep.subr.mxu0 0.0
        %2200 = vmatpush1.msra.mxu0 0.0
        %2201 = vmatprep.subr.mxu0 0.0
        %2202 = vmatpush1.msra.mxu0 0.0
        %2203 = vmatprep.subr.mxu0 0.0
        %2204 = vmatpush1.msra.mxu0 0.0
        %2205 = vmatprep.subr.mxu0 0.0
        %2206 = vmatpush1.msra.mxu0 0.0
        %2207 = vmatprep.subr.mxu0 0.0
        %2208 = vmatpush1.msra.mxu0 0.0
        %2209 = vmatprep.subr.mxu0 0.0
        %2210 = vmatpush1.msra.mxu0 0.0
        %2211 = vmatprep.subr.mxu0 0.0
        %2212 = vmatpush1.msra.mxu0 0.0
        %2213 = vmatprep.subr.mxu0 0.0
        %2214 = vmatpush1.msra.mxu0 0.0
        %2215 = vmatprep.subr.mxu0 0.0
        %2216 = vmatpush1.msra.mxu0 0.0
        %2217 = vmatprep.subr.mxu0 0.0
        %2218 = vmatpush1.msra.mxu0 0.0
        %2219 = vmatprep.subr.mxu0 0.0
        %2220 = vmatpush1.msra.mxu0 0.0
        %2221 = vmatprep.subr.mxu0 0.0
        %2222 = vmatpush1.msra.mxu0 0.0
        %2223 = vmatprep.subr.mxu0 0.0
        %2224 = vmatpush1.msra.mxu0 0.0
        %2225 = vmatprep.subr.mxu0 0.0
        %2226 = vmatpush1.msra.mxu0 0.0
        %2227 = vmatprep.subr.mxu0 0.0
        %2228 = vmatpush1.msra.mxu0 0.0
        %2229 = vmatprep.subr.mxu0 0.0
        %2230 = vmatpush1.msra.mxu0 0.0
        %2231 = vmatprep.subr.mxu0 0.0
        %2232 = vmatpush1.msra.mxu0 0.0
        %2233 = vmatprep.subr.mxu0 0.0
        %2234 = vmatpush1.msra.mxu0 0.0
        %2235 = vmatprep.subr.mxu0 0.0
        %2236 = vmatpush1.msra.mxu0 0.0
        %2237 = vmatprep.subr.mxu0 0.0
        %2238 = vmatpush1.msra.mxu0 0.0
        %2239 = vmatprep.subr.mxu0 0.0
        %2240 = vmatpush1.msra.mxu0 0.0
        %2241 = vmatprep.subr.mxu0 0.0
        %2242 = vmatpush1.msra.mxu0 0.0
        %2243 = vmatprep.subr.mxu0 0.0
        %2244 = vmatpush1.msra.mxu0 0.0
        %2245 = vmatprep.subr.mxu0 0.0
        %2246 = vmatpush1.msra.mxu0 0.0
        %2247 = vmatprep.subr.mxu0 0.0
        %2248 = vmatpush1.msra.mxu0 0.0
        %2249 = vmatprep.subr.mxu0 0.0
        %2250 = vmatpush1.msra.mxu0 0.0
        %2251 = vmatprep.mubr.f32.mxu0 0.0
        %v2252 = vand.u32 %v1768, 4294901760
        %2253 = vmatmul.mubr.f32.gmra.mrb[0].mxu0 %v2252
        %v2254 = vpop.f32.mrb[0].mxu0
        %v2255 = vadd.f32 %v2154, %v2254
        %v2256 = vpop.f32.mrb[0].mxu0
        %2257 = vmatprep.mubr.f32.mxu0 0.0
        %v2258 = vand.u32 %v1771, 4294901760
        %2259 = vmatmul.mubr.f32.gmra.mrb[0].mxu0 %v2258
        %v2260 = vpop.f32.mrb[0].mxu0
        %v2261 = vadd.f32 %v2162, %v2260
        %v2262 = vpop.f32.mrb[0].mxu0
        %2263 = vmatprep.mubr.f32.mxu0 0.0
        %v2264 = vand.u32 %v1774, 4294901760
        %2265 = vmatmul.mubr.f32.gmra.mrb[0].mxu0 %v2264
        %v2266 = vpop.f32.mrb[0].mxu0
        %v2267 = vadd.f32 %v2170, %v2266
        %v2268 = vpop.f32.mrb[0].mxu0
        %2269 = vmatprep.mubr.f32.mxu0 0.0
        %v2270 = vand.u32 %v1777, 4294901760
        %2271 = vmatmul.mubr.f32.gmra.mrb[0].mxu0 %v2270
        %v2272 = vpop.f32.mrb[0].mxu0
        %v2273 = vadd.f32 %v2178, %v2272
        %v2274 = vpop.f32.mrb[0].mxu0
        %2275 = vdwg.mxu0
        %2276 = vmatprep.subr.mxu0 0.0
        %v2277 = vand.u32 %v1765, 4294901760
        %2278 = vmatpush1.msra.mxu0 %v2277
        %2279 = vmatprep.subr.mxu0 0.0
        %v2280 = vand.u32 %v1766, 4294901760
        %2281 = vmatpush1.msra.mxu0 %v2280
        %2282 = vmatprep.subr.mxu0 0.0
        %2283 = vmatpush1.msra.mxu0 0.0
        %2284 = vmatprep.subr.mxu0 0.0
        %2285 = vmatpush1.msra.mxu0 0.0
        %2286 = vmatprep.subr.mxu0 0.0
        %2287 = vmatpush1.msra.mxu0 0.0
        %2288 = vmatprep.subr.mxu0 0.0
        %2289 = vmatpush1.msra.mxu0 0.0
        %2290 = vmatprep.subr.mxu0 0.0
        %2291 = vmatpush1.msra.mxu0 0.0
        %2292 = vmatprep.subr.mxu0 0.0
        %2293 = vmatpush1.msra.mxu0 0.0
        %2294 = vmatprep.subr.mxu0 0.0
        %2295 = vmatpush1.msra.mxu0 0.0
        %2296 = vmatprep.subr.mxu0 0.0
        %2297 = vmatpush1.msra.mxu0 0.0
        %2298 = vmatprep.subr.mxu0 0.0
        %2299 = vmatpush1.msra.mxu0 0.0
        %2300 = vmatprep.subr.mxu0 0.0
        %2301 = vmatpush1.msra.mxu0 0.0
        %2302 = vmatprep.subr.mxu0 0.0
        %2303 = vmatpush1.msra.mxu0 0.0
        %2304 = vmatprep.subr.mxu0 0.0
        %2305 = vmatpush1.msra.mxu0 0.0
        %2306 = vmatprep.subr.mxu0 0.0
        %2307 = vmatpush1.msra.mxu0 0.0
        %2308 = vmatprep.subr.mxu0 0.0
        %2309 = vmatpush1.msra.mxu0 0.0
        %2310 = vmatprep.subr.mxu0 0.0
        %2311 = vmatpush1.msra.mxu0 0.0
        %2312 = vmatprep.subr.mxu0 0.0
        %2313 = vmatpush1.msra.mxu0 0.0
        %2314 = vmatprep.subr.mxu0 0.0
        %2315 = vmatpush1.msra.mxu0 0.0
        %2316 = vmatprep.subr.mxu0 0.0
        %2317 = vmatpush1.msra.mxu0 0.0
        %2318 = vmatprep.subr.mxu0 0.0
        %2319 = vmatpush1.msra.mxu0 0.0
        %2320 = vmatprep.subr.mxu0 0.0
        %2321 = vmatpush1.msra.mxu0 0.0
        %2322 = vmatprep.subr.mxu0 0.0
        %2323 = vmatpush1.msra.mxu0 0.0
        %2324 = vmatprep.subr.mxu0 0.0
        %2325 = vmatpush1.msra.mxu0 0.0
        %2326 = vmatprep.subr.mxu0 0.0
        %2327 = vmatpush1.msra.mxu0 0.0
        %2328 = vmatprep.subr.mxu0 0.0
        %2329 = vmatpush1.msra.mxu0 0.0
        %2330 = vmatprep.subr.mxu0 0.0
        %2331 = vmatpush1.msra.mxu0 0.0
        %2332 = vmatprep.subr.mxu0 0.0
        %2333 = vmatpush1.msra.mxu0 0.0
        %2334 = vmatprep.subr.mxu0 0.0
        %2335 = vmatpush1.msra.mxu0 0.0
        %2336 = vmatprep.subr.mxu0 0.0
        %2337 = vmatpush1.msra.mxu0 0.0
        %2338 = vmatprep.subr.mxu0 0.0
        %2339 = vmatpush1.msra.mxu0 0.0
        %2340 = vmatprep.subr.mxu0 0.0
        %2341 = vmatpush1.msra.mxu0 0.0
        %2342 = vmatprep.mubr.f32.mxu0 0.0
        %v2343 = vand.u32 %v1768, 4294901760
        %2344 = vmatmul.mubr.f32.gmra.mrb[0].mxu0 %v2343
        %v2345 = vpop.f32.mrb[0].mxu0
        %v2346 = vadd.f32 %v2255, %v2345
        %v2347 = vpop.f32.mrb[0].mxu0
        %2348 = vmatprep.mubr.f32.mxu0 0.0
        %v2349 = vand.u32 %v1771, 4294901760
        %2350 = vmatmul.mubr.f32.gmra.mrb[0].mxu0 %v2349
        %v2351 = vpop.f32.mrb[0].mxu0
        %v2352 = vadd.f32 %v2261, %v2351
        %v2353 = vpop.f32.mrb[0].mxu0
        %2354 = vmatprep.mubr.f32.mxu0 0.0
        %v2355 = vand.u32 %v1774, 4294901760
        %2356 = vmatmul.mubr.f32.gmra.mrb[0].mxu0 %v2355
        %v2357 = vpop.f32.mrb[0].mxu0
        %v2358 = vadd.f32 %v2267, %v2357
        %v2359 = vpop.f32.mrb[0].mxu0
        %2360 = vmatprep.mubr.f32.mxu0 0.0
        %v2361 = vand.u32 %v1777, 4294901760
        %2362 = vmatmul.mubr.f32.gmra.mrb[0].mxu0 %v2361
        %v2363 = vpop.f32.mrb[0].mxu0
        %v2364 = vadd.f32 %v2273, %v2363
        %v2365 = vpop.f32.mrb[0].mxu0
        %2366 = vdwg.mxu0
        %v2367 = vld [vmem:[%s4] sm:$0xff]
        %v2368 = vld [vmem:[%s4 + $0x8] sm:$0xff]
        %v2369 = vld [vmem:[%s4 + $0x10] sm:$0xff]
        %v2370 = vld [vmem:[%s4 + $0x18] sm:$0xff]
        %v2371 = vld [vmem:[%s4 + $0x20] sm:$0xff]
        %v2372 = vld [vmem:[%s4 + $0x28] sm:$0xff]
        %v2373 = vld [vmem:[%s4 + $0x30] sm:$0xff]
        %v2374 = vld [vmem:[%s4 + $0x38] sm:$0xff]
        %v2375 = vld [vmem:[%s4 + $0x40] sm:$0xff]
        %v2376 = vld [vmem:[%s4 + $0x48] sm:$0xff]
        %v2377 = vld [vmem:[%s4 + $0x50] sm:$0xff]
        %v2378 = vld [vmem:[%s4 + $0x58] sm:$0xff]
        %v2379 = vld [vmem:[%s5] sm:$0xff]
        %v2380 = vld [vmem:[%s5 + $0x8] sm:$0xff]
        %v2381 = vld [vmem:[%s5 + $0x10] sm:$0xff]
        %v2382 = vld [vmem:[%s5 + $0x18] sm:$0xff]
        %v2383 = vld [vmem:[%s19] sm:$0x1]
        %2388 = vrot.lane.b32.xlu0 %v2346, 99
        %v2389 = vpop.permute.xlu0 %2388
        %2390 = vrot.lane.b32.xlu0 %v2352, 99
        %v2391 = vpop.permute.xlu0 %2390
        %2392 = vrot.lane.b32.xlu0 %v2358, 99
        %v2393 = vpop.permute.xlu0 %2392
        %2394 = vrot.lane.b32.xlu0 %v2364, 99
        %v2395 = vpop.permute.xlu0 %2394
        %2400 = vrot.lane.b32.xlu0 %v2346, 7
        %v2401 = vpop.permute.xlu0 %2400
        %2402 = vrot.lane.b32.xlu0 %v2352, 7
        %v2403 = vpop.permute.xlu0 %2402
        %2404 = vrot.lane.b32.xlu0 %v2358, 7
        %v2405 = vpop.permute.xlu0 %2404
        %2406 = vrot.lane.b32.xlu0 %v2364, 7
        %v2407 = vpop.permute.xlu0 %2406
        %vm2412 = vcmask 56320
        %v2413 = vsel %vm2412, %v2389, %v2401
        %v2414 = vsel %vm2412, %v2391, %v2403
        %v2415 = vsel %vm2412, %v2393, %v2405
        %v2416 = vsel %vm2412, %v2395, %v2407
        %2417 = vrot.lane.b32.xlu0 %v2346, 98
        %v2418 = vpop.permute.xlu0 %2417
        %2419 = vrot.lane.b32.xlu0 %v2352, 98
        %v2420 = vpop.permute.xlu0 %2419
        %2421 = vrot.lane.b32.xlu0 %v2358, 98
        %v2422 = vpop.permute.xlu0 %2421
        %2423 = vrot.lane.b32.xlu0 %v2364, 98
        %v2424 = vpop.permute.xlu0 %2423
        %2429 = vrot.lane.b32.xlu0 %v2346, 6
        %v2430 = vpop.permute.xlu0 %2429
        %2431 = vrot.lane.b32.xlu0 %v2352, 6
        %v2432 = vpop.permute.xlu0 %2431
        %2433 = vrot.lane.b32.xlu0 %v2358, 6
        %v2434 = vpop.permute.xlu0 %2433
        %2435 = vrot.lane.b32.xlu0 %v2364, 6
        %v2436 = vpop.permute.xlu0 %2435
        %vm2441 = vcmask 48128
        %v2442 = vsel %vm2441, %v2418, %v2430
        %v2443 = vsel %vm2441, %v2420, %v2432
        %v2444 = vsel %vm2441, %v2422, %v2434
        %v2445 = vsel %vm2441, %v2424, %v2436
        %2446 = vrot.lane.b32.xlu0 %v2346, 97
        %v2447 = vpop.permute.xlu0 %2446
        %2448 = vrot.lane.b32.xlu0 %v2352, 97
        %v2449 = vpop.permute.xlu0 %2448
        %2450 = vrot.lane.b32.xlu0 %v2358, 97
        %v2451 = vpop.permute.xlu0 %2450
        %2452 = vrot.lane.b32.xlu0 %v2364, 97
        %v2453 = vpop.permute.xlu0 %2452
        %2458 = vrot.lane.b32.xlu0 %v2346, 5
        %v2459 = vpop.permute.xlu0 %2458
        %2460 = vrot.lane.b32.xlu0 %v2352, 5
        %v2461 = vpop.permute.xlu0 %2460
        %2462 = vrot.lane.b32.xlu0 %v2358, 5
        %v2463 = vpop.permute.xlu0 %2462
        %2464 = vrot.lane.b32.xlu0 %v2364, 5
        %v2465 = vpop.permute.xlu0 %2464
        %vm2470 = vcmask 39936
        %v2471 = vsel %vm2470, %v2447, %v2459
        %v2472 = vsel %vm2470, %v2449, %v2461
        %v2473 = vsel %vm2470, %v2451, %v2463
        %v2474 = vsel %vm2470, %v2453, %v2465
        %2475 = vrot.lane.b32.xlu0 %v2346, 93
        %v2476 = vpop.permute.xlu0 %2475
        %2477 = vrot.lane.b32.xlu0 %v2352, 93
        %v2478 = vpop.permute.xlu0 %2477
        %2479 = vrot.lane.b32.xlu0 %v2358, 93
        %v2480 = vpop.permute.xlu0 %2479
        %2481 = vrot.lane.b32.xlu0 %v2364, 93
        %v2482 = vpop.permute.xlu0 %2481
        %2487 = vrot.lane.b32.xlu0 %v2346, 1
        %v2488 = vpop.permute.xlu0 %2487
        %2489 = vrot.lane.b32.xlu0 %v2352, 1
        %v2490 = vpop.permute.xlu0 %2489
        %2491 = vrot.lane.b32.xlu0 %v2358, 1
        %v2492 = vpop.permute.xlu0 %2491
        %2493 = vrot.lane.b32.xlu0 %v2364, 1
        %v2494 = vpop.permute.xlu0 %2493
        %vm2499 = vcmask 7168
        %v2500 = vsel %vm2499, %v2476, %v2488
        %v2501 = vsel %vm2499, %v2478, %v2490
        %v2502 = vsel %vm2499, %v2480, %v2492
        %v2503 = vsel %vm2499, %v2482, %v2494
        %2504 = vrot.lane.b32.xlu0 %v2346, 127
        %v2505 = vpop.permute.xlu0 %2504
        %2506 = vrot.lane.b32.xlu0 %v2352, 127
        %v2507 = vpop.permute.xlu0 %2506
        %2508 = vrot.lane.b32.xlu0 %v2358, 127
        %v2509 = vpop.permute.xlu0 %2508
        %2510 = vrot.lane.b32.xlu0 %v2364, 127
        %v2511 = vpop.permute.xlu0 %2510
        %2516 = vrot.lane.b32.xlu0 %v2346, 35
        %v2517 = vpop.permute.xlu0 %2516
        %2518 = vrot.lane.b32.xlu0 %v2352, 35
        %v2519 = vpop.permute.xlu0 %2518
        %2520 = vrot.lane.b32.xlu0 %v2358, 35
        %v2521 = vpop.permute.xlu0 %2520
        %2522 = vrot.lane.b32.xlu0 %v2364, 35
        %v2523 = vpop.permute.xlu0 %2522
        %vm2528 = vcmask 285696
        %v2529 = vsel %vm2528, %v2505, %v2517
        %v2530 = vsel %vm2528, %v2507, %v2519
        %v2531 = vsel %vm2528, %v2509, %v2521
        %v2532 = vsel %vm2528, %v2511, %v2523
        %2533 = vrot.lane.b32.xlu0 %v2346, 123
        %v2534 = vpop.permute.xlu0 %2533
        %2535 = vrot.lane.b32.xlu0 %v2352, 123
        %v2536 = vpop.permute.xlu0 %2535
        %2537 = vrot.lane.b32.xlu0 %v2358, 123
        %v2538 = vpop.permute.xlu0 %2537
        %2539 = vrot.lane.b32.xlu0 %v2364, 123
        %v2540 = vpop.permute.xlu0 %2539
        %2545 = vrot.lane.b32.xlu0 %v2346, 31
        %v2546 = vpop.permute.xlu0 %2545
        %2547 = vrot.lane.b32.xlu0 %v2352, 31
        %v2548 = vpop.permute.xlu0 %2547
        %2549 = vrot.lane.b32.xlu0 %v2358, 31
        %v2550 = vpop.permute.xlu0 %2549
        %2551 = vrot.lane.b32.xlu0 %v2364, 31
        %v2552 = vpop.permute.xlu0 %2551
        %vm2557 = vcmask 252928
        %v2558 = vsel %vm2557, %v2534, %v2546
        %v2559 = vsel %vm2557, %v2536, %v2548
        %v2560 = vsel %vm2557, %v2538, %v2550
        %v2561 = vsel %vm2557, %v2540, %v2552
        %2562 = vrot.lane.b32.xlu0 %v2346, 122
        %v2563 = vpop.permute.xlu0 %2562
        %2564 = vrot.lane.b32.xlu0 %v2352, 122
        %v2565 = vpop.permute.xlu0 %2564
        %2566 = vrot.lane.b32.xlu0 %v2358, 122
        %v2567 = vpop.permute.xlu0 %2566
        %2568 = vrot.lane.b32.xlu0 %v2364, 122
        %v2569 = vpop.permute.xlu0 %2568
        %2574 = vrot.lane.b32.xlu0 %v2346, 30
        %v2575 = vpop.permute.xlu0 %2574
        %2576 = vrot.lane.b32.xlu0 %v2352, 30
        %v2577 = vpop.permute.xlu0 %2576
        %2578 = vrot.lane.b32.xlu0 %v2358, 30
        %v2579 = vpop.permute.xlu0 %2578
        %2580 = vrot.lane.b32.xlu0 %v2364, 30
        %v2581 = vpop.permute.xlu0 %2580
        %vm2586 = vcmask 244736
        %v2587 = vsel %vm2586, %v2563, %v2575
        %v2588 = vsel %vm2586, %v2565, %v2577
        %v2589 = vsel %vm2586, %v2567, %v2579
        %v2590 = vsel %vm2586, %v2569, %v2581
        %2591 = vrot.lane.b32.xlu0 %v2346, 121
        %v2592 = vpop.permute.xlu0 %2591
        %2593 = vrot.lane.b32.xlu0 %v2352, 121
        %v2594 = vpop.permute.xlu0 %2593
        %2595 = vrot.lane.b32.xlu0 %v2358, 121
        %v2596 = vpop.permute.xlu0 %2595
        %2597 = vrot.lane.b32.xlu0 %v2364, 121
        %v2598 = vpop.permute.xlu0 %2597
        %2603 = vrot.lane.b32.xlu0 %v2346, 29
        %v2604 = vpop.permute.xlu0 %2603
        %2605 = vrot.lane.b32.xlu0 %v2352, 29
        %v2606 = vpop.permute.xlu0 %2605
        %2607 = vrot.lane.b32.xlu0 %v2358, 29
        %v2608 = vpop.permute.xlu0 %2607
        %2609 = vrot.lane.b32.xlu0 %v2364, 29
        %v2610 = vpop.permute.xlu0 %2609
        %vm2615 = vcmask 236544
        %v2616 = vsel %vm2615, %v2592, %v2604
        %v2617 = vsel %vm2615, %v2594, %v2606
        %v2618 = vsel %vm2615, %v2596, %v2608
        %v2619 = vsel %vm2615, %v2598, %v2610
        %2621 = vset.pattern.permute.xlu0 0
        %2622 = vperm.xlu0 %2621, %v2379
        %v2623 = vpop.permute.xlu0 %2622
        %2626 = vset.pattern.permute.xlu0 0
        %2627 = vperm.xlu0 %2626, %v2380
        %v2628 = vpop.permute.xlu0 %2627
        %2631 = vset.pattern.permute.xlu0 0
        %2632 = vperm.xlu0 %2631, %v2381
        %v2633 = vpop.permute.xlu0 %2632
        %2636 = vset.pattern.permute.xlu0 0
        %2637 = vperm.xlu0 %2636, %v2382
        %v2638 = vpop.permute.xlu0 %2637
        %vm2640 = vcmask 261120
        %v2642 = vsel %vm2640, %v2369, 0
        %v2645 = vsel %vm2640, %v2372, 0
        %v2648 = vsel %vm2640, %v2375, 0
        %v2651 = vsel %vm2640, %v2378, 0
        %2653 = vmatprep.subr.mxu0 0.0
        %v2654 = vand.u32 %v2413, 4294901760
        %2655 = vmatpush1.msra.mxu0 %v2654
        %2656 = vmatprep.subr.mxu0 0.0
        %v2657 = vand.u32 %v2414, 4294901760
        %2658 = vmatpush1.msra.mxu0 %v2657
        %2659 = vmatprep.subr.mxu0 0.0
        %v2660 = vand.u32 %v2415, 4294901760
        %2661 = vmatpush1.msra.mxu0 %v2660
        %2662 = vmatprep.subr.mxu0 0.0
        %v2663 = vand.u32 %v2416, 4294901760
        %2664 = vmatpush1.msra.mxu0 %v2663
        %2665 = vmatprep.subr.mxu0 0.0
        %v2666 = vand.u32 %v2442, 4294901760
        %2667 = vmatpush1.msra.mxu0 %v2666
        %2668 = vmatprep.subr.mxu0 0.0
        %v2669 = vand.u32 %v2443, 4294901760
        %2670 = vmatpush1.msra.mxu0 %v2669
        %2671 = vmatprep.subr.mxu0 0.0
        %v2672 = vand.u32 %v2444, 4294901760
        %2673 = vmatpush1.msra.mxu0 %v2672
        %2674 = vmatprep.subr.mxu0 0.0
        %v2675 = vand.u32 %v2445, 4294901760
        %2676 = vmatpush1.msra.mxu0 %v2675
        %2677 = vmatprep.subr.mxu0 0.0
        %v2678 = vand.u32 %v2471, 4294901760
        %2679 = vmatpush1.msra.mxu0 %v2678
        %2680 = vmatprep.subr.mxu0 0.0
        %v2681 = vand.u32 %v2472, 4294901760
        %2682 = vmatpush1.msra.mxu0 %v2681
        %2683 = vmatprep.subr.mxu0 0.0
        %v2684 = vand.u32 %v2473, 4294901760
        %2685 = vmatpush1.msra.mxu0 %v2684
        %2686 = vmatprep.subr.mxu0 0.0
        %v2687 = vand.u32 %v2474, 4294901760
        %2688 = vmatpush1.msra.mxu0 %v2687
        %2689 = vmatprep.subr.mxu0 0.0
        %v2690 = vand.u32 %v2500, 4294901760
        %2691 = vmatpush1.msra.mxu0 %v2690
        %2692 = vmatprep.subr.mxu0 0.0
        %v2693 = vand.u32 %v2501, 4294901760
        %2694 = vmatpush1.msra.mxu0 %v2693
        %2695 = vmatprep.subr.mxu0 0.0
        %v2696 = vand.u32 %v2502, 4294901760
        %2697 = vmatpush1.msra.mxu0 %v2696
        %2698 = vmatprep.subr.mxu0 0.0
        %v2699 = vand.u32 %v2503, 4294901760
        %2700 = vmatpush1.msra.mxu0 %v2699
        %2701 = vmatprep.subr.mxu0 0.0
        %v2702 = vand.u32 %v2346, 4294901760
        %2703 = vmatpush1.msra.mxu0 %v2702
        %2704 = vmatprep.subr.mxu0 0.0
        %v2705 = vand.u32 %v2352, 4294901760
        %2706 = vmatpush1.msra.mxu0 %v2705
        %2707 = vmatprep.subr.mxu0 0.0
        %v2708 = vand.u32 %v2358, 4294901760
        %2709 = vmatpush1.msra.mxu0 %v2708
        %2710 = vmatprep.subr.mxu0 0.0
        %v2711 = vand.u32 %v2364, 4294901760
        %2712 = vmatpush1.msra.mxu0 %v2711
        %2713 = vmatprep.subr.mxu0 0.0
        %v2714 = vand.u32 %v2529, 4294901760
        %2715 = vmatpush1.msra.mxu0 %v2714
        %2716 = vmatprep.subr.mxu0 0.0
        %v2717 = vand.u32 %v2530, 4294901760
        %2718 = vmatpush1.msra.mxu0 %v2717
        %2719 = vmatprep.subr.mxu0 0.0
        %v2720 = vand.u32 %v2531, 4294901760
        %2721 = vmatpush1.msra.mxu0 %v2720
        %2722 = vmatprep.subr.mxu0 0.0
        %v2723 = vand.u32 %v2532, 4294901760
        %2724 = vmatpush1.msra.mxu0 %v2723
        %2725 = vmatprep.subr.mxu0 0.0
        %v2726 = vand.u32 %v2558, 4294901760
        %2727 = vmatpush1.msra.mxu0 %v2726
        %2728 = vmatprep.subr.mxu0 0.0
        %v2729 = vand.u32 %v2559, 4294901760
        %2730 = vmatpush1.msra.mxu0 %v2729
        %2731 = vmatprep.subr.mxu0 0.0
        %v2732 = vand.u32 %v2560, 4294901760
        %2733 = vmatpush1.msra.mxu0 %v2732
        %2734 = vmatprep.subr.mxu0 0.0
        %v2735 = vand.u32 %v2561, 4294901760
        %2736 = vmatpush1.msra.mxu0 %v2735
        %2737 = vmatprep.subr.mxu0 0.0
        %v2738 = vand.u32 %v2587, 4294901760
        %2739 = vmatpush1.msra.mxu0 %v2738
        %2740 = vmatprep.subr.mxu0 0.0
        %v2741 = vand.u32 %v2588, 4294901760
        %2742 = vmatpush1.msra.mxu0 %v2741
        %2743 = vmatprep.subr.mxu0 0.0
        %v2744 = vand.u32 %v2589, 4294901760
        %2745 = vmatpush1.msra.mxu0 %v2744
        %2746 = vmatprep.subr.mxu0 0.0
        %v2747 = vand.u32 %v2590, 4294901760
        %2748 = vmatpush1.msra.mxu0 %v2747
        %v2749 = vand.u32 %v2368, 4294901760
        %v2750 = vsub.f32 %v2368, %v2749
        %v2751 = vand.u32 %v2750, 4294901760
        %v2752 = vsub.f32 %v2750, %v2751
        %v2753 = vand.u32 %v2752, 4294901760
        %2754 = vmatprep.mubr.f32.mxu0 %v2753
        %v2755 = vand.u32 %v2367, 4294901760
        %v2756 = vsub.f32 %v2367, %v2755
        %v2757 = vand.u32 %v2756, 4294901760
        %v2758 = vsub.f32 %v2756, %v2757
        %v2759 = vand.u32 %v2758, 4294901760
        %2760 = vmatmul.mubr.f32.gmra.mrb[0].mxu0 %v2759
        %v2761 = vpop.f32.mrb[0].mxu0
        %v2762 = vadd.f32 %v2623, %v2761
        %v2763 = vpop.f32.mrb[0].mxu0
        %v2764 = vand.u32 %v2371, 4294901760
        %v2765 = vsub.f32 %v2371, %v2764
        %v2766 = vand.u32 %v2765, 4294901760
        %v2767 = vsub.f32 %v2765, %v2766
        %v2768 = vand.u32 %v2767, 4294901760
        %2769 = vmatprep.mubr.f32.mxu0 %v2768
        %v2770 = vand.u32 %v2370, 4294901760
        %v2771 = vsub.f32 %v2370, %v2770
        %v2772 = vand.u32 %v2771, 4294901760
        %v2773 = vsub.f32 %v2771, %v2772
        %v2774 = vand.u32 %v2773, 4294901760
        %2775 = vmatmul.mubr.f32.gmra.mrb[0].mxu0 %v2774
        %v2776 = vpop.f32.mrb[0].mxu0
        %v2777 = vadd.f32 %v2628, %v2776
        %v2778 = vpop.f32.mrb[0].mxu0
        %v2779 = vand.u32 %v2374, 4294901760
        %v2780 = vsub.f32 %v2374, %v2779
        %v2781 = vand.u32 %v2780, 4294901760
        %v2782 = vsub.f32 %v2780, %v2781
        %v2783 = vand.u32 %v2782, 4294901760
        %2784 = vmatprep.mubr.f32.mxu0 %v2783
        %v2785 = vand.u32 %v2373, 4294901760
        %v2786 = vsub.f32 %v2373, %v2785
        %v2787 = vand.u32 %v2786, 4294901760
        %v2788 = vsub.f32 %v2786, %v2787
        %v2789 = vand.u32 %v2788, 4294901760
        %2790 = vmatmul.mubr.f32.gmra.mrb[0].mxu0 %v2789
        %v2791 = vpop.f32.mrb[0].mxu0
        %v2792 = vadd.f32 %v2633, %v2791
        %v2793 = vpop.f32.mrb[0].mxu0
        %v2794 = vand.u32 %v2377, 4294901760
        %v2795 = vsub.f32 %v2377, %v2794
        %v2796 = vand.u32 %v2795, 4294901760
        %v2797 = vsub.f32 %v2795, %v2796
        %v2798 = vand.u32 %v2797, 4294901760
        %2799 = vmatprep.mubr.f32.mxu0 %v2798
        %v2800 = vand.u32 %v2376, 4294901760
        %v2801 = vsub.f32 %v2376, %v2800
        %v2802 = vand.u32 %v2801, 4294901760
        %v2803 = vsub.f32 %v2801, %v2802
        %v2804 = vand.u32 %v2803, 4294901760
        %2805 = vmatmul.mubr.f32.gmra.mrb[0].mxu0 %v2804
        %v2806 = vpop.f32.mrb[0].mxu0
        %v2807 = vadd.f32 %v2638, %v2806
        %v2808 = vpop.f32.mrb[0].mxu0
        %2809 = vdwg.mxu0
        %2810 = vmatprep.subr.mxu0 0.0
        %v2811 = vand.u32 %v2413, 4294901760
        %v2812 = vsub.f32 %v2413, %v2811
        %v2813 = vand.u32 %v2812, 4294901760
        %v2814 = vsub.f32 %v2812, %v2813
        %v2815 = vand.u32 %v2814, 4294901760
        %2816 = vmatpush1.msra.mxu0 %v2815
        %2817 = vmatprep.subr.mxu0 0.0
        %v2818 = vand.u32 %v2414, 4294901760
        %v2819 = vsub.f32 %v2414, %v2818
        %v2820 = vand.u32 %v2819, 4294901760
        %v2821 = vsub.f32 %v2819, %v2820
        %v2822 = vand.u32 %v2821, 4294901760
        %2823 = vmatpush1.msra.mxu0 %v2822
        %2824 = vmatprep.subr.mxu0 0.0
        %v2825 = vand.u32 %v2415, 4294901760
        %v2826 = vsub.f32 %v2415, %v2825
        %v2827 = vand.u32 %v2826, 4294901760
        %v2828 = vsub.f32 %v2826, %v2827
        %v2829 = vand.u32 %v2828, 4294901760
        %2830 = vmatpush1.msra.mxu0 %v2829
        %2831 = vmatprep.subr.mxu0 0.0
        %v2832 = vand.u32 %v2416, 4294901760
        %v2833 = vsub.f32 %v2416, %v2832
        %v2834 = vand.u32 %v2833, 4294901760
        %v2835 = vsub.f32 %v2833, %v2834
        %v2836 = vand.u32 %v2835, 4294901760
        %2837 = vmatpush1.msra.mxu0 %v2836
        %2838 = vmatprep.subr.mxu0 0.0
        %v2839 = vand.u32 %v2442, 4294901760
        %v2840 = vsub.f32 %v2442, %v2839
        %v2841 = vand.u32 %v2840, 4294901760
        %v2842 = vsub.f32 %v2840, %v2841
        %v2843 = vand.u32 %v2842, 4294901760
        %2844 = vmatpush1.msra.mxu0 %v2843
        %2845 = vmatprep.subr.mxu0 0.0
        %v2846 = vand.u32 %v2443, 4294901760
        %v2847 = vsub.f32 %v2443, %v2846
        %v2848 = vand.u32 %v2847, 4294901760
        %v2849 = vsub.f32 %v2847, %v2848
        %v2850 = vand.u32 %v2849, 4294901760
        %2851 = vmatpush1.msra.mxu0 %v2850
        %2852 = vmatprep.subr.mxu0 0.0
        %v2853 = vand.u32 %v2444, 4294901760
        %v2854 = vsub.f32 %v2444, %v2853
        %v2855 = vand.u32 %v2854, 4294901760
        %v2856 = vsub.f32 %v2854, %v2855
        %v2857 = vand.u32 %v2856, 4294901760
        %2858 = vmatpush1.msra.mxu0 %v2857
        %2859 = vmatprep.subr.mxu0 0.0
        %v2860 = vand.u32 %v2445, 4294901760
        %v2861 = vsub.f32 %v2445, %v2860
        %v2862 = vand.u32 %v2861, 4294901760
        %v2863 = vsub.f32 %v2861, %v2862
        %v2864 = vand.u32 %v2863, 4294901760
        %2865 = vmatpush1.msra.mxu0 %v2864
        %2866 = vmatprep.subr.mxu0 0.0
        %v2867 = vand.u32 %v2471, 4294901760
        %v2868 = vsub.f32 %v2471, %v2867
        %v2869 = vand.u32 %v2868, 4294901760
        %v2870 = vsub.f32 %v2868, %v2869
        %v2871 = vand.u32 %v2870, 4294901760
        %2872 = vmatpush1.msra.mxu0 %v2871
        %2873 = vmatprep.subr.mxu0 0.0
        %v2874 = vand.u32 %v2472, 4294901760
        %v2875 = vsub.f32 %v2472, %v2874
        %v2876 = vand.u32 %v2875, 4294901760
        %v2877 = vsub.f32 %v2875, %v2876
        %v2878 = vand.u32 %v2877, 4294901760
        %2879 = vmatpush1.msra.mxu0 %v2878
        %2880 = vmatprep.subr.mxu0 0.0
        %v2881 = vand.u32 %v2473, 4294901760
        %v2882 = vsub.f32 %v2473, %v2881
        %v2883 = vand.u32 %v2882, 4294901760
        %v2884 = vsub.f32 %v2882, %v2883
        %v2885 = vand.u32 %v2884, 4294901760
        %2886 = vmatpush1.msra.mxu0 %v2885
        %2887 = vmatprep.subr.mxu0 0.0
        %v2888 = vand.u32 %v2474, 4294901760
        %v2889 = vsub.f32 %v2474, %v2888
        %v2890 = vand.u32 %v2889, 4294901760
        %v2891 = vsub.f32 %v2889, %v2890
        %v2892 = vand.u32 %v2891, 4294901760
        %2893 = vmatpush1.msra.mxu0 %v2892
        %2894 = vmatprep.subr.mxu0 0.0
        %v2895 = vand.u32 %v2500, 4294901760
        %v2896 = vsub.f32 %v2500, %v2895
        %v2897 = vand.u32 %v2896, 4294901760
        %v2898 = vsub.f32 %v2896, %v2897
        %v2899 = vand.u32 %v2898, 4294901760
        %2900 = vmatpush1.msra.mxu0 %v2899
        %2901 = vmatprep.subr.mxu0 0.0
        %v2902 = vand.u32 %v2501, 4294901760
        %v2903 = vsub.f32 %v2501, %v2902
        %v2904 = vand.u32 %v2903, 4294901760
        %v2905 = vsub.f32 %v2903, %v2904
        %v2906 = vand.u32 %v2905, 4294901760
        %2907 = vmatpush1.msra.mxu0 %v2906
        %2908 = vmatprep.subr.mxu0 0.0
        %v2909 = vand.u32 %v2502, 4294901760
        %v2910 = vsub.f32 %v2502, %v2909
        %v2911 = vand.u32 %v2910, 4294901760
        %v2912 = vsub.f32 %v2910, %v2911
        %v2913 = vand.u32 %v2912, 4294901760
        %2914 = vmatpush1.msra.mxu0 %v2913
        %2915 = vmatprep.subr.mxu0 0.0
        %v2916 = vand.u32 %v2503, 4294901760
        %v2917 = vsub.f32 %v2503, %v2916
        %v2918 = vand.u32 %v2917, 4294901760
        %v2919 = vsub.f32 %v2917, %v2918
        %v2920 = vand.u32 %v2919, 4294901760
        %2921 = vmatpush1.msra.mxu0 %v2920
        %2922 = vmatprep.subr.mxu0 0.0
        %v2923 = vand.u32 %v2346, 4294901760
        %v2924 = vsub.f32 %v2346, %v2923
        %v2925 = vand.u32 %v2924, 4294901760
        %v2926 = vsub.f32 %v2924, %v2925
        %v2927 = vand.u32 %v2926, 4294901760
        %2928 = vmatpush1.msra.mxu0 %v2927
        %2929 = vmatprep.subr.mxu0 0.0
        %v2930 = vand.u32 %v2352, 4294901760
        %v2931 = vsub.f32 %v2352, %v2930
        %v2932 = vand.u32 %v2931, 4294901760
        %v2933 = vsub.f32 %v2931, %v2932
        %v2934 = vand.u32 %v2933, 4294901760
        %2935 = vmatpush1.msra.mxu0 %v2934
        %2936 = vmatprep.subr.mxu0 0.0
        %v2937 = vand.u32 %v2358, 4294901760
        %v2938 = vsub.f32 %v2358, %v2937
        %v2939 = vand.u32 %v2938, 4294901760
        %v2940 = vsub.f32 %v2938, %v2939
        %v2941 = vand.u32 %v2940, 4294901760
        %2942 = vmatpush1.msra.mxu0 %v2941
        %2943 = vmatprep.subr.mxu0 0.0
        %v2944 = vand.u32 %v2364, 4294901760
        %v2945 = vsub.f32 %v2364, %v2944
        %v2946 = vand.u32 %v2945, 4294901760
        %v2947 = vsub.f32 %v2945, %v2946
        %v2948 = vand.u32 %v2947, 4294901760
        %2949 = vmatpush1.msra.mxu0 %v2948
        %2950 = vmatprep.subr.mxu0 0.0
        %v2951 = vand.u32 %v2529, 4294901760
        %v2952 = vsub.f32 %v2529, %v2951
        %v2953 = vand.u32 %v2952, 4294901760
        %v2954 = vsub.f32 %v2952, %v2953
        %v2955 = vand.u32 %v2954, 4294901760
        %2956 = vmatpush1.msra.mxu0 %v2955
        %2957 = vmatprep.subr.mxu0 0.0
        %v2958 = vand.u32 %v2530, 4294901760
        %v2959 = vsub.f32 %v2530, %v2958
        %v2960 = vand.u32 %v2959, 4294901760
        %v2961 = vsub.f32 %v2959, %v2960
        %v2962 = vand.u32 %v2961, 4294901760
        %2963 = vmatpush1.msra.mxu0 %v2962
        %2964 = vmatprep.subr.mxu0 0.0
        %v2965 = vand.u32 %v2531, 4294901760
        %v2966 = vsub.f32 %v2531, %v2965
        %v2967 = vand.u32 %v2966, 4294901760
        %v2968 = vsub.f32 %v2966, %v2967
        %v2969 = vand.u32 %v2968, 4294901760
        %2970 = vmatpush1.msra.mxu0 %v2969
        %2971 = vmatprep.subr.mxu0 0.0
        %v2972 = vand.u32 %v2532, 4294901760
        %v2973 = vsub.f32 %v2532, %v2972
        %v2974 = vand.u32 %v2973, 4294901760
        %v2975 = vsub.f32 %v2973, %v2974
        %v2976 = vand.u32 %v2975, 4294901760
        %2977 = vmatpush1.msra.mxu0 %v2976
        %2978 = vmatprep.subr.mxu0 0.0
        %v2979 = vand.u32 %v2558, 4294901760
        %v2980 = vsub.f32 %v2558, %v2979
        %v2981 = vand.u32 %v2980, 4294901760
        %v2982 = vsub.f32 %v2980, %v2981
        %v2983 = vand.u32 %v2982, 4294901760
        %2984 = vmatpush1.msra.mxu0 %v2983
        %2985 = vmatprep.subr.mxu0 0.0
        %v2986 = vand.u32 %v2559, 4294901760
        %v2987 = vsub.f32 %v2559, %v2986
        %v2988 = vand.u32 %v2987, 4294901760
        %v2989 = vsub.f32 %v2987, %v2988
        %v2990 = vand.u32 %v2989, 4294901760
        %2991 = vmatpush1.msra.mxu0 %v2990
        %2992 = vmatprep.subr.mxu0 0.0
        %v2993 = vand.u32 %v2560, 4294901760
        %v2994 = vsub.f32 %v2560, %v2993
        %v2995 = vand.u32 %v2994, 4294901760
        %v2996 = vsub.f32 %v2994, %v2995
        %v2997 = vand.u32 %v2996, 4294901760
        %2998 = vmatpush1.msra.mxu0 %v2997
        %2999 = vmatprep.subr.mxu0 0.0
        %v3000 = vand.u32 %v2561, 4294901760
        %v3001 = vsub.f32 %v2561, %v3000
        %v3002 = vand.u32 %v3001, 4294901760
        %v3003 = vsub.f32 %v3001, %v3002
        %v3004 = vand.u32 %v3003, 4294901760
        %3005 = vmatpush1.msra.mxu0 %v3004
        %3006 = vmatprep.subr.mxu0 0.0
        %v3007 = vand.u32 %v2587, 4294901760
        %v3008 = vsub.f32 %v2587, %v3007
        %v3009 = vand.u32 %v3008, 4294901760
        %v3010 = vsub.f32 %v3008, %v3009
        %v3011 = vand.u32 %v3010, 4294901760
        %3012 = vmatpush1.msra.mxu0 %v3011
        %3013 = vmatprep.subr.mxu0 0.0
        %v3014 = vand.u32 %v2588, 4294901760
        %v3015 = vsub.f32 %v2588, %v3014
        %v3016 = vand.u32 %v3015, 4294901760
        %v3017 = vsub.f32 %v3015, %v3016
        %v3018 = vand.u32 %v3017, 4294901760
        %3019 = vmatpush1.msra.mxu0 %v3018
        %3020 = vmatprep.subr.mxu0 0.0
        %v3021 = vand.u32 %v2589, 4294901760
        %v3022 = vsub.f32 %v2589, %v3021
        %v3023 = vand.u32 %v3022, 4294901760
        %v3024 = vsub.f32 %v3022, %v3023
        %v3025 = vand.u32 %v3024, 4294901760
        %3026 = vmatpush1.msra.mxu0 %v3025
        %3027 = vmatprep.subr.mxu0 0.0
        %v3028 = vand.u32 %v2590, 4294901760
        %v3029 = vsub.f32 %v2590, %v3028
        %v3030 = vand.u32 %v3029, 4294901760
        %v3031 = vsub.f32 %v3029, %v3030
        %v3032 = vand.u32 %v3031, 4294901760
        %3033 = vmatpush1.msra.mxu0 %v3032
        %v3034 = vand.u32 %v2368, 4294901760
        %3035 = vmatprep.mubr.f32.mxu0 %v3034
        %v3036 = vand.u32 %v2367, 4294901760
        %3037 = vmatmul.mubr.f32.gmra.mrb[0].mxu0 %v3036
        %v3038 = vpop.f32.mrb[0].mxu0
        %v3039 = vadd.f32 %v2762, %v3038
        %v3040 = vpop.f32.mrb[0].mxu0
        %v3041 = vand.u32 %v2371, 4294901760
        %3042 = vmatprep.mubr.f32.mxu0 %v3041
        %v3043 = vand.u32 %v2370, 4294901760
        %3044 = vmatmul.mubr.f32.gmra.mrb[0].mxu0 %v3043
        %v3045 = vpop.f32.mrb[0].mxu0
        %v3046 = vadd.f32 %v2777, %v3045
        %v3047 = vpop.f32.mrb[0].mxu0
        %v3048 = vand.u32 %v2374, 4294901760
        %3049 = vmatprep.mubr.f32.mxu0 %v3048
        %v3050 = vand.u32 %v2373, 4294901760
        %3051 = vmatmul.mubr.f32.gmra.mrb[0].mxu0 %v3050
        %v3052 = vpop.f32.mrb[0].mxu0
        %v3053 = vadd.f32 %v2792, %v3052
        %v3054 = vpop.f32.mrb[0].mxu0
        %v3055 = vand.u32 %v2377, 4294901760
        %3056 = vmatprep.mubr.f32.mxu0 %v3055
        %v3057 = vand.u32 %v2376, 4294901760
        %3058 = vmatmul.mubr.f32.gmra.mrb[0].mxu0 %v3057
        %v3059 = vpop.f32.mrb[0].mxu0
        %v3060 = vadd.f32 %v2807, %v3059
        %v3061 = vpop.f32.mrb[0].mxu0
        %3062 = vdwg.mxu0
        %3063 = vmatprep.subr.mxu0 0.0
        %v3064 = vand.u32 %v2413, 4294901760
        %v3065 = vsub.f32 %v2413, %v3064
        %3066 = vmatpush1.msra.mxu0 %v3065
        %3067 = vmatprep.subr.mxu0 0.0
        %v3068 = vand.u32 %v2414, 4294901760
        %v3069 = vsub.f32 %v2414, %v3068
        %3070 = vmatpush1.msra.mxu0 %v3069
        %3071 = vmatprep.subr.mxu0 0.0
        %v3072 = vand.u32 %v2415, 4294901760
        %v3073 = vsub.f32 %v2415, %v3072
        %3074 = vmatpush1.msra.mxu0 %v3073
        %3075 = vmatprep.subr.mxu0 0.0
        %v3076 = vand.u32 %v2416, 4294901760
        %v3077 = vsub.f32 %v2416, %v3076
        %3078 = vmatpush1.msra.mxu0 %v3077
        %3079 = vmatprep.subr.mxu0 0.0
        %v3080 = vand.u32 %v2442, 4294901760
        %v3081 = vsub.f32 %v2442, %v3080
        %3082 = vmatpush1.msra.mxu0 %v3081
        %3083 = vmatprep.subr.mxu0 0.0
        %v3084 = vand.u32 %v2443, 4294901760
        %v3085 = vsub.f32 %v2443, %v3084
        %3086 = vmatpush1.msra.mxu0 %v3085
        %3087 = vmatprep.subr.mxu0 0.0
        %v3088 = vand.u32 %v2444, 4294901760
        %v3089 = vsub.f32 %v2444, %v3088
        %3090 = vmatpush1.msra.mxu0 %v3089
        %3091 = vmatprep.subr.mxu0 0.0
        %v3092 = vand.u32 %v2445, 4294901760
        %v3093 = vsub.f32 %v2445, %v3092
        %3094 = vmatpush1.msra.mxu0 %v3093
        %3095 = vmatprep.subr.mxu0 0.0
        %v3096 = vand.u32 %v2471, 4294901760
        %v3097 = vsub.f32 %v2471, %v3096
        %3098 = vmatpush1.msra.mxu0 %v3097
        %3099 = vmatprep.subr.mxu0 0.0
        %v3100 = vand.u32 %v2472, 4294901760
        %v3101 = vsub.f32 %v2472, %v3100
        %3102 = vmatpush1.msra.mxu0 %v3101
        %3103 = vmatprep.subr.mxu0 0.0
        %v3104 = vand.u32 %v2473, 4294901760
        %v3105 = vsub.f32 %v2473, %v3104
        %3106 = vmatpush1.msra.mxu0 %v3105
        %3107 = vmatprep.subr.mxu0 0.0
        %v3108 = vand.u32 %v2474, 4294901760
        %v3109 = vsub.f32 %v2474, %v3108
        %3110 = vmatpush1.msra.mxu0 %v3109
        %3111 = vmatprep.subr.mxu0 0.0
        %v3112 = vand.u32 %v2500, 4294901760
        %v3113 = vsub.f32 %v2500, %v3112
        %3114 = vmatpush1.msra.mxu0 %v3113
        %3115 = vmatprep.subr.mxu0 0.0
        %v3116 = vand.u32 %v2501, 4294901760
        %v3117 = vsub.f32 %v2501, %v3116
        %3118 = vmatpush1.msra.mxu0 %v3117
        %3119 = vmatprep.subr.mxu0 0.0
        %v3120 = vand.u32 %v2502, 4294901760
        %v3121 = vsub.f32 %v2502, %v3120
        %3122 = vmatpush1.msra.mxu0 %v3121
        %3123 = vmatprep.subr.mxu0 0.0
        %v3124 = vand.u32 %v2503, 4294901760
        %v3125 = vsub.f32 %v2503, %v3124
        %3126 = vmatpush1.msra.mxu0 %v3125
        %3127 = vmatprep.subr.mxu0 0.0
        %v3128 = vand.u32 %v2346, 4294901760
        %v3129 = vsub.f32 %v2346, %v3128
        %3130 = vmatpush1.msra.mxu0 %v3129
        %3131 = vmatprep.subr.mxu0 0.0
        %v3132 = vand.u32 %v2352, 4294901760
        %v3133 = vsub.f32 %v2352, %v3132
        %3134 = vmatpush1.msra.mxu0 %v3133
        %3135 = vmatprep.subr.mxu0 0.0
        %v3136 = vand.u32 %v2358, 4294901760
        %v3137 = vsub.f32 %v2358, %v3136
        %3138 = vmatpush1.msra.mxu0 %v3137
        %3139 = vmatprep.subr.mxu0 0.0
        %v3140 = vand.u32 %v2364, 4294901760
        %v3141 = vsub.f32 %v2364, %v3140
        %3142 = vmatpush1.msra.mxu0 %v3141
        %3143 = vmatprep.subr.mxu0 0.0
        %v3144 = vand.u32 %v2529, 4294901760
        %v3145 = vsub.f32 %v2529, %v3144
        %3146 = vmatpush1.msra.mxu0 %v3145
        %3147 = vmatprep.subr.mxu0 0.0
        %v3148 = vand.u32 %v2530, 4294901760
        %v3149 = vsub.f32 %v2530, %v3148
        %3150 = vmatpush1.msra.mxu0 %v3149
        %3151 = vmatprep.subr.mxu0 0.0
        %v3152 = vand.u32 %v2531, 4294901760
        %v3153 = vsub.f32 %v2531, %v3152
        %3154 = vmatpush1.msra.mxu0 %v3153
        %3155 = vmatprep.subr.mxu0 0.0
        %v3156 = vand.u32 %v2532, 4294901760
        %v3157 = vsub.f32 %v2532, %v3156
        %3158 = vmatpush1.msra.mxu0 %v3157
        %3159 = vmatprep.subr.mxu0 0.0
        %v3160 = vand.u32 %v2558, 4294901760
        %v3161 = vsub.f32 %v2558, %v3160
        %3162 = vmatpush1.msra.mxu0 %v3161
        %3163 = vmatprep.subr.mxu0 0.0
        %v3164 = vand.u32 %v2559, 4294901760
        %v3165 = vsub.f32 %v2559, %v3164
        %3166 = vmatpush1.msra.mxu0 %v3165
        %3167 = vmatprep.subr.mxu0 0.0
        %v3168 = vand.u32 %v2560, 4294901760
        %v3169 = vsub.f32 %v2560, %v3168
        %3170 = vmatpush1.msra.mxu0 %v3169
        %3171 = vmatprep.subr.mxu0 0.0
        %v3172 = vand.u32 %v2561, 4294901760
        %v3173 = vsub.f32 %v2561, %v3172
        %3174 = vmatpush1.msra.mxu0 %v3173
        %3175 = vmatprep.subr.mxu0 0.0
        %v3176 = vand.u32 %v2587, 4294901760
        %v3177 = vsub.f32 %v2587, %v3176
        %3178 = vmatpush1.msra.mxu0 %v3177
        %3179 = vmatprep.subr.mxu0 0.0
        %v3180 = vand.u32 %v2588, 4294901760
        %v3181 = vsub.f32 %v2588, %v3180
        %3182 = vmatpush1.msra.mxu0 %v3181
        %3183 = vmatprep.subr.mxu0 0.0
        %v3184 = vand.u32 %v2589, 4294901760
        %v3185 = vsub.f32 %v2589, %v3184
        %3186 = vmatpush1.msra.mxu0 %v3185
        %3187 = vmatprep.subr.mxu0 0.0
        %v3188 = vand.u32 %v2590, 4294901760
        %v3189 = vsub.f32 %v2590, %v3188
        %3190 = vmatpush1.msra.mxu0 %v3189
        %v3191 = vand.u32 %v2368, 4294901760
        %v3192 = vsub.f32 %v2368, %v3191
        %3193 = vmatprep.mubr.f32.mxu0 %v3192
        %v3194 = vand.u32 %v2367, 4294901760
        %v3195 = vsub.f32 %v2367, %v3194
        %3196 = vmatmul.mubr.f32.gmra.mrb[0].mxu0 %v3195
        %v3197 = vpop.f32.mrb[0].mxu0
        %v3198 = vadd.f32 %v3039, %v3197
        %v3199 = vpop.f32.mrb[0].mxu0
        %v3200 = vand.u32 %v2371, 4294901760
        %v3201 = vsub.f32 %v2371, %v3200
        %3202 = vmatprep.mubr.f32.mxu0 %v3201
        %v3203 = vand.u32 %v2370, 4294901760
        %v3204 = vsub.f32 %v2370, %v3203
        %3205 = vmatmul.mubr.f32.gmra.mrb[0].mxu0 %v3204
        %v3206 = vpop.f32.mrb[0].mxu0
        %v3207 = vadd.f32 %v3046, %v3206
        %v3208 = vpop.f32.mrb[0].mxu0
        %v3209 = vand.u32 %v2374, 4294901760
        %v3210 = vsub.f32 %v2374, %v3209
        %3211 = vmatprep.mubr.f32.mxu0 %v3210
        %v3212 = vand.u32 %v2373, 4294901760
        %v3213 = vsub.f32 %v2373, %v3212
        %3214 = vmatmul.mubr.f32.gmra.mrb[0].mxu0 %v3213
        %v3215 = vpop.f32.mrb[0].mxu0
        %v3216 = vadd.f32 %v3053, %v3215
        %v3217 = vpop.f32.mrb[0].mxu0
        %v3218 = vand.u32 %v2377, 4294901760
        %v3219 = vsub.f32 %v2377, %v3218
        %3220 = vmatprep.mubr.f32.mxu0 %v3219
        %v3221 = vand.u32 %v2376, 4294901760
        %v3222 = vsub.f32 %v2376, %v3221
        %3223 = vmatmul.mubr.f32.gmra.mrb[0].mxu0 %v3222
        %v3224 = vpop.f32.mrb[0].mxu0
        %v3225 = vadd.f32 %v3060, %v3224
        %v3226 = vpop.f32.mrb[0].mxu0
        %3227 = vdwg.mxu0
        %3228 = vmatprep.subr.mxu0 0.0
        %v3229 = vand.u32 %v2413, 4294901760
        %3230 = vmatpush1.msra.mxu0 %v3229
        %3231 = vmatprep.subr.mxu0 0.0
        %v3232 = vand.u32 %v2414, 4294901760
        %3233 = vmatpush1.msra.mxu0 %v3232
        %3234 = vmatprep.subr.mxu0 0.0
        %v3235 = vand.u32 %v2415, 4294901760
        %3236 = vmatpush1.msra.mxu0 %v3235
        %3237 = vmatprep.subr.mxu0 0.0
        %v3238 = vand.u32 %v2416, 4294901760
        %3239 = vmatpush1.msra.mxu0 %v3238
        %3240 = vmatprep.subr.mxu0 0.0
        %v3241 = vand.u32 %v2442, 4294901760
        %3242 = vmatpush1.msra.mxu0 %v3241
        %3243 = vmatprep.subr.mxu0 0.0
        %v3244 = vand.u32 %v2443, 4294901760
        %3245 = vmatpush1.msra.mxu0 %v3244
        %3246 = vmatprep.subr.mxu0 0.0
        %v3247 = vand.u32 %v2444, 4294901760
        %3248 = vmatpush1.msra.mxu0 %v3247
        %3249 = vmatprep.subr.mxu0 0.0
        %v3250 = vand.u32 %v2445, 4294901760
        %3251 = vmatpush1.msra.mxu0 %v3250
        %3252 = vmatprep.subr.mxu0 0.0
        %v3253 = vand.u32 %v2471, 4294901760
        %3254 = vmatpush1.msra.mxu0 %v3253
        %3255 = vmatprep.subr.mxu0 0.0
        %v3256 = vand.u32 %v2472, 4294901760
        %3257 = vmatpush1.msra.mxu0 %v3256
        %3258 = vmatprep.subr.mxu0 0.0
        %v3259 = vand.u32 %v2473, 4294901760
        %3260 = vmatpush1.msra.mxu0 %v3259
        %3261 = vmatprep.subr.mxu0 0.0
        %v3262 = vand.u32 %v2474, 4294901760
        %3263 = vmatpush1.msra.mxu0 %v3262
        %3264 = vmatprep.subr.mxu0 0.0
        %v3265 = vand.u32 %v2500, 4294901760
        %3266 = vmatpush1.msra.mxu0 %v3265
        %3267 = vmatprep.subr.mxu0 0.0
        %v3268 = vand.u32 %v2501, 4294901760
        %3269 = vmatpush1.msra.mxu0 %v3268
        %3270 = vmatprep.subr.mxu0 0.0
        %v3271 = vand.u32 %v2502, 4294901760
        %3272 = vmatpush1.msra.mxu0 %v3271
        %3273 = vmatprep.subr.mxu0 0.0
        %v3274 = vand.u32 %v2503, 4294901760
        %3275 = vmatpush1.msra.mxu0 %v3274
        %3276 = vmatprep.subr.mxu0 0.0
        %v3277 = vand.u32 %v2346, 4294901760
        %3278 = vmatpush1.msra.mxu0 %v3277
        %3279 = vmatprep.subr.mxu0 0.0
        %v3280 = vand.u32 %v2352, 4294901760
        %3281 = vmatpush1.msra.mxu0 %v3280
        %3282 = vmatprep.subr.mxu0 0.0
        %v3283 = vand.u32 %v2358, 4294901760
        %3284 = vmatpush1.msra.mxu0 %v3283
        %3285 = vmatprep.subr.mxu0 0.0
        %v3286 = vand.u32 %v2364, 4294901760
        %3287 = vmatpush1.msra.mxu0 %v3286
        %3288 = vmatprep.subr.mxu0 0.0
        %v3289 = vand.u32 %v2529, 4294901760
        %3290 = vmatpush1.msra.mxu0 %v3289
        %3291 = vmatprep.subr.mxu0 0.0
        %v3292 = vand.u32 %v2530, 4294901760
        %3293 = vmatpush1.msra.mxu0 %v3292
        %3294 = vmatprep.subr.mxu0 0.0
        %v3295 = vand.u32 %v2531, 4294901760
        %3296 = vmatpush1.msra.mxu0 %v3295
        %3297 = vmatprep.subr.mxu0 0.0
        %v3298 = vand.u32 %v2532, 4294901760
        %3299 = vmatpush1.msra.mxu0 %v3298
        %3300 = vmatprep.subr.mxu0 0.0
        %v3301 = vand.u32 %v2558, 4294901760
        %3302 = vmatpush1.msra.mxu0 %v3301
        %3303 = vmatprep.subr.mxu0 0.0
        %v3304 = vand.u32 %v2559, 4294901760
        %3305 = vmatpush1.msra.mxu0 %v3304
        %3306 = vmatprep.subr.mxu0 0.0
        %v3307 = vand.u32 %v2560, 4294901760
        %3308 = vmatpush1.msra.mxu0 %v3307
        %3309 = vmatprep.subr.mxu0 0.0
        %v3310 = vand.u32 %v2561, 4294901760
        %3311 = vmatpush1.msra.mxu0 %v3310
        %3312 = vmatprep.subr.mxu0 0.0
        %v3313 = vand.u32 %v2587, 4294901760
        %3314 = vmatpush1.msra.mxu0 %v3313
        %3315 = vmatprep.subr.mxu0 0.0
        %v3316 = vand.u32 %v2588, 4294901760
        %3317 = vmatpush1.msra.mxu0 %v3316
        %3318 = vmatprep.subr.mxu0 0.0
        %v3319 = vand.u32 %v2589, 4294901760
        %3320 = vmatpush1.msra.mxu0 %v3319
        %3321 = vmatprep.subr.mxu0 0.0
        %v3322 = vand.u32 %v2590, 4294901760
        %3323 = vmatpush1.msra.mxu0 %v3322
        %v3324 = vand.u32 %v2368, 4294901760
        %v3325 = vsub.f32 %v2368, %v3324
        %v3326 = vand.u32 %v3325, 4294901760
        %3327 = vmatprep.mubr.f32.mxu0 %v3326
        %v3328 = vand.u32 %v2367, 4294901760
        %v3329 = vsub.f32 %v2367, %v3328
        %v3330 = vand.u32 %v3329, 4294901760
        %3331 = vmatmul.mubr.f32.gmra.mrb[0].mxu0 %v3330
        %v3332 = vpop.f32.mrb[0].mxu0
        %v3333 = vadd.f32 %v3198, %v3332
        %v3334 = vpop.f32.mrb[0].mxu0
        %v3335 = vand.u32 %v2371, 4294901760
        %v3336 = vsub.f32 %v2371, %v3335
        %v3337 = vand.u32 %v3336, 4294901760
        %3338 = vmatprep.mubr.f32.mxu0 %v3337
        %v3339 = vand.u32 %v2370, 4294901760
        %v3340 = vsub.f32 %v2370, %v3339
        %v3341 = vand.u32 %v3340, 4294901760
        %3342 = vmatmul.mubr.f32.gmra.mrb[0].mxu0 %v3341
        %v3343 = vpop.f32.mrb[0].mxu0
        %v3344 = vadd.f32 %v3207, %v3343
        %v3345 = vpop.f32.mrb[0].mxu0
        %v3346 = vand.u32 %v2374, 4294901760
        %v3347 = vsub.f32 %v2374, %v3346
        %v3348 = vand.u32 %v3347, 4294901760
        %3349 = vmatprep.mubr.f32.mxu0 %v3348
        %v3350 = vand.u32 %v2373, 4294901760
        %v3351 = vsub.f32 %v2373, %v3350
        %v3352 = vand.u32 %v3351, 4294901760
        %3353 = vmatmul.mubr.f32.gmra.mrb[0].mxu0 %v3352
        %v3354 = vpop.f32.mrb[0].mxu0
        %v3355 = vadd.f32 %v3216, %v3354
        %v3356 = vpop.f32.mrb[0].mxu0
        %v3357 = vand.u32 %v2377, 4294901760
        %v3358 = vsub.f32 %v2377, %v3357
        %v3359 = vand.u32 %v3358, 4294901760
        %3360 = vmatprep.mubr.f32.mxu0 %v3359
        %v3361 = vand.u32 %v2376, 4294901760
        %v3362 = vsub.f32 %v2376, %v3361
        %v3363 = vand.u32 %v3362, 4294901760
        %3364 = vmatmul.mubr.f32.gmra.mrb[0].mxu0 %v3363
        %v3365 = vpop.f32.mrb[0].mxu0
        %v3366 = vadd.f32 %v3225, %v3365
        %v3367 = vpop.f32.mrb[0].mxu0
        %3368 = vdwg.mxu0
        %3369 = vmatprep.subr.mxu0 0.0
        %v3370 = vand.u32 %v2413, 4294901760
        %v3371 = vsub.f32 %v2413, %v3370
        %v3372 = vand.u32 %v3371, 4294901760
        %3373 = vmatpush1.msra.mxu0 %v3372
        %3374 = vmatprep.subr.mxu0 0.0
        %v3375 = vand.u32 %v2414, 4294901760
        %v3376 = vsub.f32 %v2414, %v3375
        %v3377 = vand.u32 %v3376, 4294901760
        %3378 = vmatpush1.msra.mxu0 %v3377
        %3379 = vmatprep.subr.mxu0 0.0
        %v3380 = vand.u32 %v2415, 4294901760
        %v3381 = vsub.f32 %v2415, %v3380
        %v3382 = vand.u32 %v3381, 4294901760
        %3383 = vmatpush1.msra.mxu0 %v3382
        %3384 = vmatprep.subr.mxu0 0.0
        %v3385 = vand.u32 %v2416, 4294901760
        %v3386 = vsub.f32 %v2416, %v3385
        %v3387 = vand.u32 %v3386, 4294901760
        %3388 = vmatpush1.msra.mxu0 %v3387
        %3389 = vmatprep.subr.mxu0 0.0
        %v3390 = vand.u32 %v2442, 4294901760
        %v3391 = vsub.f32 %v2442, %v3390
        %v3392 = vand.u32 %v3391, 4294901760
        %3393 = vmatpush1.msra.mxu0 %v3392
        %3394 = vmatprep.subr.mxu0 0.0
        %v3395 = vand.u32 %v2443, 4294901760
        %v3396 = vsub.f32 %v2443, %v3395
        %v3397 = vand.u32 %v3396, 4294901760
        %3398 = vmatpush1.msra.mxu0 %v3397
        %3399 = vmatprep.subr.mxu0 0.0
        %v3400 = vand.u32 %v2444, 4294901760
        %v3401 = vsub.f32 %v2444, %v3400
        %v3402 = vand.u32 %v3401, 4294901760
        %3403 = vmatpush1.msra.mxu0 %v3402
        %3404 = vmatprep.subr.mxu0 0.0
        %v3405 = vand.u32 %v2445, 4294901760
        %v3406 = vsub.f32 %v2445, %v3405
        %v3407 = vand.u32 %v3406, 4294901760
        %3408 = vmatpush1.msra.mxu0 %v3407
        %3409 = vmatprep.subr.mxu0 0.0
        %v3410 = vand.u32 %v2471, 4294901760
        %v3411 = vsub.f32 %v2471, %v3410
        %v3412 = vand.u32 %v3411, 4294901760
        %3413 = vmatpush1.msra.mxu0 %v3412
        %3414 = vmatprep.subr.mxu0 0.0
        %v3415 = vand.u32 %v2472, 4294901760
        %v3416 = vsub.f32 %v2472, %v3415
        %v3417 = vand.u32 %v3416, 4294901760
        %3418 = vmatpush1.msra.mxu0 %v3417
        %3419 = vmatprep.subr.mxu0 0.0
        %v3420 = vand.u32 %v2473, 4294901760
        %v3421 = vsub.f32 %v2473, %v3420
        %v3422 = vand.u32 %v3421, 4294901760
        %3423 = vmatpush1.msra.mxu0 %v3422
        %3424 = vmatprep.subr.mxu0 0.0
        %v3425 = vand.u32 %v2474, 4294901760
        %v3426 = vsub.f32 %v2474, %v3425
        %v3427 = vand.u32 %v3426, 4294901760
        %3428 = vmatpush1.msra.mxu0 %v3427
        %3429 = vmatprep.subr.mxu0 0.0
        %v3430 = vand.u32 %v2500, 4294901760
        %v3431 = vsub.f32 %v2500, %v3430
        %v3432 = vand.u32 %v3431, 4294901760
        %3433 = vmatpush1.msra.mxu0 %v3432
        %3434 = vmatprep.subr.mxu0 0.0
        %v3435 = vand.u32 %v2501, 4294901760
        %v3436 = vsub.f32 %v2501, %v3435
        %v3437 = vand.u32 %v3436, 4294901760
        %3438 = vmatpush1.msra.mxu0 %v3437
        %3439 = vmatprep.subr.mxu0 0.0
        %v3440 = vand.u32 %v2502, 4294901760
        %v3441 = vsub.f32 %v2502, %v3440
        %v3442 = vand.u32 %v3441, 4294901760
        %3443 = vmatpush1.msra.mxu0 %v3442
        %3444 = vmatprep.subr.mxu0 0.0
        %v3445 = vand.u32 %v2503, 4294901760
        %v3446 = vsub.f32 %v2503, %v3445
        %v3447 = vand.u32 %v3446, 4294901760
        %3448 = vmatpush1.msra.mxu0 %v3447
        %3449 = vmatprep.subr.mxu0 0.0
        %v3450 = vand.u32 %v2346, 4294901760
        %v3451 = vsub.f32 %v2346, %v3450
        %v3452 = vand.u32 %v3451, 4294901760
        %3453 = vmatpush1.msra.mxu0 %v3452
        %3454 = vmatprep.subr.mxu0 0.0
        %v3455 = vand.u32 %v2352, 4294901760
        %v3456 = vsub.f32 %v2352, %v3455
        %v3457 = vand.u32 %v3456, 4294901760
        %3458 = vmatpush1.msra.mxu0 %v3457
        %3459 = vmatprep.subr.mxu0 0.0
        %v3460 = vand.u32 %v2358, 4294901760
        %v3461 = vsub.f32 %v2358, %v3460
        %v3462 = vand.u32 %v3461, 4294901760
        %3463 = vmatpush1.msra.mxu0 %v3462
        %3464 = vmatprep.subr.mxu0 0.0
        %v3465 = vand.u32 %v2364, 4294901760
        %v3466 = vsub.f32 %v2364, %v3465
        %v3467 = vand.u32 %v3466, 4294901760
        %3468 = vmatpush1.msra.mxu0 %v3467
        %3469 = vmatprep.subr.mxu0 0.0
        %v3470 = vand.u32 %v2529, 4294901760
        %v3471 = vsub.f32 %v2529, %v3470
        %v3472 = vand.u32 %v3471, 4294901760
        %3473 = vmatpush1.msra.mxu0 %v3472
        %3474 = vmatprep.subr.mxu0 0.0
        %v3475 = vand.u32 %v2530, 4294901760
        %v3476 = vsub.f32 %v2530, %v3475
        %v3477 = vand.u32 %v3476, 4294901760
        %3478 = vmatpush1.msra.mxu0 %v3477
        %3479 = vmatprep.subr.mxu0 0.0
        %v3480 = vand.u32 %v2531, 4294901760
        %v3481 = vsub.f32 %v2531, %v3480
        %v3482 = vand.u32 %v3481, 4294901760
        %3483 = vmatpush1.msra.mxu0 %v3482
        %3484 = vmatprep.subr.mxu0 0.0
        %v3485 = vand.u32 %v2532, 4294901760
        %v3486 = vsub.f32 %v2532, %v3485
        %v3487 = vand.u32 %v3486, 4294901760
        %3488 = vmatpush1.msra.mxu0 %v3487
        %3489 = vmatprep.subr.mxu0 0.0
        %v3490 = vand.u32 %v2558, 4294901760
        %v3491 = vsub.f32 %v2558, %v3490
        %v3492 = vand.u32 %v3491, 4294901760
        %3493 = vmatpush1.msra.mxu0 %v3492
        %3494 = vmatprep.subr.mxu0 0.0
        %v3495 = vand.u32 %v2559, 4294901760
        %v3496 = vsub.f32 %v2559, %v3495
        %v3497 = vand.u32 %v3496, 4294901760
        %3498 = vmatpush1.msra.mxu0 %v3497
        %3499 = vmatprep.subr.mxu0 0.0
        %v3500 = vand.u32 %v2560, 4294901760
        %v3501 = vsub.f32 %v2560, %v3500
        %v3502 = vand.u32 %v3501, 4294901760
        %3503 = vmatpush1.msra.mxu0 %v3502
        %3504 = vmatprep.subr.mxu0 0.0
        %v3505 = vand.u32 %v2561, 4294901760
        %v3506 = vsub.f32 %v2561, %v3505
        %v3507 = vand.u32 %v3506, 4294901760
        %3508 = vmatpush1.msra.mxu0 %v3507
        %3509 = vmatprep.subr.mxu0 0.0
        %v3510 = vand.u32 %v2587, 4294901760
        %v3511 = vsub.f32 %v2587, %v3510
        %v3512 = vand.u32 %v3511, 4294901760
        %3513 = vmatpush1.msra.mxu0 %v3512
        %3514 = vmatprep.subr.mxu0 0.0
        %v3515 = vand.u32 %v2588, 4294901760
        %v3516 = vsub.f32 %v2588, %v3515
        %v3517 = vand.u32 %v3516, 4294901760
        %3518 = vmatpush1.msra.mxu0 %v3517
        %3519 = vmatprep.subr.mxu0 0.0
        %v3520 = vand.u32 %v2589, 4294901760
        %v3521 = vsub.f32 %v2589, %v3520
        %v3522 = vand.u32 %v3521, 4294901760
        %3523 = vmatpush1.msra.mxu0 %v3522
        %3524 = vmatprep.subr.mxu0 0.0
        %v3525 = vand.u32 %v2590, 4294901760
        %v3526 = vsub.f32 %v2590, %v3525
        %v3527 = vand.u32 %v3526, 4294901760
        %3528 = vmatpush1.msra.mxu0 %v3527
        %v3529 = vand.u32 %v2368, 4294901760
        %3530 = vmatprep.mubr.f32.mxu0 %v3529
        %v3531 = vand.u32 %v2367, 4294901760
        %3532 = vmatmul.mubr.f32.gmra.mrb[0].mxu0 %v3531
        %v3533 = vpop.f32.mrb[0].mxu0
        %v3534 = vadd.f32 %v3333, %v3533
        %v3535 = vpop.f32.mrb[0].mxu0
        %v3536 = vand.u32 %v2371, 4294901760
        %3537 = vmatprep.mubr.f32.mxu0 %v3536
        %v3538 = vand.u32 %v2370, 4294901760
        %3539 = vmatmul.mubr.f32.gmra.mrb[0].mxu0 %v3538
        %v3540 = vpop.f32.mrb[0].mxu0
        %v3541 = vadd.f32 %v3344, %v3540
        %v3542 = vpop.f32.mrb[0].mxu0
        %v3543 = vand.u32 %v2374, 4294901760
        %3544 = vmatprep.mubr.f32.mxu0 %v3543
        %v3545 = vand.u32 %v2373, 4294901760
        %3546 = vmatmul.mubr.f32.gmra.mrb[0].mxu0 %v3545
        %v3547 = vpop.f32.mrb[0].mxu0
        %v3548 = vadd.f32 %v3355, %v3547
        %v3549 = vpop.f32.mrb[0].mxu0
        %v3550 = vand.u32 %v2377, 4294901760
        %3551 = vmatprep.mubr.f32.mxu0 %v3550
        %v3552 = vand.u32 %v2376, 4294901760
        %3553 = vmatmul.mubr.f32.gmra.mrb[0].mxu0 %v3552
        %v3554 = vpop.f32.mrb[0].mxu0
        %v3555 = vadd.f32 %v3366, %v3554
        %v3556 = vpop.f32.mrb[0].mxu0
        %3557 = vdwg.mxu0
        %3558 = vmatprep.subr.mxu0 0.0
        %v3559 = vand.u32 %v2413, 4294901760
        %3560 = vmatpush1.msra.mxu0 %v3559
        %3561 = vmatprep.subr.mxu0 0.0
        %v3562 = vand.u32 %v2414, 4294901760
        %3563 = vmatpush1.msra.mxu0 %v3562
        %3564 = vmatprep.subr.mxu0 0.0
        %v3565 = vand.u32 %v2415, 4294901760
        %3566 = vmatpush1.msra.mxu0 %v3565
        %3567 = vmatprep.subr.mxu0 0.0
        %v3568 = vand.u32 %v2416, 4294901760
        %3569 = vmatpush1.msra.mxu0 %v3568
        %3570 = vmatprep.subr.mxu0 0.0
        %v3571 = vand.u32 %v2442, 4294901760
        %3572 = vmatpush1.msra.mxu0 %v3571
        %3573 = vmatprep.subr.mxu0 0.0
        %v3574 = vand.u32 %v2443, 4294901760
        %3575 = vmatpush1.msra.mxu0 %v3574
        %3576 = vmatprep.subr.mxu0 0.0
        %v3577 = vand.u32 %v2444, 4294901760
        %3578 = vmatpush1.msra.mxu0 %v3577
        %3579 = vmatprep.subr.mxu0 0.0
        %v3580 = vand.u32 %v2445, 4294901760
        %3581 = vmatpush1.msra.mxu0 %v3580
        %3582 = vmatprep.subr.mxu0 0.0
        %v3583 = vand.u32 %v2471, 4294901760
        %3584 = vmatpush1.msra.mxu0 %v3583
        %3585 = vmatprep.subr.mxu0 0.0
        %v3586 = vand.u32 %v2472, 4294901760
        %3587 = vmatpush1.msra.mxu0 %v3586
        %3588 = vmatprep.subr.mxu0 0.0
        %v3589 = vand.u32 %v2473, 4294901760
        %3590 = vmatpush1.msra.mxu0 %v3589
        %3591 = vmatprep.subr.mxu0 0.0
        %v3592 = vand.u32 %v2474, 4294901760
        %3593 = vmatpush1.msra.mxu0 %v3592
        %3594 = vmatprep.subr.mxu0 0.0
        %v3595 = vand.u32 %v2500, 4294901760
        %3596 = vmatpush1.msra.mxu0 %v3595
        %3597 = vmatprep.subr.mxu0 0.0
        %v3598 = vand.u32 %v2501, 4294901760
        %3599 = vmatpush1.msra.mxu0 %v3598
        %3600 = vmatprep.subr.mxu0 0.0
        %v3601 = vand.u32 %v2502, 4294901760
        %3602 = vmatpush1.msra.mxu0 %v3601
        %3603 = vmatprep.subr.mxu0 0.0
        %v3604 = vand.u32 %v2503, 4294901760
        %3605 = vmatpush1.msra.mxu0 %v3604
        %3606 = vmatprep.subr.mxu0 0.0
        %v3607 = vand.u32 %v2346, 4294901760
        %3608 = vmatpush1.msra.mxu0 %v3607
        %3609 = vmatprep.subr.mxu0 0.0
        %v3610 = vand.u32 %v2352, 4294901760
        %3611 = vmatpush1.msra.mxu0 %v3610
        %3612 = vmatprep.subr.mxu0 0.0
        %v3613 = vand.u32 %v2358, 4294901760
        %3614 = vmatpush1.msra.mxu0 %v3613
        %3615 = vmatprep.subr.mxu0 0.0
        %v3616 = vand.u32 %v2364, 4294901760
        %3617 = vmatpush1.msra.mxu0 %v3616
        %3618 = vmatprep.subr.mxu0 0.0
        %v3619 = vand.u32 %v2529, 4294901760
        %3620 = vmatpush1.msra.mxu0 %v3619
        %3621 = vmatprep.subr.mxu0 0.0
        %v3622 = vand.u32 %v2530, 4294901760
        %3623 = vmatpush1.msra.mxu0 %v3622
        %3624 = vmatprep.subr.mxu0 0.0
        %v3625 = vand.u32 %v2531, 4294901760
        %3626 = vmatpush1.msra.mxu0 %v3625
        %3627 = vmatprep.subr.mxu0 0.0
        %v3628 = vand.u32 %v2532, 4294901760
        %3629 = vmatpush1.msra.mxu0 %v3628
        %3630 = vmatprep.subr.mxu0 0.0
        %v3631 = vand.u32 %v2558, 4294901760
        %3632 = vmatpush1.msra.mxu0 %v3631
        %3633 = vmatprep.subr.mxu0 0.0
        %v3634 = vand.u32 %v2559, 4294901760
        %3635 = vmatpush1.msra.mxu0 %v3634
        %3636 = vmatprep.subr.mxu0 0.0
        %v3637 = vand.u32 %v2560, 4294901760
        %3638 = vmatpush1.msra.mxu0 %v3637
        %3639 = vmatprep.subr.mxu0 0.0
        %v3640 = vand.u32 %v2561, 4294901760
        %3641 = vmatpush1.msra.mxu0 %v3640
        %3642 = vmatprep.subr.mxu0 0.0
        %v3643 = vand.u32 %v2587, 4294901760
        %3644 = vmatpush1.msra.mxu0 %v3643
        %3645 = vmatprep.subr.mxu0 0.0
        %v3646 = vand.u32 %v2588, 4294901760
        %3647 = vmatpush1.msra.mxu0 %v3646
        %3648 = vmatprep.subr.mxu0 0.0
        %v3649 = vand.u32 %v2589, 4294901760
        %3650 = vmatpush1.msra.mxu0 %v3649
        %3651 = vmatprep.subr.mxu0 0.0
        %v3652 = vand.u32 %v2590, 4294901760
        %3653 = vmatpush1.msra.mxu0 %v3652
        %v3654 = vand.u32 %v2368, 4294901760
        %3655 = vmatprep.mubr.f32.mxu0 %v3654
        %v3656 = vand.u32 %v2367, 4294901760
        %3657 = vmatmul.mubr.f32.gmra.mrb[0].mxu0 %v3656
        %v3658 = vpop.f32.mrb[0].mxu0
        %v3659 = vadd.f32 %v3534, %v3658
        %v3660 = vpop.f32.mrb[0].mxu0
        %v3661 = vand.u32 %v2371, 4294901760
        %3662 = vmatprep.mubr.f32.mxu0 %v3661
        %v3663 = vand.u32 %v2370, 4294901760
        %3664 = vmatmul.mubr.f32.gmra.mrb[0].mxu0 %v3663
        %v3665 = vpop.f32.mrb[0].mxu0
        %v3666 = vadd.f32 %v3541, %v3665
        %v3667 = vpop.f32.mrb[0].mxu0
        %v3668 = vand.u32 %v2374, 4294901760
        %3669 = vmatprep.mubr.f32.mxu0 %v3668
        %v3670 = vand.u32 %v2373, 4294901760
        %3671 = vmatmul.mubr.f32.gmra.mrb[0].mxu0 %v3670
        %v3672 = vpop.f32.mrb[0].mxu0
        %v3673 = vadd.f32 %v3548, %v3672
        %v3674 = vpop.f32.mrb[0].mxu0
        %v3675 = vand.u32 %v2377, 4294901760
        %3676 = vmatprep.mubr.f32.mxu0 %v3675
        %v3677 = vand.u32 %v2376, 4294901760
        %3678 = vmatmul.mubr.f32.gmra.mrb[0].mxu0 %v3677
        %v3679 = vpop.f32.mrb[0].mxu0
        %v3680 = vadd.f32 %v3555, %v3679
        %v3681 = vpop.f32.mrb[0].mxu0
        %3682 = vdwg.mxu0
        %3683 = vmatprep.subr.mxu0 0.0
        %v3684 = vand.u32 %v2616, 4294901760
        %3685 = vmatpush1.msra.mxu0 %v3684
        %3686 = vmatprep.subr.mxu0 0.0
        %v3687 = vand.u32 %v2617, 4294901760
        %3688 = vmatpush1.msra.mxu0 %v3687
        %3689 = vmatprep.subr.mxu0 0.0
        %v3690 = vand.u32 %v2618, 4294901760
        %3691 = vmatpush1.msra.mxu0 %v3690
        %3692 = vmatprep.subr.mxu0 0.0
        %v3693 = vand.u32 %v2619, 4294901760
        %3694 = vmatpush1.msra.mxu0 %v3693
        %3695 = vmatprep.subr.mxu0 0.0
        %3696 = vmatpush1.msra.mxu0 0.0
        %3697 = vmatprep.subr.mxu0 0.0
        %3698 = vmatpush1.msra.mxu0 0.0
        %3699 = vmatprep.subr.mxu0 0.0
        %3700 = vmatpush1.msra.mxu0 0.0
        %3701 = vmatprep.subr.mxu0 0.0
        %3702 = vmatpush1.msra.mxu0 0.0
        %3703 = vmatprep.subr.mxu0 0.0
        %3704 = vmatpush1.msra.mxu0 0.0
        %3705 = vmatprep.subr.mxu0 0.0
        %3706 = vmatpush1.msra.mxu0 0.0
        %3707 = vmatprep.subr.mxu0 0.0
        %3708 = vmatpush1.msra.mxu0 0.0
        %3709 = vmatprep.subr.mxu0 0.0
        %3710 = vmatpush1.msra.mxu0 0.0
        %3711 = vmatprep.subr.mxu0 0.0
        %3712 = vmatpush1.msra.mxu0 0.0
        %3713 = vmatprep.subr.mxu0 0.0
        %3714 = vmatpush1.msra.mxu0 0.0
        %3715 = vmatprep.subr.mxu0 0.0
        %3716 = vmatpush1.msra.mxu0 0.0
        %3717 = vmatprep.subr.mxu0 0.0
        %3718 = vmatpush1.msra.mxu0 0.0
        %3719 = vmatprep.subr.mxu0 0.0
        %3720 = vmatpush1.msra.mxu0 0.0
        %3721 = vmatprep.subr.mxu0 0.0
        %3722 = vmatpush1.msra.mxu0 0.0
        %3723 = vmatprep.subr.mxu0 0.0
        %3724 = vmatpush1.msra.mxu0 0.0
        %3725 = vmatprep.subr.mxu0 0.0
        %3726 = vmatpush1.msra.mxu0 0.0
        %3727 = vmatprep.subr.mxu0 0.0
        %3728 = vmatpush1.msra.mxu0 0.0
        %3729 = vmatprep.subr.mxu0 0.0
        %3730 = vmatpush1.msra.mxu0 0.0
        %3731 = vmatprep.subr.mxu0 0.0
        %3732 = vmatpush1.msra.mxu0 0.0
        %3733 = vmatprep.subr.mxu0 0.0
        %3734 = vmatpush1.msra.mxu0 0.0
        %3735 = vmatprep.subr.mxu0 0.0
        %3736 = vmatpush1.msra.mxu0 0.0
        %3737 = vmatprep.subr.mxu0 0.0
        %3738 = vmatpush1.msra.mxu0 0.0
        %3739 = vmatprep.subr.mxu0 0.0
        %3740 = vmatpush1.msra.mxu0 0.0
        %3741 = vmatprep.subr.mxu0 0.0
        %3742 = vmatpush1.msra.mxu0 0.0
        %3743 = vmatprep.subr.mxu0 0.0
        %3744 = vmatpush1.msra.mxu0 0.0
        %3745 = vmatprep.subr.mxu0 0.0
        %3746 = vmatpush1.msra.mxu0 0.0
        %3747 = vmatprep.subr.mxu0 0.0
        %3748 = vmatpush1.msra.mxu0 0.0
        %3749 = vmatprep.subr.mxu0 0.0
        %3750 = vmatpush1.msra.mxu0 0.0
        %3751 = vmatprep.mubr.f32.mxu0 0.0
        %v3752 = vand.u32 %v2642, 4294901760
        %v3753 = vsub.f32 %v2642, %v3752
        %v3754 = vand.u32 %v3753, 4294901760
        %v3755 = vsub.f32 %v3753, %v3754
        %v3756 = vand.u32 %v3755, 4294901760
        %3757 = vmatmul.mubr.f32.gmra.mrb[0].mxu0 %v3756
        %v3758 = vpop.f32.mrb[0].mxu0
        %v3759 = vadd.f32 %v3659, %v3758
        %v3760 = vpop.f32.mrb[0].mxu0
        %3761 = vmatprep.mubr.f32.mxu0 0.0
        %v3762 = vand.u32 %v2645, 4294901760
        %v3763 = vsub.f32 %v2645, %v3762
        %v3764 = vand.u32 %v3763, 4294901760
        %v3765 = vsub.f32 %v3763, %v3764
        %v3766 = vand.u32 %v3765, 4294901760
        %3767 = vmatmul.mubr.f32.gmra.mrb[0].mxu0 %v3766
        %v3768 = vpop.f32.mrb[0].mxu0
        %v3769 = vadd.f32 %v3666, %v3768
        %v3770 = vpop.f32.mrb[0].mxu0
        %3771 = vmatprep.mubr.f32.mxu0 0.0
        %v3772 = vand.u32 %v2648, 4294901760
        %v3773 = vsub.f32 %v2648, %v3772
        %v3774 = vand.u32 %v3773, 4294901760
        %v3775 = vsub.f32 %v3773, %v3774
        %v3776 = vand.u32 %v3775, 4294901760
        %3777 = vmatmul.mubr.f32.gmra.mrb[0].mxu0 %v3776
        %v3778 = vpop.f32.mrb[0].mxu0
        %v3779 = vadd.f32 %v3673, %v3778
        %v3780 = vpop.f32.mrb[0].mxu0
        %3781 = vmatprep.mubr.f32.mxu0 0.0
        %v3782 = vand.u32 %v2651, 4294901760
        %v3783 = vsub.f32 %v2651, %v3782
        %v3784 = vand.u32 %v3783, 4294901760
        %v3785 = vsub.f32 %v3783, %v3784
        %v3786 = vand.u32 %v3785, 4294901760
        %3787 = vmatmul.mubr.f32.gmra.mrb[0].mxu0 %v3786
        %v3788 = vpop.f32.mrb[0].mxu0
        %v3789 = vadd.f32 %v3680, %v3788
        %v3790 = vpop.f32.mrb[0].mxu0
        %3791 = vdwg.mxu0
        %3792 = vmatprep.subr.mxu0 0.0
        %v3793 = vand.u32 %v2616, 4294901760
        %v3794 = vsub.f32 %v2616, %v3793
        %v3795 = vand.u32 %v3794, 4294901760
        %v3796 = vsub.f32 %v3794, %v3795
        %v3797 = vand.u32 %v3796, 4294901760
        %3798 = vmatpush1.msra.mxu0 %v3797
        %3799 = vmatprep.subr.mxu0 0.0
        %v3800 = vand.u32 %v2617, 4294901760
        %v3801 = vsub.f32 %v2617, %v3800
        %v3802 = vand.u32 %v3801, 4294901760
        %v3803 = vsub.f32 %v3801, %v3802
        %v3804 = vand.u32 %v3803, 4294901760
        %3805 = vmatpush1.msra.mxu0 %v3804
        %3806 = vmatprep.subr.mxu0 0.0
        %v3807 = vand.u32 %v2618, 4294901760
        %v3808 = vsub.f32 %v2618, %v3807
        %v3809 = vand.u32 %v3808, 4294901760
        %v3810 = vsub.f32 %v3808, %v3809
        %v3811 = vand.u32 %v3810, 4294901760
        %3812 = vmatpush1.msra.mxu0 %v3811
        %3813 = vmatprep.subr.mxu0 0.0
        %v3814 = vand.u32 %v2619, 4294901760
        %v3815 = vsub.f32 %v2619, %v3814
        %v3816 = vand.u32 %v3815, 4294901760
        %v3817 = vsub.f32 %v3815, %v3816
        %v3818 = vand.u32 %v3817, 4294901760
        %3819 = vmatpush1.msra.mxu0 %v3818
        %3820 = vmatprep.subr.mxu0 0.0
        %3821 = vmatpush1.msra.mxu0 0.0
        %3822 = vmatprep.subr.mxu0 0.0
        %3823 = vmatpush1.msra.mxu0 0.0
        %3824 = vmatprep.subr.mxu0 0.0
        %3825 = vmatpush1.msra.mxu0 0.0
        %3826 = vmatprep.subr.mxu0 0.0
        %3827 = vmatpush1.msra.mxu0 0.0
        %3828 = vmatprep.subr.mxu0 0.0
        %3829 = vmatpush1.msra.mxu0 0.0
        %3830 = vmatprep.subr.mxu0 0.0
        %3831 = vmatpush1.msra.mxu0 0.0
        %3832 = vmatprep.subr.mxu0 0.0
        %3833 = vmatpush1.msra.mxu0 0.0
        %3834 = vmatprep.subr.mxu0 0.0
        %3835 = vmatpush1.msra.mxu0 0.0
        %3836 = vmatprep.subr.mxu0 0.0
        %3837 = vmatpush1.msra.mxu0 0.0
        %3838 = vmatprep.subr.mxu0 0.0
        %3839 = vmatpush1.msra.mxu0 0.0
        %3840 = vmatprep.subr.mxu0 0.0
        %3841 = vmatpush1.msra.mxu0 0.0
        %3842 = vmatprep.subr.mxu0 0.0
        %3843 = vmatpush1.msra.mxu0 0.0
        %3844 = vmatprep.subr.mxu0 0.0
        %3845 = vmatpush1.msra.mxu0 0.0
        %3846 = vmatprep.subr.mxu0 0.0
        %3847 = vmatpush1.msra.mxu0 0.0
        %3848 = vmatprep.subr.mxu0 0.0
        %3849 = vmatpush1.msra.mxu0 0.0
        %3850 = vmatprep.subr.mxu0 0.0
        %3851 = vmatpush1.msra.mxu0 0.0
        %3852 = vmatprep.subr.mxu0 0.0
        %3853 = vmatpush1.msra.mxu0 0.0
        %3854 = vmatprep.subr.mxu0 0.0
        %3855 = vmatpush1.msra.mxu0 0.0
        %3856 = vmatprep.subr.mxu0 0.0
        %3857 = vmatpush1.msra.mxu0 0.0
        %3858 = vmatprep.subr.mxu0 0.0
        %3859 = vmatpush1.msra.mxu0 0.0
        %3860 = vmatprep.subr.mxu0 0.0
        %3861 = vmatpush1.msra.mxu0 0.0
        %3862 = vmatprep.subr.mxu0 0.0
        %3863 = vmatpush1.msra.mxu0 0.0
        %3864 = vmatprep.subr.mxu0 0.0
        %3865 = vmatpush1.msra.mxu0 0.0
        %3866 = vmatprep.subr.mxu0 0.0
        %3867 = vmatpush1.msra.mxu0 0.0
        %3868 = vmatprep.subr.mxu0 0.0
        %3869 = vmatpush1.msra.mxu0 0.0
        %3870 = vmatprep.subr.mxu0 0.0
        %3871 = vmatpush1.msra.mxu0 0.0
        %3872 = vmatprep.subr.mxu0 0.0
        %3873 = vmatpush1.msra.mxu0 0.0
        %3874 = vmatprep.subr.mxu0 0.0
        %3875 = vmatpush1.msra.mxu0 0.0
        %3876 = vmatprep.mubr.f32.mxu0 0.0
        %v3877 = vand.u32 %v2642, 4294901760
        %3878 = vmatmul.mubr.f32.gmra.mrb[0].mxu0 %v3877
        %v3879 = vpop.f32.mrb[0].mxu0
        %v3880 = vadd.f32 %v3759, %v3879
        %v3881 = vpop.f32.mrb[0].mxu0
        %3882 = vmatprep.mubr.f32.mxu0 0.0
        %v3883 = vand.u32 %v2645, 4294901760
        %3884 = vmatmul.mubr.f32.gmra.mrb[0].mxu0 %v3883
        %v3885 = vpop.f32.mrb[0].mxu0
        %v3886 = vadd.f32 %v3769, %v3885
        %v3887 = vpop.f32.mrb[0].mxu0
        %3888 = vmatprep.mubr.f32.mxu0 0.0
        %v3889 = vand.u32 %v2648, 4294901760
        %3890 = vmatmul.mubr.f32.gmra.mrb[0].mxu0 %v3889
        %v3891 = vpop.f32.mrb[0].mxu0
        %v3892 = vadd.f32 %v3779, %v3891
        %v3893 = vpop.f32.mrb[0].mxu0
        %3894 = vmatprep.mubr.f32.mxu0 0.0
        %v3895 = vand.u32 %v2651, 4294901760
        %3896 = vmatmul.mubr.f32.gmra.mrb[0].mxu0 %v3895
        %v3897 = vpop.f32.mrb[0].mxu0
        %v3898 = vadd.f32 %v3789, %v3897
        %v3899 = vpop.f32.mrb[0].mxu0
        %3900 = vdwg.mxu0
        %3901 = vmatprep.subr.mxu0 0.0
        %v3902 = vand.u32 %v2616, 4294901760
        %v3903 = vsub.f32 %v2616, %v3902
        %3904 = vmatpush1.msra.mxu0 %v3903
        %3905 = vmatprep.subr.mxu0 0.0
        %v3906 = vand.u32 %v2617, 4294901760
        %v3907 = vsub.f32 %v2617, %v3906
        %3908 = vmatpush1.msra.mxu0 %v3907
        %3909 = vmatprep.subr.mxu0 0.0
        %v3910 = vand.u32 %v2618, 4294901760
        %v3911 = vsub.f32 %v2618, %v3910
        %3912 = vmatpush1.msra.mxu0 %v3911
        %3913 = vmatprep.subr.mxu0 0.0
        %v3914 = vand.u32 %v2619, 4294901760
        %v3915 = vsub.f32 %v2619, %v3914
        %3916 = vmatpush1.msra.mxu0 %v3915
        %3917 = vmatprep.subr.mxu0 0.0
        %3918 = vmatpush1.msra.mxu0 0.0
        %3919 = vmatprep.subr.mxu0 0.0
        %3920 = vmatpush1.msra.mxu0 0.0
        %3921 = vmatprep.subr.mxu0 0.0
        %3922 = vmatpush1.msra.mxu0 0.0
        %3923 = vmatprep.subr.mxu0 0.0
        %3924 = vmatpush1.msra.mxu0 0.0
        %3925 = vmatprep.subr.mxu0 0.0
        %3926 = vmatpush1.msra.mxu0 0.0
        %3927 = vmatprep.subr.mxu0 0.0
        %3928 = vmatpush1.msra.mxu0 0.0
        %3929 = vmatprep.subr.mxu0 0.0
        %3930 = vmatpush1.msra.mxu0 0.0
        %3931 = vmatprep.subr.mxu0 0.0
        %3932 = vmatpush1.msra.mxu0 0.0
        %3933 = vmatprep.subr.mxu0 0.0
        %3934 = vmatpush1.msra.mxu0 0.0
        %3935 = vmatprep.subr.mxu0 0.0
        %3936 = vmatpush1.msra.mxu0 0.0
        %3937 = vmatprep.subr.mxu0 0.0
        %3938 = vmatpush1.msra.mxu0 0.0
        %3939 = vmatprep.subr.mxu0 0.0
        %3940 = vmatpush1.msra.mxu0 0.0
        %3941 = vmatprep.subr.mxu0 0.0
        %3942 = vmatpush1.msra.mxu0 0.0
        %3943 = vmatprep.subr.mxu0 0.0
        %3944 = vmatpush1.msra.mxu0 0.0
        %3945 = vmatprep.subr.mxu0 0.0
        %3946 = vmatpush1.msra.mxu0 0.0
        %3947 = vmatprep.subr.mxu0 0.0
        %3948 = vmatpush1.msra.mxu0 0.0
        %3949 = vmatprep.subr.mxu0 0.0
        %3950 = vmatpush1.msra.mxu0 0.0
        %3951 = vmatprep.subr.mxu0 0.0
        %3952 = vmatpush1.msra.mxu0 0.0
        %3953 = vmatprep.subr.mxu0 0.0
        %3954 = vmatpush1.msra.mxu0 0.0
        %3955 = vmatprep.subr.mxu0 0.0
        %3956 = vmatpush1.msra.mxu0 0.0
        %3957 = vmatprep.subr.mxu0 0.0
        %3958 = vmatpush1.msra.mxu0 0.0
        %3959 = vmatprep.subr.mxu0 0.0
        %3960 = vmatpush1.msra.mxu0 0.0
        %3961 = vmatprep.subr.mxu0 0.0
        %3962 = vmatpush1.msra.mxu0 0.0
        %3963 = vmatprep.subr.mxu0 0.0
        %3964 = vmatpush1.msra.mxu0 0.0
        %3965 = vmatprep.subr.mxu0 0.0
        %3966 = vmatpush1.msra.mxu0 0.0
        %3967 = vmatprep.subr.mxu0 0.0
        %3968 = vmatpush1.msra.mxu0 0.0
        %3969 = vmatprep.subr.mxu0 0.0
        %3970 = vmatpush1.msra.mxu0 0.0
        %3971 = vmatprep.subr.mxu0 0.0
        %3972 = vmatpush1.msra.mxu0 0.0
        %3973 = vmatprep.mubr.f32.mxu0 0.0
        %v3974 = vand.u32 %v2642, 4294901760
        %v3975 = vsub.f32 %v2642, %v3974
        %3976 = vmatmul.mubr.f32.gmra.mrb[0].mxu0 %v3975
        %v3977 = vpop.f32.mrb[0].mxu0
        %v3978 = vadd.f32 %v3880, %v3977
        %v3979 = vpop.f32.mrb[0].mxu0
        %3980 = vmatprep.mubr.f32.mxu0 0.0
        %v3981 = vand.u32 %v2645, 4294901760
        %v3982 = vsub.f32 %v2645, %v3981
        %3983 = vmatmul.mubr.f32.gmra.mrb[0].mxu0 %v3982
        %v3984 = vpop.f32.mrb[0].mxu0
        %v3985 = vadd.f32 %v3886, %v3984
        %v3986 = vpop.f32.mrb[0].mxu0
        %3987 = vmatprep.mubr.f32.mxu0 0.0
        %v3988 = vand.u32 %v2648, 4294901760
        %v3989 = vsub.f32 %v2648, %v3988
        %3990 = vmatmul.mubr.f32.gmra.mrb[0].mxu0 %v3989
        %v3991 = vpop.f32.mrb[0].mxu0
        %v3992 = vadd.f32 %v3892, %v3991
        %v3993 = vpop.f32.mrb[0].mxu0
        %3994 = vmatprep.mubr.f32.mxu0 0.0
        %v3995 = vand.u32 %v2651, 4294901760
        %v3996 = vsub.f32 %v2651, %v3995
        %3997 = vmatmul.mubr.f32.gmra.mrb[0].mxu0 %v3996
        %v3998 = vpop.f32.mrb[0].mxu0
        %v3999 = vadd.f32 %v3898, %v3998
        %v4000 = vpop.f32.mrb[0].mxu0
        %4001 = vdwg.mxu0
        %4002 = vmatprep.subr.mxu0 0.0
        %v4003 = vand.u32 %v2616, 4294901760
        %4004 = vmatpush1.msra.mxu0 %v4003
        %4005 = vmatprep.subr.mxu0 0.0
        %v4006 = vand.u32 %v2617, 4294901760
        %4007 = vmatpush1.msra.mxu0 %v4006
        %4008 = vmatprep.subr.mxu0 0.0
        %v4009 = vand.u32 %v2618, 4294901760
        %4010 = vmatpush1.msra.mxu0 %v4009
        %4011 = vmatprep.subr.mxu0 0.0
        %v4012 = vand.u32 %v2619, 4294901760
        %4013 = vmatpush1.msra.mxu0 %v4012
        %4014 = vmatprep.subr.mxu0 0.0
        %4015 = vmatpush1.msra.mxu0 0.0
        %4016 = vmatprep.subr.mxu0 0.0
        %4017 = vmatpush1.msra.mxu0 0.0
        %4018 = vmatprep.subr.mxu0 0.0
        %4019 = vmatpush1.msra.mxu0 0.0
        %4020 = vmatprep.subr.mxu0 0.0
        %4021 = vmatpush1.msra.mxu0 0.0
        %4022 = vmatprep.subr.mxu0 0.0
        %4023 = vmatpush1.msra.mxu0 0.0
        %4024 = vmatprep.subr.mxu0 0.0
        %4025 = vmatpush1.msra.mxu0 0.0
        %4026 = vmatprep.subr.mxu0 0.0
        %4027 = vmatpush1.msra.mxu0 0.0
        %4028 = vmatprep.subr.mxu0 0.0
        %4029 = vmatpush1.msra.mxu0 0.0
        %4030 = vmatprep.subr.mxu0 0.0
        %4031 = vmatpush1.msra.mxu0 0.0
        %4032 = vmatprep.subr.mxu0 0.0
        %4033 = vmatpush1.msra.mxu0 0.0
        %4034 = vmatprep.subr.mxu0 0.0
        %4035 = vmatpush1.msra.mxu0 0.0
        %4036 = vmatprep.subr.mxu0 0.0
        %4037 = vmatpush1.msra.mxu0 0.0
        %4038 = vmatprep.subr.mxu0 0.0
        %4039 = vmatpush1.msra.mxu0 0.0
        %4040 = vmatprep.subr.mxu0 0.0
        %4041 = vmatpush1.msra.mxu0 0.0
        %4042 = vmatprep.subr.mxu0 0.0
        %4043 = vmatpush1.msra.mxu0 0.0
        %4044 = vmatprep.subr.mxu0 0.0
        %4045 = vmatpush1.msra.mxu0 0.0
        %4046 = vmatprep.subr.mxu0 0.0
        %4047 = vmatpush1.msra.mxu0 0.0
        %4048 = vmatprep.subr.mxu0 0.0
        %4049 = vmatpush1.msra.mxu0 0.0
        %4050 = vmatprep.subr.mxu0 0.0
        %4051 = vmatpush1.msra.mxu0 0.0
        %4052 = vmatprep.subr.mxu0 0.0
        %4053 = vmatpush1.msra.mxu0 0.0
        %4054 = vmatprep.subr.mxu0 0.0
        %4055 = vmatpush1.msra.mxu0 0.0
        %4056 = vmatprep.subr.mxu0 0.0
        %4057 = vmatpush1.msra.mxu0 0.0
        %4058 = vmatprep.subr.mxu0 0.0
        %4059 = vmatpush1.msra.mxu0 0.0
        %4060 = vmatprep.subr.mxu0 0.0
        %4061 = vmatpush1.msra.mxu0 0.0
        %4062 = vmatprep.subr.mxu0 0.0
        %4063 = vmatpush1.msra.mxu0 0.0
        %4064 = vmatprep.subr.mxu0 0.0
        %4065 = vmatpush1.msra.mxu0 0.0
        %4066 = vmatprep.subr.mxu0 0.0
        %4067 = vmatpush1.msra.mxu0 0.0
        %4068 = vmatprep.subr.mxu0 0.0
        %4069 = vmatpush1.msra.mxu0 0.0
        %4070 = vmatprep.mubr.f32.mxu0 0.0
        %v4071 = vand.u32 %v2642, 4294901760
        %v4072 = vsub.f32 %v2642, %v4071
        %v4073 = vand.u32 %v4072, 4294901760
        %4074 = vmatmul.mubr.f32.gmra.mrb[0].mxu0 %v4073
        %v4075 = vpop.f32.mrb[0].mxu0
        %v4076 = vadd.f32 %v3978, %v4075
        %v4077 = vpop.f32.mrb[0].mxu0
        %4078 = vmatprep.mubr.f32.mxu0 0.0
        %v4079 = vand.u32 %v2645, 4294901760
        %v4080 = vsub.f32 %v2645, %v4079
        %v4081 = vand.u32 %v4080, 4294901760
        %4082 = vmatmul.mubr.f32.gmra.mrb[0].mxu0 %v4081
        %v4083 = vpop.f32.mrb[0].mxu0
        %v4084 = vadd.f32 %v3985, %v4083
        %v4085 = vpop.f32.mrb[0].mxu0
        %4086 = vmatprep.mubr.f32.mxu0 0.0
        %v4087 = vand.u32 %v2648, 4294901760
        %v4088 = vsub.f32 %v2648, %v4087
        %v4089 = vand.u32 %v4088, 4294901760
        %4090 = vmatmul.mubr.f32.gmra.mrb[0].mxu0 %v4089
        %v4091 = vpop.f32.mrb[0].mxu0
        %v4092 = vadd.f32 %v3992, %v4091
        %v4093 = vpop.f32.mrb[0].mxu0
        %4094 = vmatprep.mubr.f32.mxu0 0.0
        %v4095 = vand.u32 %v2651, 4294901760
        %v4096 = vsub.f32 %v2651, %v4095
        %v4097 = vand.u32 %v4096, 4294901760
        %4098 = vmatmul.mubr.f32.gmra.mrb[0].mxu0 %v4097
        %v4099 = vpop.f32.mrb[0].mxu0
        %v4100 = vadd.f32 %v3999, %v4099
        %v4101 = vpop.f32.mrb[0].mxu0
        %4102 = vdwg.mxu0
        %4103 = vmatprep.subr.mxu0 0.0
        %v4104 = vand.u32 %v2616, 4294901760
        %v4105 = vsub.f32 %v2616, %v4104
        %v4106 = vand.u32 %v4105, 4294901760
        %4107 = vmatpush1.msra.mxu0 %v4106
        %4108 = vmatprep.subr.mxu0 0.0
        %v4109 = vand.u32 %v2617, 4294901760
        %v4110 = vsub.f32 %v2617, %v4109
        %v4111 = vand.u32 %v4110, 4294901760
        %4112 = vmatpush1.msra.mxu0 %v4111
        %4113 = vmatprep.subr.mxu0 0.0
        %v4114 = vand.u32 %v2618, 4294901760
        %v4115 = vsub.f32 %v2618, %v4114
        %v4116 = vand.u32 %v4115, 4294901760
        %4117 = vmatpush1.msra.mxu0 %v4116
        %4118 = vmatprep.subr.mxu0 0.0
        %v4119 = vand.u32 %v2619, 4294901760
        %v4120 = vsub.f32 %v2619, %v4119
        %v4121 = vand.u32 %v4120, 4294901760
        %4122 = vmatpush1.msra.mxu0 %v4121
        %4123 = vmatprep.subr.mxu0 0.0
        %4124 = vmatpush1.msra.mxu0 0.0
        %4125 = vmatprep.subr.mxu0 0.0
        %4126 = vmatpush1.msra.mxu0 0.0
        %4127 = vmatprep.subr.mxu0 0.0
        %4128 = vmatpush1.msra.mxu0 0.0
        %4129 = vmatprep.subr.mxu0 0.0
        %4130 = vmatpush1.msra.mxu0 0.0
        %4131 = vmatprep.subr.mxu0 0.0
        %4132 = vmatpush1.msra.mxu0 0.0
        %4133 = vmatprep.subr.mxu0 0.0
        %4134 = vmatpush1.msra.mxu0 0.0
        %4135 = vmatprep.subr.mxu0 0.0
        %4136 = vmatpush1.msra.mxu0 0.0
        %4137 = vmatprep.subr.mxu0 0.0
        %4138 = vmatpush1.msra.mxu0 0.0
        %4139 = vmatprep.subr.mxu0 0.0
        %4140 = vmatpush1.msra.mxu0 0.0
        %4141 = vmatprep.subr.mxu0 0.0
        %4142 = vmatpush1.msra.mxu0 0.0
        %4143 = vmatprep.subr.mxu0 0.0
        %4144 = vmatpush1.msra.mxu0 0.0
        %4145 = vmatprep.subr.mxu0 0.0
        %4146 = vmatpush1.msra.mxu0 0.0
        %4147 = vmatprep.subr.mxu0 0.0
        %4148 = vmatpush1.msra.mxu0 0.0
        %4149 = vmatprep.subr.mxu0 0.0
        %4150 = vmatpush1.msra.mxu0 0.0
        %4151 = vmatprep.subr.mxu0 0.0
        %4152 = vmatpush1.msra.mxu0 0.0
        %4153 = vmatprep.subr.mxu0 0.0
        %4154 = vmatpush1.msra.mxu0 0.0
        %4155 = vmatprep.subr.mxu0 0.0
        %4156 = vmatpush1.msra.mxu0 0.0
        %4157 = vmatprep.subr.mxu0 0.0
        %4158 = vmatpush1.msra.mxu0 0.0
        %4159 = vmatprep.subr.mxu0 0.0
        %4160 = vmatpush1.msra.mxu0 0.0
        %4161 = vmatprep.subr.mxu0 0.0
        %4162 = vmatpush1.msra.mxu0 0.0
        %4163 = vmatprep.subr.mxu0 0.0
        %4164 = vmatpush1.msra.mxu0 0.0
        %4165 = vmatprep.subr.mxu0 0.0
        %4166 = vmatpush1.msra.mxu0 0.0
        %4167 = vmatprep.subr.mxu0 0.0
        %4168 = vmatpush1.msra.mxu0 0.0
        %4169 = vmatprep.subr.mxu0 0.0
        %4170 = vmatpush1.msra.mxu0 0.0
        %4171 = vmatprep.subr.mxu0 0.0
        %4172 = vmatpush1.msra.mxu0 0.0
        %4173 = vmatprep.subr.mxu0 0.0
        %4174 = vmatpush1.msra.mxu0 0.0
        %4175 = vmatprep.subr.mxu0 0.0
        %4176 = vmatpush1.msra.mxu0 0.0
        %4177 = vmatprep.subr.mxu0 0.0
        %4178 = vmatpush1.msra.mxu0 0.0
        %4179 = vmatprep.mubr.f32.mxu0 0.0
        %v4180 = vand.u32 %v2642, 4294901760
        %4181 = vmatmul.mubr.f32.gmra.mrb[0].mxu0 %v4180
        %v4182 = vpop.f32.mrb[0].mxu0
        %v4183 = vadd.f32 %v4076, %v4182
        %v4184 = vpop.f32.mrb[0].mxu0
        %4185 = vmatprep.mubr.f32.mxu0 0.0
        %v4186 = vand.u32 %v2645, 4294901760
        %4187 = vmatmul.mubr.f32.gmra.mrb[0].mxu0 %v4186
        %v4188 = vpop.f32.mrb[0].mxu0
        %v4189 = vadd.f32 %v4084, %v4188
        %v4190 = vpop.f32.mrb[0].mxu0
        %4191 = vmatprep.mubr.f32.mxu0 0.0
        %v4192 = vand.u32 %v2648, 4294901760
        %4193 = vmatmul.mubr.f32.gmra.mrb[0].mxu0 %v4192
        %v4194 = vpop.f32.mrb[0].mxu0
        %v4195 = vadd.f32 %v4092, %v4194
        %v4196 = vpop.f32.mrb[0].mxu0
        %4197 = vmatprep.mubr.f32.mxu0 0.0
        %v4198 = vand.u32 %v2651, 4294901760
        %4199 = vmatmul.mubr.f32.gmra.mrb[0].mxu0 %v4198
        %v4200 = vpop.f32.mrb[0].mxu0
        %v4201 = vadd.f32 %v4100, %v4200
        %v4202 = vpop.f32.mrb[0].mxu0
        %4203 = vdwg.mxu0
        %4204 = vmatprep.subr.mxu0 0.0
        %v4205 = vand.u32 %v2616, 4294901760
        %4206 = vmatpush1.msra.mxu0 %v4205
        %4207 = vmatprep.subr.mxu0 0.0
        %v4208 = vand.u32 %v2617, 4294901760
        %4209 = vmatpush1.msra.mxu0 %v4208
        %4210 = vmatprep.subr.mxu0 0.0
        %v4211 = vand.u32 %v2618, 4294901760
        %4212 = vmatpush1.msra.mxu0 %v4211
        %4213 = vmatprep.subr.mxu0 0.0
        %v4214 = vand.u32 %v2619, 4294901760
        %4215 = vmatpush1.msra.mxu0 %v4214
        %4216 = vmatprep.subr.mxu0 0.0
        %4217 = vmatpush1.msra.mxu0 0.0
        %4218 = vmatprep.subr.mxu0 0.0
        %4219 = vmatpush1.msra.mxu0 0.0
        %4220 = vmatprep.subr.mxu0 0.0
        %4221 = vmatpush1.msra.mxu0 0.0
        %4222 = vmatprep.subr.mxu0 0.0
        %4223 = vmatpush1.msra.mxu0 0.0
        %4224 = vmatprep.subr.mxu0 0.0
        %4225 = vmatpush1.msra.mxu0 0.0
        %4226 = vmatprep.subr.mxu0 0.0
        %4227 = vmatpush1.msra.mxu0 0.0
        %4228 = vmatprep.subr.mxu0 0.0
        %4229 = vmatpush1.msra.mxu0 0.0
        %4230 = vmatprep.subr.mxu0 0.0
        %4231 = vmatpush1.msra.mxu0 0.0
        %4232 = vmatprep.subr.mxu0 0.0
        %4233 = vmatpush1.msra.mxu0 0.0
        %4234 = vmatprep.subr.mxu0 0.0
        %4235 = vmatpush1.msra.mxu0 0.0
        %4236 = vmatprep.subr.mxu0 0.0
        %4237 = vmatpush1.msra.mxu0 0.0
        %4238 = vmatprep.subr.mxu0 0.0
        %4239 = vmatpush1.msra.mxu0 0.0
        %4240 = vmatprep.subr.mxu0 0.0
        %4241 = vmatpush1.msra.mxu0 0.0
        %4242 = vmatprep.subr.mxu0 0.0
        %4243 = vmatpush1.msra.mxu0 0.0
        %4244 = vmatprep.subr.mxu0 0.0
        %4245 = vmatpush1.msra.mxu0 0.0
        %4246 = vmatprep.subr.mxu0 0.0
        %4247 = vmatpush1.msra.mxu0 0.0
        %4248 = vmatprep.subr.mxu0 0.0
        %4249 = vmatpush1.msra.mxu0 0.0
        %4250 = vmatprep.subr.mxu0 0.0
        %4251 = vmatpush1.msra.mxu0 0.0
        %4252 = vmatprep.subr.mxu0 0.0
        %4253 = vmatpush1.msra.mxu0 0.0
        %4254 = vmatprep.subr.mxu0 0.0
        %4255 = vmatpush1.msra.mxu0 0.0
        %4256 = vmatprep.subr.mxu0 0.0
        %4257 = vmatpush1.msra.mxu0 0.0
        %4258 = vmatprep.subr.mxu0 0.0
        %4259 = vmatpush1.msra.mxu0 0.0
        %4260 = vmatprep.subr.mxu0 0.0
        %4261 = vmatpush1.msra.mxu0 0.0
        %4262 = vmatprep.subr.mxu0 0.0
        %4263 = vmatpush1.msra.mxu0 0.0
        %4264 = vmatprep.subr.mxu0 0.0
        %4265 = vmatpush1.msra.mxu0 0.0
        %4266 = vmatprep.subr.mxu0 0.0
        %4267 = vmatpush1.msra.mxu0 0.0
        %4268 = vmatprep.subr.mxu0 0.0
        %4269 = vmatpush1.msra.mxu0 0.0
        %4270 = vmatprep.subr.mxu0 0.0
        %4271 = vmatpush1.msra.mxu0 0.0
        %4272 = vmatprep.mubr.f32.mxu0 0.0
        %v4273 = vand.u32 %v2642, 4294901760
        %4274 = vmatmul.mubr.f32.gmra.mrb[0].mxu0 %v4273
        %v4275 = vpop.f32.mrb[0].mxu0
        %v4276 = vadd.f32 %v4183, %v4275
        %v4277 = vpop.f32.mrb[0].mxu0
        %4278 = vmatprep.mubr.f32.mxu0 0.0
        %v4279 = vand.u32 %v2645, 4294901760
        %4280 = vmatmul.mubr.f32.gmra.mrb[0].mxu0 %v4279
        %v4281 = vpop.f32.mrb[0].mxu0
        %v4282 = vadd.f32 %v4189, %v4281
        %v4283 = vpop.f32.mrb[0].mxu0
        %4284 = vmatprep.mubr.f32.mxu0 0.0
        %v4285 = vand.u32 %v2648, 4294901760
        %4286 = vmatmul.mubr.f32.gmra.mrb[0].mxu0 %v4285
        %v4287 = vpop.f32.mrb[0].mxu0
        %v4288 = vadd.f32 %v4195, %v4287
        %v4289 = vpop.f32.mrb[0].mxu0
        %4290 = vmatprep.mubr.f32.mxu0 0.0
        %v4291 = vand.u32 %v2651, 4294901760
        %4292 = vmatmul.mubr.f32.gmra.mrb[0].mxu0 %v4291
        %v4293 = vpop.f32.mrb[0].mxu0
        %v4294 = vadd.f32 %v4201, %v4293
        %v4295 = vpop.f32.mrb[0].mxu0
        %4296 = vdwg.mxu0
        %v4297 = vmax.f32 %v4276, 0.0
        %v4298 = vmax.f32 %v4282, 0.0
        %v4299 = vmax.f32 %v4288, 0.0
        %v4300 = vmax.f32 %v4294, 0.0
        %v4302 = vlaneseq
        %v4303 = vshrl.u32 %v4302, 7
        %v4304 = vsub.s32 0, %v4303
        %v4305 = vrot.slane %v2383, %v4304
        %v4307 = vmul.f32 %v4297, %v4305
        %v4308 = vmul.f32 %v4298, %v4305
        %v4309 = vmul.f32 %v4299, %v4305
        %v4310 = vmul.f32 %v4300, %v4305
        %v4311 = vld [vmem:[%s6] sm:$0xff]
        %v4312 = vld [vmem:[%s6 + $0x8] sm:$0xff]
        %v4313 = vld [vmem:[%s6 + $0x10] sm:$0xff]
        %v4314 = vld [vmem:[%s6 + $0x18] sm:$0xff]
        %v4315 = vld [vmem:[%s6 + $0x20] sm:$0xff]
        %v4316 = vld [vmem:[%s6 + $0x28] sm:$0xff]
        %v4317 = vld [vmem:[%s6 + $0x30] sm:$0xff]
        %v4318 = vld [vmem:[%s6 + $0x38] sm:$0xff]
        %v4319 = vld [vmem:[%s6 + $0x40] sm:$0xff]
        %v4320 = vld [vmem:[%s6 + $0x48] sm:$0xff]
        %v4321 = vld [vmem:[%s6 + $0x50] sm:$0xff]
        %v4322 = vld [vmem:[%s6 + $0x58] sm:$0xff]
        %v4323 = vld [vmem:[%s7] sm:$0xff]
        %v4324 = vld [vmem:[%s7 + $0x8] sm:$0xff]
        %v4325 = vld [vmem:[%s7 + $0x10] sm:$0xff]
        %v4326 = vld [vmem:[%s7 + $0x18] sm:$0xff]
        %4331 = vrot.lane.b32.xlu0 %v4307, 99
        %v4332 = vpop.permute.xlu0 %4331
        %4333 = vrot.lane.b32.xlu0 %v4308, 99
        %v4334 = vpop.permute.xlu0 %4333
        %4335 = vrot.lane.b32.xlu0 %v4309, 99
        %v4336 = vpop.permute.xlu0 %4335
        %4337 = vrot.lane.b32.xlu0 %v4310, 99
        %v4338 = vpop.permute.xlu0 %4337
        %4343 = vrot.lane.b32.xlu0 %v4307, 7
        %v4344 = vpop.permute.xlu0 %4343
        %4345 = vrot.lane.b32.xlu0 %v4308, 7
        %v4346 = vpop.permute.xlu0 %4345
        %4347 = vrot.lane.b32.xlu0 %v4309, 7
        %v4348 = vpop.permute.xlu0 %4347
        %4349 = vrot.lane.b32.xlu0 %v4310, 7
        %v4350 = vpop.permute.xlu0 %4349
        %v4355 = vsel %vm2412, %v4332, %v4344
        %v4356 = vsel %vm2412, %v4334, %v4346
        %v4357 = vsel %vm2412, %v4336, %v4348
        %v4358 = vsel %vm2412, %v4338, %v4350
        %4359 = vrot.lane.b32.xlu0 %v4307, 98
        %v4360 = vpop.permute.xlu0 %4359
        %4361 = vrot.lane.b32.xlu0 %v4308, 98
        %v4362 = vpop.permute.xlu0 %4361
        %4363 = vrot.lane.b32.xlu0 %v4309, 98
        %v4364 = vpop.permute.xlu0 %4363
        %4365 = vrot.lane.b32.xlu0 %v4310, 98
        %v4366 = vpop.permute.xlu0 %4365
        %4371 = vrot.lane.b32.xlu0 %v4307, 6
        %v4372 = vpop.permute.xlu0 %4371
        %4373 = vrot.lane.b32.xlu0 %v4308, 6
        %v4374 = vpop.permute.xlu0 %4373
        %4375 = vrot.lane.b32.xlu0 %v4309, 6
        %v4376 = vpop.permute.xlu0 %4375
        %4377 = vrot.lane.b32.xlu0 %v4310, 6
        %v4378 = vpop.permute.xlu0 %4377
        %v4383 = vsel %vm2441, %v4360, %v4372
        %v4384 = vsel %vm2441, %v4362, %v4374
        %v4385 = vsel %vm2441, %v4364, %v4376
        %v4386 = vsel %vm2441, %v4366, %v4378
        %4387 = vrot.lane.b32.xlu0 %v4307, 97
        %v4388 = vpop.permute.xlu0 %4387
        %4389 = vrot.lane.b32.xlu0 %v4308, 97
        %v4390 = vpop.permute.xlu0 %4389
        %4391 = vrot.lane.b32.xlu0 %v4309, 97
        %v4392 = vpop.permute.xlu0 %4391
        %4393 = vrot.lane.b32.xlu0 %v4310, 97
        %v4394 = vpop.permute.xlu0 %4393
        %4399 = vrot.lane.b32.xlu0 %v4307, 5
        %v4400 = vpop.permute.xlu0 %4399
        %4401 = vrot.lane.b32.xlu0 %v4308, 5
        %v4402 = vpop.permute.xlu0 %4401
        %4403 = vrot.lane.b32.xlu0 %v4309, 5
        %v4404 = vpop.permute.xlu0 %4403
        %4405 = vrot.lane.b32.xlu0 %v4310, 5
        %v4406 = vpop.permute.xlu0 %4405
        %v4411 = vsel %vm2470, %v4388, %v4400
        %v4412 = vsel %vm2470, %v4390, %v4402
        %v4413 = vsel %vm2470, %v4392, %v4404
        %v4414 = vsel %vm2470, %v4394, %v4406
        %4415 = vrot.lane.b32.xlu0 %v4307, 93
        %v4416 = vpop.permute.xlu0 %4415
        %4417 = vrot.lane.b32.xlu0 %v4308, 93
        %v4418 = vpop.permute.xlu0 %4417
        %4419 = vrot.lane.b32.xlu0 %v4309, 93
        %v4420 = vpop.permute.xlu0 %4419
        %4421 = vrot.lane.b32.xlu0 %v4310, 93
        %v4422 = vpop.permute.xlu0 %4421
        %4427 = vrot.lane.b32.xlu0 %v4307, 1
        %v4428 = vpop.permute.xlu0 %4427
        %4429 = vrot.lane.b32.xlu0 %v4308, 1
        %v4430 = vpop.permute.xlu0 %4429
        %4431 = vrot.lane.b32.xlu0 %v4309, 1
        %v4432 = vpop.permute.xlu0 %4431
        %4433 = vrot.lane.b32.xlu0 %v4310, 1
        %v4434 = vpop.permute.xlu0 %4433
        %v4439 = vsel %vm2499, %v4416, %v4428
        %v4440 = vsel %vm2499, %v4418, %v4430
        %v4441 = vsel %vm2499, %v4420, %v4432
        %v4442 = vsel %vm2499, %v4422, %v4434
        %4443 = vrot.lane.b32.xlu0 %v4307, 127
        %v4444 = vpop.permute.xlu0 %4443
        %4445 = vrot.lane.b32.xlu0 %v4308, 127
        %v4446 = vpop.permute.xlu0 %4445
        %4447 = vrot.lane.b32.xlu0 %v4309, 127
        %v4448 = vpop.permute.xlu0 %4447
        %4449 = vrot.lane.b32.xlu0 %v4310, 127
        %v4450 = vpop.permute.xlu0 %4449
        %4455 = vrot.lane.b32.xlu0 %v4307, 35
        %v4456 = vpop.permute.xlu0 %4455
        %4457 = vrot.lane.b32.xlu0 %v4308, 35
        %v4458 = vpop.permute.xlu0 %4457
        %4459 = vrot.lane.b32.xlu0 %v4309, 35
        %v4460 = vpop.permute.xlu0 %4459
        %4461 = vrot.lane.b32.xlu0 %v4310, 35
        %v4462 = vpop.permute.xlu0 %4461
        %v4467 = vsel %vm2528, %v4444, %v4456
        %v4468 = vsel %vm2528, %v4446, %v4458
        %v4469 = vsel %vm2528, %v4448, %v4460
        %v4470 = vsel %vm2528, %v4450, %v4462
        %4471 = vrot.lane.b32.xlu0 %v4307, 123
        %v4472 = vpop.permute.xlu0 %4471
        %4473 = vrot.lane.b32.xlu0 %v4308, 123
        %v4474 = vpop.permute.xlu0 %4473
        %4475 = vrot.lane.b32.xlu0 %v4309, 123
        %v4476 = vpop.permute.xlu0 %4475
        %4477 = vrot.lane.b32.xlu0 %v4310, 123
        %v4478 = vpop.permute.xlu0 %4477
        %4483 = vrot.lane.b32.xlu0 %v4307, 31
        %v4484 = vpop.permute.xlu0 %4483
        %4485 = vrot.lane.b32.xlu0 %v4308, 31
        %v4486 = vpop.permute.xlu0 %4485
        %4487 = vrot.lane.b32.xlu0 %v4309, 31
        %v4488 = vpop.permute.xlu0 %4487
        %4489 = vrot.lane.b32.xlu0 %v4310, 31
        %v4490 = vpop.permute.xlu0 %4489
        %v4495 = vsel %vm2557, %v4472, %v4484
        %v4496 = vsel %vm2557, %v4474, %v4486
        %v4497 = vsel %vm2557, %v4476, %v4488
        %v4498 = vsel %vm2557, %v4478, %v4490
        %4499 = vrot.lane.b32.xlu0 %v4307, 122
        %v4500 = vpop.permute.xlu0 %4499
        %4501 = vrot.lane.b32.xlu0 %v4308, 122
        %v4502 = vpop.permute.xlu0 %4501
        %4503 = vrot.lane.b32.xlu0 %v4309, 122
        %v4504 = vpop.permute.xlu0 %4503
        %4505 = vrot.lane.b32.xlu0 %v4310, 122
        %v4506 = vpop.permute.xlu0 %4505
        %4511 = vrot.lane.b32.xlu0 %v4307, 30
        %v4512 = vpop.permute.xlu0 %4511
        %4513 = vrot.lane.b32.xlu0 %v4308, 30
        %v4514 = vpop.permute.xlu0 %4513
        %4515 = vrot.lane.b32.xlu0 %v4309, 30
        %v4516 = vpop.permute.xlu0 %4515
        %4517 = vrot.lane.b32.xlu0 %v4310, 30
        %v4518 = vpop.permute.xlu0 %4517
        %v4523 = vsel %vm2586, %v4500, %v4512
        %v4524 = vsel %vm2586, %v4502, %v4514
        %v4525 = vsel %vm2586, %v4504, %v4516
        %v4526 = vsel %vm2586, %v4506, %v4518
        %4527 = vrot.lane.b32.xlu0 %v4307, 121
        %v4528 = vpop.permute.xlu0 %4527
        %4529 = vrot.lane.b32.xlu0 %v4308, 121
        %v4530 = vpop.permute.xlu0 %4529
        %4531 = vrot.lane.b32.xlu0 %v4309, 121
        %v4532 = vpop.permute.xlu0 %4531
        %4533 = vrot.lane.b32.xlu0 %v4310, 121
        %v4534 = vpop.permute.xlu0 %4533
        %4539 = vrot.lane.b32.xlu0 %v4307, 29
        %v4540 = vpop.permute.xlu0 %4539
        %4541 = vrot.lane.b32.xlu0 %v4308, 29
        %v4542 = vpop.permute.xlu0 %4541
        %4543 = vrot.lane.b32.xlu0 %v4309, 29
        %v4544 = vpop.permute.xlu0 %4543
        %4545 = vrot.lane.b32.xlu0 %v4310, 29
        %v4546 = vpop.permute.xlu0 %4545
        %v4551 = vsel %vm2615, %v4528, %v4540
        %v4552 = vsel %vm2615, %v4530, %v4542
        %v4553 = vsel %vm2615, %v4532, %v4544
        %v4554 = vsel %vm2615, %v4534, %v4546
        %4556 = vset.pattern.permute.xlu0 0
        %4557 = vperm.xlu0 %4556, %v4323
        %v4558 = vpop.permute.xlu0 %4557
        %4561 = vset.pattern.permute.xlu0 0
        %4562 = vperm.xlu0 %4561, %v4324
        %v4563 = vpop.permute.xlu0 %4562
        %4566 = vset.pattern.permute.xlu0 0
        %4567 = vperm.xlu0 %4566, %v4325
        %v4568 = vpop.permute.xlu0 %4567
        %4571 = vset.pattern.permute.xlu0 0
        %4572 = vperm.xlu0 %4571, %v4326
        %v4573 = vpop.permute.xlu0 %4572
        %v4576 = vsel %vm2640, %v4313, 0
        %v4579 = vsel %vm2640, %v4316, 0
        %v4582 = vsel %vm2640, %v4319, 0
        %v4585 = vsel %vm2640, %v4322, 0
        %4587 = vmatprep.subr.mxu0 0.0
        %v4588 = vand.u32 %v4355, 4294901760
        %4589 = vmatpush1.msra.mxu0 %v4588
        %4590 = vmatprep.subr.mxu0 0.0
        %v4591 = vand.u32 %v4356, 4294901760
        %4592 = vmatpush1.msra.mxu0 %v4591
        %4593 = vmatprep.subr.mxu0 0.0
        %v4594 = vand.u32 %v4357, 4294901760
        %4595 = vmatpush1.msra.mxu0 %v4594
        %4596 = vmatprep.subr.mxu0 0.0
        %v4597 = vand.u32 %v4358, 4294901760
        %4598 = vmatpush1.msra.mxu0 %v4597
        %4599 = vmatprep.subr.mxu0 0.0
        %v4600 = vand.u32 %v4383, 4294901760
        %4601 = vmatpush1.msra.mxu0 %v4600
        %4602 = vmatprep.subr.mxu0 0.0
        %v4603 = vand.u32 %v4384, 4294901760
        %4604 = vmatpush1.msra.mxu0 %v4603
        %4605 = vmatprep.subr.mxu0 0.0
        %v4606 = vand.u32 %v4385, 4294901760
        %4607 = vmatpush1.msra.mxu0 %v4606
        %4608 = vmatprep.subr.mxu0 0.0
        %v4609 = vand.u32 %v4386, 4294901760
        %4610 = vmatpush1.msra.mxu0 %v4609
        %4611 = vmatprep.subr.mxu0 0.0
        %v4612 = vand.u32 %v4411, 4294901760
        %4613 = vmatpush1.msra.mxu0 %v4612
        %4614 = vmatprep.subr.mxu0 0.0
        %v4615 = vand.u32 %v4412, 4294901760
        %4616 = vmatpush1.msra.mxu0 %v4615
        %4617 = vmatprep.subr.mxu0 0.0
        %v4618 = vand.u32 %v4413, 4294901760
        %4619 = vmatpush1.msra.mxu0 %v4618
        %4620 = vmatprep.subr.mxu0 0.0
        %v4621 = vand.u32 %v4414, 4294901760
        %4622 = vmatpush1.msra.mxu0 %v4621
        %4623 = vmatprep.subr.mxu0 0.0
        %v4624 = vand.u32 %v4439, 4294901760
        %4625 = vmatpush1.msra.mxu0 %v4624
        %4626 = vmatprep.subr.mxu0 0.0
        %v4627 = vand.u32 %v4440, 4294901760
        %4628 = vmatpush1.msra.mxu0 %v4627
        %4629 = vmatprep.subr.mxu0 0.0
        %v4630 = vand.u32 %v4441, 4294901760
        %4631 = vmatpush1.msra.mxu0 %v4630
        %4632 = vmatprep.subr.mxu0 0.0
        %v4633 = vand.u32 %v4442, 4294901760
        %4634 = vmatpush1.msra.mxu0 %v4633
        %4635 = vmatprep.subr.mxu0 0.0
        %v4636 = vand.u32 %v4307, 4294901760
        %4637 = vmatpush1.msra.mxu0 %v4636
        %4638 = vmatprep.subr.mxu0 0.0
        %v4639 = vand.u32 %v4308, 4294901760
        %4640 = vmatpush1.msra.mxu0 %v4639
        %4641 = vmatprep.subr.mxu0 0.0
        %v4642 = vand.u32 %v4309, 4294901760
        %4643 = vmatpush1.msra.mxu0 %v4642
        %4644 = vmatprep.subr.mxu0 0.0
        %v4645 = vand.u32 %v4310, 4294901760
        %4646 = vmatpush1.msra.mxu0 %v4645
        %4647 = vmatprep.subr.mxu0 0.0
        %v4648 = vand.u32 %v4467, 4294901760
        %4649 = vmatpush1.msra.mxu0 %v4648
        %4650 = vmatprep.subr.mxu0 0.0
        %v4651 = vand.u32 %v4468, 4294901760
        %4652 = vmatpush1.msra.mxu0 %v4651
        %4653 = vmatprep.subr.mxu0 0.0
        %v4654 = vand.u32 %v4469, 4294901760
        %4655 = vmatpush1.msra.mxu0 %v4654
        %4656 = vmatprep.subr.mxu0 0.0
        %v4657 = vand.u32 %v4470, 4294901760
        %4658 = vmatpush1.msra.mxu0 %v4657
        %4659 = vmatprep.subr.mxu0 0.0
        %v4660 = vand.u32 %v4495, 4294901760
        %4661 = vmatpush1.msra.mxu0 %v4660
        %4662 = vmatprep.subr.mxu0 0.0
        %v4663 = vand.u32 %v4496, 4294901760
        %4664 = vmatpush1.msra.mxu0 %v4663
        %4665 = vmatprep.subr.mxu0 0.0
        %v4666 = vand.u32 %v4497, 4294901760
        %4667 = vmatpush1.msra.mxu0 %v4666
        %4668 = vmatprep.subr.mxu0 0.0
        %v4669 = vand.u32 %v4498, 4294901760
        %4670 = vmatpush1.msra.mxu0 %v4669
        %4671 = vmatprep.subr.mxu0 0.0
        %v4672 = vand.u32 %v4523, 4294901760
        %4673 = vmatpush1.msra.mxu0 %v4672
        %4674 = vmatprep.subr.mxu0 0.0
        %v4675 = vand.u32 %v4524, 4294901760
        %4676 = vmatpush1.msra.mxu0 %v4675
        %4677 = vmatprep.subr.mxu0 0.0
        %v4678 = vand.u32 %v4525, 4294901760
        %4679 = vmatpush1.msra.mxu0 %v4678
        %4680 = vmatprep.subr.mxu0 0.0
        %v4681 = vand.u32 %v4526, 4294901760
        %4682 = vmatpush1.msra.mxu0 %v4681
        %v4683 = vand.u32 %v4312, 4294901760
        %v4684 = vsub.f32 %v4312, %v4683
        %v4685 = vand.u32 %v4684, 4294901760
        %v4686 = vsub.f32 %v4684, %v4685
        %v4687 = vand.u32 %v4686, 4294901760
        %4688 = vmatprep.mubr.f32.mxu0 %v4687
        %v4689 = vand.u32 %v4311, 4294901760
        %v4690 = vsub.f32 %v4311, %v4689
        %v4691 = vand.u32 %v4690, 4294901760
        %v4692 = vsub.f32 %v4690, %v4691
        %v4693 = vand.u32 %v4692, 4294901760
        %4694 = vmatmul.mubr.f32.gmra.mrb[0].mxu0 %v4693
        %v4695 = vpop.f32.mrb[0].mxu0
        %v4696 = vadd.f32 %v4558, %v4695
        %v4697 = vpop.f32.mrb[0].mxu0
        %v4698 = vand.u32 %v4315, 4294901760
        %v4699 = vsub.f32 %v4315, %v4698
        %v4700 = vand.u32 %v4699, 4294901760
        %v4701 = vsub.f32 %v4699, %v4700
        %v4702 = vand.u32 %v4701, 4294901760
        %4703 = vmatprep.mubr.f32.mxu0 %v4702
        %v4704 = vand.u32 %v4314, 4294901760
        %v4705 = vsub.f32 %v4314, %v4704
        %v4706 = vand.u32 %v4705, 4294901760
        %v4707 = vsub.f32 %v4705, %v4706
        %v4708 = vand.u32 %v4707, 4294901760
        %4709 = vmatmul.mubr.f32.gmra.mrb[0].mxu0 %v4708
        %v4710 = vpop.f32.mrb[0].mxu0
        %v4711 = vadd.f32 %v4563, %v4710
        %v4712 = vpop.f32.mrb[0].mxu0
        %v4713 = vand.u32 %v4318, 4294901760
        %v4714 = vsub.f32 %v4318, %v4713
        %v4715 = vand.u32 %v4714, 4294901760
        %v4716 = vsub.f32 %v4714, %v4715
        %v4717 = vand.u32 %v4716, 4294901760
        %4718 = vmatprep.mubr.f32.mxu0 %v4717
        %v4719 = vand.u32 %v4317, 4294901760
        %v4720 = vsub.f32 %v4317, %v4719
        %v4721 = vand.u32 %v4720, 4294901760
        %v4722 = vsub.f32 %v4720, %v4721
        %v4723 = vand.u32 %v4722, 4294901760
        %4724 = vmatmul.mubr.f32.gmra.mrb[0].mxu0 %v4723
        %v4725 = vpop.f32.mrb[0].mxu0
        %v4726 = vadd.f32 %v4568, %v4725
        %v4727 = vpop.f32.mrb[0].mxu0
        %v4728 = vand.u32 %v4321, 4294901760
        %v4729 = vsub.f32 %v4321, %v4728
        %v4730 = vand.u32 %v4729, 4294901760
        %v4731 = vsub.f32 %v4729, %v4730
        %v4732 = vand.u32 %v4731, 4294901760
        %4733 = vmatprep.mubr.f32.mxu0 %v4732
        %v4734 = vand.u32 %v4320, 4294901760
        %v4735 = vsub.f32 %v4320, %v4734
        %v4736 = vand.u32 %v4735, 4294901760
        %v4737 = vsub.f32 %v4735, %v4736
        %v4738 = vand.u32 %v4737, 4294901760
        %4739 = vmatmul.mubr.f32.gmra.mrb[0].mxu0 %v4738
        %v4740 = vpop.f32.mrb[0].mxu0
        %v4741 = vadd.f32 %v4573, %v4740
        %v4742 = vpop.f32.mrb[0].mxu0
        %4743 = vdwg.mxu0
        %4744 = vmatprep.subr.mxu0 0.0
        %v4745 = vand.u32 %v4355, 4294901760
        %v4746 = vsub.f32 %v4355, %v4745
        %v4747 = vand.u32 %v4746, 4294901760
        %v4748 = vsub.f32 %v4746, %v4747
        %v4749 = vand.u32 %v4748, 4294901760
        %4750 = vmatpush1.msra.mxu0 %v4749
        %4751 = vmatprep.subr.mxu0 0.0
        %v4752 = vand.u32 %v4356, 4294901760
        %v4753 = vsub.f32 %v4356, %v4752
        %v4754 = vand.u32 %v4753, 4294901760
        %v4755 = vsub.f32 %v4753, %v4754
        %v4756 = vand.u32 %v4755, 4294901760
        %4757 = vmatpush1.msra.mxu0 %v4756
        %4758 = vmatprep.subr.mxu0 0.0
        %v4759 = vand.u32 %v4357, 4294901760
        %v4760 = vsub.f32 %v4357, %v4759
        %v4761 = vand.u32 %v4760, 4294901760
        %v4762 = vsub.f32 %v4760, %v4761
        %v4763 = vand.u32 %v4762, 4294901760
        %4764 = vmatpush1.msra.mxu0 %v4763
        %4765 = vmatprep.subr.mxu0 0.0
        %v4766 = vand.u32 %v4358, 4294901760
        %v4767 = vsub.f32 %v4358, %v4766
        %v4768 = vand.u32 %v4767, 4294901760
        %v4769 = vsub.f32 %v4767, %v4768
        %v4770 = vand.u32 %v4769, 4294901760
        %4771 = vmatpush1.msra.mxu0 %v4770
        %4772 = vmatprep.subr.mxu0 0.0
        %v4773 = vand.u32 %v4383, 4294901760
        %v4774 = vsub.f32 %v4383, %v4773
        %v4775 = vand.u32 %v4774, 4294901760
        %v4776 = vsub.f32 %v4774, %v4775
        %v4777 = vand.u32 %v4776, 4294901760
        %4778 = vmatpush1.msra.mxu0 %v4777
        %4779 = vmatprep.subr.mxu0 0.0
        %v4780 = vand.u32 %v4384, 4294901760
        %v4781 = vsub.f32 %v4384, %v4780
        %v4782 = vand.u32 %v4781, 4294901760
        %v4783 = vsub.f32 %v4781, %v4782
        %v4784 = vand.u32 %v4783, 4294901760
        %4785 = vmatpush1.msra.mxu0 %v4784
        %4786 = vmatprep.subr.mxu0 0.0
        %v4787 = vand.u32 %v4385, 4294901760
        %v4788 = vsub.f32 %v4385, %v4787
        %v4789 = vand.u32 %v4788, 4294901760
        %v4790 = vsub.f32 %v4788, %v4789
        %v4791 = vand.u32 %v4790, 4294901760
        %4792 = vmatpush1.msra.mxu0 %v4791
        %4793 = vmatprep.subr.mxu0 0.0
        %v4794 = vand.u32 %v4386, 4294901760
        %v4795 = vsub.f32 %v4386, %v4794
        %v4796 = vand.u32 %v4795, 4294901760
        %v4797 = vsub.f32 %v4795, %v4796
        %v4798 = vand.u32 %v4797, 4294901760
        %4799 = vmatpush1.msra.mxu0 %v4798
        %4800 = vmatprep.subr.mxu0 0.0
        %v4801 = vand.u32 %v4411, 4294901760
        %v4802 = vsub.f32 %v4411, %v4801
        %v4803 = vand.u32 %v4802, 4294901760
        %v4804 = vsub.f32 %v4802, %v4803
        %v4805 = vand.u32 %v4804, 4294901760
        %4806 = vmatpush1.msra.mxu0 %v4805
        %4807 = vmatprep.subr.mxu0 0.0
        %v4808 = vand.u32 %v4412, 4294901760
        %v4809 = vsub.f32 %v4412, %v4808
        %v4810 = vand.u32 %v4809, 4294901760
        %v4811 = vsub.f32 %v4809, %v4810
        %v4812 = vand.u32 %v4811, 4294901760
        %4813 = vmatpush1.msra.mxu0 %v4812
        %4814 = vmatprep.subr.mxu0 0.0
        %v4815 = vand.u32 %v4413, 4294901760
        %v4816 = vsub.f32 %v4413, %v4815
        %v4817 = vand.u32 %v4816, 4294901760
        %v4818 = vsub.f32 %v4816, %v4817
        %v4819 = vand.u32 %v4818, 4294901760
        %4820 = vmatpush1.msra.mxu0 %v4819
        %4821 = vmatprep.subr.mxu0 0.0
        %v4822 = vand.u32 %v4414, 4294901760
        %v4823 = vsub.f32 %v4414, %v4822
        %v4824 = vand.u32 %v4823, 4294901760
        %v4825 = vsub.f32 %v4823, %v4824
        %v4826 = vand.u32 %v4825, 4294901760
        %4827 = vmatpush1.msra.mxu0 %v4826
        %4828 = vmatprep.subr.mxu0 0.0
        %v4829 = vand.u32 %v4439, 4294901760
        %v4830 = vsub.f32 %v4439, %v4829
        %v4831 = vand.u32 %v4830, 4294901760
        %v4832 = vsub.f32 %v4830, %v4831
        %v4833 = vand.u32 %v4832, 4294901760
        %4834 = vmatpush1.msra.mxu0 %v4833
        %4835 = vmatprep.subr.mxu0 0.0
        %v4836 = vand.u32 %v4440, 4294901760
        %v4837 = vsub.f32 %v4440, %v4836
        %v4838 = vand.u32 %v4837, 4294901760
        %v4839 = vsub.f32 %v4837, %v4838
        %v4840 = vand.u32 %v4839, 4294901760
        %4841 = vmatpush1.msra.mxu0 %v4840
        %4842 = vmatprep.subr.mxu0 0.0
        %v4843 = vand.u32 %v4441, 4294901760
        %v4844 = vsub.f32 %v4441, %v4843
        %v4845 = vand.u32 %v4844, 4294901760
        %v4846 = vsub.f32 %v4844, %v4845
        %v4847 = vand.u32 %v4846, 4294901760
        %4848 = vmatpush1.msra.mxu0 %v4847
        %4849 = vmatprep.subr.mxu0 0.0
        %v4850 = vand.u32 %v4442, 4294901760
        %v4851 = vsub.f32 %v4442, %v4850
        %v4852 = vand.u32 %v4851, 4294901760
        %v4853 = vsub.f32 %v4851, %v4852
        %v4854 = vand.u32 %v4853, 4294901760
        %4855 = vmatpush1.msra.mxu0 %v4854
        %4856 = vmatprep.subr.mxu0 0.0
        %v4857 = vand.u32 %v4307, 4294901760
        %v4858 = vsub.f32 %v4307, %v4857
        %v4859 = vand.u32 %v4858, 4294901760
        %v4860 = vsub.f32 %v4858, %v4859
        %v4861 = vand.u32 %v4860, 4294901760
        %4862 = vmatpush1.msra.mxu0 %v4861
        %4863 = vmatprep.subr.mxu0 0.0
        %v4864 = vand.u32 %v4308, 4294901760
        %v4865 = vsub.f32 %v4308, %v4864
        %v4866 = vand.u32 %v4865, 4294901760
        %v4867 = vsub.f32 %v4865, %v4866
        %v4868 = vand.u32 %v4867, 4294901760
        %4869 = vmatpush1.msra.mxu0 %v4868
        %4870 = vmatprep.subr.mxu0 0.0
        %v4871 = vand.u32 %v4309, 4294901760
        %v4872 = vsub.f32 %v4309, %v4871
        %v4873 = vand.u32 %v4872, 4294901760
        %v4874 = vsub.f32 %v4872, %v4873
        %v4875 = vand.u32 %v4874, 4294901760
        %4876 = vmatpush1.msra.mxu0 %v4875
        %4877 = vmatprep.subr.mxu0 0.0
        %v4878 = vand.u32 %v4310, 4294901760
        %v4879 = vsub.f32 %v4310, %v4878
        %v4880 = vand.u32 %v4879, 4294901760
        %v4881 = vsub.f32 %v4879, %v4880
        %v4882 = vand.u32 %v4881, 4294901760
        %4883 = vmatpush1.msra.mxu0 %v4882
        %4884 = vmatprep.subr.mxu0 0.0
        %v4885 = vand.u32 %v4467, 4294901760
        %v4886 = vsub.f32 %v4467, %v4885
        %v4887 = vand.u32 %v4886, 4294901760
        %v4888 = vsub.f32 %v4886, %v4887
        %v4889 = vand.u32 %v4888, 4294901760
        %4890 = vmatpush1.msra.mxu0 %v4889
        %4891 = vmatprep.subr.mxu0 0.0
        %v4892 = vand.u32 %v4468, 4294901760
        %v4893 = vsub.f32 %v4468, %v4892
        %v4894 = vand.u32 %v4893, 4294901760
        %v4895 = vsub.f32 %v4893, %v4894
        %v4896 = vand.u32 %v4895, 4294901760
        %4897 = vmatpush1.msra.mxu0 %v4896
        %4898 = vmatprep.subr.mxu0 0.0
        %v4899 = vand.u32 %v4469, 4294901760
        %v4900 = vsub.f32 %v4469, %v4899
        %v4901 = vand.u32 %v4900, 4294901760
        %v4902 = vsub.f32 %v4900, %v4901
        %v4903 = vand.u32 %v4902, 4294901760
        %4904 = vmatpush1.msra.mxu0 %v4903
        %4905 = vmatprep.subr.mxu0 0.0
        %v4906 = vand.u32 %v4470, 4294901760
        %v4907 = vsub.f32 %v4470, %v4906
        %v4908 = vand.u32 %v4907, 4294901760
        %v4909 = vsub.f32 %v4907, %v4908
        %v4910 = vand.u32 %v4909, 4294901760
        %4911 = vmatpush1.msra.mxu0 %v4910
        %4912 = vmatprep.subr.mxu0 0.0
        %v4913 = vand.u32 %v4495, 4294901760
        %v4914 = vsub.f32 %v4495, %v4913
        %v4915 = vand.u32 %v4914, 4294901760
        %v4916 = vsub.f32 %v4914, %v4915
        %v4917 = vand.u32 %v4916, 4294901760
        %4918 = vmatpush1.msra.mxu0 %v4917
        %4919 = vmatprep.subr.mxu0 0.0
        %v4920 = vand.u32 %v4496, 4294901760
        %v4921 = vsub.f32 %v4496, %v4920
        %v4922 = vand.u32 %v4921, 4294901760
        %v4923 = vsub.f32 %v4921, %v4922
        %v4924 = vand.u32 %v4923, 4294901760
        %4925 = vmatpush1.msra.mxu0 %v4924
        %4926 = vmatprep.subr.mxu0 0.0
        %v4927 = vand.u32 %v4497, 4294901760
        %v4928 = vsub.f32 %v4497, %v4927
        %v4929 = vand.u32 %v4928, 4294901760
        %v4930 = vsub.f32 %v4928, %v4929
        %v4931 = vand.u32 %v4930, 4294901760
        %4932 = vmatpush1.msra.mxu0 %v4931
        %4933 = vmatprep.subr.mxu0 0.0
        %v4934 = vand.u32 %v4498, 4294901760
        %v4935 = vsub.f32 %v4498, %v4934
        %v4936 = vand.u32 %v4935, 4294901760
        %v4937 = vsub.f32 %v4935, %v4936
        %v4938 = vand.u32 %v4937, 4294901760
        %4939 = vmatpush1.msra.mxu0 %v4938
        %4940 = vmatprep.subr.mxu0 0.0
        %v4941 = vand.u32 %v4523, 4294901760
        %v4942 = vsub.f32 %v4523, %v4941
        %v4943 = vand.u32 %v4942, 4294901760
        %v4944 = vsub.f32 %v4942, %v4943
        %v4945 = vand.u32 %v4944, 4294901760
        %4946 = vmatpush1.msra.mxu0 %v4945
        %4947 = vmatprep.subr.mxu0 0.0
        %v4948 = vand.u32 %v4524, 4294901760
        %v4949 = vsub.f32 %v4524, %v4948
        %v4950 = vand.u32 %v4949, 4294901760
        %v4951 = vsub.f32 %v4949, %v4950
        %v4952 = vand.u32 %v4951, 4294901760
        %4953 = vmatpush1.msra.mxu0 %v4952
        %4954 = vmatprep.subr.mxu0 0.0
        %v4955 = vand.u32 %v4525, 4294901760
        %v4956 = vsub.f32 %v4525, %v4955
        %v4957 = vand.u32 %v4956, 4294901760
        %v4958 = vsub.f32 %v4956, %v4957
        %v4959 = vand.u32 %v4958, 4294901760
        %4960 = vmatpush1.msra.mxu0 %v4959
        %4961 = vmatprep.subr.mxu0 0.0
        %v4962 = vand.u32 %v4526, 4294901760
        %v4963 = vsub.f32 %v4526, %v4962
        %v4964 = vand.u32 %v4963, 4294901760
        %v4965 = vsub.f32 %v4963, %v4964
        %v4966 = vand.u32 %v4965, 4294901760
        %4967 = vmatpush1.msra.mxu0 %v4966
        %v4968 = vand.u32 %v4312, 4294901760
        %4969 = vmatprep.mubr.f32.mxu0 %v4968
        %v4970 = vand.u32 %v4311, 4294901760
        %4971 = vmatmul.mubr.f32.gmra.mrb[0].mxu0 %v4970
        %v4972 = vpop.f32.mrb[0].mxu0
        %v4973 = vadd.f32 %v4696, %v4972
        %v4974 = vpop.f32.mrb[0].mxu0
        %v4975 = vand.u32 %v4315, 4294901760
        %4976 = vmatprep.mubr.f32.mxu0 %v4975
        %v4977 = vand.u32 %v4314, 4294901760
        %4978 = vmatmul.mubr.f32.gmra.mrb[0].mxu0 %v4977
        %v4979 = vpop.f32.mrb[0].mxu0
        %v4980 = vadd.f32 %v4711, %v4979
        %v4981 = vpop.f32.mrb[0].mxu0
        %v4982 = vand.u32 %v4318, 4294901760
        %4983 = vmatprep.mubr.f32.mxu0 %v4982
        %v4984 = vand.u32 %v4317, 4294901760
        %4985 = vmatmul.mubr.f32.gmra.mrb[0].mxu0 %v4984
        %v4986 = vpop.f32.mrb[0].mxu0
        %v4987 = vadd.f32 %v4726, %v4986
        %v4988 = vpop.f32.mrb[0].mxu0
        %v4989 = vand.u32 %v4321, 4294901760
        %4990 = vmatprep.mubr.f32.mxu0 %v4989
        %v4991 = vand.u32 %v4320, 4294901760
        %4992 = vmatmul.mubr.f32.gmra.mrb[0].mxu0 %v4991
        %v4993 = vpop.f32.mrb[0].mxu0
        %v4994 = vadd.f32 %v4741, %v4993
        %v4995 = vpop.f32.mrb[0].mxu0
        %4996 = vdwg.mxu0
        %4997 = vmatprep.subr.mxu0 0.0
        %v4998 = vand.u32 %v4355, 4294901760
        %v4999 = vsub.f32 %v4355, %v4998
        %5000 = vmatpush1.msra.mxu0 %v4999
        %5001 = vmatprep.subr.mxu0 0.0
        %v5002 = vand.u32 %v4356, 4294901760
        %v5003 = vsub.f32 %v4356, %v5002
        %5004 = vmatpush1.msra.mxu0 %v5003
        %5005 = vmatprep.subr.mxu0 0.0
        %v5006 = vand.u32 %v4357, 4294901760
        %v5007 = vsub.f32 %v4357, %v5006
        %5008 = vmatpush1.msra.mxu0 %v5007
        %5009 = vmatprep.subr.mxu0 0.0
        %v5010 = vand.u32 %v4358, 4294901760
        %v5011 = vsub.f32 %v4358, %v5010
        %5012 = vmatpush1.msra.mxu0 %v5011
        %5013 = vmatprep.subr.mxu0 0.0
        %v5014 = vand.u32 %v4383, 4294901760
        %v5015 = vsub.f32 %v4383, %v5014
        %5016 = vmatpush1.msra.mxu0 %v5015
        %5017 = vmatprep.subr.mxu0 0.0
        %v5018 = vand.u32 %v4384, 4294901760
        %v5019 = vsub.f32 %v4384, %v5018
        %5020 = vmatpush1.msra.mxu0 %v5019
        %5021 = vmatprep.subr.mxu0 0.0
        %v5022 = vand.u32 %v4385, 4294901760
        %v5023 = vsub.f32 %v4385, %v5022
        %5024 = vmatpush1.msra.mxu0 %v5023
        %5025 = vmatprep.subr.mxu0 0.0
        %v5026 = vand.u32 %v4386, 4294901760
        %v5027 = vsub.f32 %v4386, %v5026
        %5028 = vmatpush1.msra.mxu0 %v5027
        %5029 = vmatprep.subr.mxu0 0.0
        %v5030 = vand.u32 %v4411, 4294901760
        %v5031 = vsub.f32 %v4411, %v5030
        %5032 = vmatpush1.msra.mxu0 %v5031
        %5033 = vmatprep.subr.mxu0 0.0
        %v5034 = vand.u32 %v4412, 4294901760
        %v5035 = vsub.f32 %v4412, %v5034
        %5036 = vmatpush1.msra.mxu0 %v5035
        %5037 = vmatprep.subr.mxu0 0.0
        %v5038 = vand.u32 %v4413, 4294901760
        %v5039 = vsub.f32 %v4413, %v5038
        %5040 = vmatpush1.msra.mxu0 %v5039
        %5041 = vmatprep.subr.mxu0 0.0
        %v5042 = vand.u32 %v4414, 4294901760
        %v5043 = vsub.f32 %v4414, %v5042
        %5044 = vmatpush1.msra.mxu0 %v5043
        %5045 = vmatprep.subr.mxu0 0.0
        %v5046 = vand.u32 %v4439, 4294901760
        %v5047 = vsub.f32 %v4439, %v5046
        %5048 = vmatpush1.msra.mxu0 %v5047
        %5049 = vmatprep.subr.mxu0 0.0
        %v5050 = vand.u32 %v4440, 4294901760
        %v5051 = vsub.f32 %v4440, %v5050
        %5052 = vmatpush1.msra.mxu0 %v5051
        %5053 = vmatprep.subr.mxu0 0.0
        %v5054 = vand.u32 %v4441, 4294901760
        %v5055 = vsub.f32 %v4441, %v5054
        %5056 = vmatpush1.msra.mxu0 %v5055
        %5057 = vmatprep.subr.mxu0 0.0
        %v5058 = vand.u32 %v4442, 4294901760
        %v5059 = vsub.f32 %v4442, %v5058
        %5060 = vmatpush1.msra.mxu0 %v5059
        %5061 = vmatprep.subr.mxu0 0.0
        %v5062 = vand.u32 %v4307, 4294901760
        %v5063 = vsub.f32 %v4307, %v5062
        %5064 = vmatpush1.msra.mxu0 %v5063
        %5065 = vmatprep.subr.mxu0 0.0
        %v5066 = vand.u32 %v4308, 4294901760
        %v5067 = vsub.f32 %v4308, %v5066
        %5068 = vmatpush1.msra.mxu0 %v5067
        %5069 = vmatprep.subr.mxu0 0.0
        %v5070 = vand.u32 %v4309, 4294901760
        %v5071 = vsub.f32 %v4309, %v5070
        %5072 = vmatpush1.msra.mxu0 %v5071
        %5073 = vmatprep.subr.mxu0 0.0
        %v5074 = vand.u32 %v4310, 4294901760
        %v5075 = vsub.f32 %v4310, %v5074
        %5076 = vmatpush1.msra.mxu0 %v5075
        %5077 = vmatprep.subr.mxu0 0.0
        %v5078 = vand.u32 %v4467, 4294901760
        %v5079 = vsub.f32 %v4467, %v5078
        %5080 = vmatpush1.msra.mxu0 %v5079
        %5081 = vmatprep.subr.mxu0 0.0
        %v5082 = vand.u32 %v4468, 4294901760
        %v5083 = vsub.f32 %v4468, %v5082
        %5084 = vmatpush1.msra.mxu0 %v5083
        %5085 = vmatprep.subr.mxu0 0.0
        %v5086 = vand.u32 %v4469, 4294901760
        %v5087 = vsub.f32 %v4469, %v5086
        %5088 = vmatpush1.msra.mxu0 %v5087
        %5089 = vmatprep.subr.mxu0 0.0
        %v5090 = vand.u32 %v4470, 4294901760
        %v5091 = vsub.f32 %v4470, %v5090
        %5092 = vmatpush1.msra.mxu0 %v5091
        %5093 = vmatprep.subr.mxu0 0.0
        %v5094 = vand.u32 %v4495, 4294901760
        %v5095 = vsub.f32 %v4495, %v5094
        %5096 = vmatpush1.msra.mxu0 %v5095
        %5097 = vmatprep.subr.mxu0 0.0
        %v5098 = vand.u32 %v4496, 4294901760
        %v5099 = vsub.f32 %v4496, %v5098
        %5100 = vmatpush1.msra.mxu0 %v5099
        %5101 = vmatprep.subr.mxu0 0.0
        %v5102 = vand.u32 %v4497, 4294901760
        %v5103 = vsub.f32 %v4497, %v5102
        %5104 = vmatpush1.msra.mxu0 %v5103
        %5105 = vmatprep.subr.mxu0 0.0
        %v5106 = vand.u32 %v4498, 4294901760
        %v5107 = vsub.f32 %v4498, %v5106
        %5108 = vmatpush1.msra.mxu0 %v5107
        %5109 = vmatprep.subr.mxu0 0.0
        %v5110 = vand.u32 %v4523, 4294901760
        %v5111 = vsub.f32 %v4523, %v5110
        %5112 = vmatpush1.msra.mxu0 %v5111
        %5113 = vmatprep.subr.mxu0 0.0
        %v5114 = vand.u32 %v4524, 4294901760
        %v5115 = vsub.f32 %v4524, %v5114
        %5116 = vmatpush1.msra.mxu0 %v5115
        %5117 = vmatprep.subr.mxu0 0.0
        %v5118 = vand.u32 %v4525, 4294901760
        %v5119 = vsub.f32 %v4525, %v5118
        %5120 = vmatpush1.msra.mxu0 %v5119
        %5121 = vmatprep.subr.mxu0 0.0
        %v5122 = vand.u32 %v4526, 4294901760
        %v5123 = vsub.f32 %v4526, %v5122
        %5124 = vmatpush1.msra.mxu0 %v5123
        %v5125 = vand.u32 %v4312, 4294901760
        %v5126 = vsub.f32 %v4312, %v5125
        %5127 = vmatprep.mubr.f32.mxu0 %v5126
        %v5128 = vand.u32 %v4311, 4294901760
        %v5129 = vsub.f32 %v4311, %v5128
        %5130 = vmatmul.mubr.f32.gmra.mrb[0].mxu0 %v5129
        %v5131 = vpop.f32.mrb[0].mxu0
        %v5132 = vadd.f32 %v4973, %v5131
        %v5133 = vpop.f32.mrb[0].mxu0
        %v5134 = vand.u32 %v4315, 4294901760
        %v5135 = vsub.f32 %v4315, %v5134
        %5136 = vmatprep.mubr.f32.mxu0 %v5135
        %v5137 = vand.u32 %v4314, 4294901760
        %v5138 = vsub.f32 %v4314, %v5137
        %5139 = vmatmul.mubr.f32.gmra.mrb[0].mxu0 %v5138
        %v5140 = vpop.f32.mrb[0].mxu0
        %v5141 = vadd.f32 %v4980, %v5140
        %v5142 = vpop.f32.mrb[0].mxu0
        %v5143 = vand.u32 %v4318, 4294901760
        %v5144 = vsub.f32 %v4318, %v5143
        %5145 = vmatprep.mubr.f32.mxu0 %v5144
        %v5146 = vand.u32 %v4317, 4294901760
        %v5147 = vsub.f32 %v4317, %v5146
        %5148 = vmatmul.mubr.f32.gmra.mrb[0].mxu0 %v5147
        %v5149 = vpop.f32.mrb[0].mxu0
        %v5150 = vadd.f32 %v4987, %v5149
        %v5151 = vpop.f32.mrb[0].mxu0
        %v5152 = vand.u32 %v4321, 4294901760
        %v5153 = vsub.f32 %v4321, %v5152
        %5154 = vmatprep.mubr.f32.mxu0 %v5153
        %v5155 = vand.u32 %v4320, 4294901760
        %v5156 = vsub.f32 %v4320, %v5155
        %5157 = vmatmul.mubr.f32.gmra.mrb[0].mxu0 %v5156
        %v5158 = vpop.f32.mrb[0].mxu0
        %v5159 = vadd.f32 %v4994, %v5158
        %v5160 = vpop.f32.mrb[0].mxu0
        %5161 = vdwg.mxu0
        %5162 = vmatprep.subr.mxu0 0.0
        %v5163 = vand.u32 %v4355, 4294901760
        %5164 = vmatpush1.msra.mxu0 %v5163
        %5165 = vmatprep.subr.mxu0 0.0
        %v5166 = vand.u32 %v4356, 4294901760
        %5167 = vmatpush1.msra.mxu0 %v5166
        %5168 = vmatprep.subr.mxu0 0.0
        %v5169 = vand.u32 %v4357, 4294901760
        %5170 = vmatpush1.msra.mxu0 %v5169
        %5171 = vmatprep.subr.mxu0 0.0
        %v5172 = vand.u32 %v4358, 4294901760
        %5173 = vmatpush1.msra.mxu0 %v5172
        %5174 = vmatprep.subr.mxu0 0.0
        %v5175 = vand.u32 %v4383, 4294901760
        %5176 = vmatpush1.msra.mxu0 %v5175
        %5177 = vmatprep.subr.mxu0 0.0
        %v5178 = vand.u32 %v4384, 4294901760
        %5179 = vmatpush1.msra.mxu0 %v5178
        %5180 = vmatprep.subr.mxu0 0.0
        %v5181 = vand.u32 %v4385, 4294901760
        %5182 = vmatpush1.msra.mxu0 %v5181
        %5183 = vmatprep.subr.mxu0 0.0
        %v5184 = vand.u32 %v4386, 4294901760
        %5185 = vmatpush1.msra.mxu0 %v5184
        %5186 = vmatprep.subr.mxu0 0.0
        %v5187 = vand.u32 %v4411, 4294901760
        %5188 = vmatpush1.msra.mxu0 %v5187
        %5189 = vmatprep.subr.mxu0 0.0
        %v5190 = vand.u32 %v4412, 4294901760
        %5191 = vmatpush1.msra.mxu0 %v5190
        %5192 = vmatprep.subr.mxu0 0.0
        %v5193 = vand.u32 %v4413, 4294901760
        %5194 = vmatpush1.msra.mxu0 %v5193
        %5195 = vmatprep.subr.mxu0 0.0
        %v5196 = vand.u32 %v4414, 4294901760
        %5197 = vmatpush1.msra.mxu0 %v5196
        %5198 = vmatprep.subr.mxu0 0.0
        %v5199 = vand.u32 %v4439, 4294901760
        %5200 = vmatpush1.msra.mxu0 %v5199
        %5201 = vmatprep.subr.mxu0 0.0
        %v5202 = vand.u32 %v4440, 4294901760
        %5203 = vmatpush1.msra.mxu0 %v5202
        %5204 = vmatprep.subr.mxu0 0.0
        %v5205 = vand.u32 %v4441, 4294901760
        %5206 = vmatpush1.msra.mxu0 %v5205
        %5207 = vmatprep.subr.mxu0 0.0
        %v5208 = vand.u32 %v4442, 4294901760
        %5209 = vmatpush1.msra.mxu0 %v5208
        %5210 = vmatprep.subr.mxu0 0.0
        %v5211 = vand.u32 %v4307, 4294901760
        %5212 = vmatpush1.msra.mxu0 %v5211
        %5213 = vmatprep.subr.mxu0 0.0
        %v5214 = vand.u32 %v4308, 4294901760
        %5215 = vmatpush1.msra.mxu0 %v5214
        %5216 = vmatprep.subr.mxu0 0.0
        %v5217 = vand.u32 %v4309, 4294901760
        %5218 = vmatpush1.msra.mxu0 %v5217
        %5219 = vmatprep.subr.mxu0 0.0
        %v5220 = vand.u32 %v4310, 4294901760
        %5221 = vmatpush1.msra.mxu0 %v5220
        %5222 = vmatprep.subr.mxu0 0.0
        %v5223 = vand.u32 %v4467, 4294901760
        %5224 = vmatpush1.msra.mxu0 %v5223
        %5225 = vmatprep.subr.mxu0 0.0
        %v5226 = vand.u32 %v4468, 4294901760
        %5227 = vmatpush1.msra.mxu0 %v5226
        %5228 = vmatprep.subr.mxu0 0.0
        %v5229 = vand.u32 %v4469, 4294901760
        %5230 = vmatpush1.msra.mxu0 %v5229
        %5231 = vmatprep.subr.mxu0 0.0
        %v5232 = vand.u32 %v4470, 4294901760
        %5233 = vmatpush1.msra.mxu0 %v5232
        %5234 = vmatprep.subr.mxu0 0.0
        %v5235 = vand.u32 %v4495, 4294901760
        %5236 = vmatpush1.msra.mxu0 %v5235
        %5237 = vmatprep.subr.mxu0 0.0
        %v5238 = vand.u32 %v4496, 4294901760
        %5239 = vmatpush1.msra.mxu0 %v5238
        %5240 = vmatprep.subr.mxu0 0.0
        %v5241 = vand.u32 %v4497, 4294901760
        %5242 = vmatpush1.msra.mxu0 %v5241
        %5243 = vmatprep.subr.mxu0 0.0
        %v5244 = vand.u32 %v4498, 4294901760
        %5245 = vmatpush1.msra.mxu0 %v5244
        %5246 = vmatprep.subr.mxu0 0.0
        %v5247 = vand.u32 %v4523, 4294901760
        %5248 = vmatpush1.msra.mxu0 %v5247
        %5249 = vmatprep.subr.mxu0 0.0
        %v5250 = vand.u32 %v4524, 4294901760
        %5251 = vmatpush1.msra.mxu0 %v5250
        %5252 = vmatprep.subr.mxu0 0.0
        %v5253 = vand.u32 %v4525, 4294901760
        %5254 = vmatpush1.msra.mxu0 %v5253
        %5255 = vmatprep.subr.mxu0 0.0
        %v5256 = vand.u32 %v4526, 4294901760
        %5257 = vmatpush1.msra.mxu0 %v5256
        %v5258 = vand.u32 %v4312, 4294901760
        %v5259 = vsub.f32 %v4312, %v5258
        %v5260 = vand.u32 %v5259, 4294901760
        %5261 = vmatprep.mubr.f32.mxu0 %v5260
        %v5262 = vand.u32 %v4311, 4294901760
        %v5263 = vsub.f32 %v4311, %v5262
        %v5264 = vand.u32 %v5263, 4294901760
        %5265 = vmatmul.mubr.f32.gmra.mrb[0].mxu0 %v5264
        %v5266 = vpop.f32.mrb[0].mxu0
        %v5267 = vadd.f32 %v5132, %v5266
        %v5268 = vpop.f32.mrb[0].mxu0
        %v5269 = vand.u32 %v4315, 4294901760
        %v5270 = vsub.f32 %v4315, %v5269
        %v5271 = vand.u32 %v5270, 4294901760
        %5272 = vmatprep.mubr.f32.mxu0 %v5271
        %v5273 = vand.u32 %v4314, 4294901760
        %v5274 = vsub.f32 %v4314, %v5273
        %v5275 = vand.u32 %v5274, 4294901760
        %5276 = vmatmul.mubr.f32.gmra.mrb[0].mxu0 %v5275
        %v5277 = vpop.f32.mrb[0].mxu0
        %v5278 = vadd.f32 %v5141, %v5277
        %v5279 = vpop.f32.mrb[0].mxu0
        %v5280 = vand.u32 %v4318, 4294901760
        %v5281 = vsub.f32 %v4318, %v5280
        %v5282 = vand.u32 %v5281, 4294901760
        %5283 = vmatprep.mubr.f32.mxu0 %v5282
        %v5284 = vand.u32 %v4317, 4294901760
        %v5285 = vsub.f32 %v4317, %v5284
        %v5286 = vand.u32 %v5285, 4294901760
        %5287 = vmatmul.mubr.f32.gmra.mrb[0].mxu0 %v5286
        %v5288 = vpop.f32.mrb[0].mxu0
        %v5289 = vadd.f32 %v5150, %v5288
        %v5290 = vpop.f32.mrb[0].mxu0
        %v5291 = vand.u32 %v4321, 4294901760
        %v5292 = vsub.f32 %v4321, %v5291
        %v5293 = vand.u32 %v5292, 4294901760
        %5294 = vmatprep.mubr.f32.mxu0 %v5293
        %v5295 = vand.u32 %v4320, 4294901760
        %v5296 = vsub.f32 %v4320, %v5295
        %v5297 = vand.u32 %v5296, 4294901760
        %5298 = vmatmul.mubr.f32.gmra.mrb[0].mxu0 %v5297
        %v5299 = vpop.f32.mrb[0].mxu0
        %v5300 = vadd.f32 %v5159, %v5299
        %v5301 = vpop.f32.mrb[0].mxu0
        %5302 = vdwg.mxu0
        %5303 = vmatprep.subr.mxu0 0.0
        %v5304 = vand.u32 %v4355, 4294901760
        %v5305 = vsub.f32 %v4355, %v5304
        %v5306 = vand.u32 %v5305, 4294901760
        %5307 = vmatpush1.msra.mxu0 %v5306
        %5308 = vmatprep.subr.mxu0 0.0
        %v5309 = vand.u32 %v4356, 4294901760
        %v5310 = vsub.f32 %v4356, %v5309
        %v5311 = vand.u32 %v5310, 4294901760
        %5312 = vmatpush1.msra.mxu0 %v5311
        %5313 = vmatprep.subr.mxu0 0.0
        %v5314 = vand.u32 %v4357, 4294901760
        %v5315 = vsub.f32 %v4357, %v5314
        %v5316 = vand.u32 %v5315, 4294901760
        %5317 = vmatpush1.msra.mxu0 %v5316
        %5318 = vmatprep.subr.mxu0 0.0
        %v5319 = vand.u32 %v4358, 4294901760
        %v5320 = vsub.f32 %v4358, %v5319
        %v5321 = vand.u32 %v5320, 4294901760
        %5322 = vmatpush1.msra.mxu0 %v5321
        %5323 = vmatprep.subr.mxu0 0.0
        %v5324 = vand.u32 %v4383, 4294901760
        %v5325 = vsub.f32 %v4383, %v5324
        %v5326 = vand.u32 %v5325, 4294901760
        %5327 = vmatpush1.msra.mxu0 %v5326
        %5328 = vmatprep.subr.mxu0 0.0
        %v5329 = vand.u32 %v4384, 4294901760
        %v5330 = vsub.f32 %v4384, %v5329
        %v5331 = vand.u32 %v5330, 4294901760
        %5332 = vmatpush1.msra.mxu0 %v5331
        %5333 = vmatprep.subr.mxu0 0.0
        %v5334 = vand.u32 %v4385, 4294901760
        %v5335 = vsub.f32 %v4385, %v5334
        %v5336 = vand.u32 %v5335, 4294901760
        %5337 = vmatpush1.msra.mxu0 %v5336
        %5338 = vmatprep.subr.mxu0 0.0
        %v5339 = vand.u32 %v4386, 4294901760
        %v5340 = vsub.f32 %v4386, %v5339
        %v5341 = vand.u32 %v5340, 4294901760
        %5342 = vmatpush1.msra.mxu0 %v5341
        %5343 = vmatprep.subr.mxu0 0.0
        %v5344 = vand.u32 %v4411, 4294901760
        %v5345 = vsub.f32 %v4411, %v5344
        %v5346 = vand.u32 %v5345, 4294901760
        %5347 = vmatpush1.msra.mxu0 %v5346
        %5348 = vmatprep.subr.mxu0 0.0
        %v5349 = vand.u32 %v4412, 4294901760
        %v5350 = vsub.f32 %v4412, %v5349
        %v5351 = vand.u32 %v5350, 4294901760
        %5352 = vmatpush1.msra.mxu0 %v5351
        %5353 = vmatprep.subr.mxu0 0.0
        %v5354 = vand.u32 %v4413, 4294901760
        %v5355 = vsub.f32 %v4413, %v5354
        %v5356 = vand.u32 %v5355, 4294901760
        %5357 = vmatpush1.msra.mxu0 %v5356
        %5358 = vmatprep.subr.mxu0 0.0
        %v5359 = vand.u32 %v4414, 4294901760
        %v5360 = vsub.f32 %v4414, %v5359
        %v5361 = vand.u32 %v5360, 4294901760
        %5362 = vmatpush1.msra.mxu0 %v5361
        %5363 = vmatprep.subr.mxu0 0.0
        %v5364 = vand.u32 %v4439, 4294901760
        %v5365 = vsub.f32 %v4439, %v5364
        %v5366 = vand.u32 %v5365, 4294901760
        %5367 = vmatpush1.msra.mxu0 %v5366
        %5368 = vmatprep.subr.mxu0 0.0
        %v5369 = vand.u32 %v4440, 4294901760
        %v5370 = vsub.f32 %v4440, %v5369
        %v5371 = vand.u32 %v5370, 4294901760
        %5372 = vmatpush1.msra.mxu0 %v5371
        %5373 = vmatprep.subr.mxu0 0.0
        %v5374 = vand.u32 %v4441, 4294901760
        %v5375 = vsub.f32 %v4441, %v5374
        %v5376 = vand.u32 %v5375, 4294901760
        %5377 = vmatpush1.msra.mxu0 %v5376
        %5378 = vmatprep.subr.mxu0 0.0
        %v5379 = vand.u32 %v4442, 4294901760
        %v5380 = vsub.f32 %v4442, %v5379
        %v5381 = vand.u32 %v5380, 4294901760
        %5382 = vmatpush1.msra.mxu0 %v5381
        %5383 = vmatprep.subr.mxu0 0.0
        %v5384 = vand.u32 %v4307, 4294901760
        %v5385 = vsub.f32 %v4307, %v5384
        %v5386 = vand.u32 %v5385, 4294901760
        %5387 = vmatpush1.msra.mxu0 %v5386
        %5388 = vmatprep.subr.mxu0 0.0
        %v5389 = vand.u32 %v4308, 4294901760
        %v5390 = vsub.f32 %v4308, %v5389
        %v5391 = vand.u32 %v5390, 4294901760
        %5392 = vmatpush1.msra.mxu0 %v5391
        %5393 = vmatprep.subr.mxu0 0.0
        %v5394 = vand.u32 %v4309, 4294901760
        %v5395 = vsub.f32 %v4309, %v5394
        %v5396 = vand.u32 %v5395, 4294901760
        %5397 = vmatpush1.msra.mxu0 %v5396
        %5398 = vmatprep.subr.mxu0 0.0
        %v5399 = vand.u32 %v4310, 4294901760
        %v5400 = vsub.f32 %v4310, %v5399
        %v5401 = vand.u32 %v5400, 4294901760
        %5402 = vmatpush1.msra.mxu0 %v5401
        %5403 = vmatprep.subr.mxu0 0.0
        %v5404 = vand.u32 %v4467, 4294901760
        %v5405 = vsub.f32 %v4467, %v5404
        %v5406 = vand.u32 %v5405, 4294901760
        %5407 = vmatpush1.msra.mxu0 %v5406
        %5408 = vmatprep.subr.mxu0 0.0
        %v5409 = vand.u32 %v4468, 4294901760
        %v5410 = vsub.f32 %v4468, %v5409
        %v5411 = vand.u32 %v5410, 4294901760
        %5412 = vmatpush1.msra.mxu0 %v5411
        %5413 = vmatprep.subr.mxu0 0.0
        %v5414 = vand.u32 %v4469, 4294901760
        %v5415 = vsub.f32 %v4469, %v5414
        %v5416 = vand.u32 %v5415, 4294901760
        %5417 = vmatpush1.msra.mxu0 %v5416
        %5418 = vmatprep.subr.mxu0 0.0
        %v5419 = vand.u32 %v4470, 4294901760
        %v5420 = vsub.f32 %v4470, %v5419
        %v5421 = vand.u32 %v5420, 4294901760
        %5422 = vmatpush1.msra.mxu0 %v5421
        %5423 = vmatprep.subr.mxu0 0.0
        %v5424 = vand.u32 %v4495, 4294901760
        %v5425 = vsub.f32 %v4495, %v5424
        %v5426 = vand.u32 %v5425, 4294901760
        %5427 = vmatpush1.msra.mxu0 %v5426
        %5428 = vmatprep.subr.mxu0 0.0
        %v5429 = vand.u32 %v4496, 4294901760
        %v5430 = vsub.f32 %v4496, %v5429
        %v5431 = vand.u32 %v5430, 4294901760
        %5432 = vmatpush1.msra.mxu0 %v5431
        %5433 = vmatprep.subr.mxu0 0.0
        %v5434 = vand.u32 %v4497, 4294901760
        %v5435 = vsub.f32 %v4497, %v5434
        %v5436 = vand.u32 %v5435, 4294901760
        %5437 = vmatpush1.msra.mxu0 %v5436
        %5438 = vmatprep.subr.mxu0 0.0
        %v5439 = vand.u32 %v4498, 4294901760
        %v5440 = vsub.f32 %v4498, %v5439
        %v5441 = vand.u32 %v5440, 4294901760
        %5442 = vmatpush1.msra.mxu0 %v5441
        %5443 = vmatprep.subr.mxu0 0.0
        %v5444 = vand.u32 %v4523, 4294901760
        %v5445 = vsub.f32 %v4523, %v5444
        %v5446 = vand.u32 %v5445, 4294901760
        %5447 = vmatpush1.msra.mxu0 %v5446
        %5448 = vmatprep.subr.mxu0 0.0
        %v5449 = vand.u32 %v4524, 4294901760
        %v5450 = vsub.f32 %v4524, %v5449
        %v5451 = vand.u32 %v5450, 4294901760
        %5452 = vmatpush1.msra.mxu0 %v5451
        %5453 = vmatprep.subr.mxu0 0.0
        %v5454 = vand.u32 %v4525, 4294901760
        %v5455 = vsub.f32 %v4525, %v5454
        %v5456 = vand.u32 %v5455, 4294901760
        %5457 = vmatpush1.msra.mxu0 %v5456
        %5458 = vmatprep.subr.mxu0 0.0
        %v5459 = vand.u32 %v4526, 4294901760
        %v5460 = vsub.f32 %v4526, %v5459
        %v5461 = vand.u32 %v5460, 4294901760
        %5462 = vmatpush1.msra.mxu0 %v5461
        %v5463 = vand.u32 %v4312, 4294901760
        %5464 = vmatprep.mubr.f32.mxu0 %v5463
        %v5465 = vand.u32 %v4311, 4294901760
        %5466 = vmatmul.mubr.f32.gmra.mrb[0].mxu0 %v5465
        %v5467 = vpop.f32.mrb[0].mxu0
        %v5468 = vadd.f32 %v5267, %v5467
        %v5469 = vpop.f32.mrb[0].mxu0
        %v5470 = vand.u32 %v4315, 4294901760
        %5471 = vmatprep.mubr.f32.mxu0 %v5470
        %v5472 = vand.u32 %v4314, 4294901760
        %5473 = vmatmul.mubr.f32.gmra.mrb[0].mxu0 %v5472
        %v5474 = vpop.f32.mrb[0].mxu0
        %v5475 = vadd.f32 %v5278, %v5474
        %v5476 = vpop.f32.mrb[0].mxu0
        %v5477 = vand.u32 %v4318, 4294901760
        %5478 = vmatprep.mubr.f32.mxu0 %v5477
        %v5479 = vand.u32 %v4317, 4294901760
        %5480 = vmatmul.mubr.f32.gmra.mrb[0].mxu0 %v5479
        %v5481 = vpop.f32.mrb[0].mxu0
        %v5482 = vadd.f32 %v5289, %v5481
        %v5483 = vpop.f32.mrb[0].mxu0
        %v5484 = vand.u32 %v4321, 4294901760
        %5485 = vmatprep.mubr.f32.mxu0 %v5484
        %v5486 = vand.u32 %v4320, 4294901760
        %5487 = vmatmul.mubr.f32.gmra.mrb[0].mxu0 %v5486
        %v5488 = vpop.f32.mrb[0].mxu0
        %v5489 = vadd.f32 %v5300, %v5488
        %v5490 = vpop.f32.mrb[0].mxu0
        %5491 = vdwg.mxu0
        %5492 = vmatprep.subr.mxu0 0.0
        %v5493 = vand.u32 %v4355, 4294901760
        %5494 = vmatpush1.msra.mxu0 %v5493
        %5495 = vmatprep.subr.mxu0 0.0
        %v5496 = vand.u32 %v4356, 4294901760
        %5497 = vmatpush1.msra.mxu0 %v5496
        %5498 = vmatprep.subr.mxu0 0.0
        %v5499 = vand.u32 %v4357, 4294901760
        %5500 = vmatpush1.msra.mxu0 %v5499
        %5501 = vmatprep.subr.mxu0 0.0
        %v5502 = vand.u32 %v4358, 4294901760
        %5503 = vmatpush1.msra.mxu0 %v5502
        %5504 = vmatprep.subr.mxu0 0.0
        %v5505 = vand.u32 %v4383, 4294901760
        %5506 = vmatpush1.msra.mxu0 %v5505
        %5507 = vmatprep.subr.mxu0 0.0
        %v5508 = vand.u32 %v4384, 4294901760
        %5509 = vmatpush1.msra.mxu0 %v5508
        %5510 = vmatprep.subr.mxu0 0.0
        %v5511 = vand.u32 %v4385, 4294901760
        %5512 = vmatpush1.msra.mxu0 %v5511
        %5513 = vmatprep.subr.mxu0 0.0
        %v5514 = vand.u32 %v4386, 4294901760
        %5515 = vmatpush1.msra.mxu0 %v5514
        %5516 = vmatprep.subr.mxu0 0.0
        %v5517 = vand.u32 %v4411, 4294901760
        %5518 = vmatpush1.msra.mxu0 %v5517
        %5519 = vmatprep.subr.mxu0 0.0
        %v5520 = vand.u32 %v4412, 4294901760
        %5521 = vmatpush1.msra.mxu0 %v5520
        %5522 = vmatprep.subr.mxu0 0.0
        %v5523 = vand.u32 %v4413, 4294901760
        %5524 = vmatpush1.msra.mxu0 %v5523
        %5525 = vmatprep.subr.mxu0 0.0
        %v5526 = vand.u32 %v4414, 4294901760
        %5527 = vmatpush1.msra.mxu0 %v5526
        %5528 = vmatprep.subr.mxu0 0.0
        %v5529 = vand.u32 %v4439, 4294901760
        %5530 = vmatpush1.msra.mxu0 %v5529
        %5531 = vmatprep.subr.mxu0 0.0
        %v5532 = vand.u32 %v4440, 4294901760
        %5533 = vmatpush1.msra.mxu0 %v5532
        %5534 = vmatprep.subr.mxu0 0.0
        %v5535 = vand.u32 %v4441, 4294901760
        %5536 = vmatpush1.msra.mxu0 %v5535
        %5537 = vmatprep.subr.mxu0 0.0
        %v5538 = vand.u32 %v4442, 4294901760
        %5539 = vmatpush1.msra.mxu0 %v5538
        %5540 = vmatprep.subr.mxu0 0.0
        %v5541 = vand.u32 %v4307, 4294901760
        %5542 = vmatpush1.msra.mxu0 %v5541
        %5543 = vmatprep.subr.mxu0 0.0
        %v5544 = vand.u32 %v4308, 4294901760
        %5545 = vmatpush1.msra.mxu0 %v5544
        %5546 = vmatprep.subr.mxu0 0.0
        %v5547 = vand.u32 %v4309, 4294901760
        %5548 = vmatpush1.msra.mxu0 %v5547
        %5549 = vmatprep.subr.mxu0 0.0
        %v5550 = vand.u32 %v4310, 4294901760
        %5551 = vmatpush1.msra.mxu0 %v5550
        %5552 = vmatprep.subr.mxu0 0.0
        %v5553 = vand.u32 %v4467, 4294901760
        %5554 = vmatpush1.msra.mxu0 %v5553
        %5555 = vmatprep.subr.mxu0 0.0
        %v5556 = vand.u32 %v4468, 4294901760
        %5557 = vmatpush1.msra.mxu0 %v5556
        %5558 = vmatprep.subr.mxu0 0.0
        %v5559 = vand.u32 %v4469, 4294901760
        %5560 = vmatpush1.msra.mxu0 %v5559
        %5561 = vmatprep.subr.mxu0 0.0
        %v5562 = vand.u32 %v4470, 4294901760
        %5563 = vmatpush1.msra.mxu0 %v5562
        %5564 = vmatprep.subr.mxu0 0.0
        %v5565 = vand.u32 %v4495, 4294901760
        %5566 = vmatpush1.msra.mxu0 %v5565
        %5567 = vmatprep.subr.mxu0 0.0
        %v5568 = vand.u32 %v4496, 4294901760
        %5569 = vmatpush1.msra.mxu0 %v5568
        %5570 = vmatprep.subr.mxu0 0.0
        %v5571 = vand.u32 %v4497, 4294901760
        %5572 = vmatpush1.msra.mxu0 %v5571
        %5573 = vmatprep.subr.mxu0 0.0
        %v5574 = vand.u32 %v4498, 4294901760
        %5575 = vmatpush1.msra.mxu0 %v5574
        %5576 = vmatprep.subr.mxu0 0.0
        %v5577 = vand.u32 %v4523, 4294901760
        %5578 = vmatpush1.msra.mxu0 %v5577
        %5579 = vmatprep.subr.mxu0 0.0
        %v5580 = vand.u32 %v4524, 4294901760
        %5581 = vmatpush1.msra.mxu0 %v5580
        %5582 = vmatprep.subr.mxu0 0.0
        %v5583 = vand.u32 %v4525, 4294901760
        %5584 = vmatpush1.msra.mxu0 %v5583
        %5585 = vmatprep.subr.mxu0 0.0
        %v5586 = vand.u32 %v4526, 4294901760
        %5587 = vmatpush1.msra.mxu0 %v5586
        %v5588 = vand.u32 %v4312, 4294901760
        %5589 = vmatprep.mubr.f32.mxu0 %v5588
        %v5590 = vand.u32 %v4311, 4294901760
        %5591 = vmatmul.mubr.f32.gmra.mrb[0].mxu0 %v5590
        %v5592 = vpop.f32.mrb[0].mxu0
        %v5593 = vadd.f32 %v5468, %v5592
        %v5594 = vpop.f32.mrb[0].mxu0
        %v5595 = vand.u32 %v4315, 4294901760
        %5596 = vmatprep.mubr.f32.mxu0 %v5595
        %v5597 = vand.u32 %v4314, 4294901760
        %5598 = vmatmul.mubr.f32.gmra.mrb[0].mxu0 %v5597
        %v5599 = vpop.f32.mrb[0].mxu0
        %v5600 = vadd.f32 %v5475, %v5599
        %v5601 = vpop.f32.mrb[0].mxu0
        %v5602 = vand.u32 %v4318, 4294901760
        %5603 = vmatprep.mubr.f32.mxu0 %v5602
        %v5604 = vand.u32 %v4317, 4294901760
        %5605 = vmatmul.mubr.f32.gmra.mrb[0].mxu0 %v5604
        %v5606 = vpop.f32.mrb[0].mxu0
        %v5607 = vadd.f32 %v5482, %v5606
        %v5608 = vpop.f32.mrb[0].mxu0
        %v5609 = vand.u32 %v4321, 4294901760
        %5610 = vmatprep.mubr.f32.mxu0 %v5609
        %v5611 = vand.u32 %v4320, 4294901760
        %5612 = vmatmul.mubr.f32.gmra.mrb[0].mxu0 %v5611
        %v5613 = vpop.f32.mrb[0].mxu0
        %v5614 = vadd.f32 %v5489, %v5613
        %v5615 = vpop.f32.mrb[0].mxu0
        %5616 = vdwg.mxu0
        %5617 = vmatprep.subr.mxu0 0.0
        %v5618 = vand.u32 %v4551, 4294901760
        %5619 = vmatpush1.msra.mxu0 %v5618
        %5620 = vmatprep.subr.mxu0 0.0
        %v5621 = vand.u32 %v4552, 4294901760
        %5622 = vmatpush1.msra.mxu0 %v5621
        %5623 = vmatprep.subr.mxu0 0.0
        %v5624 = vand.u32 %v4553, 4294901760
        %5625 = vmatpush1.msra.mxu0 %v5624
        %5626 = vmatprep.subr.mxu0 0.0
        %v5627 = vand.u32 %v4554, 4294901760
        %5628 = vmatpush1.msra.mxu0 %v5627
        %5629 = vmatprep.subr.mxu0 0.0
        %5630 = vmatpush1.msra.mxu0 0.0
        %5631 = vmatprep.subr.mxu0 0.0
        %5632 = vmatpush1.msra.mxu0 0.0
        %5633 = vmatprep.subr.mxu0 0.0
        %5634 = vmatpush1.msra.mxu0 0.0
        %5635 = vmatprep.subr.mxu0 0.0
        %5636 = vmatpush1.msra.mxu0 0.0
        %5637 = vmatprep.subr.mxu0 0.0
        %5638 = vmatpush1.msra.mxu0 0.0
        %5639 = vmatprep.subr.mxu0 0.0
        %5640 = vmatpush1.msra.mxu0 0.0
        %5641 = vmatprep.subr.mxu0 0.0
        %5642 = vmatpush1.msra.mxu0 0.0
        %5643 = vmatprep.subr.mxu0 0.0
        %5644 = vmatpush1.msra.mxu0 0.0
        %5645 = vmatprep.subr.mxu0 0.0
        %5646 = vmatpush1.msra.mxu0 0.0
        %5647 = vmatprep.subr.mxu0 0.0
        %5648 = vmatpush1.msra.mxu0 0.0
        %5649 = vmatprep.subr.mxu0 0.0
        %5650 = vmatpush1.msra.mxu0 0.0
        %5651 = vmatprep.subr.mxu0 0.0
        %5652 = vmatpush1.msra.mxu0 0.0
        %5653 = vmatprep.subr.mxu0 0.0
        %5654 = vmatpush1.msra.mxu0 0.0
        %5655 = vmatprep.subr.mxu0 0.0
        %5656 = vmatpush1.msra.mxu0 0.0
        %5657 = vmatprep.subr.mxu0 0.0
        %5658 = vmatpush1.msra.mxu0 0.0
        %5659 = vmatprep.subr.mxu0 0.0
        %5660 = vmatpush1.msra.mxu0 0.0
        %5661 = vmatprep.subr.mxu0 0.0
        %5662 = vmatpush1.msra.mxu0 0.0
        %5663 = vmatprep.subr.mxu0 0.0
        %5664 = vmatpush1.msra.mxu0 0.0
        %5665 = vmatprep.subr.mxu0 0.0
        %5666 = vmatpush1.msra.mxu0 0.0
        %5667 = vmatprep.subr.mxu0 0.0
        %5668 = vmatpush1.msra.mxu0 0.0
        %5669 = vmatprep.subr.mxu0 0.0
        %5670 = vmatpush1.msra.mxu0 0.0
        %5671 = vmatprep.subr.mxu0 0.0
        %5672 = vmatpush1.msra.mxu0 0.0
        %5673 = vmatprep.subr.mxu0 0.0
        %5674 = vmatpush1.msra.mxu0 0.0
        %5675 = vmatprep.subr.mxu0 0.0
        %5676 = vmatpush1.msra.mxu0 0.0
        %5677 = vmatprep.subr.mxu0 0.0
        %5678 = vmatpush1.msra.mxu0 0.0
        %5679 = vmatprep.subr.mxu0 0.0
        %5680 = vmatpush1.msra.mxu0 0.0
        %5681 = vmatprep.subr.mxu0 0.0
        %5682 = vmatpush1.msra.mxu0 0.0
        %5683 = vmatprep.subr.mxu0 0.0
        %5684 = vmatpush1.msra.mxu0 0.0
        %5685 = vmatprep.mubr.f32.mxu0 0.0
        %v5686 = vand.u32 %v4576, 4294901760
        %v5687 = vsub.f32 %v4576, %v5686
        %v5688 = vand.u32 %v5687, 4294901760
        %v5689 = vsub.f32 %v5687, %v5688
        %v5690 = vand.u32 %v5689, 4294901760
        %5691 = vmatmul.mubr.f32.gmra.mrb[0].mxu0 %v5690
        %v5692 = vpop.f32.mrb[0].mxu0
        %v5693 = vadd.f32 %v5593, %v5692
        %v5694 = vpop.f32.mrb[0].mxu0
        %5695 = vmatprep.mubr.f32.mxu0 0.0
        %v5696 = vand.u32 %v4579, 4294901760
        %v5697 = vsub.f32 %v4579, %v5696
        %v5698 = vand.u32 %v5697, 4294901760
        %v5699 = vsub.f32 %v5697, %v5698
        %v5700 = vand.u32 %v5699, 4294901760
        %5701 = vmatmul.mubr.f32.gmra.mrb[0].mxu0 %v5700
        %v5702 = vpop.f32.mrb[0].mxu0
        %v5703 = vadd.f32 %v5600, %v5702
        %v5704 = vpop.f32.mrb[0].mxu0
        %5705 = vmatprep.mubr.f32.mxu0 0.0
        %v5706 = vand.u32 %v4582, 4294901760
        %v5707 = vsub.f32 %v4582, %v5706
        %v5708 = vand.u32 %v5707, 4294901760
        %v5709 = vsub.f32 %v5707, %v5708
        %v5710 = vand.u32 %v5709, 4294901760
        %5711 = vmatmul.mubr.f32.gmra.mrb[0].mxu0 %v5710
        %v5712 = vpop.f32.mrb[0].mxu0
        %v5713 = vadd.f32 %v5607, %v5712
        %v5714 = vpop.f32.mrb[0].mxu0
        %5715 = vmatprep.mubr.f32.mxu0 0.0
        %v5716 = vand.u32 %v4585, 4294901760
        %v5717 = vsub.f32 %v4585, %v5716
        %v5718 = vand.u32 %v5717, 4294901760
        %v5719 = vsub.f32 %v5717, %v5718
        %v5720 = vand.u32 %v5719, 4294901760
        %5721 = vmatmul.mubr.f32.gmra.mrb[0].mxu0 %v5720
        %v5722 = vpop.f32.mrb[0].mxu0
        %v5723 = vadd.f32 %v5614, %v5722
        %v5724 = vpop.f32.mrb[0].mxu0
        %5725 = vdwg.mxu0
        %5726 = vmatprep.subr.mxu0 0.0
        %v5727 = vand.u32 %v4551, 4294901760
        %v5728 = vsub.f32 %v4551, %v5727
        %v5729 = vand.u32 %v5728, 4294901760
        %v5730 = vsub.f32 %v5728, %v5729
        %v5731 = vand.u32 %v5730, 4294901760
        %5732 = vmatpush1.msra.mxu0 %v5731
        %5733 = vmatprep.subr.mxu0 0.0
        %v5734 = vand.u32 %v4552, 4294901760
        %v5735 = vsub.f32 %v4552, %v5734
        %v5736 = vand.u32 %v5735, 4294901760
        %v5737 = vsub.f32 %v5735, %v5736
        %v5738 = vand.u32 %v5737, 4294901760
        %5739 = vmatpush1.msra.mxu0 %v5738
        %5740 = vmatprep.subr.mxu0 0.0
        %v5741 = vand.u32 %v4553, 4294901760
        %v5742 = vsub.f32 %v4553, %v5741
        %v5743 = vand.u32 %v5742, 4294901760
        %v5744 = vsub.f32 %v5742, %v5743
        %v5745 = vand.u32 %v5744, 4294901760
        %5746 = vmatpush1.msra.mxu0 %v5745
        %5747 = vmatprep.subr.mxu0 0.0
        %v5748 = vand.u32 %v4554, 4294901760
        %v5749 = vsub.f32 %v4554, %v5748
        %v5750 = vand.u32 %v5749, 4294901760
        %v5751 = vsub.f32 %v5749, %v5750
        %v5752 = vand.u32 %v5751, 4294901760
        %5753 = vmatpush1.msra.mxu0 %v5752
        %5754 = vmatprep.subr.mxu0 0.0
        %5755 = vmatpush1.msra.mxu0 0.0
        %5756 = vmatprep.subr.mxu0 0.0
        %5757 = vmatpush1.msra.mxu0 0.0
        %5758 = vmatprep.subr.mxu0 0.0
        %5759 = vmatpush1.msra.mxu0 0.0
        %5760 = vmatprep.subr.mxu0 0.0
        %5761 = vmatpush1.msra.mxu0 0.0
        %5762 = vmatprep.subr.mxu0 0.0
        %5763 = vmatpush1.msra.mxu0 0.0
        %5764 = vmatprep.subr.mxu0 0.0
        %5765 = vmatpush1.msra.mxu0 0.0
        %5766 = vmatprep.subr.mxu0 0.0
        %5767 = vmatpush1.msra.mxu0 0.0
        %5768 = vmatprep.subr.mxu0 0.0
        %5769 = vmatpush1.msra.mxu0 0.0
        %5770 = vmatprep.subr.mxu0 0.0
        %5771 = vmatpush1.msra.mxu0 0.0
        %5772 = vmatprep.subr.mxu0 0.0
        %5773 = vmatpush1.msra.mxu0 0.0
        %5774 = vmatprep.subr.mxu0 0.0
        %5775 = vmatpush1.msra.mxu0 0.0
        %5776 = vmatprep.subr.mxu0 0.0
        %5777 = vmatpush1.msra.mxu0 0.0
        %5778 = vmatprep.subr.mxu0 0.0
        %5779 = vmatpush1.msra.mxu0 0.0
        %5780 = vmatprep.subr.mxu0 0.0
        %5781 = vmatpush1.msra.mxu0 0.0
        %5782 = vmatprep.subr.mxu0 0.0
        %5783 = vmatpush1.msra.mxu0 0.0
        %5784 = vmatprep.subr.mxu0 0.0
        %5785 = vmatpush1.msra.mxu0 0.0
        %5786 = vmatprep.subr.mxu0 0.0
        %5787 = vmatpush1.msra.mxu0 0.0
        %5788 = vmatprep.subr.mxu0 0.0
        %5789 = vmatpush1.msra.mxu0 0.0
        %5790 = vmatprep.subr.mxu0 0.0
        %5791 = vmatpush1.msra.mxu0 0.0
        %5792 = vmatprep.subr.mxu0 0.0
        %5793 = vmatpush1.msra.mxu0 0.0
        %5794 = vmatprep.subr.mxu0 0.0
        %5795 = vmatpush1.msra.mxu0 0.0
        %5796 = vmatprep.subr.mxu0 0.0
        %5797 = vmatpush1.msra.mxu0 0.0
        %5798 = vmatprep.subr.mxu0 0.0
        %5799 = vmatpush1.msra.mxu0 0.0
        %5800 = vmatprep.subr.mxu0 0.0
        %5801 = vmatpush1.msra.mxu0 0.0
        %5802 = vmatprep.subr.mxu0 0.0
        %5803 = vmatpush1.msra.mxu0 0.0
        %5804 = vmatprep.subr.mxu0 0.0
        %5805 = vmatpush1.msra.mxu0 0.0
        %5806 = vmatprep.subr.mxu0 0.0
        %5807 = vmatpush1.msra.mxu0 0.0
        %5808 = vmatprep.subr.mxu0 0.0
        %5809 = vmatpush1.msra.mxu0 0.0
        %5810 = vmatprep.mubr.f32.mxu0 0.0
        %v5811 = vand.u32 %v4576, 4294901760
        %5812 = vmatmul.mubr.f32.gmra.mrb[0].mxu0 %v5811
        %v5813 = vpop.f32.mrb[0].mxu0
        %v5814 = vadd.f32 %v5693, %v5813
        %v5815 = vpop.f32.mrb[0].mxu0
        %5816 = vmatprep.mubr.f32.mxu0 0.0
        %v5817 = vand.u32 %v4579, 4294901760
        %5818 = vmatmul.mubr.f32.gmra.mrb[0].mxu0 %v5817
        %v5819 = vpop.f32.mrb[0].mxu0
        %v5820 = vadd.f32 %v5703, %v5819
        %v5821 = vpop.f32.mrb[0].mxu0
        %5822 = vmatprep.mubr.f32.mxu0 0.0
        %v5823 = vand.u32 %v4582, 4294901760
        %5824 = vmatmul.mubr.f32.gmra.mrb[0].mxu0 %v5823
        %v5825 = vpop.f32.mrb[0].mxu0
        %v5826 = vadd.f32 %v5713, %v5825
        %v5827 = vpop.f32.mrb[0].mxu0
        %5828 = vmatprep.mubr.f32.mxu0 0.0
        %v5829 = vand.u32 %v4585, 4294901760
        %5830 = vmatmul.mubr.f32.gmra.mrb[0].mxu0 %v5829
        %v5831 = vpop.f32.mrb[0].mxu0
        %v5832 = vadd.f32 %v5723, %v5831
        %v5833 = vpop.f32.mrb[0].mxu0
        %5834 = vdwg.mxu0
        %5835 = vmatprep.subr.mxu0 0.0
        %v5836 = vand.u32 %v4551, 4294901760
        %v5837 = vsub.f32 %v4551, %v5836
        %5838 = vmatpush1.msra.mxu0 %v5837
        %5839 = vmatprep.subr.mxu0 0.0
        %v5840 = vand.u32 %v4552, 4294901760
        %v5841 = vsub.f32 %v4552, %v5840
        %5842 = vmatpush1.msra.mxu0 %v5841
        %5843 = vmatprep.subr.mxu0 0.0
        %v5844 = vand.u32 %v4553, 4294901760
        %v5845 = vsub.f32 %v4553, %v5844
        %5846 = vmatpush1.msra.mxu0 %v5845
        %5847 = vmatprep.subr.mxu0 0.0
        %v5848 = vand.u32 %v4554, 4294901760
        %v5849 = vsub.f32 %v4554, %v5848
        %5850 = vmatpush1.msra.mxu0 %v5849
        %5851 = vmatprep.subr.mxu0 0.0
        %5852 = vmatpush1.msra.mxu0 0.0
        %5853 = vmatprep.subr.mxu0 0.0
        %5854 = vmatpush1.msra.mxu0 0.0
        %5855 = vmatprep.subr.mxu0 0.0
        %5856 = vmatpush1.msra.mxu0 0.0
        %5857 = vmatprep.subr.mxu0 0.0
        %5858 = vmatpush1.msra.mxu0 0.0
        %5859 = vmatprep.subr.mxu0 0.0
        %5860 = vmatpush1.msra.mxu0 0.0
        %5861 = vmatprep.subr.mxu0 0.0
        %5862 = vmatpush1.msra.mxu0 0.0
        %5863 = vmatprep.subr.mxu0 0.0
        %5864 = vmatpush1.msra.mxu0 0.0
        %5865 = vmatprep.subr.mxu0 0.0
        %5866 = vmatpush1.msra.mxu0 0.0
        %5867 = vmatprep.subr.mxu0 0.0
        %5868 = vmatpush1.msra.mxu0 0.0
        %5869 = vmatprep.subr.mxu0 0.0
        %5870 = vmatpush1.msra.mxu0 0.0
        %5871 = vmatprep.subr.mxu0 0.0
        %5872 = vmatpush1.msra.mxu0 0.0
        %5873 = vmatprep.subr.mxu0 0.0
        %5874 = vmatpush1.msra.mxu0 0.0
        %5875 = vmatprep.subr.mxu0 0.0
        %5876 = vmatpush1.msra.mxu0 0.0
        %5877 = vmatprep.subr.mxu0 0.0
        %5878 = vmatpush1.msra.mxu0 0.0
        %5879 = vmatprep.subr.mxu0 0.0
        %5880 = vmatpush1.msra.mxu0 0.0
        %5881 = vmatprep.subr.mxu0 0.0
        %5882 = vmatpush1.msra.mxu0 0.0
        %5883 = vmatprep.subr.mxu0 0.0
        %5884 = vmatpush1.msra.mxu0 0.0
        %5885 = vmatprep.subr.mxu0 0.0
        %5886 = vmatpush1.msra.mxu0 0.0
        %5887 = vmatprep.subr.mxu0 0.0
        %5888 = vmatpush1.msra.mxu0 0.0
        %5889 = vmatprep.subr.mxu0 0.0
        %5890 = vmatpush1.msra.mxu0 0.0
        %5891 = vmatprep.subr.mxu0 0.0
        %5892 = vmatpush1.msra.mxu0 0.0
        %5893 = vmatprep.subr.mxu0 0.0
        %5894 = vmatpush1.msra.mxu0 0.0
        %5895 = vmatprep.subr.mxu0 0.0
        %5896 = vmatpush1.msra.mxu0 0.0
        %5897 = vmatprep.subr.mxu0 0.0
        %5898 = vmatpush1.msra.mxu0 0.0
        %5899 = vmatprep.subr.mxu0 0.0
        %5900 = vmatpush1.msra.mxu0 0.0
        %5901 = vmatprep.subr.mxu0 0.0
        %5902 = vmatpush1.msra.mxu0 0.0
        %5903 = vmatprep.subr.mxu0 0.0
        %5904 = vmatpush1.msra.mxu0 0.0
        %5905 = vmatprep.subr.mxu0 0.0
        %5906 = vmatpush1.msra.mxu0 0.0
        %5907 = vmatprep.mubr.f32.mxu0 0.0
        %v5908 = vand.u32 %v4576, 4294901760
        %v5909 = vsub.f32 %v4576, %v5908
        %5910 = vmatmul.mubr.f32.gmra.mrb[0].mxu0 %v5909
        %v5911 = vpop.f32.mrb[0].mxu0
        %v5912 = vadd.f32 %v5814, %v5911
        %v5913 = vpop.f32.mrb[0].mxu0
        %5914 = vmatprep.mubr.f32.mxu0 0.0
        %v5915 = vand.u32 %v4579, 4294901760
        %v5916 = vsub.f32 %v4579, %v5915
        %5917 = vmatmul.mubr.f32.gmra.mrb[0].mxu0 %v5916
        %v5918 = vpop.f32.mrb[0].mxu0
        %v5919 = vadd.f32 %v5820, %v5918
        %v5920 = vpop.f32.mrb[0].mxu0
        %5921 = vmatprep.mubr.f32.mxu0 0.0
        %v5922 = vand.u32 %v4582, 4294901760
        %v5923 = vsub.f32 %v4582, %v5922
        %5924 = vmatmul.mubr.f32.gmra.mrb[0].mxu0 %v5923
        %v5925 = vpop.f32.mrb[0].mxu0
        %v5926 = vadd.f32 %v5826, %v5925
        %v5927 = vpop.f32.mrb[0].mxu0
        %5928 = vmatprep.mubr.f32.mxu0 0.0
        %v5929 = vand.u32 %v4585, 4294901760
        %v5930 = vsub.f32 %v4585, %v5929
        %5931 = vmatmul.mubr.f32.gmra.mrb[0].mxu0 %v5930
        %v5932 = vpop.f32.mrb[0].mxu0
        %v5933 = vadd.f32 %v5832, %v5932
        %v5934 = vpop.f32.mrb[0].mxu0
        %5935 = vdwg.mxu0
        %5936 = vmatprep.subr.mxu0 0.0
        %v5937 = vand.u32 %v4551, 4294901760
        %5938 = vmatpush1.msra.mxu0 %v5937
        %5939 = vmatprep.subr.mxu0 0.0
        %v5940 = vand.u32 %v4552, 4294901760
        %5941 = vmatpush1.msra.mxu0 %v5940
        %5942 = vmatprep.subr.mxu0 0.0
        %v5943 = vand.u32 %v4553, 4294901760
        %5944 = vmatpush1.msra.mxu0 %v5943
        %5945 = vmatprep.subr.mxu0 0.0
        %v5946 = vand.u32 %v4554, 4294901760
        %5947 = vmatpush1.msra.mxu0 %v5946
        %5948 = vmatprep.subr.mxu0 0.0
        %5949 = vmatpush1.msra.mxu0 0.0
        %5950 = vmatprep.subr.mxu0 0.0
        %5951 = vmatpush1.msra.mxu0 0.0
        %5952 = vmatprep.subr.mxu0 0.0
        %5953 = vmatpush1.msra.mxu0 0.0
        %5954 = vmatprep.subr.mxu0 0.0
        %5955 = vmatpush1.msra.mxu0 0.0
        %5956 = vmatprep.subr.mxu0 0.0
        %5957 = vmatpush1.msra.mxu0 0.0
        %5958 = vmatprep.subr.mxu0 0.0
        %5959 = vmatpush1.msra.mxu0 0.0
        %5960 = vmatprep.subr.mxu0 0.0
        %5961 = vmatpush1.msra.mxu0 0.0
        %5962 = vmatprep.subr.mxu0 0.0
        %5963 = vmatpush1.msra.mxu0 0.0
        %5964 = vmatprep.subr.mxu0 0.0
        %5965 = vmatpush1.msra.mxu0 0.0
        %5966 = vmatprep.subr.mxu0 0.0
        %5967 = vmatpush1.msra.mxu0 0.0
        %5968 = vmatprep.subr.mxu0 0.0
        %5969 = vmatpush1.msra.mxu0 0.0
        %5970 = vmatprep.subr.mxu0 0.0
        %5971 = vmatpush1.msra.mxu0 0.0
        %5972 = vmatprep.subr.mxu0 0.0
        %5973 = vmatpush1.msra.mxu0 0.0
        %5974 = vmatprep.subr.mxu0 0.0
        %5975 = vmatpush1.msra.mxu0 0.0
        %5976 = vmatprep.subr.mxu0 0.0
        %5977 = vmatpush1.msra.mxu0 0.0
        %5978 = vmatprep.subr.mxu0 0.0
        %5979 = vmatpush1.msra.mxu0 0.0
        %5980 = vmatprep.subr.mxu0 0.0
        %5981 = vmatpush1.msra.mxu0 0.0
        %5982 = vmatprep.subr.mxu0 0.0
        %5983 = vmatpush1.msra.mxu0 0.0
        %5984 = vmatprep.subr.mxu0 0.0
        %5985 = vmatpush1.msra.mxu0 0.0
        %5986 = vmatprep.subr.mxu0 0.0
        %5987 = vmatpush1.msra.mxu0 0.0
        %5988 = vmatprep.subr.mxu0 0.0
        %5989 = vmatpush1.msra.mxu0 0.0
        %5990 = vmatprep.subr.mxu0 0.0
        %5991 = vmatpush1.msra.mxu0 0.0
        %5992 = vmatprep.subr.mxu0 0.0
        %5993 = vmatpush1.msra.mxu0 0.0
        %5994 = vmatprep.subr.mxu0 0.0
        %5995 = vmatpush1.msra.mxu0 0.0
        %5996 = vmatprep.subr.mxu0 0.0
        %5997 = vmatpush1.msra.mxu0 0.0
        %5998 = vmatprep.subr.mxu0 0.0
        %5999 = vmatpush1.msra.mxu0 0.0
        %6000 = vmatprep.subr.mxu0 0.0
        %6001 = vmatpush1.msra.mxu0 0.0
        %6002 = vmatprep.subr.mxu0 0.0
        %6003 = vmatpush1.msra.mxu0 0.0
        %6004 = vmatprep.mubr.f32.mxu0 0.0
        %v6005 = vand.u32 %v4576, 4294901760
        %v6006 = vsub.f32 %v4576, %v6005
        %v6007 = vand.u32 %v6006, 4294901760
        %6008 = vmatmul.mubr.f32.gmra.mrb[0].mxu0 %v6007
        %v6009 = vpop.f32.mrb[0].mxu0
        %v6010 = vadd.f32 %v5912, %v6009
        %v6011 = vpop.f32.mrb[0].mxu0
        %6012 = vmatprep.mubr.f32.mxu0 0.0
        %v6013 = vand.u32 %v4579, 4294901760
        %v6014 = vsub.f32 %v4579, %v6013
        %v6015 = vand.u32 %v6014, 4294901760
        %6016 = vmatmul.mubr.f32.gmra.mrb[0].mxu0 %v6015
        %v6017 = vpop.f32.mrb[0].mxu0
        %v6018 = vadd.f32 %v5919, %v6017
        %v6019 = vpop.f32.mrb[0].mxu0
        %6020 = vmatprep.mubr.f32.mxu0 0.0
        %v6021 = vand.u32 %v4582, 4294901760
        %v6022 = vsub.f32 %v4582, %v6021
        %v6023 = vand.u32 %v6022, 4294901760
        %6024 = vmatmul.mubr.f32.gmra.mrb[0].mxu0 %v6023
        %v6025 = vpop.f32.mrb[0].mxu0
        %v6026 = vadd.f32 %v5926, %v6025
        %v6027 = vpop.f32.mrb[0].mxu0
        %6028 = vmatprep.mubr.f32.mxu0 0.0
        %v6029 = vand.u32 %v4585, 4294901760
        %v6030 = vsub.f32 %v4585, %v6029
        %v6031 = vand.u32 %v6030, 4294901760
        %6032 = vmatmul.mubr.f32.gmra.mrb[0].mxu0 %v6031
        %v6033 = vpop.f32.mrb[0].mxu0
        %v6034 = vadd.f32 %v5933, %v6033
        %v6035 = vpop.f32.mrb[0].mxu0
        %6036 = vdwg.mxu0
        %6037 = vmatprep.subr.mxu0 0.0
        %v6038 = vand.u32 %v4551, 4294901760
        %v6039 = vsub.f32 %v4551, %v6038
        %v6040 = vand.u32 %v6039, 4294901760
        %6041 = vmatpush1.msra.mxu0 %v6040
        %6042 = vmatprep.subr.mxu0 0.0
        %v6043 = vand.u32 %v4552, 4294901760
        %v6044 = vsub.f32 %v4552, %v6043
        %v6045 = vand.u32 %v6044, 4294901760
        %6046 = vmatpush1.msra.mxu0 %v6045
        %6047 = vmatprep.subr.mxu0 0.0
        %v6048 = vand.u32 %v4553, 4294901760
        %v6049 = vsub.f32 %v4553, %v6048
        %v6050 = vand.u32 %v6049, 4294901760
        %6051 = vmatpush1.msra.mxu0 %v6050
        %6052 = vmatprep.subr.mxu0 0.0
        %v6053 = vand.u32 %v4554, 4294901760
        %v6054 = vsub.f32 %v4554, %v6053
        %v6055 = vand.u32 %v6054, 4294901760
        %6056 = vmatpush1.msra.mxu0 %v6055
        %6057 = vmatprep.subr.mxu0 0.0
        %6058 = vmatpush1.msra.mxu0 0.0
        %6059 = vmatprep.subr.mxu0 0.0
        %6060 = vmatpush1.msra.mxu0 0.0
        %6061 = vmatprep.subr.mxu0 0.0
        %6062 = vmatpush1.msra.mxu0 0.0
        %6063 = vmatprep.subr.mxu0 0.0
        %6064 = vmatpush1.msra.mxu0 0.0
        %6065 = vmatprep.subr.mxu0 0.0
        %6066 = vmatpush1.msra.mxu0 0.0
        %6067 = vmatprep.subr.mxu0 0.0
        %6068 = vmatpush1.msra.mxu0 0.0
        %6069 = vmatprep.subr.mxu0 0.0
        %6070 = vmatpush1.msra.mxu0 0.0
        %6071 = vmatprep.subr.mxu0 0.0
        %6072 = vmatpush1.msra.mxu0 0.0
        %6073 = vmatprep.subr.mxu0 0.0
        %6074 = vmatpush1.msra.mxu0 0.0
        %6075 = vmatprep.subr.mxu0 0.0
        %6076 = vmatpush1.msra.mxu0 0.0
        %6077 = vmatprep.subr.mxu0 0.0
        %6078 = vmatpush1.msra.mxu0 0.0
        %6079 = vmatprep.subr.mxu0 0.0
        %6080 = vmatpush1.msra.mxu0 0.0
        %6081 = vmatprep.subr.mxu0 0.0
        %6082 = vmatpush1.msra.mxu0 0.0
        %6083 = vmatprep.subr.mxu0 0.0
        %6084 = vmatpush1.msra.mxu0 0.0
        %6085 = vmatprep.subr.mxu0 0.0
        %6086 = vmatpush1.msra.mxu0 0.0
        %6087 = vmatprep.subr.mxu0 0.0
        %6088 = vmatpush1.msra.mxu0 0.0
        %6089 = vmatprep.subr.mxu0 0.0
        %6090 = vmatpush1.msra.mxu0 0.0
        %6091 = vmatprep.subr.mxu0 0.0
        %6092 = vmatpush1.msra.mxu0 0.0
        %6093 = vmatprep.subr.mxu0 0.0
        %6094 = vmatpush1.msra.mxu0 0.0
        %6095 = vmatprep.subr.mxu0 0.0
        %6096 = vmatpush1.msra.mxu0 0.0
        %6097 = vmatprep.subr.mxu0 0.0
        %6098 = vmatpush1.msra.mxu0 0.0
        %6099 = vmatprep.subr.mxu0 0.0
        %6100 = vmatpush1.msra.mxu0 0.0
        %6101 = vmatprep.subr.mxu0 0.0
        %6102 = vmatpush1.msra.mxu0 0.0
        %6103 = vmatprep.subr.mxu0 0.0
        %6104 = vmatpush1.msra.mxu0 0.0
        %6105 = vmatprep.subr.mxu0 0.0
        %6106 = vmatpush1.msra.mxu0 0.0
        %6107 = vmatprep.subr.mxu0 0.0
        %6108 = vmatpush1.msra.mxu0 0.0
        %6109 = vmatprep.subr.mxu0 0.0
        %6110 = vmatpush1.msra.mxu0 0.0
        %6111 = vmatprep.subr.mxu0 0.0
        %6112 = vmatpush1.msra.mxu0 0.0
        %6113 = vmatprep.mubr.f32.mxu0 0.0
        %v6114 = vand.u32 %v4576, 4294901760
        %6115 = vmatmul.mubr.f32.gmra.mrb[0].mxu0 %v6114
        %v6116 = vpop.f32.mrb[0].mxu0
        %v6117 = vadd.f32 %v6010, %v6116
        %v6118 = vpop.f32.mrb[0].mxu0
        %6119 = vmatprep.mubr.f32.mxu0 0.0
        %v6120 = vand.u32 %v4579, 4294901760
        %6121 = vmatmul.mubr.f32.gmra.mrb[0].mxu0 %v6120
        %v6122 = vpop.f32.mrb[0].mxu0
        %v6123 = vadd.f32 %v6018, %v6122
        %v6124 = vpop.f32.mrb[0].mxu0
        %6125 = vmatprep.mubr.f32.mxu0 0.0
        %v6126 = vand.u32 %v4582, 4294901760
        %6127 = vmatmul.mubr.f32.gmra.mrb[0].mxu0 %v6126
        %v6128 = vpop.f32.mrb[0].mxu0
        %v6129 = vadd.f32 %v6026, %v6128
        %v6130 = vpop.f32.mrb[0].mxu0
        %6131 = vmatprep.mubr.f32.mxu0 0.0
        %v6132 = vand.u32 %v4585, 4294901760
        %6133 = vmatmul.mubr.f32.gmra.mrb[0].mxu0 %v6132
        %v6134 = vpop.f32.mrb[0].mxu0
        %v6135 = vadd.f32 %v6034, %v6134
        %v6136 = vpop.f32.mrb[0].mxu0
        %6137 = vdwg.mxu0
        %6138 = vmatprep.subr.mxu0 0.0
        %v6139 = vand.u32 %v4551, 4294901760
        %6140 = vmatpush1.msra.mxu0 %v6139
        %6141 = vmatprep.subr.mxu0 0.0
        %v6142 = vand.u32 %v4552, 4294901760
        %6143 = vmatpush1.msra.mxu0 %v6142
        %6144 = vmatprep.subr.mxu0 0.0
        %v6145 = vand.u32 %v4553, 4294901760
        %6146 = vmatpush1.msra.mxu0 %v6145
        %6147 = vmatprep.subr.mxu0 0.0
        %v6148 = vand.u32 %v4554, 4294901760
        %6149 = vmatpush1.msra.mxu0 %v6148
        %6150 = vmatprep.subr.mxu0 0.0
        %6151 = vmatpush1.msra.mxu0 0.0
        %6152 = vmatprep.subr.mxu0 0.0
        %6153 = vmatpush1.msra.mxu0 0.0
        %6154 = vmatprep.subr.mxu0 0.0
        %6155 = vmatpush1.msra.mxu0 0.0
        %6156 = vmatprep.subr.mxu0 0.0
        %6157 = vmatpush1.msra.mxu0 0.0
        %6158 = vmatprep.subr.mxu0 0.0
        %6159 = vmatpush1.msra.mxu0 0.0
        %6160 = vmatprep.subr.mxu0 0.0
        %6161 = vmatpush1.msra.mxu0 0.0
        %6162 = vmatprep.subr.mxu0 0.0
        %6163 = vmatpush1.msra.mxu0 0.0
        %6164 = vmatprep.subr.mxu0 0.0
        %6165 = vmatpush1.msra.mxu0 0.0
        %6166 = vmatprep.subr.mxu0 0.0
        %6167 = vmatpush1.msra.mxu0 0.0
        %6168 = vmatprep.subr.mxu0 0.0
        %6169 = vmatpush1.msra.mxu0 0.0
        %6170 = vmatprep.subr.mxu0 0.0
        %6171 = vmatpush1.msra.mxu0 0.0
        %6172 = vmatprep.subr.mxu0 0.0
        %6173 = vmatpush1.msra.mxu0 0.0
        %6174 = vmatprep.subr.mxu0 0.0
        %6175 = vmatpush1.msra.mxu0 0.0
        %6176 = vmatprep.subr.mxu0 0.0
        %6177 = vmatpush1.msra.mxu0 0.0
        %6178 = vmatprep.subr.mxu0 0.0
        %6179 = vmatpush1.msra.mxu0 0.0
        %6180 = vmatprep.subr.mxu0 0.0
        %6181 = vmatpush1.msra.mxu0 0.0
        %6182 = vmatprep.subr.mxu0 0.0
        %6183 = vmatpush1.msra.mxu0 0.0
        %6184 = vmatprep.subr.mxu0 0.0
        %6185 = vmatpush1.msra.mxu0 0.0
        %6186 = vmatprep.subr.mxu0 0.0
        %6187 = vmatpush1.msra.mxu0 0.0
        %6188 = vmatprep.subr.mxu0 0.0
        %6189 = vmatpush1.msra.mxu0 0.0
        %6190 = vmatprep.subr.mxu0 0.0
        %6191 = vmatpush1.msra.mxu0 0.0
        %6192 = vmatprep.subr.mxu0 0.0
        %6193 = vmatpush1.msra.mxu0 0.0
        %6194 = vmatprep.subr.mxu0 0.0
        %6195 = vmatpush1.msra.mxu0 0.0
        %6196 = vmatprep.subr.mxu0 0.0
        %6197 = vmatpush1.msra.mxu0 0.0
        %6198 = vmatprep.subr.mxu0 0.0
        %6199 = vmatpush1.msra.mxu0 0.0
        %6200 = vmatprep.subr.mxu0 0.0
        %6201 = vmatpush1.msra.mxu0 0.0
        %6202 = vmatprep.subr.mxu0 0.0
        %6203 = vmatpush1.msra.mxu0 0.0
        %6204 = vmatprep.subr.mxu0 0.0
        %6205 = vmatpush1.msra.mxu0 0.0
        %6206 = vmatprep.mubr.f32.mxu0 0.0
        %v6207 = vand.u32 %v4576, 4294901760
        %6208 = vmatmul.mubr.f32.gmra.mrb[0].mxu0 %v6207
        %v6209 = vpop.f32.mrb[0].mxu0
        %v6210 = vadd.f32 %v6117, %v6209
        %v6211 = vpop.f32.mrb[0].mxu0
        %6212 = vmatprep.mubr.f32.mxu0 0.0
        %v6213 = vand.u32 %v4579, 4294901760
        %6214 = vmatmul.mubr.f32.gmra.mrb[0].mxu0 %v6213
        %v6215 = vpop.f32.mrb[0].mxu0
        %v6216 = vadd.f32 %v6123, %v6215
        %v6217 = vpop.f32.mrb[0].mxu0
        %6218 = vmatprep.mubr.f32.mxu0 0.0
        %v6219 = vand.u32 %v4582, 4294901760
        %6220 = vmatmul.mubr.f32.gmra.mrb[0].mxu0 %v6219
        %v6221 = vpop.f32.mrb[0].mxu0
        %v6222 = vadd.f32 %v6129, %v6221
        %v6223 = vpop.f32.mrb[0].mxu0
        %6224 = vmatprep.mubr.f32.mxu0 0.0
        %v6225 = vand.u32 %v4585, 4294901760
        %6226 = vmatmul.mubr.f32.gmra.mrb[0].mxu0 %v6225
        %v6227 = vpop.f32.mrb[0].mxu0
        %v6228 = vadd.f32 %v6135, %v6227
        %v6229 = vpop.f32.mrb[0].mxu0
        %6230 = vdwg.mxu0
        %v6231 = vmax.f32 %v6210, 0.0
        %v6232 = vmax.f32 %v6216, 0.0
        %v6233 = vmax.f32 %v6222, 0.0
        %v6234 = vmax.f32 %v6228, 0.0
        %v6235 = vld [vmem:[#allocation7] sm:$0xff]
        %v6236 = vld [vmem:[#allocation7 + $0x8] sm:$0xff]
        %v6237 = vld [vmem:[#allocation7 + $0x10] sm:$0xff]
        %v6238 = vld [vmem:[#allocation7 + $0x18] sm:$0xff]
        %v6239 = vld [vmem:[%s9] sm:$0xff]
        %v6240 = vld [vmem:[%s9 + $0x8] sm:$0xff]
        %v6241 = vld [vmem:[%s9 + $0x10] sm:$0xff]
        %v6242 = vld [vmem:[%s9 + $0x18] sm:$0xff]
        %6244 = vset.pattern.permute.xlu0 0
        %6245 = vperm.xlu0 %6244, %v6239
        %v6246 = vpop.permute.xlu0 %6245
        %6249 = vset.pattern.permute.xlu0 0
        %6250 = vperm.xlu0 %6249, %v6240
        %v6251 = vpop.permute.xlu0 %6250
        %6254 = vset.pattern.permute.xlu0 0
        %6255 = vperm.xlu0 %6254, %v6241
        %v6256 = vpop.permute.xlu0 %6255
        %6259 = vset.pattern.permute.xlu0 0
        %6260 = vperm.xlu0 %6259, %v6242
        %v6261 = vpop.permute.xlu0 %6260
        %v6264 = vsel %vm2640, %v6235, 0
        %v6267 = vsel %vm2640, %v6236, 0
        %v6270 = vsel %vm2640, %v6237, 0
        %v6273 = vsel %vm2640, %v6238, 0
        %6275 = vmatprep.subr.mxu0 0.0
        %v6276 = vand.u32 %v6231, 4294901760
        %6277 = vmatpush1.msra.mxu0 %v6276
        %6278 = vmatprep.subr.mxu0 0.0
        %v6279 = vand.u32 %v6232, 4294901760
        %6280 = vmatpush1.msra.mxu0 %v6279
        %6281 = vmatprep.subr.mxu0 0.0
        %v6282 = vand.u32 %v6233, 4294901760
        %6283 = vmatpush1.msra.mxu0 %v6282
        %6284 = vmatprep.subr.mxu0 0.0
        %v6285 = vand.u32 %v6234, 4294901760
        %6286 = vmatpush1.msra.mxu0 %v6285
        %6287 = vmatprep.subr.mxu0 0.0
        %6288 = vmatpush1.msra.mxu0 0.0
        %6289 = vmatprep.subr.mxu0 0.0
        %6290 = vmatpush1.msra.mxu0 0.0
        %6291 = vmatprep.subr.mxu0 0.0
        %6292 = vmatpush1.msra.mxu0 0.0
        %6293 = vmatprep.subr.mxu0 0.0
        %6294 = vmatpush1.msra.mxu0 0.0
        %6295 = vmatprep.subr.mxu0 0.0
        %6296 = vmatpush1.msra.mxu0 0.0
        %6297 = vmatprep.subr.mxu0 0.0
        %6298 = vmatpush1.msra.mxu0 0.0
        %6299 = vmatprep.subr.mxu0 0.0
        %6300 = vmatpush1.msra.mxu0 0.0
        %6301 = vmatprep.subr.mxu0 0.0
        %6302 = vmatpush1.msra.mxu0 0.0
        %6303 = vmatprep.subr.mxu0 0.0
        %6304 = vmatpush1.msra.mxu0 0.0
        %6305 = vmatprep.subr.mxu0 0.0
        %6306 = vmatpush1.msra.mxu0 0.0
        %6307 = vmatprep.subr.mxu0 0.0
        %6308 = vmatpush1.msra.mxu0 0.0
        %6309 = vmatprep.subr.mxu0 0.0
        %6310 = vmatpush1.msra.mxu0 0.0
        %6311 = vmatprep.subr.mxu0 0.0
        %6312 = vmatpush1.msra.mxu0 0.0
        %6313 = vmatprep.subr.mxu0 0.0
        %6314 = vmatpush1.msra.mxu0 0.0
        %6315 = vmatprep.subr.mxu0 0.0
        %6316 = vmatpush1.msra.mxu0 0.0
        %6317 = vmatprep.subr.mxu0 0.0
        %6318 = vmatpush1.msra.mxu0 0.0
        %6319 = vmatprep.subr.mxu0 0.0
        %6320 = vmatpush1.msra.mxu0 0.0
        %6321 = vmatprep.subr.mxu0 0.0
        %6322 = vmatpush1.msra.mxu0 0.0
        %6323 = vmatprep.subr.mxu0 0.0
        %6324 = vmatpush1.msra.mxu0 0.0
        %6325 = vmatprep.subr.mxu0 0.0
        %6326 = vmatpush1.msra.mxu0 0.0
        %6327 = vmatprep.subr.mxu0 0.0
        %6328 = vmatpush1.msra.mxu0 0.0
        %6329 = vmatprep.subr.mxu0 0.0
        %6330 = vmatpush1.msra.mxu0 0.0
        %6331 = vmatprep.subr.mxu0 0.0
        %6332 = vmatpush1.msra.mxu0 0.0
        %6333 = vmatprep.subr.mxu0 0.0
        %6334 = vmatpush1.msra.mxu0 0.0
        %6335 = vmatprep.subr.mxu0 0.0
        %6336 = vmatpush1.msra.mxu0 0.0
        %6337 = vmatprep.subr.mxu0 0.0
        %6338 = vmatpush1.msra.mxu0 0.0
        %6339 = vmatprep.subr.mxu0 0.0
        %6340 = vmatpush1.msra.mxu0 0.0
        %6341 = vmatprep.subr.mxu0 0.0
        %6342 = vmatpush1.msra.mxu0 0.0
        %6343 = vmatprep.mubr.f32.mxu0 0.0
        %v6344 = vand.u32 %v6264, 4294901760
        %v6345 = vsub.f32 %v6264, %v6344
        %v6346 = vand.u32 %v6345, 4294901760
        %v6347 = vsub.f32 %v6345, %v6346
        %v6348 = vand.u32 %v6347, 4294901760
        %6349 = vmatmul.mubr.f32.gmra.mrb[0].mxu0 %v6348
        %v6350 = vpop.f32.mrb[0].mxu0
        %v6351 = vadd.f32 %v6246, %v6350
        %v6352 = vpop.f32.mrb[0].mxu0
        %6353 = vmatprep.mubr.f32.mxu0 0.0
        %v6354 = vand.u32 %v6267, 4294901760
        %v6355 = vsub.f32 %v6267, %v6354
        %v6356 = vand.u32 %v6355, 4294901760
        %v6357 = vsub.f32 %v6355, %v6356
        %v6358 = vand.u32 %v6357, 4294901760
        %6359 = vmatmul.mubr.f32.gmra.mrb[0].mxu0 %v6358
        %v6360 = vpop.f32.mrb[0].mxu0
        %v6361 = vadd.f32 %v6251, %v6360
        %v6362 = vpop.f32.mrb[0].mxu0
        %6363 = vmatprep.mubr.f32.mxu0 0.0
        %v6364 = vand.u32 %v6270, 4294901760
        %v6365 = vsub.f32 %v6270, %v6364
        %v6366 = vand.u32 %v6365, 4294901760
        %v6367 = vsub.f32 %v6365, %v6366
        %v6368 = vand.u32 %v6367, 4294901760
        %6369 = vmatmul.mubr.f32.gmra.mrb[0].mxu0 %v6368
        %v6370 = vpop.f32.mrb[0].mxu0
        %v6371 = vadd.f32 %v6256, %v6370
        %v6372 = vpop.f32.mrb[0].mxu0
        %6373 = vmatprep.mubr.f32.mxu0 0.0
        %v6374 = vand.u32 %v6273, 4294901760
        %v6375 = vsub.f32 %v6273, %v6374
        %v6376 = vand.u32 %v6375, 4294901760
        %v6377 = vsub.f32 %v6375, %v6376
        %v6378 = vand.u32 %v6377, 4294901760
        %6379 = vmatmul.mubr.f32.gmra.mrb[0].mxu0 %v6378
        %v6380 = vpop.f32.mrb[0].mxu0
        %v6381 = vadd.f32 %v6261, %v6380
        %v6382 = vpop.f32.mrb[0].mxu0
        %6383 = vdwg.mxu0
        %6384 = vmatprep.subr.mxu0 0.0
        %v6385 = vand.u32 %v6231, 4294901760
        %v6386 = vsub.f32 %v6231, %v6385
        %v6387 = vand.u32 %v6386, 4294901760
        %v6388 = vsub.f32 %v6386, %v6387
        %v6389 = vand.u32 %v6388, 4294901760
        %6390 = vmatpush1.msra.mxu0 %v6389
        %6391 = vmatprep.subr.mxu0 0.0
        %v6392 = vand.u32 %v6232, 4294901760
        %v6393 = vsub.f32 %v6232, %v6392
        %v6394 = vand.u32 %v6393, 4294901760
        %v6395 = vsub.f32 %v6393, %v6394
        %v6396 = vand.u32 %v6395, 4294901760
        %6397 = vmatpush1.msra.mxu0 %v6396
        %6398 = vmatprep.subr.mxu0 0.0
        %v6399 = vand.u32 %v6233, 4294901760
        %v6400 = vsub.f32 %v6233, %v6399
        %v6401 = vand.u32 %v6400, 4294901760
        %v6402 = vsub.f32 %v6400, %v6401
        %v6403 = vand.u32 %v6402, 4294901760
        %6404 = vmatpush1.msra.mxu0 %v6403
        %6405 = vmatprep.subr.mxu0 0.0
        %v6406 = vand.u32 %v6234, 4294901760
        %v6407 = vsub.f32 %v6234, %v6406
        %v6408 = vand.u32 %v6407, 4294901760
        %v6409 = vsub.f32 %v6407, %v6408
        %v6410 = vand.u32 %v6409, 4294901760
        %6411 = vmatpush1.msra.mxu0 %v6410
        %6412 = vmatprep.subr.mxu0 0.0
        %6413 = vmatpush1.msra.mxu0 0.0
        %6414 = vmatprep.subr.mxu0 0.0
        %6415 = vmatpush1.msra.mxu0 0.0
        %6416 = vmatprep.subr.mxu0 0.0
        %6417 = vmatpush1.msra.mxu0 0.0
        %6418 = vmatprep.subr.mxu0 0.0
        %6419 = vmatpush1.msra.mxu0 0.0
        %6420 = vmatprep.subr.mxu0 0.0
        %6421 = vmatpush1.msra.mxu0 0.0
        %6422 = vmatprep.subr.mxu0 0.0
        %6423 = vmatpush1.msra.mxu0 0.0
        %6424 = vmatprep.subr.mxu0 0.0
        %6425 = vmatpush1.msra.mxu0 0.0
        %6426 = vmatprep.subr.mxu0 0.0
        %6427 = vmatpush1.msra.mxu0 0.0
        %6428 = vmatprep.subr.mxu0 0.0
        %6429 = vmatpush1.msra.mxu0 0.0
        %6430 = vmatprep.subr.mxu0 0.0
        %6431 = vmatpush1.msra.mxu0 0.0
        %6432 = vmatprep.subr.mxu0 0.0
        %6433 = vmatpush1.msra.mxu0 0.0
        %6434 = vmatprep.subr.mxu0 0.0
        %6435 = vmatpush1.msra.mxu0 0.0
        %6436 = vmatprep.subr.mxu0 0.0
        %6437 = vmatpush1.msra.mxu0 0.0
        %6438 = vmatprep.subr.mxu0 0.0
        %6439 = vmatpush1.msra.mxu0 0.0
        %6440 = vmatprep.subr.mxu0 0.0
        %6441 = vmatpush1.msra.mxu0 0.0
        %6442 = vmatprep.subr.mxu0 0.0
        %6443 = vmatpush1.msra.mxu0 0.0
        %6444 = vmatprep.subr.mxu0 0.0
        %6445 = vmatpush1.msra.mxu0 0.0
        %6446 = vmatprep.subr.mxu0 0.0
        %6447 = vmatpush1.msra.mxu0 0.0
        %6448 = vmatprep.subr.mxu0 0.0
        %6449 = vmatpush1.msra.mxu0 0.0
        %6450 = vmatprep.subr.mxu0 0.0
        %6451 = vmatpush1.msra.mxu0 0.0
        %6452 = vmatprep.subr.mxu0 0.0
        %6453 = vmatpush1.msra.mxu0 0.0
        %6454 = vmatprep.subr.mxu0 0.0
        %6455 = vmatpush1.msra.mxu0 0.0
        %6456 = vmatprep.subr.mxu0 0.0
        %6457 = vmatpush1.msra.mxu0 0.0
        %6458 = vmatprep.subr.mxu0 0.0
        %6459 = vmatpush1.msra.mxu0 0.0
        %6460 = vmatprep.subr.mxu0 0.0
        %6461 = vmatpush1.msra.mxu0 0.0
        %6462 = vmatprep.subr.mxu0 0.0
        %6463 = vmatpush1.msra.mxu0 0.0
        %6464 = vmatprep.subr.mxu0 0.0
        %6465 = vmatpush1.msra.mxu0 0.0
        %6466 = vmatprep.subr.mxu0 0.0
        %6467 = vmatpush1.msra.mxu0 0.0
        %6468 = vmatprep.mubr.f32.mxu0 0.0
        %v6469 = vand.u32 %v6264, 4294901760
        %6470 = vmatmul.mubr.f32.gmra.mrb[0].mxu0 %v6469
        %v6471 = vpop.f32.mrb[0].mxu0
        %v6472 = vadd.f32 %v6351, %v6471
        %v6473 = vpop.f32.mrb[0].mxu0
        %6474 = vmatprep.mubr.f32.mxu0 0.0
        %v6475 = vand.u32 %v6267, 4294901760
        %6476 = vmatmul.mubr.f32.gmra.mrb[0].mxu0 %v6475
        %v6477 = vpop.f32.mrb[0].mxu0
        %v6478 = vadd.f32 %v6361, %v6477
        %v6479 = vpop.f32.mrb[0].mxu0
        %6480 = vmatprep.mubr.f32.mxu0 0.0
        %v6481 = vand.u32 %v6270, 4294901760
        %6482 = vmatmul.mubr.f32.gmra.mrb[0].mxu0 %v6481
        %v6483 = vpop.f32.mrb[0].mxu0
        %v6484 = vadd.f32 %v6371, %v6483
        %v6485 = vpop.f32.mrb[0].mxu0
        %6486 = vmatprep.mubr.f32.mxu0 0.0
        %v6487 = vand.u32 %v6273, 4294901760
        %6488 = vmatmul.mubr.f32.gmra.mrb[0].mxu0 %v6487
        %v6489 = vpop.f32.mrb[0].mxu0
        %v6490 = vadd.f32 %v6381, %v6489
        %v6491 = vpop.f32.mrb[0].mxu0
        %6492 = vdwg.mxu0
        %6493 = vmatprep.subr.mxu0 0.0
        %v6494 = vand.u32 %v6231, 4294901760
        %v6495 = vsub.f32 %v6231, %v6494
        %6496 = vmatpush1.msra.mxu0 %v6495
        %6497 = vmatprep.subr.mxu0 0.0
        %v6498 = vand.u32 %v6232, 4294901760
        %v6499 = vsub.f32 %v6232, %v6498
        %6500 = vmatpush1.msra.mxu0 %v6499
        %6501 = vmatprep.subr.mxu0 0.0
        %v6502 = vand.u32 %v6233, 4294901760
        %v6503 = vsub.f32 %v6233, %v6502
        %6504 = vmatpush1.msra.mxu0 %v6503
        %6505 = vmatprep.subr.mxu0 0.0
        %v6506 = vand.u32 %v6234, 4294901760
        %v6507 = vsub.f32 %v6234, %v6506
        %6508 = vmatpush1.msra.mxu0 %v6507
        %6509 = vmatprep.subr.mxu0 0.0
        %6510 = vmatpush1.msra.mxu0 0.0
        %6511 = vmatprep.subr.mxu0 0.0
        %6512 = vmatpush1.msra.mxu0 0.0
        %6513 = vmatprep.subr.mxu0 0.0
        %6514 = vmatpush1.msra.mxu0 0.0
        %6515 = vmatprep.subr.mxu0 0.0
        %6516 = vmatpush1.msra.mxu0 0.0
        %6517 = vmatprep.subr.mxu0 0.0
        %6518 = vmatpush1.msra.mxu0 0.0
        %6519 = vmatprep.subr.mxu0 0.0
        %6520 = vmatpush1.msra.mxu0 0.0
        %6521 = vmatprep.subr.mxu0 0.0
        %6522 = vmatpush1.msra.mxu0 0.0
        %6523 = vmatprep.subr.mxu0 0.0
        %6524 = vmatpush1.msra.mxu0 0.0
        %6525 = vmatprep.subr.mxu0 0.0
        %6526 = vmatpush1.msra.mxu0 0.0
        %6527 = vmatprep.subr.mxu0 0.0
        %6528 = vmatpush1.msra.mxu0 0.0
        %6529 = vmatprep.subr.mxu0 0.0
        %6530 = vmatpush1.msra.mxu0 0.0
        %6531 = vmatprep.subr.mxu0 0.0
        %6532 = vmatpush1.msra.mxu0 0.0
        %6533 = vmatprep.subr.mxu0 0.0
        %6534 = vmatpush1.msra.mxu0 0.0
        %6535 = vmatprep.subr.mxu0 0.0
        %6536 = vmatpush1.msra.mxu0 0.0
        %6537 = vmatprep.subr.mxu0 0.0
        %6538 = vmatpush1.msra.mxu0 0.0
        %6539 = vmatprep.subr.mxu0 0.0
        %6540 = vmatpush1.msra.mxu0 0.0
        %6541 = vmatprep.subr.mxu0 0.0
        %6542 = vmatpush1.msra.mxu0 0.0
        %6543 = vmatprep.subr.mxu0 0.0
        %6544 = vmatpush1.msra.mxu0 0.0
        %6545 = vmatprep.subr.mxu0 0.0
        %6546 = vmatpush1.msra.mxu0 0.0
        %6547 = vmatprep.subr.mxu0 0.0
        %6548 = vmatpush1.msra.mxu0 0.0
        %6549 = vmatprep.subr.mxu0 0.0
        %6550 = vmatpush1.msra.mxu0 0.0
        %6551 = vmatprep.subr.mxu0 0.0
        %6552 = vmatpush1.msra.mxu0 0.0
        %6553 = vmatprep.subr.mxu0 0.0
        %6554 = vmatpush1.msra.mxu0 0.0
        %6555 = vmatprep.subr.mxu0 0.0
        %6556 = vmatpush1.msra.mxu0 0.0
        %6557 = vmatprep.subr.mxu0 0.0
        %6558 = vmatpush1.msra.mxu0 0.0
        %6559 = vmatprep.subr.mxu0 0.0
        %6560 = vmatpush1.msra.mxu0 0.0
        %6561 = vmatprep.subr.mxu0 0.0
        %6562 = vmatpush1.msra.mxu0 0.0
        %6563 = vmatprep.subr.mxu0 0.0
        %6564 = vmatpush1.msra.mxu0 0.0
        %6565 = vmatprep.mubr.f32.mxu0 0.0
        %v6566 = vand.u32 %v6264, 4294901760
        %v6567 = vsub.f32 %v6264, %v6566
        %6568 = vmatmul.mubr.f32.gmra.mrb[0].mxu0 %v6567
        %v6569 = vpop.f32.mrb[0].mxu0
        %v6570 = vadd.f32 %v6472, %v6569
        %v6571 = vpop.f32.mrb[0].mxu0
        %6572 = vmatprep.mubr.f32.mxu0 0.0
        %v6573 = vand.u32 %v6267, 4294901760
        %v6574 = vsub.f32 %v6267, %v6573
        %6575 = vmatmul.mubr.f32.gmra.mrb[0].mxu0 %v6574
        %v6576 = vpop.f32.mrb[0].mxu0
        %v6577 = vadd.f32 %v6478, %v6576
        %v6578 = vpop.f32.mrb[0].mxu0
        %6579 = vmatprep.mubr.f32.mxu0 0.0
        %v6580 = vand.u32 %v6270, 4294901760
        %v6581 = vsub.f32 %v6270, %v6580
        %6582 = vmatmul.mubr.f32.gmra.mrb[0].mxu0 %v6581
        %v6583 = vpop.f32.mrb[0].mxu0
        %v6584 = vadd.f32 %v6484, %v6583
        %v6585 = vpop.f32.mrb[0].mxu0
        %6586 = vmatprep.mubr.f32.mxu0 0.0
        %v6587 = vand.u32 %v6273, 4294901760
        %v6588 = vsub.f32 %v6273, %v6587
        %6589 = vmatmul.mubr.f32.gmra.mrb[0].mxu0 %v6588
        %v6590 = vpop.f32.mrb[0].mxu0
        %v6591 = vadd.f32 %v6490, %v6590
        %v6592 = vpop.f32.mrb[0].mxu0
        %6593 = vdwg.mxu0
        %6594 = vmatprep.subr.mxu0 0.0
        %v6595 = vand.u32 %v6231, 4294901760
        %6596 = vmatpush1.msra.mxu0 %v6595
        %6597 = vmatprep.subr.mxu0 0.0
        %v6598 = vand.u32 %v6232, 4294901760
        %6599 = vmatpush1.msra.mxu0 %v6598
        %6600 = vmatprep.subr.mxu0 0.0
        %v6601 = vand.u32 %v6233, 4294901760
        %6602 = vmatpush1.msra.mxu0 %v6601
        %6603 = vmatprep.subr.mxu0 0.0
        %v6604 = vand.u32 %v6234, 4294901760
        %6605 = vmatpush1.msra.mxu0 %v6604
        %6606 = vmatprep.subr.mxu0 0.0
        %6607 = vmatpush1.msra.mxu0 0.0
        %6608 = vmatprep.subr.mxu0 0.0
        %6609 = vmatpush1.msra.mxu0 0.0
        %6610 = vmatprep.subr.mxu0 0.0
        %6611 = vmatpush1.msra.mxu0 0.0
        %6612 = vmatprep.subr.mxu0 0.0
        %6613 = vmatpush1.msra.mxu0 0.0
        %6614 = vmatprep.subr.mxu0 0.0
        %6615 = vmatpush1.msra.mxu0 0.0
        %6616 = vmatprep.subr.mxu0 0.0
        %6617 = vmatpush1.msra.mxu0 0.0
        %6618 = vmatprep.subr.mxu0 0.0
        %6619 = vmatpush1.msra.mxu0 0.0
        %6620 = vmatprep.subr.mxu0 0.0
        %6621 = vmatpush1.msra.mxu0 0.0
        %6622 = vmatprep.subr.mxu0 0.0
        %6623 = vmatpush1.msra.mxu0 0.0
        %6624 = vmatprep.subr.mxu0 0.0
        %6625 = vmatpush1.msra.mxu0 0.0
        %6626 = vmatprep.subr.mxu0 0.0
        %6627 = vmatpush1.msra.mxu0 0.0
        %6628 = vmatprep.subr.mxu0 0.0
        %6629 = vmatpush1.msra.mxu0 0.0
        %6630 = vmatprep.subr.mxu0 0.0
        %6631 = vmatpush1.msra.mxu0 0.0
        %6632 = vmatprep.subr.mxu0 0.0
        %6633 = vmatpush1.msra.mxu0 0.0
        %6634 = vmatprep.subr.mxu0 0.0
        %6635 = vmatpush1.msra.mxu0 0.0
        %6636 = vmatprep.subr.mxu0 0.0
        %6637 = vmatpush1.msra.mxu0 0.0
        %6638 = vmatprep.subr.mxu0 0.0
        %6639 = vmatpush1.msra.mxu0 0.0
        %6640 = vmatprep.subr.mxu0 0.0
        %6641 = vmatpush1.msra.mxu0 0.0
        %6642 = vmatprep.subr.mxu0 0.0
        %6643 = vmatpush1.msra.mxu0 0.0
        %6644 = vmatprep.subr.mxu0 0.0
        %6645 = vmatpush1.msra.mxu0 0.0
        %6646 = vmatprep.subr.mxu0 0.0
        %6647 = vmatpush1.msra.mxu0 0.0
        %6648 = vmatprep.subr.mxu0 0.0
        %6649 = vmatpush1.msra.mxu0 0.0
        %6650 = vmatprep.subr.mxu0 0.0
        %6651 = vmatpush1.msra.mxu0 0.0
        %6652 = vmatprep.subr.mxu0 0.0
        %6653 = vmatpush1.msra.mxu0 0.0
        %6654 = vmatprep.subr.mxu0 0.0
        %6655 = vmatpush1.msra.mxu0 0.0
        %6656 = vmatprep.subr.mxu0 0.0
        %6657 = vmatpush1.msra.mxu0 0.0
        %6658 = vmatprep.subr.mxu0 0.0
        %6659 = vmatpush1.msra.mxu0 0.0
        %6660 = vmatprep.subr.mxu0 0.0
        %6661 = vmatpush1.msra.mxu0 0.0
        %6662 = vmatprep.mubr.f32.mxu0 0.0
        %v6663 = vand.u32 %v6264, 4294901760
        %v6664 = vsub.f32 %v6264, %v6663
        %v6665 = vand.u32 %v6664, 4294901760
        %6666 = vmatmul.mubr.f32.gmra.mrb[0].mxu0 %v6665
        %v6667 = vpop.f32.mrb[0].mxu0
        %v6668 = vadd.f32 %v6570, %v6667
        %v6669 = vpop.f32.mrb[0].mxu0
        %6670 = vmatprep.mubr.f32.mxu0 0.0
        %v6671 = vand.u32 %v6267, 4294901760
        %v6672 = vsub.f32 %v6267, %v6671
        %v6673 = vand.u32 %v6672, 4294901760
        %6674 = vmatmul.mubr.f32.gmra.mrb[0].mxu0 %v6673
        %v6675 = vpop.f32.mrb[0].mxu0
        %v6676 = vadd.f32 %v6577, %v6675
        %v6677 = vpop.f32.mrb[0].mxu0
        %6678 = vmatprep.mubr.f32.mxu0 0.0
        %v6679 = vand.u32 %v6270, 4294901760
        %v6680 = vsub.f32 %v6270, %v6679
        %v6681 = vand.u32 %v6680, 4294901760
        %6682 = vmatmul.mubr.f32.gmra.mrb[0].mxu0 %v6681
        %v6683 = vpop.f32.mrb[0].mxu0
        %v6684 = vadd.f32 %v6584, %v6683
        %v6685 = vpop.f32.mrb[0].mxu0
        %6686 = vmatprep.mubr.f32.mxu0 0.0
        %v6687 = vand.u32 %v6273, 4294901760
        %v6688 = vsub.f32 %v6273, %v6687
        %v6689 = vand.u32 %v6688, 4294901760
        %6690 = vmatmul.mubr.f32.gmra.mrb[0].mxu0 %v6689
        %v6691 = vpop.f32.mrb[0].mxu0
        %v6692 = vadd.f32 %v6591, %v6691
        %v6693 = vpop.f32.mrb[0].mxu0
        %6694 = vdwg.mxu0
        %6695 = vmatprep.subr.mxu0 0.0
        %v6696 = vand.u32 %v6231, 4294901760
        %v6697 = vsub.f32 %v6231, %v6696
        %v6698 = vand.u32 %v6697, 4294901760
        %6699 = vmatpush1.msra.mxu0 %v6698
        %6700 = vmatprep.subr.mxu0 0.0
        %v6701 = vand.u32 %v6232, 4294901760
        %v6702 = vsub.f32 %v6232, %v6701
        %v6703 = vand.u32 %v6702, 4294901760
        %6704 = vmatpush1.msra.mxu0 %v6703
        %6705 = vmatprep.subr.mxu0 0.0
        %v6706 = vand.u32 %v6233, 4294901760
        %v6707 = vsub.f32 %v6233, %v6706
        %v6708 = vand.u32 %v6707, 4294901760
        %6709 = vmatpush1.msra.mxu0 %v6708
        %6710 = vmatprep.subr.mxu0 0.0
        %v6711 = vand.u32 %v6234, 4294901760
        %v6712 = vsub.f32 %v6234, %v6711
        %v6713 = vand.u32 %v6712, 4294901760
        %6714 = vmatpush1.msra.mxu0 %v6713
        %6715 = vmatprep.subr.mxu0 0.0
        %6716 = vmatpush1.msra.mxu0 0.0
        %6717 = vmatprep.subr.mxu0 0.0
        %6718 = vmatpush1.msra.mxu0 0.0
        %6719 = vmatprep.subr.mxu0 0.0
        %6720 = vmatpush1.msra.mxu0 0.0
        %6721 = vmatprep.subr.mxu0 0.0
        %6722 = vmatpush1.msra.mxu0 0.0
        %6723 = vmatprep.subr.mxu0 0.0
        %6724 = vmatpush1.msra.mxu0 0.0
        %6725 = vmatprep.subr.mxu0 0.0
        %6726 = vmatpush1.msra.mxu0 0.0
        %6727 = vmatprep.subr.mxu0 0.0
        %6728 = vmatpush1.msra.mxu0 0.0
        %6729 = vmatprep.subr.mxu0 0.0
        %6730 = vmatpush1.msra.mxu0 0.0
        %6731 = vmatprep.subr.mxu0 0.0
        %6732 = vmatpush1.msra.mxu0 0.0
        %6733 = vmatprep.subr.mxu0 0.0
        %6734 = vmatpush1.msra.mxu0 0.0
        %6735 = vmatprep.subr.mxu0 0.0
        %6736 = vmatpush1.msra.mxu0 0.0
        %6737 = vmatprep.subr.mxu0 0.0
        %6738 = vmatpush1.msra.mxu0 0.0
        %6739 = vmatprep.subr.mxu0 0.0
        %6740 = vmatpush1.msra.mxu0 0.0
        %6741 = vmatprep.subr.mxu0 0.0
        %6742 = vmatpush1.msra.mxu0 0.0
        %6743 = vmatprep.subr.mxu0 0.0
        %6744 = vmatpush1.msra.mxu0 0.0
        %6745 = vmatprep.subr.mxu0 0.0
        %6746 = vmatpush1.msra.mxu0 0.0
        %6747 = vmatprep.subr.mxu0 0.0
        %6748 = vmatpush1.msra.mxu0 0.0
        %6749 = vmatprep.subr.mxu0 0.0
        %6750 = vmatpush1.msra.mxu0 0.0
        %6751 = vmatprep.subr.mxu0 0.0
        %6752 = vmatpush1.msra.mxu0 0.0
        %6753 = vmatprep.subr.mxu0 0.0
        %6754 = vmatpush1.msra.mxu0 0.0
        %6755 = vmatprep.subr.mxu0 0.0
        %6756 = vmatpush1.msra.mxu0 0.0
        %6757 = vmatprep.subr.mxu0 0.0
        %6758 = vmatpush1.msra.mxu0 0.0
        %6759 = vmatprep.subr.mxu0 0.0
        %6760 = vmatpush1.msra.mxu0 0.0
        %6761 = vmatprep.subr.mxu0 0.0
        %6762 = vmatpush1.msra.mxu0 0.0
        %6763 = vmatprep.subr.mxu0 0.0
        %6764 = vmatpush1.msra.mxu0 0.0
        %6765 = vmatprep.subr.mxu0 0.0
        %6766 = vmatpush1.msra.mxu0 0.0
        %6767 = vmatprep.subr.mxu0 0.0
        %6768 = vmatpush1.msra.mxu0 0.0
        %6769 = vmatprep.subr.mxu0 0.0
        %6770 = vmatpush1.msra.mxu0 0.0
        %6771 = vmatprep.mubr.f32.mxu0 0.0
        %v6772 = vand.u32 %v6264, 4294901760
        %6773 = vmatmul.mubr.f32.gmra.mrb[0].mxu0 %v6772
        %v6774 = vpop.f32.mrb[0].mxu0
        %v6775 = vadd.f32 %v6668, %v6774
        %v6776 = vpop.f32.mrb[0].mxu0
        %6777 = vmatprep.mubr.f32.mxu0 0.0
        %v6778 = vand.u32 %v6267, 4294901760
        %6779 = vmatmul.mubr.f32.gmra.mrb[0].mxu0 %v6778
        %v6780 = vpop.f32.mrb[0].mxu0
        %v6781 = vadd.f32 %v6676, %v6780
        %v6782 = vpop.f32.mrb[0].mxu0
        %6783 = vmatprep.mubr.f32.mxu0 0.0
        %v6784 = vand.u32 %v6270, 4294901760
        %6785 = vmatmul.mubr.f32.gmra.mrb[0].mxu0 %v6784
        %v6786 = vpop.f32.mrb[0].mxu0
        %v6787 = vadd.f32 %v6684, %v6786
        %v6788 = vpop.f32.mrb[0].mxu0
        %6789 = vmatprep.mubr.f32.mxu0 0.0
        %v6790 = vand.u32 %v6273, 4294901760
        %6791 = vmatmul.mubr.f32.gmra.mrb[0].mxu0 %v6790
        %v6792 = vpop.f32.mrb[0].mxu0
        %v6793 = vadd.f32 %v6692, %v6792
        %v6794 = vpop.f32.mrb[0].mxu0
        %6795 = vdwg.mxu0
        %6796 = vmatprep.subr.mxu0 0.0
        %v6797 = vand.u32 %v6231, 4294901760
        %6798 = vmatpush1.msra.mxu0 %v6797
        %6799 = vmatprep.subr.mxu0 0.0
        %v6800 = vand.u32 %v6232, 4294901760
        %6801 = vmatpush1.msra.mxu0 %v6800
        %6802 = vmatprep.subr.mxu0 0.0
        %v6803 = vand.u32 %v6233, 4294901760
        %6804 = vmatpush1.msra.mxu0 %v6803
        %6805 = vmatprep.subr.mxu0 0.0
        %v6806 = vand.u32 %v6234, 4294901760
        %6807 = vmatpush1.msra.mxu0 %v6806
        %6808 = vmatprep.subr.mxu0 0.0
        %6809 = vmatpush1.msra.mxu0 0.0
        %6810 = vmatprep.subr.mxu0 0.0
        %6811 = vmatpush1.msra.mxu0 0.0
        %6812 = vmatprep.subr.mxu0 0.0
        %6813 = vmatpush1.msra.mxu0 0.0
        %6814 = vmatprep.subr.mxu0 0.0
        %6815 = vmatpush1.msra.mxu0 0.0
        %6816 = vmatprep.subr.mxu0 0.0
        %6817 = vmatpush1.msra.mxu0 0.0
        %6818 = vmatprep.subr.mxu0 0.0
        %6819 = vmatpush1.msra.mxu0 0.0
        %6820 = vmatprep.subr.mxu0 0.0
        %6821 = vmatpush1.msra.mxu0 0.0
        %6822 = vmatprep.subr.mxu0 0.0
        %6823 = vmatpush1.msra.mxu0 0.0
        %6824 = vmatprep.subr.mxu0 0.0
        %6825 = vmatpush1.msra.mxu0 0.0
        %6826 = vmatprep.subr.mxu0 0.0
        %6827 = vmatpush1.msra.mxu0 0.0
        %6828 = vmatprep.subr.mxu0 0.0
        %6829 = vmatpush1.msra.mxu0 0.0
        %6830 = vmatprep.subr.mxu0 0.0
        %6831 = vmatpush1.msra.mxu0 0.0
        %6832 = vmatprep.subr.mxu0 0.0
        %6833 = vmatpush1.msra.mxu0 0.0
        %6834 = vmatprep.subr.mxu0 0.0
        %6835 = vmatpush1.msra.mxu0 0.0
        %6836 = vmatprep.subr.mxu0 0.0
        %6837 = vmatpush1.msra.mxu0 0.0
        %6838 = vmatprep.subr.mxu0 0.0
        %6839 = vmatpush1.msra.mxu0 0.0
        %6840 = vmatprep.subr.mxu0 0.0
        %6841 = vmatpush1.msra.mxu0 0.0
        %6842 = vmatprep.subr.mxu0 0.0
        %6843 = vmatpush1.msra.mxu0 0.0
        %6844 = vmatprep.subr.mxu0 0.0
        %6845 = vmatpush1.msra.mxu0 0.0
        %6846 = vmatprep.subr.mxu0 0.0
        %6847 = vmatpush1.msra.mxu0 0.0
        %6848 = vmatprep.subr.mxu0 0.0
        %6849 = vmatpush1.msra.mxu0 0.0
        %6850 = vmatprep.subr.mxu0 0.0
        %6851 = vmatpush1.msra.mxu0 0.0
        %6852 = vmatprep.subr.mxu0 0.0
        %6853 = vmatpush1.msra.mxu0 0.0
        %6854 = vmatprep.subr.mxu0 0.0
        %6855 = vmatpush1.msra.mxu0 0.0
        %6856 = vmatprep.subr.mxu0 0.0
        %6857 = vmatpush1.msra.mxu0 0.0
        %6858 = vmatprep.subr.mxu0 0.0
        %6859 = vmatpush1.msra.mxu0 0.0
        %6860 = vmatprep.subr.mxu0 0.0
        %6861 = vmatpush1.msra.mxu0 0.0
        %6862 = vmatprep.subr.mxu0 0.0
        %6863 = vmatpush1.msra.mxu0 0.0
        %6864 = vmatprep.mubr.f32.mxu0 0.0
        %v6865 = vand.u32 %v6264, 4294901760
        %6866 = vmatmul.mubr.f32.gmra.mrb[0].mxu0 %v6865
        %v6867 = vpop.f32.mrb[0].mxu0
        %v6868 = vadd.f32 %v6775, %v6867
        %v6869 = vpop.f32.mrb[0].mxu0
        %6870 = vmatprep.mubr.f32.mxu0 0.0
        %v6871 = vand.u32 %v6267, 4294901760
        %6872 = vmatmul.mubr.f32.gmra.mrb[0].mxu0 %v6871
        %v6873 = vpop.f32.mrb[0].mxu0
        %v6874 = vadd.f32 %v6781, %v6873
        %v6875 = vpop.f32.mrb[0].mxu0
        %6876 = vmatprep.mubr.f32.mxu0 0.0
        %v6877 = vand.u32 %v6270, 4294901760
        %6878 = vmatmul.mubr.f32.gmra.mrb[0].mxu0 %v6877
        %v6879 = vpop.f32.mrb[0].mxu0
        %v6880 = vadd.f32 %v6787, %v6879
        %v6881 = vpop.f32.mrb[0].mxu0
        %6882 = vmatprep.mubr.f32.mxu0 0.0
        %v6883 = vand.u32 %v6273, 4294901760
        %6884 = vmatmul.mubr.f32.gmra.mrb[0].mxu0 %v6883
        %v6885 = vpop.f32.mrb[0].mxu0
        %v6886 = vadd.f32 %v6793, %v6885
        %v6887 = vpop.f32.mrb[0].mxu0
        %6888 = vdwg.mxu0
        %v6889 = vmax.f32 %v6868, 0.0
        %v6890 = vmax.f32 %v6874, 0.0
        %v6891 = vmax.f32 %v6880, 0.0
        %v6892 = vmax.f32 %v6886, 0.0
        %6894 = vrot.lane.b32.xlu0 %v6890, 36
        %v6895 = vpop.permute.xlu0 %6894
        %6898 = vrot.lane.b32.xlu0 %v6891, 72
        %v6899 = vpop.permute.xlu0 %6898
        %6902 = vrot.lane.b32.xlu0 %v6892, 108
        %v6903 = vpop.permute.xlu0 %6902
        %vm6905 = vcmask 293888
        %v6906 = vsel %vm6905, %v6889, %v6895
        %vm6907 = vcmask 588800
        %v6908 = vsel %vm6907, %v6906, %v6899
        %vm6909 = vcmask 883712
        %v6910 = vsel %vm6909, %v6908, %v6903
        %v6911 = vld [vmem:[%s16] sm:$0xff]
        %v6912 = vld [vmem:[%s16 + $0x8] sm:$0xff]
        %v6913 = vld [vmem:[%s16 + $0x10] sm:$0xff]
        %v6914 = vld [vmem:[%s16 + $0x18] sm:$0xff]
        %v6915 = vld [vmem:[%s16 + $0x20] sm:$0xff]
        %v6916 = vld [vmem:[%s16 + $0x28] sm:$0xff]
        %v6917 = vld [vmem:[%s16 + $0x30] sm:$0xff]
        %v6918 = vld [vmem:[%s16 + $0x38] sm:$0xff]
        %v6919 = vld [vmem:[%s16 + $0x40] sm:$0xff]
        %v6920 = vld [vmem:[%s16 + $0x48] sm:$0xff]
        %v6921 = vld [vmem:[%s16 + $0x50] sm:$0xff]
        %v6922 = vld [vmem:[%s16 + $0x58] sm:$0xff]
        %v6923 = vld [vmem:[%s16 + $0x60] sm:$0xff]
        %v6924 = vld [vmem:[%s16 + $0x68] sm:$0xff]
        %v6925 = vld [vmem:[%s16 + $0x70] sm:$0xff]
        %v6926 = vld [vmem:[%s16 + $0x78] sm:$0xff]
        %v6927 = vld [vmem:[%s16 + $0x80] sm:$0xff]
        %v6928 = vld [vmem:[%s16 + $0x88] sm:$0xff]
        %v6929 = vsel %vm752, %v6903, 0
        %6931 = vmatprep.subr.mxu0 0.0
        %v6932 = vand.u32 %v6911, 4294901760
        %6933 = vmatpush1.msra.mxu0 %v6932
        %6934 = vmatprep.subr.mxu0 0.0
        %v6935 = vand.u32 %v6912, 4294901760
        %6936 = vmatpush1.msra.mxu0 %v6935
        %6937 = vmatprep.subr.mxu0 0.0
        %v6938 = vand.u32 %v6913, 4294901760
        %6939 = vmatpush1.msra.mxu0 %v6938
        %6940 = vmatprep.subr.mxu0 0.0
        %v6941 = vand.u32 %v6914, 4294901760
        %6942 = vmatpush1.msra.mxu0 %v6941
        %6943 = vmatprep.subr.mxu0 0.0
        %v6944 = vand.u32 %v6915, 4294901760
        %6945 = vmatpush1.msra.mxu0 %v6944
        %6946 = vmatprep.subr.mxu0 0.0
        %v6947 = vand.u32 %v6916, 4294901760
        %6948 = vmatpush1.msra.mxu0 %v6947
        %6949 = vmatprep.subr.mxu0 0.0
        %v6950 = vand.u32 %v6917, 4294901760
        %6951 = vmatpush1.msra.mxu0 %v6950
        %6952 = vmatprep.subr.mxu0 0.0
        %v6953 = vand.u32 %v6918, 4294901760
        %6954 = vmatpush1.msra.mxu0 %v6953
        %6955 = vmatprep.subr.mxu0 0.0
        %v6956 = vand.u32 %v6919, 4294901760
        %6957 = vmatpush1.msra.mxu0 %v6956
        %6958 = vmatprep.subr.mxu0 0.0
        %v6959 = vand.u32 %v6920, 4294901760
        %6960 = vmatpush1.msra.mxu0 %v6959
        %6961 = vmatprep.subr.mxu0 0.0
        %v6962 = vand.u32 %v6921, 4294901760
        %6963 = vmatpush1.msra.mxu0 %v6962
        %6964 = vmatprep.subr.mxu0 0.0
        %v6965 = vand.u32 %v6922, 4294901760
        %6966 = vmatpush1.msra.mxu0 %v6965
        %6967 = vmatprep.subr.mxu0 0.0
        %v6968 = vand.u32 %v6923, 4294901760
        %6969 = vmatpush1.msra.mxu0 %v6968
        %6970 = vmatprep.subr.mxu0 0.0
        %v6971 = vand.u32 %v6924, 4294901760
        %6972 = vmatpush1.msra.mxu0 %v6971
        %6973 = vmatprep.subr.mxu0 0.0
        %v6974 = vand.u32 %v6925, 4294901760
        %6975 = vmatpush1.msra.mxu0 %v6974
        %6976 = vmatprep.subr.mxu0 0.0
        %v6977 = vand.u32 %v6926, 4294901760
        %6978 = vmatpush1.msra.mxu0 %v6977
        %6979 = vmatprep.subr.mxu0 0.0
        %v6980 = vand.u32 %v6927, 4294901760
        %6981 = vmatpush1.msra.mxu0 %v6980
        %6982 = vmatprep.subr.mxu0 0.0
        %v6983 = vand.u32 %v6928, 4294901760
        %6984 = vmatpush1.msra.mxu0 %v6983
        %6985 = vmatprep.subr.mxu0 0.0
        %6986 = vmatpush1.msra.mxu0 0.0
        %6987 = vmatprep.subr.mxu0 0.0
        %6988 = vmatpush1.msra.mxu0 0.0
        %6989 = vmatprep.subr.mxu0 0.0
        %6990 = vmatpush1.msra.mxu0 0.0
        %6991 = vmatprep.subr.mxu0 0.0
        %6992 = vmatpush1.msra.mxu0 0.0
        %6993 = vmatprep.subr.mxu0 0.0
        %6994 = vmatpush1.msra.mxu0 0.0
        %6995 = vmatprep.subr.mxu0 0.0
        %6996 = vmatpush1.msra.mxu0 0.0
        %6997 = vmatprep.subr.mxu0 0.0
        %6998 = vmatpush1.msra.mxu0 0.0
        %6999 = vmatprep.subr.mxu0 0.0
        %7000 = vmatpush1.msra.mxu0 0.0
        %7001 = vmatprep.subr.mxu0 0.0
        %7002 = vmatpush1.msra.mxu0 0.0
        %7003 = vmatprep.subr.mxu0 0.0
        %7004 = vmatpush1.msra.mxu0 0.0
        %7005 = vmatprep.subr.mxu0 0.0
        %7006 = vmatpush1.msra.mxu0 0.0
        %7007 = vmatprep.subr.mxu0 0.0
        %7008 = vmatpush1.msra.mxu0 0.0
        %7009 = vmatprep.subr.mxu0 0.0
        %7010 = vmatpush1.msra.mxu0 0.0
        %7011 = vmatprep.subr.mxu0 0.0
        %7012 = vmatpush1.msra.mxu0 0.0
        %v7013 = vand.u32 %v6929, 4294901760
        %v7014 = vsub.f32 %v6929, %v7013
        %v7015 = vand.u32 %v7014, 4294901760
        %v7016 = vsub.f32 %v7014, %v7015
        %v7017 = vand.u32 %v7016, 4294901760
        %7018 = vmatprep.mubr.f32.mxu0 %v7017
        %v7019 = vand.u32 %v6910, 4294901760
        %v7020 = vsub.f32 %v6910, %v7019
        %v7021 = vand.u32 %v7020, 4294901760
        %v7022 = vsub.f32 %v7020, %v7021
        %v7023 = vand.u32 %v7022, 4294901760
        %7024 = vmatmul.mubr.f32.gmra.mrb[0].mxu0 %v7023
        %v7025 = vpop.f32.mrb[0].mxu0
        %v7026 = vadd.f32 0.0, %v7025
        %v7027 = vpop.f32.mrb[0].mxu0
        %7028 = vdwg.mxu0
        %7029 = vmatprep.subr.mxu0 0.0
        %v7030 = vand.u32 %v6911, 4294901760
        %v7031 = vsub.f32 %v6911, %v7030
        %v7032 = vand.u32 %v7031, 4294901760
        %v7033 = vsub.f32 %v7031, %v7032
        %v7034 = vand.u32 %v7033, 4294901760
        %7035 = vmatpush1.msra.mxu0 %v7034
        %7036 = vmatprep.subr.mxu0 0.0
        %v7037 = vand.u32 %v6912, 4294901760
        %v7038 = vsub.f32 %v6912, %v7037
        %v7039 = vand.u32 %v7038, 4294901760
        %v7040 = vsub.f32 %v7038, %v7039
        %v7041 = vand.u32 %v7040, 4294901760
        %7042 = vmatpush1.msra.mxu0 %v7041
        %7043 = vmatprep.subr.mxu0 0.0
        %v7044 = vand.u32 %v6913, 4294901760
        %v7045 = vsub.f32 %v6913, %v7044
        %v7046 = vand.u32 %v7045, 4294901760
        %v7047 = vsub.f32 %v7045, %v7046
        %v7048 = vand.u32 %v7047, 4294901760
        %7049 = vmatpush1.msra.mxu0 %v7048
        %7050 = vmatprep.subr.mxu0 0.0
        %v7051 = vand.u32 %v6914, 4294901760
        %v7052 = vsub.f32 %v6914, %v7051
        %v7053 = vand.u32 %v7052, 4294901760
        %v7054 = vsub.f32 %v7052, %v7053
        %v7055 = vand.u32 %v7054, 4294901760
        %7056 = vmatpush1.msra.mxu0 %v7055
        %7057 = vmatprep.subr.mxu0 0.0
        %v7058 = vand.u32 %v6915, 4294901760
        %v7059 = vsub.f32 %v6915, %v7058
        %v7060 = vand.u32 %v7059, 4294901760
        %v7061 = vsub.f32 %v7059, %v7060
        %v7062 = vand.u32 %v7061, 4294901760
        %7063 = vmatpush1.msra.mxu0 %v7062
        %7064 = vmatprep.subr.mxu0 0.0
        %v7065 = vand.u32 %v6916, 4294901760
        %v7066 = vsub.f32 %v6916, %v7065
        %v7067 = vand.u32 %v7066, 4294901760
        %v7068 = vsub.f32 %v7066, %v7067
        %v7069 = vand.u32 %v7068, 4294901760
        %7070 = vmatpush1.msra.mxu0 %v7069
        %7071 = vmatprep.subr.mxu0 0.0
        %v7072 = vand.u32 %v6917, 4294901760
        %v7073 = vsub.f32 %v6917, %v7072
        %v7074 = vand.u32 %v7073, 4294901760
        %v7075 = vsub.f32 %v7073, %v7074
        %v7076 = vand.u32 %v7075, 4294901760
        %7077 = vmatpush1.msra.mxu0 %v7076
        %7078 = vmatprep.subr.mxu0 0.0
        %v7079 = vand.u32 %v6918, 4294901760
        %v7080 = vsub.f32 %v6918, %v7079
        %v7081 = vand.u32 %v7080, 4294901760
        %v7082 = vsub.f32 %v7080, %v7081
        %v7083 = vand.u32 %v7082, 4294901760
        %7084 = vmatpush1.msra.mxu0 %v7083
        %7085 = vmatprep.subr.mxu0 0.0
        %v7086 = vand.u32 %v6919, 4294901760
        %v7087 = vsub.f32 %v6919, %v7086
        %v7088 = vand.u32 %v7087, 4294901760
        %v7089 = vsub.f32 %v7087, %v7088
        %v7090 = vand.u32 %v7089, 4294901760
        %7091 = vmatpush1.msra.mxu0 %v7090
        %7092 = vmatprep.subr.mxu0 0.0
        %v7093 = vand.u32 %v6920, 4294901760
        %v7094 = vsub.f32 %v6920, %v7093
        %v7095 = vand.u32 %v7094, 4294901760
        %v7096 = vsub.f32 %v7094, %v7095
        %v7097 = vand.u32 %v7096, 4294901760
        %7098 = vmatpush1.msra.mxu0 %v7097
        %7099 = vmatprep.subr.mxu0 0.0
        %v7100 = vand.u32 %v6921, 4294901760
        %v7101 = vsub.f32 %v6921, %v7100
        %v7102 = vand.u32 %v7101, 4294901760
        %v7103 = vsub.f32 %v7101, %v7102
        %v7104 = vand.u32 %v7103, 4294901760
        %7105 = vmatpush1.msra.mxu0 %v7104
        %7106 = vmatprep.subr.mxu0 0.0
        %v7107 = vand.u32 %v6922, 4294901760
        %v7108 = vsub.f32 %v6922, %v7107
        %v7109 = vand.u32 %v7108, 4294901760
        %v7110 = vsub.f32 %v7108, %v7109
        %v7111 = vand.u32 %v7110, 4294901760
        %7112 = vmatpush1.msra.mxu0 %v7111
        %7113 = vmatprep.subr.mxu0 0.0
        %v7114 = vand.u32 %v6923, 4294901760
        %v7115 = vsub.f32 %v6923, %v7114
        %v7116 = vand.u32 %v7115, 4294901760
        %v7117 = vsub.f32 %v7115, %v7116
        %v7118 = vand.u32 %v7117, 4294901760
        %7119 = vmatpush1.msra.mxu0 %v7118
        %7120 = vmatprep.subr.mxu0 0.0
        %v7121 = vand.u32 %v6924, 4294901760
        %v7122 = vsub.f32 %v6924, %v7121
        %v7123 = vand.u32 %v7122, 4294901760
        %v7124 = vsub.f32 %v7122, %v7123
        %v7125 = vand.u32 %v7124, 4294901760
        %7126 = vmatpush1.msra.mxu0 %v7125
        %7127 = vmatprep.subr.mxu0 0.0
        %v7128 = vand.u32 %v6925, 4294901760
        %v7129 = vsub.f32 %v6925, %v7128
        %v7130 = vand.u32 %v7129, 4294901760
        %v7131 = vsub.f32 %v7129, %v7130
        %v7132 = vand.u32 %v7131, 4294901760
        %7133 = vmatpush1.msra.mxu0 %v7132
        %7134 = vmatprep.subr.mxu0 0.0
        %v7135 = vand.u32 %v6926, 4294901760
        %v7136 = vsub.f32 %v6926, %v7135
        %v7137 = vand.u32 %v7136, 4294901760
        %v7138 = vsub.f32 %v7136, %v7137
        %v7139 = vand.u32 %v7138, 4294901760
        %7140 = vmatpush1.msra.mxu0 %v7139
        %7141 = vmatprep.subr.mxu0 0.0
        %v7142 = vand.u32 %v6927, 4294901760
        %v7143 = vsub.f32 %v6927, %v7142
        %v7144 = vand.u32 %v7143, 4294901760
        %v7145 = vsub.f32 %v7143, %v7144
        %v7146 = vand.u32 %v7145, 4294901760
        %7147 = vmatpush1.msra.mxu0 %v7146
        %7148 = vmatprep.subr.mxu0 0.0
        %v7149 = vand.u32 %v6928, 4294901760
        %v7150 = vsub.f32 %v6928, %v7149
        %v7151 = vand.u32 %v7150, 4294901760
        %v7152 = vsub.f32 %v7150, %v7151
        %v7153 = vand.u32 %v7152, 4294901760
        %7154 = vmatpush1.msra.mxu0 %v7153
        %7155 = vmatprep.subr.mxu0 0.0
        %7156 = vmatpush1.msra.mxu0 0.0
        %7157 = vmatprep.subr.mxu0 0.0
        %7158 = vmatpush1.msra.mxu0 0.0
        %7159 = vmatprep.subr.mxu0 0.0
        %7160 = vmatpush1.msra.mxu0 0.0
        %7161 = vmatprep.subr.mxu0 0.0
        %7162 = vmatpush1.msra.mxu0 0.0
        %7163 = vmatprep.subr.mxu0 0.0
        %7164 = vmatpush1.msra.mxu0 0.0
        %7165 = vmatprep.subr.mxu0 0.0
        %7166 = vmatpush1.msra.mxu0 0.0
        %7167 = vmatprep.subr.mxu0 0.0
        %7168 = vmatpush1.msra.mxu0 0.0
        %7169 = vmatprep.subr.mxu0 0.0
        %7170 = vmatpush1.msra.mxu0 0.0
        %7171 = vmatprep.subr.mxu0 0.0
        %7172 = vmatpush1.msra.mxu0 0.0
        %7173 = vmatprep.subr.mxu0 0.0
        %7174 = vmatpush1.msra.mxu0 0.0
        %7175 = vmatprep.subr.mxu0 0.0
        %7176 = vmatpush1.msra.mxu0 0.0
        %7177 = vmatprep.subr.mxu0 0.0
        %7178 = vmatpush1.msra.mxu0 0.0
        %7179 = vmatprep.subr.mxu0 0.0
        %7180 = vmatpush1.msra.mxu0 0.0
        %7181 = vmatprep.subr.mxu0 0.0
        %7182 = vmatpush1.msra.mxu0 0.0
        %v7183 = vand.u32 %v6929, 4294901760
        %7184 = vmatprep.mubr.f32.mxu0 %v7183
        %v7185 = vand.u32 %v6910, 4294901760
        %7186 = vmatmul.mubr.f32.gmra.mrb[0].mxu0 %v7185
        %v7187 = vpop.f32.mrb[0].mxu0
        %v7188 = vadd.f32 %v7026, %v7187
        %v7189 = vpop.f32.mrb[0].mxu0
        %7190 = vdwg.mxu0
        %7191 = vmatprep.subr.mxu0 0.0
        %v7192 = vand.u32 %v6911, 4294901760
        %v7193 = vsub.f32 %v6911, %v7192
        %7194 = vmatpush1.msra.mxu0 %v7193
        %7195 = vmatprep.subr.mxu0 0.0
        %v7196 = vand.u32 %v6912, 4294901760
        %v7197 = vsub.f32 %v6912, %v7196
        %7198 = vmatpush1.msra.mxu0 %v7197
        %7199 = vmatprep.subr.mxu0 0.0
        %v7200 = vand.u32 %v6913, 4294901760
        %v7201 = vsub.f32 %v6913, %v7200
        %7202 = vmatpush1.msra.mxu0 %v7201
        %7203 = vmatprep.subr.mxu0 0.0
        %v7204 = vand.u32 %v6914, 4294901760
        %v7205 = vsub.f32 %v6914, %v7204
        %7206 = vmatpush1.msra.mxu0 %v7205
        %7207 = vmatprep.subr.mxu0 0.0
        %v7208 = vand.u32 %v6915, 4294901760
        %v7209 = vsub.f32 %v6915, %v7208
        %7210 = vmatpush1.msra.mxu0 %v7209
        %7211 = vmatprep.subr.mxu0 0.0
        %v7212 = vand.u32 %v6916, 4294901760
        %v7213 = vsub.f32 %v6916, %v7212
        %7214 = vmatpush1.msra.mxu0 %v7213
        %7215 = vmatprep.subr.mxu0 0.0
        %v7216 = vand.u32 %v6917, 4294901760
        %v7217 = vsub.f32 %v6917, %v7216
        %7218 = vmatpush1.msra.mxu0 %v7217
        %7219 = vmatprep.subr.mxu0 0.0
        %v7220 = vand.u32 %v6918, 4294901760
        %v7221 = vsub.f32 %v6918, %v7220
        %7222 = vmatpush1.msra.mxu0 %v7221
        %7223 = vmatprep.subr.mxu0 0.0
        %v7224 = vand.u32 %v6919, 4294901760
        %v7225 = vsub.f32 %v6919, %v7224
        %7226 = vmatpush1.msra.mxu0 %v7225
        %7227 = vmatprep.subr.mxu0 0.0
        %v7228 = vand.u32 %v6920, 4294901760
        %v7229 = vsub.f32 %v6920, %v7228
        %7230 = vmatpush1.msra.mxu0 %v7229
        %7231 = vmatprep.subr.mxu0 0.0
        %v7232 = vand.u32 %v6921, 4294901760
        %v7233 = vsub.f32 %v6921, %v7232
        %7234 = vmatpush1.msra.mxu0 %v7233
        %7235 = vmatprep.subr.mxu0 0.0
        %v7236 = vand.u32 %v6922, 4294901760
        %v7237 = vsub.f32 %v6922, %v7236
        %7238 = vmatpush1.msra.mxu0 %v7237
        %7239 = vmatprep.subr.mxu0 0.0
        %v7240 = vand.u32 %v6923, 4294901760
        %v7241 = vsub.f32 %v6923, %v7240
        %7242 = vmatpush1.msra.mxu0 %v7241
        %7243 = vmatprep.subr.mxu0 0.0
        %v7244 = vand.u32 %v6924, 4294901760
        %v7245 = vsub.f32 %v6924, %v7244
        %7246 = vmatpush1.msra.mxu0 %v7245
        %7247 = vmatprep.subr.mxu0 0.0
        %v7248 = vand.u32 %v6925, 4294901760
        %v7249 = vsub.f32 %v6925, %v7248
        %7250 = vmatpush1.msra.mxu0 %v7249
        %7251 = vmatprep.subr.mxu0 0.0
        %v7252 = vand.u32 %v6926, 4294901760
        %v7253 = vsub.f32 %v6926, %v7252
        %7254 = vmatpush1.msra.mxu0 %v7253
        %7255 = vmatprep.subr.mxu0 0.0
        %v7256 = vand.u32 %v6927, 4294901760
        %v7257 = vsub.f32 %v6927, %v7256
        %7258 = vmatpush1.msra.mxu0 %v7257
        %7259 = vmatprep.subr.mxu0 0.0
        %v7260 = vand.u32 %v6928, 4294901760
        %v7261 = vsub.f32 %v6928, %v7260
        %7262 = vmatpush1.msra.mxu0 %v7261
        %7263 = vmatprep.subr.mxu0 0.0
        %7264 = vmatpush1.msra.mxu0 0.0
        %7265 = vmatprep.subr.mxu0 0.0
        %7266 = vmatpush1.msra.mxu0 0.0
        %7267 = vmatprep.subr.mxu0 0.0
        %7268 = vmatpush1.msra.mxu0 0.0
        %7269 = vmatprep.subr.mxu0 0.0
        %7270 = vmatpush1.msra.mxu0 0.0
        %7271 = vmatprep.subr.mxu0 0.0
        %7272 = vmatpush1.msra.mxu0 0.0
        %7273 = vmatprep.subr.mxu0 0.0
        %7274 = vmatpush1.msra.mxu0 0.0
        %7275 = vmatprep.subr.mxu0 0.0
        %7276 = vmatpush1.msra.mxu0 0.0
        %7277 = vmatprep.subr.mxu0 0.0
        %7278 = vmatpush1.msra.mxu0 0.0
        %7279 = vmatprep.subr.mxu0 0.0
        %7280 = vmatpush1.msra.mxu0 0.0
        %7281 = vmatprep.subr.mxu0 0.0
        %7282 = vmatpush1.msra.mxu0 0.0
        %7283 = vmatprep.subr.mxu0 0.0
        %7284 = vmatpush1.msra.mxu0 0.0
        %7285 = vmatprep.subr.mxu0 0.0
        %7286 = vmatpush1.msra.mxu0 0.0
        %7287 = vmatprep.subr.mxu0 0.0
        %7288 = vmatpush1.msra.mxu0 0.0
        %7289 = vmatprep.subr.mxu0 0.0
        %7290 = vmatpush1.msra.mxu0 0.0
        %v7291 = vand.u32 %v6929, 4294901760
        %v7292 = vsub.f32 %v6929, %v7291
        %7293 = vmatprep.mubr.f32.mxu0 %v7292
        %v7294 = vand.u32 %v6910, 4294901760
        %v7295 = vsub.f32 %v6910, %v7294
        %7296 = vmatmul.mubr.f32.gmra.mrb[0].mxu0 %v7295
        %v7297 = vpop.f32.mrb[0].mxu0
        %v7298 = vadd.f32 %v7188, %v7297
        %v7299 = vpop.f32.mrb[0].mxu0
        %7300 = vdwg.mxu0
        %7301 = vmatprep.subr.mxu0 0.0
        %v7302 = vand.u32 %v6911, 4294901760
        %7303 = vmatpush1.msra.mxu0 %v7302
        %7304 = vmatprep.subr.mxu0 0.0
        %v7305 = vand.u32 %v6912, 4294901760
        %7306 = vmatpush1.msra.mxu0 %v7305
        %7307 = vmatprep.subr.mxu0 0.0
        %v7308 = vand.u32 %v6913, 4294901760
        %7309 = vmatpush1.msra.mxu0 %v7308
        %7310 = vmatprep.subr.mxu0 0.0
        %v7311 = vand.u32 %v6914, 4294901760
        %7312 = vmatpush1.msra.mxu0 %v7311
        %7313 = vmatprep.subr.mxu0 0.0
        %v7314 = vand.u32 %v6915, 4294901760
        %7315 = vmatpush1.msra.mxu0 %v7314
        %7316 = vmatprep.subr.mxu0 0.0
        %v7317 = vand.u32 %v6916, 4294901760
        %7318 = vmatpush1.msra.mxu0 %v7317
        %7319 = vmatprep.subr.mxu0 0.0
        %v7320 = vand.u32 %v6917, 4294901760
        %7321 = vmatpush1.msra.mxu0 %v7320
        %7322 = vmatprep.subr.mxu0 0.0
        %v7323 = vand.u32 %v6918, 4294901760
        %7324 = vmatpush1.msra.mxu0 %v7323
        %7325 = vmatprep.subr.mxu0 0.0
        %v7326 = vand.u32 %v6919, 4294901760
        %7327 = vmatpush1.msra.mxu0 %v7326
        %7328 = vmatprep.subr.mxu0 0.0
        %v7329 = vand.u32 %v6920, 4294901760
        %7330 = vmatpush1.msra.mxu0 %v7329
        %7331 = vmatprep.subr.mxu0 0.0
        %v7332 = vand.u32 %v6921, 4294901760
        %7333 = vmatpush1.msra.mxu0 %v7332
        %7334 = vmatprep.subr.mxu0 0.0
        %v7335 = vand.u32 %v6922, 4294901760
        %7336 = vmatpush1.msra.mxu0 %v7335
        %7337 = vmatprep.subr.mxu0 0.0
        %v7338 = vand.u32 %v6923, 4294901760
        %7339 = vmatpush1.msra.mxu0 %v7338
        %7340 = vmatprep.subr.mxu0 0.0
        %v7341 = vand.u32 %v6924, 4294901760
        %7342 = vmatpush1.msra.mxu0 %v7341
        %7343 = vmatprep.subr.mxu0 0.0
        %v7344 = vand.u32 %v6925, 4294901760
        %7345 = vmatpush1.msra.mxu0 %v7344
        %7346 = vmatprep.subr.mxu0 0.0
        %v7347 = vand.u32 %v6926, 4294901760
        %7348 = vmatpush1.msra.mxu0 %v7347
        %7349 = vmatprep.subr.mxu0 0.0
        %v7350 = vand.u32 %v6927, 4294901760
        %7351 = vmatpush1.msra.mxu0 %v7350
        %7352 = vmatprep.subr.mxu0 0.0
        %v7353 = vand.u32 %v6928, 4294901760
        %7354 = vmatpush1.msra.mxu0 %v7353
        %7355 = vmatprep.subr.mxu0 0.0
        %7356 = vmatpush1.msra.mxu0 0.0
        %7357 = vmatprep.subr.mxu0 0.0
        %7358 = vmatpush1.msra.mxu0 0.0
        %7359 = vmatprep.subr.mxu0 0.0
        %7360 = vmatpush1.msra.mxu0 0.0
        %7361 = vmatprep.subr.mxu0 0.0
        %7362 = vmatpush1.msra.mxu0 0.0
        %7363 = vmatprep.subr.mxu0 0.0
        %7364 = vmatpush1.msra.mxu0 0.0
        %7365 = vmatprep.subr.mxu0 0.0
        %7366 = vmatpush1.msra.mxu0 0.0
        %7367 = vmatprep.subr.mxu0 0.0
        %7368 = vmatpush1.msra.mxu0 0.0
        %7369 = vmatprep.subr.mxu0 0.0
        %7370 = vmatpush1.msra.mxu0 0.0
        %7371 = vmatprep.subr.mxu0 0.0
        %7372 = vmatpush1.msra.mxu0 0.0
        %7373 = vmatprep.subr.mxu0 0.0
        %7374 = vmatpush1.msra.mxu0 0.0
        %7375 = vmatprep.subr.mxu0 0.0
        %7376 = vmatpush1.msra.mxu0 0.0
        %7377 = vmatprep.subr.mxu0 0.0
        %7378 = vmatpush1.msra.mxu0 0.0
        %7379 = vmatprep.subr.mxu0 0.0
        %7380 = vmatpush1.msra.mxu0 0.0
        %7381 = vmatprep.subr.mxu0 0.0
        %7382 = vmatpush1.msra.mxu0 0.0
        %v7383 = vand.u32 %v6929, 4294901760
        %v7384 = vsub.f32 %v6929, %v7383
        %v7385 = vand.u32 %v7384, 4294901760
        %7386 = vmatprep.mubr.f32.mxu0 %v7385
        %v7387 = vand.u32 %v6910, 4294901760
        %v7388 = vsub.f32 %v6910, %v7387
        %v7389 = vand.u32 %v7388, 4294901760
        %7390 = vmatmul.mubr.f32.gmra.mrb[0].mxu0 %v7389
        %v7391 = vpop.f32.mrb[0].mxu0
        %v7392 = vadd.f32 %v7298, %v7391
        %v7393 = vpop.f32.mrb[0].mxu0
        %7394 = vdwg.mxu0
        %7395 = vmatprep.subr.mxu0 0.0
        %v7396 = vand.u32 %v6911, 4294901760
        %v7397 = vsub.f32 %v6911, %v7396
        %v7398 = vand.u32 %v7397, 4294901760
        %7399 = vmatpush1.msra.mxu0 %v7398
        %7400 = vmatprep.subr.mxu0 0.0
        %v7401 = vand.u32 %v6912, 4294901760
        %v7402 = vsub.f32 %v6912, %v7401
        %v7403 = vand.u32 %v7402, 4294901760
        %7404 = vmatpush1.msra.mxu0 %v7403
        %7405 = vmatprep.subr.mxu0 0.0
        %v7406 = vand.u32 %v6913, 4294901760
        %v7407 = vsub.f32 %v6913, %v7406
        %v7408 = vand.u32 %v7407, 4294901760
        %7409 = vmatpush1.msra.mxu0 %v7408
        %7410 = vmatprep.subr.mxu0 0.0
        %v7411 = vand.u32 %v6914, 4294901760
        %v7412 = vsub.f32 %v6914, %v7411
        %v7413 = vand.u32 %v7412, 4294901760
        %7414 = vmatpush1.msra.mxu0 %v7413
        %7415 = vmatprep.subr.mxu0 0.0
        %v7416 = vand.u32 %v6915, 4294901760
        %v7417 = vsub.f32 %v6915, %v7416
        %v7418 = vand.u32 %v7417, 4294901760
        %7419 = vmatpush1.msra.mxu0 %v7418
        %7420 = vmatprep.subr.mxu0 0.0
        %v7421 = vand.u32 %v6916, 4294901760
        %v7422 = vsub.f32 %v6916, %v7421
        %v7423 = vand.u32 %v7422, 4294901760
        %7424 = vmatpush1.msra.mxu0 %v7423
        %7425 = vmatprep.subr.mxu0 0.0
        %v7426 = vand.u32 %v6917, 4294901760
        %v7427 = vsub.f32 %v6917, %v7426
        %v7428 = vand.u32 %v7427, 4294901760
        %7429 = vmatpush1.msra.mxu0 %v7428
        %7430 = vmatprep.subr.mxu0 0.0
        %v7431 = vand.u32 %v6918, 4294901760
        %v7432 = vsub.f32 %v6918, %v7431
        %v7433 = vand.u32 %v7432, 4294901760
        %7434 = vmatpush1.msra.mxu0 %v7433
        %7435 = vmatprep.subr.mxu0 0.0
        %v7436 = vand.u32 %v6919, 4294901760
        %v7437 = vsub.f32 %v6919, %v7436
        %v7438 = vand.u32 %v7437, 4294901760
        %7439 = vmatpush1.msra.mxu0 %v7438
        %7440 = vmatprep.subr.mxu0 0.0
        %v7441 = vand.u32 %v6920, 4294901760
        %v7442 = vsub.f32 %v6920, %v7441
        %v7443 = vand.u32 %v7442, 4294901760
        %7444 = vmatpush1.msra.mxu0 %v7443
        %7445 = vmatprep.subr.mxu0 0.0
        %v7446 = vand.u32 %v6921, 4294901760
        %v7447 = vsub.f32 %v6921, %v7446
        %v7448 = vand.u32 %v7447, 4294901760
        %7449 = vmatpush1.msra.mxu0 %v7448
        %7450 = vmatprep.subr.mxu0 0.0
        %v7451 = vand.u32 %v6922, 4294901760
        %v7452 = vsub.f32 %v6922, %v7451
        %v7453 = vand.u32 %v7452, 4294901760
        %7454 = vmatpush1.msra.mxu0 %v7453
        %7455 = vmatprep.subr.mxu0 0.0
        %v7456 = vand.u32 %v6923, 4294901760
        %v7457 = vsub.f32 %v6923, %v7456
        %v7458 = vand.u32 %v7457, 4294901760
        %7459 = vmatpush1.msra.mxu0 %v7458
        %7460 = vmatprep.subr.mxu0 0.0
        %v7461 = vand.u32 %v6924, 4294901760
        %v7462 = vsub.f32 %v6924, %v7461
        %v7463 = vand.u32 %v7462, 4294901760
        %7464 = vmatpush1.msra.mxu0 %v7463
        %7465 = vmatprep.subr.mxu0 0.0
        %v7466 = vand.u32 %v6925, 4294901760
        %v7467 = vsub.f32 %v6925, %v7466
        %v7468 = vand.u32 %v7467, 4294901760
        %7469 = vmatpush1.msra.mxu0 %v7468
        %7470 = vmatprep.subr.mxu0 0.0
        %v7471 = vand.u32 %v6926, 4294901760
        %v7472 = vsub.f32 %v6926, %v7471
        %v7473 = vand.u32 %v7472, 4294901760
        %7474 = vmatpush1.msra.mxu0 %v7473
        %7475 = vmatprep.subr.mxu0 0.0
        %v7476 = vand.u32 %v6927, 4294901760
        %v7477 = vsub.f32 %v6927, %v7476
        %v7478 = vand.u32 %v7477, 4294901760
        %7479 = vmatpush1.msra.mxu0 %v7478
        %7480 = vmatprep.subr.mxu0 0.0
        %v7481 = vand.u32 %v6928, 4294901760
        %v7482 = vsub.f32 %v6928, %v7481
        %v7483 = vand.u32 %v7482, 4294901760
        %7484 = vmatpush1.msra.mxu0 %v7483
        %7485 = vmatprep.subr.mxu0 0.0
        %7486 = vmatpush1.msra.mxu0 0.0
        %7487 = vmatprep.subr.mxu0 0.0
        %7488 = vmatpush1.msra.mxu0 0.0
        %7489 = vmatprep.subr.mxu0 0.0
        %7490 = vmatpush1.msra.mxu0 0.0
        %7491 = vmatprep.subr.mxu0 0.0
        %7492 = vmatpush1.msra.mxu0 0.0
        %7493 = vmatprep.subr.mxu0 0.0
        %7494 = vmatpush1.msra.mxu0 0.0
        %7495 = vmatprep.subr.mxu0 0.0
        %7496 = vmatpush1.msra.mxu0 0.0
        %7497 = vmatprep.subr.mxu0 0.0
        %7498 = vmatpush1.msra.mxu0 0.0
        %7499 = vmatprep.subr.mxu0 0.0
        %7500 = vmatpush1.msra.mxu0 0.0
        %7501 = vmatprep.subr.mxu0 0.0
        %7502 = vmatpush1.msra.mxu0 0.0
        %7503 = vmatprep.subr.mxu0 0.0
        %7504 = vmatpush1.msra.mxu0 0.0
        %7505 = vmatprep.subr.mxu0 0.0
        %7506 = vmatpush1.msra.mxu0 0.0
        %7507 = vmatprep.subr.mxu0 0.0
        %7508 = vmatpush1.msra.mxu0 0.0
        %7509 = vmatprep.subr.mxu0 0.0
        %7510 = vmatpush1.msra.mxu0 0.0
        %7511 = vmatprep.subr.mxu0 0.0
        %7512 = vmatpush1.msra.mxu0 0.0
        %v7513 = vand.u32 %v6929, 4294901760
        %7514 = vmatprep.mubr.f32.mxu0 %v7513
        %v7515 = vand.u32 %v6910, 4294901760
        %7516 = vmatmul.mubr.f32.gmra.mrb[0].mxu0 %v7515
        %v7517 = vpop.f32.mrb[0].mxu0
        %v7518 = vadd.f32 %v7392, %v7517
        %v7519 = vpop.f32.mrb[0].mxu0
        %7520 = vdwg.mxu0
        %7521 = vmatprep.subr.mxu0 0.0
        %v7522 = vand.u32 %v6911, 4294901760
        %7523 = vmatpush1.msra.mxu0 %v7522
        %7524 = vmatprep.subr.mxu0 0.0
        %v7525 = vand.u32 %v6912, 4294901760
        %7526 = vmatpush1.msra.mxu0 %v7525
        %7527 = vmatprep.subr.mxu0 0.0
        %v7528 = vand.u32 %v6913, 4294901760
        %7529 = vmatpush1.msra.mxu0 %v7528
        %7530 = vmatprep.subr.mxu0 0.0
        %v7531 = vand.u32 %v6914, 4294901760
        %7532 = vmatpush1.msra.mxu0 %v7531
        %7533 = vmatprep.subr.mxu0 0.0
        %v7534 = vand.u32 %v6915, 4294901760
        %7535 = vmatpush1.msra.mxu0 %v7534
        %7536 = vmatprep.subr.mxu0 0.0
        %v7537 = vand.u32 %v6916, 4294901760
        %7538 = vmatpush1.msra.mxu0 %v7537
        %7539 = vmatprep.subr.mxu0 0.0
        %v7540 = vand.u32 %v6917, 4294901760
        %7541 = vmatpush1.msra.mxu0 %v7540
        %7542 = vmatprep.subr.mxu0 0.0
        %v7543 = vand.u32 %v6918, 4294901760
        %7544 = vmatpush1.msra.mxu0 %v7543
        %7545 = vmatprep.subr.mxu0 0.0
        %v7546 = vand.u32 %v6919, 4294901760
        %7547 = vmatpush1.msra.mxu0 %v7546
        %7548 = vmatprep.subr.mxu0 0.0
        %v7549 = vand.u32 %v6920, 4294901760
        %7550 = vmatpush1.msra.mxu0 %v7549
        %7551 = vmatprep.subr.mxu0 0.0
        %v7552 = vand.u32 %v6921, 4294901760
        %7553 = vmatpush1.msra.mxu0 %v7552
        %7554 = vmatprep.subr.mxu0 0.0
        %v7555 = vand.u32 %v6922, 4294901760
        %7556 = vmatpush1.msra.mxu0 %v7555
        %7557 = vmatprep.subr.mxu0 0.0
        %v7558 = vand.u32 %v6923, 4294901760
        %7559 = vmatpush1.msra.mxu0 %v7558
        %7560 = vmatprep.subr.mxu0 0.0
        %v7561 = vand.u32 %v6924, 4294901760
        %7562 = vmatpush1.msra.mxu0 %v7561
        %7563 = vmatprep.subr.mxu0 0.0
        %v7564 = vand.u32 %v6925, 4294901760
        %7565 = vmatpush1.msra.mxu0 %v7564
        %7566 = vmatprep.subr.mxu0 0.0
        %v7567 = vand.u32 %v6926, 4294901760
        %7568 = vmatpush1.msra.mxu0 %v7567
        %7569 = vmatprep.subr.mxu0 0.0
        %v7570 = vand.u32 %v6927, 4294901760
        %7571 = vmatpush1.msra.mxu0 %v7570
        %7572 = vmatprep.subr.mxu0 0.0
        %v7573 = vand.u32 %v6928, 4294901760
        %7574 = vmatpush1.msra.mxu0 %v7573
        %7575 = vmatprep.subr.mxu0 0.0
        %7576 = vmatpush1.msra.mxu0 0.0
        %7577 = vmatprep.subr.mxu0 0.0
        %7578 = vmatpush1.msra.mxu0 0.0
        %7579 = vmatprep.subr.mxu0 0.0
        %7580 = vmatpush1.msra.mxu0 0.0
        %7581 = vmatprep.subr.mxu0 0.0
        %7582 = vmatpush1.msra.mxu0 0.0
        %7583 = vmatprep.subr.mxu0 0.0
        %7584 = vmatpush1.msra.mxu0 0.0
        %7585 = vmatprep.subr.mxu0 0.0
        %7586 = vmatpush1.msra.mxu0 0.0
        %7587 = vmatprep.subr.mxu0 0.0
        %7588 = vmatpush1.msra.mxu0 0.0
        %7589 = vmatprep.subr.mxu0 0.0
        %7590 = vmatpush1.msra.mxu0 0.0
        %7591 = vmatprep.subr.mxu0 0.0
        %7592 = vmatpush1.msra.mxu0 0.0
        %7593 = vmatprep.subr.mxu0 0.0
        %7594 = vmatpush1.msra.mxu0 0.0
        %7595 = vmatprep.subr.mxu0 0.0
        %7596 = vmatpush1.msra.mxu0 0.0
        %7597 = vmatprep.subr.mxu0 0.0
        %7598 = vmatpush1.msra.mxu0 0.0
        %7599 = vmatprep.subr.mxu0 0.0
        %7600 = vmatpush1.msra.mxu0 0.0
        %7601 = vmatprep.subr.mxu0 0.0
        %7602 = vmatpush1.msra.mxu0 0.0
        %v7603 = vand.u32 %v6929, 4294901760
        %7604 = vmatprep.mubr.f32.mxu0 %v7603
        %v7605 = vand.u32 %v6910, 4294901760
        %7606 = vmatmul.mubr.f32.gmra.mrb[0].mxu0 %v7605
        %v7607 = vpop.f32.mrb[0].mxu0
        %v7608 = vadd.f32 %v7518, %v7607
        %v7609 = vpop.f32.mrb[0].mxu0
        %7610 = vdwg.mxu0
        %v7611 = vld [vmem:[#allocation8] sm:$0xff]
        %v7612 = vld [vmem:[#allocation8 + $0x8] sm:$0xff]
        %v7613 = vld [vmem:[#allocation8 + $0x10] sm:$0xff]
        %v7614 = vld [vmem:[#allocation8 + $0x18] sm:$0xff]
        %v7615 = vld [vmem:[%s11] sm:$0xff]
        %v7616 = vld [vmem:[%s11 + $0x8] sm:$0xff]
        %v7617 = vld [vmem:[%s18] sm:$0x1]
        %7620 = vrot.lane.b32.xlu0 %v1762, 39
        %v7621 = vpop.permute.xlu0 %7620
        %7622 = vrot.lane.b32.xlu0 %v7608, 39
        %v7623 = vpop.permute.xlu0 %7622
        %7626 = vrot.lane.b32.xlu0 %v1762, 11
        %v7627 = vpop.permute.xlu0 %7626
        %7628 = vrot.lane.b32.xlu0 %v7608, 11
        %v7629 = vpop.permute.xlu0 %7628
        %vm7632 = vcmask 89088
        %v7633 = vsel %vm7632, %v7621, %v7627
        %v7634 = vsel %vm7632, %v7623, %v7629
        %7635 = vrot.lane.b32.xlu0 %v1762, 38
        %v7636 = vpop.permute.xlu0 %7635
        %7637 = vrot.lane.b32.xlu0 %v7608, 38
        %v7638 = vpop.permute.xlu0 %7637
        %7641 = vrot.lane.b32.xlu0 %v1762, 10
        %v7642 = vpop.permute.xlu0 %7641
        %7643 = vrot.lane.b32.xlu0 %v7608, 10
        %v7644 = vpop.permute.xlu0 %7643
        %vm7647 = vcmask 80896
        %v7648 = vsel %vm7647, %v7636, %v7642
        %v7649 = vsel %vm7647, %v7638, %v7644
        %7650 = vrot.lane.b32.xlu0 %v1762, 37
        %v7651 = vpop.permute.xlu0 %7650
        %7652 = vrot.lane.b32.xlu0 %v7608, 37
        %v7653 = vpop.permute.xlu0 %7652
        %7656 = vrot.lane.b32.xlu0 %v1762, 9
        %v7657 = vpop.permute.xlu0 %7656
        %7658 = vrot.lane.b32.xlu0 %v7608, 9
        %v7659 = vpop.permute.xlu0 %7658
        %vm7662 = vcmask 72704
        %v7663 = vsel %vm7662, %v7651, %v7657
        %v7664 = vsel %vm7662, %v7653, %v7659
        %7665 = vrot.lane.b32.xlu0 %v1762, 29
        %v7666 = vpop.permute.xlu0 %7665
        %7667 = vrot.lane.b32.xlu0 %v7608, 29
        %v7668 = vpop.permute.xlu0 %7667
        %7671 = vrot.lane.b32.xlu0 %v1762, 1
        %v7672 = vpop.permute.xlu0 %7671
        %7673 = vrot.lane.b32.xlu0 %v7608, 1
        %v7674 = vpop.permute.xlu0 %7673
        %v7677 = vsel %vm2499, %v7666, %v7672
        %v7678 = vsel %vm2499, %v7668, %v7674
        %7679 = vrot.lane.b32.xlu0 %v1762, 127
        %v7680 = vpop.permute.xlu0 %7679
        %7681 = vrot.lane.b32.xlu0 %v7608, 127
        %v7682 = vpop.permute.xlu0 %7681
        %7685 = vrot.lane.b32.xlu0 %v1762, 99
        %v7686 = vpop.permute.xlu0 %7685
        %7687 = vrot.lane.b32.xlu0 %v7608, 99
        %v7688 = vpop.permute.xlu0 %7687
        %vm7691 = vcmask 809984
        %v7692 = vsel %vm7691, %v7680, %v7686
        %v7693 = vsel %vm7691, %v7682, %v7688
        %7694 = vrot.lane.b32.xlu0 %v1762, 119
        %v7695 = vpop.permute.xlu0 %7694
        %7696 = vrot.lane.b32.xlu0 %v7608, 119
        %v7697 = vpop.permute.xlu0 %7696
        %7700 = vrot.lane.b32.xlu0 %v1762, 91
        %v7701 = vpop.permute.xlu0 %7700
        %7702 = vrot.lane.b32.xlu0 %v7608, 91
        %v7703 = vpop.permute.xlu0 %7702
        %vm7706 = vcmask 744448
        %v7707 = vsel %vm7706, %v7695, %v7701
        %v7708 = vsel %vm7706, %v7697, %v7703
        %7709 = vrot.lane.b32.xlu0 %v1762, 118
        %v7710 = vpop.permute.xlu0 %7709
        %7711 = vrot.lane.b32.xlu0 %v7608, 118
        %v7712 = vpop.permute.xlu0 %7711
        %7715 = vrot.lane.b32.xlu0 %v1762, 90
        %v7716 = vpop.permute.xlu0 %7715
        %7717 = vrot.lane.b32.xlu0 %v7608, 90
        %v7718 = vpop.permute.xlu0 %7717
        %vm7721 = vcmask 736256
        %v7722 = vsel %vm7721, %v7710, %v7716
        %v7723 = vsel %vm7721, %v7712, %v7718
        %7724 = vrot.lane.b32.xlu0 %v1762, 117
        %v7725 = vpop.permute.xlu0 %7724
        %7726 = vrot.lane.b32.xlu0 %v7608, 117
        %v7727 = vpop.permute.xlu0 %7726
        %7730 = vrot.lane.b32.xlu0 %v1762, 89
        %v7731 = vpop.permute.xlu0 %7730
        %7732 = vrot.lane.b32.xlu0 %v7608, 89
        %v7733 = vpop.permute.xlu0 %7732
        %vm7736 = vcmask 728064
        %v7737 = vsel %vm7736, %v7725, %v7731
        %v7738 = vsel %vm7736, %v7727, %v7733
        %7740 = vset.pattern.permute.xlu0 0
        %7741 = vperm.xlu0 %7740, %v7615
        %v7742 = vpop.permute.xlu0 %7741
        %7745 = vset.pattern.permute.xlu0 0
        %7746 = vperm.xlu0 %7745, %v7616
        %v7747 = vpop.permute.xlu0 %7746
        %v7750 = vsel %vm752, %v7612, 0
        %v7753 = vsel %vm752, %v7614, 0
        %7755 = vmatprep.subr.mxu0 0.0
        %v7756 = vand.u32 %v7633, 4294901760
        %7757 = vmatpush1.msra.mxu0 %v7756
        %7758 = vmatprep.subr.mxu0 0.0
        %v7759 = vand.u32 %v7634, 4294901760
        %7760 = vmatpush1.msra.mxu0 %v7759
        %7761 = vmatprep.subr.mxu0 0.0
        %v7762 = vand.u32 %v7648, 4294901760
        %7763 = vmatpush1.msra.mxu0 %v7762
        %7764 = vmatprep.subr.mxu0 0.0
        %v7765 = vand.u32 %v7649, 4294901760
        %7766 = vmatpush1.msra.mxu0 %v7765
        %7767 = vmatprep.subr.mxu0 0.0
        %v7768 = vand.u32 %v7663, 4294901760
        %7769 = vmatpush1.msra.mxu0 %v7768
        %7770 = vmatprep.subr.mxu0 0.0
        %v7771 = vand.u32 %v7664, 4294901760
        %7772 = vmatpush1.msra.mxu0 %v7771
        %7773 = vmatprep.subr.mxu0 0.0
        %v7774 = vand.u32 %v7677, 4294901760
        %7775 = vmatpush1.msra.mxu0 %v7774
        %7776 = vmatprep.subr.mxu0 0.0
        %v7777 = vand.u32 %v7678, 4294901760
        %7778 = vmatpush1.msra.mxu0 %v7777
        %7779 = vmatprep.subr.mxu0 0.0
        %v7780 = vand.u32 %v1762, 4294901760
        %7781 = vmatpush1.msra.mxu0 %v7780
        %7782 = vmatprep.subr.mxu0 0.0
        %v7783 = vand.u32 %v7608, 4294901760
        %7784 = vmatpush1.msra.mxu0 %v7783
        %7785 = vmatprep.subr.mxu0 0.0
        %v7786 = vand.u32 %v7692, 4294901760
        %7787 = vmatpush1.msra.mxu0 %v7786
        %7788 = vmatprep.subr.mxu0 0.0
        %v7789 = vand.u32 %v7693, 4294901760
        %7790 = vmatpush1.msra.mxu0 %v7789
        %7791 = vmatprep.subr.mxu0 0.0
        %v7792 = vand.u32 %v7707, 4294901760
        %7793 = vmatpush1.msra.mxu0 %v7792
        %7794 = vmatprep.subr.mxu0 0.0
        %v7795 = vand.u32 %v7708, 4294901760
        %7796 = vmatpush1.msra.mxu0 %v7795
        %7797 = vmatprep.subr.mxu0 0.0
        %v7798 = vand.u32 %v7722, 4294901760
        %7799 = vmatpush1.msra.mxu0 %v7798
        %7800 = vmatprep.subr.mxu0 0.0
        %v7801 = vand.u32 %v7723, 4294901760
        %7802 = vmatpush1.msra.mxu0 %v7801
        %7803 = vmatprep.subr.mxu0 0.0
        %v7804 = vand.u32 %v7737, 4294901760
        %7805 = vmatpush1.msra.mxu0 %v7804
        %7806 = vmatprep.subr.mxu0 0.0
        %v7807 = vand.u32 %v7738, 4294901760
        %7808 = vmatpush1.msra.mxu0 %v7807
        %7809 = vmatprep.subr.mxu0 0.0
        %7810 = vmatpush1.msra.mxu0 0.0
        %7811 = vmatprep.subr.mxu0 0.0
        %7812 = vmatpush1.msra.mxu0 0.0
        %7813 = vmatprep.subr.mxu0 0.0
        %7814 = vmatpush1.msra.mxu0 0.0
        %7815 = vmatprep.subr.mxu0 0.0
        %7816 = vmatpush1.msra.mxu0 0.0
        %7817 = vmatprep.subr.mxu0 0.0
        %7818 = vmatpush1.msra.mxu0 0.0
        %7819 = vmatprep.subr.mxu0 0.0
        %7820 = vmatpush1.msra.mxu0 0.0
        %7821 = vmatprep.subr.mxu0 0.0
        %7822 = vmatpush1.msra.mxu0 0.0
        %7823 = vmatprep.subr.mxu0 0.0
        %7824 = vmatpush1.msra.mxu0 0.0
        %7825 = vmatprep.subr.mxu0 0.0
        %7826 = vmatpush1.msra.mxu0 0.0
        %7827 = vmatprep.subr.mxu0 0.0
        %7828 = vmatpush1.msra.mxu0 0.0
        %7829 = vmatprep.subr.mxu0 0.0
        %7830 = vmatpush1.msra.mxu0 0.0
        %7831 = vmatprep.subr.mxu0 0.0
        %7832 = vmatpush1.msra.mxu0 0.0
        %7833 = vmatprep.subr.mxu0 0.0
        %7834 = vmatpush1.msra.mxu0 0.0
        %7835 = vmatprep.subr.mxu0 0.0
        %7836 = vmatpush1.msra.mxu0 0.0
        %v7837 = vand.u32 %v7750, 4294901760
        %v7838 = vsub.f32 %v7750, %v7837
        %v7839 = vand.u32 %v7838, 4294901760
        %v7840 = vsub.f32 %v7838, %v7839
        %v7841 = vand.u32 %v7840, 4294901760
        %7842 = vmatprep.mubr.f32.mxu0 %v7841
        %v7843 = vand.u32 %v7611, 4294901760
        %v7844 = vsub.f32 %v7611, %v7843
        %v7845 = vand.u32 %v7844, 4294901760
        %v7846 = vsub.f32 %v7844, %v7845
        %v7847 = vand.u32 %v7846, 4294901760
        %7848 = vmatmul.mubr.f32.gmra.mrb[0].mxu0 %v7847
        %v7849 = vpop.f32.mrb[0].mxu0
        %v7850 = vadd.f32 %v7742, %v7849
        %v7851 = vpop.f32.mrb[0].mxu0
        %v7852 = vand.u32 %v7753, 4294901760
        %v7853 = vsub.f32 %v7753, %v7852
        %v7854 = vand.u32 %v7853, 4294901760
        %v7855 = vsub.f32 %v7853, %v7854
        %v7856 = vand.u32 %v7855, 4294901760
        %7857 = vmatprep.mubr.f32.mxu0 %v7856
        %v7858 = vand.u32 %v7613, 4294901760
        %v7859 = vsub.f32 %v7613, %v7858
        %v7860 = vand.u32 %v7859, 4294901760
        %v7861 = vsub.f32 %v7859, %v7860
        %v7862 = vand.u32 %v7861, 4294901760
        %7863 = vmatmul.mubr.f32.gmra.mrb[0].mxu0 %v7862
        %v7864 = vpop.f32.mrb[0].mxu0
        %v7865 = vadd.f32 %v7747, %v7864
        %v7866 = vpop.f32.mrb[0].mxu0
        %7867 = vdwg.mxu0
        %7868 = vmatprep.subr.mxu0 0.0
        %v7869 = vand.u32 %v7633, 4294901760
        %v7870 = vsub.f32 %v7633, %v7869
        %v7871 = vand.u32 %v7870, 4294901760
        %v7872 = vsub.f32 %v7870, %v7871
        %v7873 = vand.u32 %v7872, 4294901760
        %7874 = vmatpush1.msra.mxu0 %v7873
        %7875 = vmatprep.subr.mxu0 0.0
        %v7876 = vand.u32 %v7634, 4294901760
        %v7877 = vsub.f32 %v7634, %v7876
        %v7878 = vand.u32 %v7877, 4294901760
        %v7879 = vsub.f32 %v7877, %v7878
        %v7880 = vand.u32 %v7879, 4294901760
        %7881 = vmatpush1.msra.mxu0 %v7880
        %7882 = vmatprep.subr.mxu0 0.0
        %v7883 = vand.u32 %v7648, 4294901760
        %v7884 = vsub.f32 %v7648, %v7883
        %v7885 = vand.u32 %v7884, 4294901760
        %v7886 = vsub.f32 %v7884, %v7885
        %v7887 = vand.u32 %v7886, 4294901760
        %7888 = vmatpush1.msra.mxu0 %v7887
        %7889 = vmatprep.subr.mxu0 0.0
        %v7890 = vand.u32 %v7649, 4294901760
        %v7891 = vsub.f32 %v7649, %v7890
        %v7892 = vand.u32 %v7891, 4294901760
        %v7893 = vsub.f32 %v7891, %v7892
        %v7894 = vand.u32 %v7893, 4294901760
        %7895 = vmatpush1.msra.mxu0 %v7894
        %7896 = vmatprep.subr.mxu0 0.0
        %v7897 = vand.u32 %v7663, 4294901760
        %v7898 = vsub.f32 %v7663, %v7897
        %v7899 = vand.u32 %v7898, 4294901760
        %v7900 = vsub.f32 %v7898, %v7899
        %v7901 = vand.u32 %v7900, 4294901760
        %7902 = vmatpush1.msra.mxu0 %v7901
        %7903 = vmatprep.subr.mxu0 0.0
        %v7904 = vand.u32 %v7664, 4294901760
        %v7905 = vsub.f32 %v7664, %v7904
        %v7906 = vand.u32 %v7905, 4294901760
        %v7907 = vsub.f32 %v7905, %v7906
        %v7908 = vand.u32 %v7907, 4294901760
        %7909 = vmatpush1.msra.mxu0 %v7908
        %7910 = vmatprep.subr.mxu0 0.0
        %v7911 = vand.u32 %v7677, 4294901760
        %v7912 = vsub.f32 %v7677, %v7911
        %v7913 = vand.u32 %v7912, 4294901760
        %v7914 = vsub.f32 %v7912, %v7913
        %v7915 = vand.u32 %v7914, 4294901760
        %7916 = vmatpush1.msra.mxu0 %v7915
        %7917 = vmatprep.subr.mxu0 0.0
        %v7918 = vand.u32 %v7678, 4294901760
        %v7919 = vsub.f32 %v7678, %v7918
        %v7920 = vand.u32 %v7919, 4294901760
        %v7921 = vsub.f32 %v7919, %v7920
        %v7922 = vand.u32 %v7921, 4294901760
        %7923 = vmatpush1.msra.mxu0 %v7922
        %7924 = vmatprep.subr.mxu0 0.0
        %v7925 = vand.u32 %v1762, 4294901760
        %v7926 = vsub.f32 %v1762, %v7925
        %v7927 = vand.u32 %v7926, 4294901760
        %v7928 = vsub.f32 %v7926, %v7927
        %v7929 = vand.u32 %v7928, 4294901760
        %7930 = vmatpush1.msra.mxu0 %v7929
        %7931 = vmatprep.subr.mxu0 0.0
        %v7932 = vand.u32 %v7608, 4294901760
        %v7933 = vsub.f32 %v7608, %v7932
        %v7934 = vand.u32 %v7933, 4294901760
        %v7935 = vsub.f32 %v7933, %v7934
        %v7936 = vand.u32 %v7935, 4294901760
        %7937 = vmatpush1.msra.mxu0 %v7936
        %7938 = vmatprep.subr.mxu0 0.0
        %v7939 = vand.u32 %v7692, 4294901760
        %v7940 = vsub.f32 %v7692, %v7939
        %v7941 = vand.u32 %v7940, 4294901760
        %v7942 = vsub.f32 %v7940, %v7941
        %v7943 = vand.u32 %v7942, 4294901760
        %7944 = vmatpush1.msra.mxu0 %v7943
        %7945 = vmatprep.subr.mxu0 0.0
        %v7946 = vand.u32 %v7693, 4294901760
        %v7947 = vsub.f32 %v7693, %v7946
        %v7948 = vand.u32 %v7947, 4294901760
        %v7949 = vsub.f32 %v7947, %v7948
        %v7950 = vand.u32 %v7949, 4294901760
        %7951 = vmatpush1.msra.mxu0 %v7950
        %7952 = vmatprep.subr.mxu0 0.0
        %v7953 = vand.u32 %v7707, 4294901760
        %v7954 = vsub.f32 %v7707, %v7953
        %v7955 = vand.u32 %v7954, 4294901760
        %v7956 = vsub.f32 %v7954, %v7955
        %v7957 = vand.u32 %v7956, 4294901760
        %7958 = vmatpush1.msra.mxu0 %v7957
        %7959 = vmatprep.subr.mxu0 0.0
        %v7960 = vand.u32 %v7708, 4294901760
        %v7961 = vsub.f32 %v7708, %v7960
        %v7962 = vand.u32 %v7961, 4294901760
        %v7963 = vsub.f32 %v7961, %v7962
        %v7964 = vand.u32 %v7963, 4294901760
        %7965 = vmatpush1.msra.mxu0 %v7964
        %7966 = vmatprep.subr.mxu0 0.0
        %v7967 = vand.u32 %v7722, 4294901760
        %v7968 = vsub.f32 %v7722, %v7967
        %v7969 = vand.u32 %v7968, 4294901760
        %v7970 = vsub.f32 %v7968, %v7969
        %v7971 = vand.u32 %v7970, 4294901760
        %7972 = vmatpush1.msra.mxu0 %v7971
        %7973 = vmatprep.subr.mxu0 0.0
        %v7974 = vand.u32 %v7723, 4294901760
        %v7975 = vsub.f32 %v7723, %v7974
        %v7976 = vand.u32 %v7975, 4294901760
        %v7977 = vsub.f32 %v7975, %v7976
        %v7978 = vand.u32 %v7977, 4294901760
        %7979 = vmatpush1.msra.mxu0 %v7978
        %7980 = vmatprep.subr.mxu0 0.0
        %v7981 = vand.u32 %v7737, 4294901760
        %v7982 = vsub.f32 %v7737, %v7981
        %v7983 = vand.u32 %v7982, 4294901760
        %v7984 = vsub.f32 %v7982, %v7983
        %v7985 = vand.u32 %v7984, 4294901760
        %7986 = vmatpush1.msra.mxu0 %v7985
        %7987 = vmatprep.subr.mxu0 0.0
        %v7988 = vand.u32 %v7738, 4294901760
        %v7989 = vsub.f32 %v7738, %v7988
        %v7990 = vand.u32 %v7989, 4294901760
        %v7991 = vsub.f32 %v7989, %v7990
        %v7992 = vand.u32 %v7991, 4294901760
        %7993 = vmatpush1.msra.mxu0 %v7992
        %7994 = vmatprep.subr.mxu0 0.0
        %7995 = vmatpush1.msra.mxu0 0.0
        %7996 = vmatprep.subr.mxu0 0.0
        %7997 = vmatpush1.msra.mxu0 0.0
        %7998 = vmatprep.subr.mxu0 0.0
        %7999 = vmatpush1.msra.mxu0 0.0
        %8000 = vmatprep.subr.mxu0 0.0
        %8001 = vmatpush1.msra.mxu0 0.0
        %8002 = vmatprep.subr.mxu0 0.0
        %8003 = vmatpush1.msra.mxu0 0.0
        %8004 = vmatprep.subr.mxu0 0.0
        %8005 = vmatpush1.msra.mxu0 0.0
        %8006 = vmatprep.subr.mxu0 0.0
        %8007 = vmatpush1.msra.mxu0 0.0
        %8008 = vmatprep.subr.mxu0 0.0
        %8009 = vmatpush1.msra.mxu0 0.0
        %8010 = vmatprep.subr.mxu0 0.0
        %8011 = vmatpush1.msra.mxu0 0.0
        %8012 = vmatprep.subr.mxu0 0.0
        %8013 = vmatpush1.msra.mxu0 0.0
        %8014 = vmatprep.subr.mxu0 0.0
        %8015 = vmatpush1.msra.mxu0 0.0
        %8016 = vmatprep.subr.mxu0 0.0
        %8017 = vmatpush1.msra.mxu0 0.0
        %8018 = vmatprep.subr.mxu0 0.0
        %8019 = vmatpush1.msra.mxu0 0.0
        %8020 = vmatprep.subr.mxu0 0.0
        %8021 = vmatpush1.msra.mxu0 0.0
        %v8022 = vand.u32 %v7750, 4294901760
        %8023 = vmatprep.mubr.f32.mxu0 %v8022
        %v8024 = vand.u32 %v7611, 4294901760
        %8025 = vmatmul.mubr.f32.gmra.mrb[0].mxu0 %v8024
        %v8026 = vpop.f32.mrb[0].mxu0
        %v8027 = vadd.f32 %v7850, %v8026
        %v8028 = vpop.f32.mrb[0].mxu0
        %v8029 = vand.u32 %v7753, 4294901760
        %8030 = vmatprep.mubr.f32.mxu0 %v8029
        %v8031 = vand.u32 %v7613, 4294901760
        %8032 = vmatmul.mubr.f32.gmra.mrb[0].mxu0 %v8031
        %v8033 = vpop.f32.mrb[0].mxu0
        %v8034 = vadd.f32 %v7865, %v8033
        %v8035 = vpop.f32.mrb[0].mxu0
        %8036 = vdwg.mxu0
        %8037 = vmatprep.subr.mxu0 0.0
        %v8038 = vand.u32 %v7633, 4294901760
        %v8039 = vsub.f32 %v7633, %v8038
        %8040 = vmatpush1.msra.mxu0 %v8039
        %8041 = vmatprep.subr.mxu0 0.0
        %v8042 = vand.u32 %v7634, 4294901760
        %v8043 = vsub.f32 %v7634, %v8042
        %8044 = vmatpush1.msra.mxu0 %v8043
        %8045 = vmatprep.subr.mxu0 0.0
        %v8046 = vand.u32 %v7648, 4294901760
        %v8047 = vsub.f32 %v7648, %v8046
        %8048 = vmatpush1.msra.mxu0 %v8047
        %8049 = vmatprep.subr.mxu0 0.0
        %v8050 = vand.u32 %v7649, 4294901760
        %v8051 = vsub.f32 %v7649, %v8050
        %8052 = vmatpush1.msra.mxu0 %v8051
        %8053 = vmatprep.subr.mxu0 0.0
        %v8054 = vand.u32 %v7663, 4294901760
        %v8055 = vsub.f32 %v7663, %v8054
        %8056 = vmatpush1.msra.mxu0 %v8055
        %8057 = vmatprep.subr.mxu0 0.0
        %v8058 = vand.u32 %v7664, 4294901760
        %v8059 = vsub.f32 %v7664, %v8058
        %8060 = vmatpush1.msra.mxu0 %v8059
        %8061 = vmatprep.subr.mxu0 0.0
        %v8062 = vand.u32 %v7677, 4294901760
        %v8063 = vsub.f32 %v7677, %v8062
        %8064 = vmatpush1.msra.mxu0 %v8063
        %8065 = vmatprep.subr.mxu0 0.0
        %v8066 = vand.u32 %v7678, 4294901760
        %v8067 = vsub.f32 %v7678, %v8066
        %8068 = vmatpush1.msra.mxu0 %v8067
        %8069 = vmatprep.subr.mxu0 0.0
        %v8070 = vand.u32 %v1762, 4294901760
        %v8071 = vsub.f32 %v1762, %v8070
        %8072 = vmatpush1.msra.mxu0 %v8071
        %8073 = vmatprep.subr.mxu0 0.0
        %v8074 = vand.u32 %v7608, 4294901760
        %v8075 = vsub.f32 %v7608, %v8074
        %8076 = vmatpush1.msra.mxu0 %v8075
        %8077 = vmatprep.subr.mxu0 0.0
        %v8078 = vand.u32 %v7692, 4294901760
        %v8079 = vsub.f32 %v7692, %v8078
        %8080 = vmatpush1.msra.mxu0 %v8079
        %8081 = vmatprep.subr.mxu0 0.0
        %v8082 = vand.u32 %v7693, 4294901760
        %v8083 = vsub.f32 %v7693, %v8082
        %8084 = vmatpush1.msra.mxu0 %v8083
        %8085 = vmatprep.subr.mxu0 0.0
        %v8086 = vand.u32 %v7707, 4294901760
        %v8087 = vsub.f32 %v7707, %v8086
        %8088 = vmatpush1.msra.mxu0 %v8087
        %8089 = vmatprep.subr.mxu0 0.0
        %v8090 = vand.u32 %v7708, 4294901760
        %v8091 = vsub.f32 %v7708, %v8090
        %8092 = vmatpush1.msra.mxu0 %v8091
        %8093 = vmatprep.subr.mxu0 0.0
        %v8094 = vand.u32 %v7722, 4294901760
        %v8095 = vsub.f32 %v7722, %v8094
        %8096 = vmatpush1.msra.mxu0 %v8095
        %8097 = vmatprep.subr.mxu0 0.0
        %v8098 = vand.u32 %v7723, 4294901760
        %v8099 = vsub.f32 %v7723, %v8098
        %8100 = vmatpush1.msra.mxu0 %v8099
        %8101 = vmatprep.subr.mxu0 0.0
        %v8102 = vand.u32 %v7737, 4294901760
        %v8103 = vsub.f32 %v7737, %v8102
        %8104 = vmatpush1.msra.mxu0 %v8103
        %8105 = vmatprep.subr.mxu0 0.0
        %v8106 = vand.u32 %v7738, 4294901760
        %v8107 = vsub.f32 %v7738, %v8106
        %8108 = vmatpush1.msra.mxu0 %v8107
        %8109 = vmatprep.subr.mxu0 0.0
        %8110 = vmatpush1.msra.mxu0 0.0
        %8111 = vmatprep.subr.mxu0 0.0
        %8112 = vmatpush1.msra.mxu0 0.0
        %8113 = vmatprep.subr.mxu0 0.0
        %8114 = vmatpush1.msra.mxu0 0.0
        %8115 = vmatprep.subr.mxu0 0.0
        %8116 = vmatpush1.msra.mxu0 0.0
        %8117 = vmatprep.subr.mxu0 0.0
        %8118 = vmatpush1.msra.mxu0 0.0
        %8119 = vmatprep.subr.mxu0 0.0
        %8120 = vmatpush1.msra.mxu0 0.0
        %8121 = vmatprep.subr.mxu0 0.0
        %8122 = vmatpush1.msra.mxu0 0.0
        %8123 = vmatprep.subr.mxu0 0.0
        %8124 = vmatpush1.msra.mxu0 0.0
        %8125 = vmatprep.subr.mxu0 0.0
        %8126 = vmatpush1.msra.mxu0 0.0
        %8127 = vmatprep.subr.mxu0 0.0
        %8128 = vmatpush1.msra.mxu0 0.0
        %8129 = vmatprep.subr.mxu0 0.0
        %8130 = vmatpush1.msra.mxu0 0.0
        %8131 = vmatprep.subr.mxu0 0.0
        %8132 = vmatpush1.msra.mxu0 0.0
        %8133 = vmatprep.subr.mxu0 0.0
        %8134 = vmatpush1.msra.mxu0 0.0
        %8135 = vmatprep.subr.mxu0 0.0
        %8136 = vmatpush1.msra.mxu0 0.0
        %v8137 = vand.u32 %v7750, 4294901760
        %v8138 = vsub.f32 %v7750, %v8137
        %8139 = vmatprep.mubr.f32.mxu0 %v8138
        %v8140 = vand.u32 %v7611, 4294901760
        %v8141 = vsub.f32 %v7611, %v8140
        %8142 = vmatmul.mubr.f32.gmra.mrb[0].mxu0 %v8141
        %v8143 = vpop.f32.mrb[0].mxu0
        %v8144 = vadd.f32 %v8027, %v8143
        %v8145 = vpop.f32.mrb[0].mxu0
        %v8146 = vand.u32 %v7753, 4294901760
        %v8147 = vsub.f32 %v7753, %v8146
        %8148 = vmatprep.mubr.f32.mxu0 %v8147
        %v8149 = vand.u32 %v7613, 4294901760
        %v8150 = vsub.f32 %v7613, %v8149
        %8151 = vmatmul.mubr.f32.gmra.mrb[0].mxu0 %v8150
        %v8152 = vpop.f32.mrb[0].mxu0
        %v8153 = vadd.f32 %v8034, %v8152
        %v8154 = vpop.f32.mrb[0].mxu0
        %8155 = vdwg.mxu0
        %8156 = vmatprep.subr.mxu0 0.0
        %v8157 = vand.u32 %v7633, 4294901760
        %8158 = vmatpush1.msra.mxu0 %v8157
        %8159 = vmatprep.subr.mxu0 0.0
        %v8160 = vand.u32 %v7634, 4294901760
        %8161 = vmatpush1.msra.mxu0 %v8160
        %8162 = vmatprep.subr.mxu0 0.0
        %v8163 = vand.u32 %v7648, 4294901760
        %8164 = vmatpush1.msra.mxu0 %v8163
        %8165 = vmatprep.subr.mxu0 0.0
        %v8166 = vand.u32 %v7649, 4294901760
        %8167 = vmatpush1.msra.mxu0 %v8166
        %8168 = vmatprep.subr.mxu0 0.0
        %v8169 = vand.u32 %v7663, 4294901760
        %8170 = vmatpush1.msra.mxu0 %v8169
        %8171 = vmatprep.subr.mxu0 0.0
        %v8172 = vand.u32 %v7664, 4294901760
        %8173 = vmatpush1.msra.mxu0 %v8172
        %8174 = vmatprep.subr.mxu0 0.0
        %v8175 = vand.u32 %v7677, 4294901760
        %8176 = vmatpush1.msra.mxu0 %v8175
        %8177 = vmatprep.subr.mxu0 0.0
        %v8178 = vand.u32 %v7678, 4294901760
        %8179 = vmatpush1.msra.mxu0 %v8178
        %8180 = vmatprep.subr.mxu0 0.0
        %v8181 = vand.u32 %v1762, 4294901760
        %8182 = vmatpush1.msra.mxu0 %v8181
        %8183 = vmatprep.subr.mxu0 0.0
        %v8184 = vand.u32 %v7608, 4294901760
        %8185 = vmatpush1.msra.mxu0 %v8184
        %8186 = vmatprep.subr.mxu0 0.0
        %v8187 = vand.u32 %v7692, 4294901760
        %8188 = vmatpush1.msra.mxu0 %v8187
        %8189 = vmatprep.subr.mxu0 0.0
        %v8190 = vand.u32 %v7693, 4294901760
        %8191 = vmatpush1.msra.mxu0 %v8190
        %8192 = vmatprep.subr.mxu0 0.0
        %v8193 = vand.u32 %v7707, 4294901760
        %8194 = vmatpush1.msra.mxu0 %v8193
        %8195 = vmatprep.subr.mxu0 0.0
        %v8196 = vand.u32 %v7708, 4294901760
        %8197 = vmatpush1.msra.mxu0 %v8196
        %8198 = vmatprep.subr.mxu0 0.0
        %v8199 = vand.u32 %v7722, 4294901760
        %8200 = vmatpush1.msra.mxu0 %v8199
        %8201 = vmatprep.subr.mxu0 0.0
        %v8202 = vand.u32 %v7723, 4294901760
        %8203 = vmatpush1.msra.mxu0 %v8202
        %8204 = vmatprep.subr.mxu0 0.0
        %v8205 = vand.u32 %v7737, 4294901760
        %8206 = vmatpush1.msra.mxu0 %v8205
        %8207 = vmatprep.subr.mxu0 0.0
        %v8208 = vand.u32 %v7738, 4294901760
        %8209 = vmatpush1.msra.mxu0 %v8208
        %8210 = vmatprep.subr.mxu0 0.0
        %8211 = vmatpush1.msra.mxu0 0.0
        %8212 = vmatprep.subr.mxu0 0.0
        %8213 = vmatpush1.msra.mxu0 0.0
        %8214 = vmatprep.subr.mxu0 0.0
        %8215 = vmatpush1.msra.mxu0 0.0
        %8216 = vmatprep.subr.mxu0 0.0
        %8217 = vmatpush1.msra.mxu0 0.0
        %8218 = vmatprep.subr.mxu0 0.0
        %8219 = vmatpush1.msra.mxu0 0.0
        %8220 = vmatprep.subr.mxu0 0.0
        %8221 = vmatpush1.msra.mxu0 0.0
        %8222 = vmatprep.subr.mxu0 0.0
        %8223 = vmatpush1.msra.mxu0 0.0
        %8224 = vmatprep.subr.mxu0 0.0
        %8225 = vmatpush1.msra.mxu0 0.0
        %8226 = vmatprep.subr.mxu0 0.0
        %8227 = vmatpush1.msra.mxu0 0.0
        %8228 = vmatprep.subr.mxu0 0.0
        %8229 = vmatpush1.msra.mxu0 0.0
        %8230 = vmatprep.subr.mxu0 0.0
        %8231 = vmatpush1.msra.mxu0 0.0
        %8232 = vmatprep.subr.mxu0 0.0
        %8233 = vmatpush1.msra.mxu0 0.0
        %8234 = vmatprep.subr.mxu0 0.0
        %8235 = vmatpush1.msra.mxu0 0.0
        %8236 = vmatprep.subr.mxu0 0.0
        %8237 = vmatpush1.msra.mxu0 0.0
        %v8238 = vand.u32 %v7750, 4294901760
        %v8239 = vsub.f32 %v7750, %v8238
        %v8240 = vand.u32 %v8239, 4294901760
        %8241 = vmatprep.mubr.f32.mxu0 %v8240
        %v8242 = vand.u32 %v7611, 4294901760
        %v8243 = vsub.f32 %v7611, %v8242
        %v8244 = vand.u32 %v8243, 4294901760
        %8245 = vmatmul.mubr.f32.gmra.mrb[0].mxu0 %v8244
        %v8246 = vpop.f32.mrb[0].mxu0
        %v8247 = vadd.f32 %v8144, %v8246
        %v8248 = vpop.f32.mrb[0].mxu0
        %v8249 = vand.u32 %v7753, 4294901760
        %v8250 = vsub.f32 %v7753, %v8249
        %v8251 = vand.u32 %v8250, 4294901760
        %8252 = vmatprep.mubr.f32.mxu0 %v8251
        %v8253 = vand.u32 %v7613, 4294901760
        %v8254 = vsub.f32 %v7613, %v8253
        %v8255 = vand.u32 %v8254, 4294901760
        %8256 = vmatmul.mubr.f32.gmra.mrb[0].mxu0 %v8255
        %v8257 = vpop.f32.mrb[0].mxu0
        %v8258 = vadd.f32 %v8153, %v8257
        %v8259 = vpop.f32.mrb[0].mxu0
        %8260 = vdwg.mxu0
        %8261 = vmatprep.subr.mxu0 0.0
        %v8262 = vand.u32 %v7633, 4294901760
        %v8263 = vsub.f32 %v7633, %v8262
        %v8264 = vand.u32 %v8263, 4294901760
        %8265 = vmatpush1.msra.mxu0 %v8264
        %8266 = vmatprep.subr.mxu0 0.0
        %v8267 = vand.u32 %v7634, 4294901760
        %v8268 = vsub.f32 %v7634, %v8267
        %v8269 = vand.u32 %v8268, 4294901760
        %8270 = vmatpush1.msra.mxu0 %v8269
        %8271 = vmatprep.subr.mxu0 0.0
        %v8272 = vand.u32 %v7648, 4294901760
        %v8273 = vsub.f32 %v7648, %v8272
        %v8274 = vand.u32 %v8273, 4294901760
        %8275 = vmatpush1.msra.mxu0 %v8274
        %8276 = vmatprep.subr.mxu0 0.0
        %v8277 = vand.u32 %v7649, 4294901760
        %v8278 = vsub.f32 %v7649, %v8277
        %v8279 = vand.u32 %v8278, 4294901760
        %8280 = vmatpush1.msra.mxu0 %v8279
        %8281 = vmatprep.subr.mxu0 0.0
        %v8282 = vand.u32 %v7663, 4294901760
        %v8283 = vsub.f32 %v7663, %v8282
        %v8284 = vand.u32 %v8283, 4294901760
        %8285 = vmatpush1.msra.mxu0 %v8284
        %8286 = vmatprep.subr.mxu0 0.0
        %v8287 = vand.u32 %v7664, 4294901760
        %v8288 = vsub.f32 %v7664, %v8287
        %v8289 = vand.u32 %v8288, 4294901760
        %8290 = vmatpush1.msra.mxu0 %v8289
        %8291 = vmatprep.subr.mxu0 0.0
        %v8292 = vand.u32 %v7677, 4294901760
        %v8293 = vsub.f32 %v7677, %v8292
        %v8294 = vand.u32 %v8293, 4294901760
        %8295 = vmatpush1.msra.mxu0 %v8294
        %8296 = vmatprep.subr.mxu0 0.0
        %v8297 = vand.u32 %v7678, 4294901760
        %v8298 = vsub.f32 %v7678, %v8297
        %v8299 = vand.u32 %v8298, 4294901760
        %8300 = vmatpush1.msra.mxu0 %v8299
        %8301 = vmatprep.subr.mxu0 0.0
        %v8302 = vand.u32 %v1762, 4294901760
        %v8303 = vsub.f32 %v1762, %v8302
        %v8304 = vand.u32 %v8303, 4294901760
        %8305 = vmatpush1.msra.mxu0 %v8304
        %8306 = vmatprep.subr.mxu0 0.0
        %v8307 = vand.u32 %v7608, 4294901760
        %v8308 = vsub.f32 %v7608, %v8307
        %v8309 = vand.u32 %v8308, 4294901760
        %8310 = vmatpush1.msra.mxu0 %v8309
        %8311 = vmatprep.subr.mxu0 0.0
        %v8312 = vand.u32 %v7692, 4294901760
        %v8313 = vsub.f32 %v7692, %v8312
        %v8314 = vand.u32 %v8313, 4294901760
        %8315 = vmatpush1.msra.mxu0 %v8314
        %8316 = vmatprep.subr.mxu0 0.0
        %v8317 = vand.u32 %v7693, 4294901760
        %v8318 = vsub.f32 %v7693, %v8317
        %v8319 = vand.u32 %v8318, 4294901760
        %8320 = vmatpush1.msra.mxu0 %v8319
        %8321 = vmatprep.subr.mxu0 0.0
        %v8322 = vand.u32 %v7707, 4294901760
        %v8323 = vsub.f32 %v7707, %v8322
        %v8324 = vand.u32 %v8323, 4294901760
        %8325 = vmatpush1.msra.mxu0 %v8324
        %8326 = vmatprep.subr.mxu0 0.0
        %v8327 = vand.u32 %v7708, 4294901760
        %v8328 = vsub.f32 %v7708, %v8327
        %v8329 = vand.u32 %v8328, 4294901760
        %8330 = vmatpush1.msra.mxu0 %v8329
        %8331 = vmatprep.subr.mxu0 0.0
        %v8332 = vand.u32 %v7722, 4294901760
        %v8333 = vsub.f32 %v7722, %v8332
        %v8334 = vand.u32 %v8333, 4294901760
        %8335 = vmatpush1.msra.mxu0 %v8334
        %8336 = vmatprep.subr.mxu0 0.0
        %v8337 = vand.u32 %v7723, 4294901760
        %v8338 = vsub.f32 %v7723, %v8337
        %v8339 = vand.u32 %v8338, 4294901760
        %8340 = vmatpush1.msra.mxu0 %v8339
        %8341 = vmatprep.subr.mxu0 0.0
        %v8342 = vand.u32 %v7737, 4294901760
        %v8343 = vsub.f32 %v7737, %v8342
        %v8344 = vand.u32 %v8343, 4294901760
        %8345 = vmatpush1.msra.mxu0 %v8344
        %8346 = vmatprep.subr.mxu0 0.0
        %v8347 = vand.u32 %v7738, 4294901760
        %v8348 = vsub.f32 %v7738, %v8347
        %v8349 = vand.u32 %v8348, 4294901760
        %8350 = vmatpush1.msra.mxu0 %v8349
        %8351 = vmatprep.subr.mxu0 0.0
        %8352 = vmatpush1.msra.mxu0 0.0
        %8353 = vmatprep.subr.mxu0 0.0
        %8354 = vmatpush1.msra.mxu0 0.0
        %8355 = vmatprep.subr.mxu0 0.0
        %8356 = vmatpush1.msra.mxu0 0.0
        %8357 = vmatprep.subr.mxu0 0.0
        %8358 = vmatpush1.msra.mxu0 0.0
        %8359 = vmatprep.subr.mxu0 0.0
        %8360 = vmatpush1.msra.mxu0 0.0
        %8361 = vmatprep.subr.mxu0 0.0
        %8362 = vmatpush1.msra.mxu0 0.0
        %8363 = vmatprep.subr.mxu0 0.0
        %8364 = vmatpush1.msra.mxu0 0.0
        %8365 = vmatprep.subr.mxu0 0.0
        %8366 = vmatpush1.msra.mxu0 0.0
        %8367 = vmatprep.subr.mxu0 0.0
        %8368 = vmatpush1.msra.mxu0 0.0
        %8369 = vmatprep.subr.mxu0 0.0
        %8370 = vmatpush1.msra.mxu0 0.0
        %8371 = vmatprep.subr.mxu0 0.0
        %8372 = vmatpush1.msra.mxu0 0.0
        %8373 = vmatprep.subr.mxu0 0.0
        %8374 = vmatpush1.msra.mxu0 0.0
        %8375 = vmatprep.subr.mxu0 0.0
        %8376 = vmatpush1.msra.mxu0 0.0
        %8377 = vmatprep.subr.mxu0 0.0
        %8378 = vmatpush1.msra.mxu0 0.0
        %v8379 = vand.u32 %v7750, 4294901760
        %8380 = vmatprep.mubr.f32.mxu0 %v8379
        %v8381 = vand.u32 %v7611, 4294901760
        %8382 = vmatmul.mubr.f32.gmra.mrb[0].mxu0 %v8381
        %v8383 = vpop.f32.mrb[0].mxu0
        %v8384 = vadd.f32 %v8247, %v8383
        %v8385 = vpop.f32.mrb[0].mxu0
        %v8386 = vand.u32 %v7753, 4294901760
        %8387 = vmatprep.mubr.f32.mxu0 %v8386
        %v8388 = vand.u32 %v7613, 4294901760
        %8389 = vmatmul.mubr.f32.gmra.mrb[0].mxu0 %v8388
        %v8390 = vpop.f32.mrb[0].mxu0
        %v8391 = vadd.f32 %v8258, %v8390
        %v8392 = vpop.f32.mrb[0].mxu0
        %8393 = vdwg.mxu0
        %8394 = vmatprep.subr.mxu0 0.0
        %v8395 = vand.u32 %v7633, 4294901760
        %8396 = vmatpush1.msra.mxu0 %v8395
        %8397 = vmatprep.subr.mxu0 0.0
        %v8398 = vand.u32 %v7634, 4294901760
        %8399 = vmatpush1.msra.mxu0 %v8398
        %8400 = vmatprep.subr.mxu0 0.0
        %v8401 = vand.u32 %v7648, 4294901760
        %8402 = vmatpush1.msra.mxu0 %v8401
        %8403 = vmatprep.subr.mxu0 0.0
        %v8404 = vand.u32 %v7649, 4294901760
        %8405 = vmatpush1.msra.mxu0 %v8404
        %8406 = vmatprep.subr.mxu0 0.0
        %v8407 = vand.u32 %v7663, 4294901760
        %8408 = vmatpush1.msra.mxu0 %v8407
        %8409 = vmatprep.subr.mxu0 0.0
        %v8410 = vand.u32 %v7664, 4294901760
        %8411 = vmatpush1.msra.mxu0 %v8410
        %8412 = vmatprep.subr.mxu0 0.0
        %v8413 = vand.u32 %v7677, 4294901760
        %8414 = vmatpush1.msra.mxu0 %v8413
        %8415 = vmatprep.subr.mxu0 0.0
        %v8416 = vand.u32 %v7678, 4294901760
        %8417 = vmatpush1.msra.mxu0 %v8416
        %8418 = vmatprep.subr.mxu0 0.0
        %v8419 = vand.u32 %v1762, 4294901760
        %8420 = vmatpush1.msra.mxu0 %v8419
        %8421 = vmatprep.subr.mxu0 0.0
        %v8422 = vand.u32 %v7608, 4294901760
        %8423 = vmatpush1.msra.mxu0 %v8422
        %8424 = vmatprep.subr.mxu0 0.0
        %v8425 = vand.u32 %v7692, 4294901760
        %8426 = vmatpush1.msra.mxu0 %v8425
        %8427 = vmatprep.subr.mxu0 0.0
        %v8428 = vand.u32 %v7693, 4294901760
        %8429 = vmatpush1.msra.mxu0 %v8428
        %8430 = vmatprep.subr.mxu0 0.0
        %v8431 = vand.u32 %v7707, 4294901760
        %8432 = vmatpush1.msra.mxu0 %v8431
        %8433 = vmatprep.subr.mxu0 0.0
        %v8434 = vand.u32 %v7708, 4294901760
        %8435 = vmatpush1.msra.mxu0 %v8434
        %8436 = vmatprep.subr.mxu0 0.0
        %v8437 = vand.u32 %v7722, 4294901760
        %8438 = vmatpush1.msra.mxu0 %v8437
        %8439 = vmatprep.subr.mxu0 0.0
        %v8440 = vand.u32 %v7723, 4294901760
        %8441 = vmatpush1.msra.mxu0 %v8440
        %8442 = vmatprep.subr.mxu0 0.0
        %v8443 = vand.u32 %v7737, 4294901760
        %8444 = vmatpush1.msra.mxu0 %v8443
        %8445 = vmatprep.subr.mxu0 0.0
        %v8446 = vand.u32 %v7738, 4294901760
        %8447 = vmatpush1.msra.mxu0 %v8446
        %8448 = vmatprep.subr.mxu0 0.0
        %8449 = vmatpush1.msra.mxu0 0.0
        %8450 = vmatprep.subr.mxu0 0.0
        %8451 = vmatpush1.msra.mxu0 0.0
        %8452 = vmatprep.subr.mxu0 0.0
        %8453 = vmatpush1.msra.mxu0 0.0
        %8454 = vmatprep.subr.mxu0 0.0
        %8455 = vmatpush1.msra.mxu0 0.0
        %8456 = vmatprep.subr.mxu0 0.0
        %8457 = vmatpush1.msra.mxu0 0.0
        %8458 = vmatprep.subr.mxu0 0.0
        %8459 = vmatpush1.msra.mxu0 0.0
        %8460 = vmatprep.subr.mxu0 0.0
        %8461 = vmatpush1.msra.mxu0 0.0
        %8462 = vmatprep.subr.mxu0 0.0
        %8463 = vmatpush1.msra.mxu0 0.0
        %8464 = vmatprep.subr.mxu0 0.0
        %8465 = vmatpush1.msra.mxu0 0.0
        %8466 = vmatprep.subr.mxu0 0.0
        %8467 = vmatpush1.msra.mxu0 0.0
        %8468 = vmatprep.subr.mxu0 0.0
        %8469 = vmatpush1.msra.mxu0 0.0
        %8470 = vmatprep.subr.mxu0 0.0
        %8471 = vmatpush1.msra.mxu0 0.0
        %8472 = vmatprep.subr.mxu0 0.0
        %8473 = vmatpush1.msra.mxu0 0.0
        %8474 = vmatprep.subr.mxu0 0.0
        %8475 = vmatpush1.msra.mxu0 0.0
        %v8476 = vand.u32 %v7750, 4294901760
        %8477 = vmatprep.mubr.f32.mxu0 %v8476
        %v8478 = vand.u32 %v7611, 4294901760
        %8479 = vmatmul.mubr.f32.gmra.mrb[0].mxu0 %v8478
        %v8480 = vpop.f32.mrb[0].mxu0
        %v8481 = vadd.f32 %v8384, %v8480
        %v8482 = vpop.f32.mrb[0].mxu0
        %v8483 = vand.u32 %v7753, 4294901760
        %8484 = vmatprep.mubr.f32.mxu0 %v8483
        %v8485 = vand.u32 %v7613, 4294901760
        %8486 = vmatmul.mubr.f32.gmra.mrb[0].mxu0 %v8485
        %v8487 = vpop.f32.mrb[0].mxu0
        %v8488 = vadd.f32 %v8391, %v8487
        %v8489 = vpop.f32.mrb[0].mxu0
        %8490 = vdwg.mxu0
        %v8491 = vmax.f32 %v8481, 0.0
        %v8492 = vmax.f32 %v8488, 0.0
        %v8494 = vlaneseq
        %v8495 = vshrl.u32 %v8494, 7
        %v8496 = vsub.s32 0, %v8495
        %v8497 = vrot.slane %v7617, %v8496
        %v8499 = vmul.f32 %v8491, %v8497
        %v8500 = vmul.f32 %v8492, %v8497
        %v8501 = vld [vmem:[#allocation10] sm:$0xff]
        %v8502 = vld [vmem:[#allocation10 + $0x8] sm:$0xff]
        %v8503 = vld [vmem:[#allocation10 + $0x10] sm:$0xff]
        %v8504 = vld [vmem:[#allocation10 + $0x18] sm:$0xff]
        %v8505 = vld [vmem:[%s13] sm:$0xff]
        %v8506 = vld [vmem:[%s13 + $0x8] sm:$0xff]
        %8509 = vrot.lane.b32.xlu0 %v8499, 39
        %v8510 = vpop.permute.xlu0 %8509
        %8511 = vrot.lane.b32.xlu0 %v8500, 39
        %v8512 = vpop.permute.xlu0 %8511
        %8515 = vrot.lane.b32.xlu0 %v8499, 11
        %v8516 = vpop.permute.xlu0 %8515
        %8517 = vrot.lane.b32.xlu0 %v8500, 11
        %v8518 = vpop.permute.xlu0 %8517
        %v8521 = vsel %vm7632, %v8510, %v8516
        %v8522 = vsel %vm7632, %v8512, %v8518
        %8523 = vrot.lane.b32.xlu0 %v8499, 38
        %v8524 = vpop.permute.xlu0 %8523
        %8525 = vrot.lane.b32.xlu0 %v8500, 38
        %v8526 = vpop.permute.xlu0 %8525
        %8529 = vrot.lane.b32.xlu0 %v8499, 10
        %v8530 = vpop.permute.xlu0 %8529
        %8531 = vrot.lane.b32.xlu0 %v8500, 10
        %v8532 = vpop.permute.xlu0 %8531
        %v8535 = vsel %vm7647, %v8524, %v8530
        %v8536 = vsel %vm7647, %v8526, %v8532
        %8537 = vrot.lane.b32.xlu0 %v8499, 37
        %v8538 = vpop.permute.xlu0 %8537
        %8539 = vrot.lane.b32.xlu0 %v8500, 37
        %v8540 = vpop.permute.xlu0 %8539
        %8543 = vrot.lane.b32.xlu0 %v8499, 9
        %v8544 = vpop.permute.xlu0 %8543
        %8545 = vrot.lane.b32.xlu0 %v8500, 9
        %v8546 = vpop.permute.xlu0 %8545
        %v8549 = vsel %vm7662, %v8538, %v8544
        %v8550 = vsel %vm7662, %v8540, %v8546
        %8551 = vrot.lane.b32.xlu0 %v8499, 29
        %v8552 = vpop.permute.xlu0 %8551
        %8553 = vrot.lane.b32.xlu0 %v8500, 29
        %v8554 = vpop.permute.xlu0 %8553
        %8557 = vrot.lane.b32.xlu0 %v8499, 1
        %v8558 = vpop.permute.xlu0 %8557
        %8559 = vrot.lane.b32.xlu0 %v8500, 1
        %v8560 = vpop.permute.xlu0 %8559
        %v8563 = vsel %vm2499, %v8552, %v8558
        %v8564 = vsel %vm2499, %v8554, %v8560
        %8565 = vrot.lane.b32.xlu0 %v8499, 127
        %v8566 = vpop.permute.xlu0 %8565
        %8567 = vrot.lane.b32.xlu0 %v8500, 127
        %v8568 = vpop.permute.xlu0 %8567
        %8571 = vrot.lane.b32.xlu0 %v8499, 99
        %v8572 = vpop.permute.xlu0 %8571
        %8573 = vrot.lane.b32.xlu0 %v8500, 99
        %v8574 = vpop.permute.xlu0 %8573
        %v8577 = vsel %vm7691, %v8566, %v8572
        %v8578 = vsel %vm7691, %v8568, %v8574
        %8579 = vrot.lane.b32.xlu0 %v8499, 119
        %v8580 = vpop.permute.xlu0 %8579
        %8581 = vrot.lane.b32.xlu0 %v8500, 119
        %v8582 = vpop.permute.xlu0 %8581
        %8585 = vrot.lane.b32.xlu0 %v8499, 91
        %v8586 = vpop.permute.xlu0 %8585
        %8587 = vrot.lane.b32.xlu0 %v8500, 91
        %v8588 = vpop.permute.xlu0 %8587
        %v8591 = vsel %vm7706, %v8580, %v8586
        %v8592 = vsel %vm7706, %v8582, %v8588
        %8593 = vrot.lane.b32.xlu0 %v8499, 118
        %v8594 = vpop.permute.xlu0 %8593
        %8595 = vrot.lane.b32.xlu0 %v8500, 118
        %v8596 = vpop.permute.xlu0 %8595
        %8599 = vrot.lane.b32.xlu0 %v8499, 90
        %v8600 = vpop.permute.xlu0 %8599
        %8601 = vrot.lane.b32.xlu0 %v8500, 90
        %v8602 = vpop.permute.xlu0 %8601
        %v8605 = vsel %vm7721, %v8594, %v8600
        %v8606 = vsel %vm7721, %v8596, %v8602
        %8607 = vrot.lane.b32.xlu0 %v8499, 117
        %v8608 = vpop.permute.xlu0 %8607
        %8609 = vrot.lane.b32.xlu0 %v8500, 117
        %v8610 = vpop.permute.xlu0 %8609
        %8613 = vrot.lane.b32.xlu0 %v8499, 89
        %v8614 = vpop.permute.xlu0 %8613
        %8615 = vrot.lane.b32.xlu0 %v8500, 89
        %v8616 = vpop.permute.xlu0 %8615
        %v8619 = vsel %vm7736, %v8608, %v8614
        %v8620 = vsel %vm7736, %v8610, %v8616
        %8622 = vset.pattern.permute.xlu0 0
        %8623 = vperm.xlu0 %8622, %v8505
        %v8624 = vpop.permute.xlu0 %8623
        %8627 = vset.pattern.permute.xlu0 0
        %8628 = vperm.xlu0 %8627, %v8506
        %v8629 = vpop.permute.xlu0 %8628
        %v8632 = vsel %vm752, %v8502, 0
        %v8635 = vsel %vm752, %v8504, 0
        %8637 = vmatprep.subr.mxu0 0.0
        %v8638 = vand.u32 %v8521, 4294901760
        %8639 = vmatpush1.msra.mxu0 %v8638
        %8640 = vmatprep.subr.mxu0 0.0
        %v8641 = vand.u32 %v8522, 4294901760
        %8642 = vmatpush1.msra.mxu0 %v8641
        %8643 = vmatprep.subr.mxu0 0.0
        %v8644 = vand.u32 %v8535, 4294901760
        %8645 = vmatpush1.msra.mxu0 %v8644
        %8646 = vmatprep.subr.mxu0 0.0
        %v8647 = vand.u32 %v8536, 4294901760
        %8648 = vmatpush1.msra.mxu0 %v8647
        %8649 = vmatprep.subr.mxu0 0.0
        %v8650 = vand.u32 %v8549, 4294901760
        %8651 = vmatpush1.msra.mxu0 %v8650
        %8652 = vmatprep.subr.mxu0 0.0
        %v8653 = vand.u32 %v8550, 4294901760
        %8654 = vmatpush1.msra.mxu0 %v8653
        %8655 = vmatprep.subr.mxu0 0.0
        %v8656 = vand.u32 %v8563, 4294901760
        %8657 = vmatpush1.msra.mxu0 %v8656
        %8658 = vmatprep.subr.mxu0 0.0
        %v8659 = vand.u32 %v8564, 4294901760
        %8660 = vmatpush1.msra.mxu0 %v8659
        %8661 = vmatprep.subr.mxu0 0.0
        %v8662 = vand.u32 %v8499, 4294901760
        %8663 = vmatpush1.msra.mxu0 %v8662
        %8664 = vmatprep.subr.mxu0 0.0
        %v8665 = vand.u32 %v8500, 4294901760
        %8666 = vmatpush1.msra.mxu0 %v8665
        %8667 = vmatprep.subr.mxu0 0.0
        %v8668 = vand.u32 %v8577, 4294901760
        %8669 = vmatpush1.msra.mxu0 %v8668
        %8670 = vmatprep.subr.mxu0 0.0
        %v8671 = vand.u32 %v8578, 4294901760
        %8672 = vmatpush1.msra.mxu0 %v8671
        %8673 = vmatprep.subr.mxu0 0.0
        %v8674 = vand.u32 %v8591, 4294901760
        %8675 = vmatpush1.msra.mxu0 %v8674
        %8676 = vmatprep.subr.mxu0 0.0
        %v8677 = vand.u32 %v8592, 4294901760
        %8678 = vmatpush1.msra.mxu0 %v8677
        %8679 = vmatprep.subr.mxu0 0.0
        %v8680 = vand.u32 %v8605, 4294901760
        %8681 = vmatpush1.msra.mxu0 %v8680
        %8682 = vmatprep.subr.mxu0 0.0
        %v8683 = vand.u32 %v8606, 4294901760
        %8684 = vmatpush1.msra.mxu0 %v8683
        %8685 = vmatprep.subr.mxu0 0.0
        %v8686 = vand.u32 %v8619, 4294901760
        %8687 = vmatpush1.msra.mxu0 %v8686
        %8688 = vmatprep.subr.mxu0 0.0
        %v8689 = vand.u32 %v8620, 4294901760
        %8690 = vmatpush1.msra.mxu0 %v8689
        %8691 = vmatprep.subr.mxu0 0.0
        %8692 = vmatpush1.msra.mxu0 0.0
        %8693 = vmatprep.subr.mxu0 0.0
        %8694 = vmatpush1.msra.mxu0 0.0
        %8695 = vmatprep.subr.mxu0 0.0
        %8696 = vmatpush1.msra.mxu0 0.0
        %8697 = vmatprep.subr.mxu0 0.0
        %8698 = vmatpush1.msra.mxu0 0.0
        %8699 = vmatprep.subr.mxu0 0.0
        %8700 = vmatpush1.msra.mxu0 0.0
        %8701 = vmatprep.subr.mxu0 0.0
        %8702 = vmatpush1.msra.mxu0 0.0
        %8703 = vmatprep.subr.mxu0 0.0
        %8704 = vmatpush1.msra.mxu0 0.0
        %8705 = vmatprep.subr.mxu0 0.0
        %8706 = vmatpush1.msra.mxu0 0.0
        %8707 = vmatprep.subr.mxu0 0.0
        %8708 = vmatpush1.msra.mxu0 0.0
        %8709 = vmatprep.subr.mxu0 0.0
        %8710 = vmatpush1.msra.mxu0 0.0
        %8711 = vmatprep.subr.mxu0 0.0
        %8712 = vmatpush1.msra.mxu0 0.0
        %8713 = vmatprep.subr.mxu0 0.0
        %8714 = vmatpush1.msra.mxu0 0.0
        %8715 = vmatprep.subr.mxu0 0.0
        %8716 = vmatpush1.msra.mxu0 0.0
        %8717 = vmatprep.subr.mxu0 0.0
        %8718 = vmatpush1.msra.mxu0 0.0
        %v8719 = vand.u32 %v8632, 4294901760
        %v8720 = vsub.f32 %v8632, %v8719
        %v8721 = vand.u32 %v8720, 4294901760
        %v8722 = vsub.f32 %v8720, %v8721
        %v8723 = vand.u32 %v8722, 4294901760
        %8724 = vmatprep.mubr.f32.mxu0 %v8723
        %v8725 = vand.u32 %v8501, 4294901760
        %v8726 = vsub.f32 %v8501, %v8725
        %v8727 = vand.u32 %v8726, 4294901760
        %v8728 = vsub.f32 %v8726, %v8727
        %v8729 = vand.u32 %v8728, 4294901760
        %8730 = vmatmul.mubr.f32.gmra.mrb[0].mxu0 %v8729
        %v8731 = vpop.f32.mrb[0].mxu0
        %v8732 = vadd.f32 %v8624, %v8731
        %v8733 = vpop.f32.mrb[0].mxu0
        %v8734 = vand.u32 %v8635, 4294901760
        %v8735 = vsub.f32 %v8635, %v8734
        %v8736 = vand.u32 %v8735, 4294901760
        %v8737 = vsub.f32 %v8735, %v8736
        %v8738 = vand.u32 %v8737, 4294901760
        %8739 = vmatprep.mubr.f32.mxu0 %v8738
        %v8740 = vand.u32 %v8503, 4294901760
        %v8741 = vsub.f32 %v8503, %v8740
        %v8742 = vand.u32 %v8741, 4294901760
        %v8743 = vsub.f32 %v8741, %v8742
        %v8744 = vand.u32 %v8743, 4294901760
        %8745 = vmatmul.mubr.f32.gmra.mrb[0].mxu0 %v8744
        %v8746 = vpop.f32.mrb[0].mxu0
        %v8747 = vadd.f32 %v8629, %v8746
        %v8748 = vpop.f32.mrb[0].mxu0
        %8749 = vdwg.mxu0
        %8750 = vmatprep.subr.mxu0 0.0
        %v8751 = vand.u32 %v8521, 4294901760
        %v8752 = vsub.f32 %v8521, %v8751
        %v8753 = vand.u32 %v8752, 4294901760
        %v8754 = vsub.f32 %v8752, %v8753
        %v8755 = vand.u32 %v8754, 4294901760
        %8756 = vmatpush1.msra.mxu0 %v8755
        %8757 = vmatprep.subr.mxu0 0.0
        %v8758 = vand.u32 %v8522, 4294901760
        %v8759 = vsub.f32 %v8522, %v8758
        %v8760 = vand.u32 %v8759, 4294901760
        %v8761 = vsub.f32 %v8759, %v8760
        %v8762 = vand.u32 %v8761, 4294901760
        %8763 = vmatpush1.msra.mxu0 %v8762
        %8764 = vmatprep.subr.mxu0 0.0
        %v8765 = vand.u32 %v8535, 4294901760
        %v8766 = vsub.f32 %v8535, %v8765
        %v8767 = vand.u32 %v8766, 4294901760
        %v8768 = vsub.f32 %v8766, %v8767
        %v8769 = vand.u32 %v8768, 4294901760
        %8770 = vmatpush1.msra.mxu0 %v8769
        %8771 = vmatprep.subr.mxu0 0.0
        %v8772 = vand.u32 %v8536, 4294901760
        %v8773 = vsub.f32 %v8536, %v8772
        %v8774 = vand.u32 %v8773, 4294901760
        %v8775 = vsub.f32 %v8773, %v8774
        %v8776 = vand.u32 %v8775, 4294901760
        %8777 = vmatpush1.msra.mxu0 %v8776
        %8778 = vmatprep.subr.mxu0 0.0
        %v8779 = vand.u32 %v8549, 4294901760
        %v8780 = vsub.f32 %v8549, %v8779
        %v8781 = vand.u32 %v8780, 4294901760
        %v8782 = vsub.f32 %v8780, %v8781
        %v8783 = vand.u32 %v8782, 4294901760
        %8784 = vmatpush1.msra.mxu0 %v8783
        %8785 = vmatprep.subr.mxu0 0.0
        %v8786 = vand.u32 %v8550, 4294901760
        %v8787 = vsub.f32 %v8550, %v8786
        %v8788 = vand.u32 %v8787, 4294901760
        %v8789 = vsub.f32 %v8787, %v8788
        %v8790 = vand.u32 %v8789, 4294901760
        %8791 = vmatpush1.msra.mxu0 %v8790
        %8792 = vmatprep.subr.mxu0 0.0
        %v8793 = vand.u32 %v8563, 4294901760
        %v8794 = vsub.f32 %v8563, %v8793
        %v8795 = vand.u32 %v8794, 4294901760
        %v8796 = vsub.f32 %v8794, %v8795
        %v8797 = vand.u32 %v8796, 4294901760
        %8798 = vmatpush1.msra.mxu0 %v8797
        %8799 = vmatprep.subr.mxu0 0.0
        %v8800 = vand.u32 %v8564, 4294901760
        %v8801 = vsub.f32 %v8564, %v8800
        %v8802 = vand.u32 %v8801, 4294901760
        %v8803 = vsub.f32 %v8801, %v8802
        %v8804 = vand.u32 %v8803, 4294901760
        %8805 = vmatpush1.msra.mxu0 %v8804
        %8806 = vmatprep.subr.mxu0 0.0
        %v8807 = vand.u32 %v8499, 4294901760
        %v8808 = vsub.f32 %v8499, %v8807
        %v8809 = vand.u32 %v8808, 4294901760
        %v8810 = vsub.f32 %v8808, %v8809
        %v8811 = vand.u32 %v8810, 4294901760
        %8812 = vmatpush1.msra.mxu0 %v8811
        %8813 = vmatprep.subr.mxu0 0.0
        %v8814 = vand.u32 %v8500, 4294901760
        %v8815 = vsub.f32 %v8500, %v8814
        %v8816 = vand.u32 %v8815, 4294901760
        %v8817 = vsub.f32 %v8815, %v8816
        %v8818 = vand.u32 %v8817, 4294901760
        %8819 = vmatpush1.msra.mxu0 %v8818
        %8820 = vmatprep.subr.mxu0 0.0
        %v8821 = vand.u32 %v8577, 4294901760
        %v8822 = vsub.f32 %v8577, %v8821
        %v8823 = vand.u32 %v8822, 4294901760
        %v8824 = vsub.f32 %v8822, %v8823
        %v8825 = vand.u32 %v8824, 4294901760
        %8826 = vmatpush1.msra.mxu0 %v8825
        %8827 = vmatprep.subr.mxu0 0.0
        %v8828 = vand.u32 %v8578, 4294901760
        %v8829 = vsub.f32 %v8578, %v8828
        %v8830 = vand.u32 %v8829, 4294901760
        %v8831 = vsub.f32 %v8829, %v8830
        %v8832 = vand.u32 %v8831, 4294901760
        %8833 = vmatpush1.msra.mxu0 %v8832
        %8834 = vmatprep.subr.mxu0 0.0
        %v8835 = vand.u32 %v8591, 4294901760
        %v8836 = vsub.f32 %v8591, %v8835
        %v8837 = vand.u32 %v8836, 4294901760
        %v8838 = vsub.f32 %v8836, %v8837
        %v8839 = vand.u32 %v8838, 4294901760
        %8840 = vmatpush1.msra.mxu0 %v8839
        %8841 = vmatprep.subr.mxu0 0.0
        %v8842 = vand.u32 %v8592, 4294901760
        %v8843 = vsub.f32 %v8592, %v8842
        %v8844 = vand.u32 %v8843, 4294901760
        %v8845 = vsub.f32 %v8843, %v8844
        %v8846 = vand.u32 %v8845, 4294901760
        %8847 = vmatpush1.msra.mxu0 %v8846
        %8848 = vmatprep.subr.mxu0 0.0
        %v8849 = vand.u32 %v8605, 4294901760
        %v8850 = vsub.f32 %v8605, %v8849
        %v8851 = vand.u32 %v8850, 4294901760
        %v8852 = vsub.f32 %v8850, %v8851
        %v8853 = vand.u32 %v8852, 4294901760
        %8854 = vmatpush1.msra.mxu0 %v8853
        %8855 = vmatprep.subr.mxu0 0.0
        %v8856 = vand.u32 %v8606, 4294901760
        %v8857 = vsub.f32 %v8606, %v8856
        %v8858 = vand.u32 %v8857, 4294901760
        %v8859 = vsub.f32 %v8857, %v8858
        %v8860 = vand.u32 %v8859, 4294901760
        %8861 = vmatpush1.msra.mxu0 %v8860
        %8862 = vmatprep.subr.mxu0 0.0
        %v8863 = vand.u32 %v8619, 4294901760
        %v8864 = vsub.f32 %v8619, %v8863
        %v8865 = vand.u32 %v8864, 4294901760
        %v8866 = vsub.f32 %v8864, %v8865
        %v8867 = vand.u32 %v8866, 4294901760
        %8868 = vmatpush1.msra.mxu0 %v8867
        %8869 = vmatprep.subr.mxu0 0.0
        %v8870 = vand.u32 %v8620, 4294901760
        %v8871 = vsub.f32 %v8620, %v8870
        %v8872 = vand.u32 %v8871, 4294901760
        %v8873 = vsub.f32 %v8871, %v8872
        %v8874 = vand.u32 %v8873, 4294901760
        %8875 = vmatpush1.msra.mxu0 %v8874
        %8876 = vmatprep.subr.mxu0 0.0
        %8877 = vmatpush1.msra.mxu0 0.0
        %8878 = vmatprep.subr.mxu0 0.0
        %8879 = vmatpush1.msra.mxu0 0.0
        %8880 = vmatprep.subr.mxu0 0.0
        %8881 = vmatpush1.msra.mxu0 0.0
        %8882 = vmatprep.subr.mxu0 0.0
        %8883 = vmatpush1.msra.mxu0 0.0
        %8884 = vmatprep.subr.mxu0 0.0
        %8885 = vmatpush1.msra.mxu0 0.0
        %8886 = vmatprep.subr.mxu0 0.0
        %8887 = vmatpush1.msra.mxu0 0.0
        %8888 = vmatprep.subr.mxu0 0.0
        %8889 = vmatpush1.msra.mxu0 0.0
        %8890 = vmatprep.subr.mxu0 0.0
        %8891 = vmatpush1.msra.mxu0 0.0
        %8892 = vmatprep.subr.mxu0 0.0
        %8893 = vmatpush1.msra.mxu0 0.0
        %8894 = vmatprep.subr.mxu0 0.0
        %8895 = vmatpush1.msra.mxu0 0.0
        %8896 = vmatprep.subr.mxu0 0.0
        %8897 = vmatpush1.msra.mxu0 0.0
        %8898 = vmatprep.subr.mxu0 0.0
        %8899 = vmatpush1.msra.mxu0 0.0
        %8900 = vmatprep.subr.mxu0 0.0
        %8901 = vmatpush1.msra.mxu0 0.0
        %8902 = vmatprep.subr.mxu0 0.0
        %8903 = vmatpush1.msra.mxu0 0.0
        %v8904 = vand.u32 %v8632, 4294901760
        %8905 = vmatprep.mubr.f32.mxu0 %v8904
        %v8906 = vand.u32 %v8501, 4294901760
        %8907 = vmatmul.mubr.f32.gmra.mrb[0].mxu0 %v8906
        %v8908 = vpop.f32.mrb[0].mxu0
        %v8909 = vadd.f32 %v8732, %v8908
        %v8910 = vpop.f32.mrb[0].mxu0
        %v8911 = vand.u32 %v8635, 4294901760
        %8912 = vmatprep.mubr.f32.mxu0 %v8911
        %v8913 = vand.u32 %v8503, 4294901760
        %8914 = vmatmul.mubr.f32.gmra.mrb[0].mxu0 %v8913
        %v8915 = vpop.f32.mrb[0].mxu0
        %v8916 = vadd.f32 %v8747, %v8915
        %v8917 = vpop.f32.mrb[0].mxu0
        %8918 = vdwg.mxu0
        %8919 = vmatprep.subr.mxu0 0.0
        %v8920 = vand.u32 %v8521, 4294901760
        %v8921 = vsub.f32 %v8521, %v8920
        %8922 = vmatpush1.msra.mxu0 %v8921
        %8923 = vmatprep.subr.mxu0 0.0
        %v8924 = vand.u32 %v8522, 4294901760
        %v8925 = vsub.f32 %v8522, %v8924
        %8926 = vmatpush1.msra.mxu0 %v8925
        %8927 = vmatprep.subr.mxu0 0.0
        %v8928 = vand.u32 %v8535, 4294901760
        %v8929 = vsub.f32 %v8535, %v8928
        %8930 = vmatpush1.msra.mxu0 %v8929
        %8931 = vmatprep.subr.mxu0 0.0
        %v8932 = vand.u32 %v8536, 4294901760
        %v8933 = vsub.f32 %v8536, %v8932
        %8934 = vmatpush1.msra.mxu0 %v8933
        %8935 = vmatprep.subr.mxu0 0.0
        %v8936 = vand.u32 %v8549, 4294901760
        %v8937 = vsub.f32 %v8549, %v8936
        %8938 = vmatpush1.msra.mxu0 %v8937
        %8939 = vmatprep.subr.mxu0 0.0
        %v8940 = vand.u32 %v8550, 4294901760
        %v8941 = vsub.f32 %v8550, %v8940
        %8942 = vmatpush1.msra.mxu0 %v8941
        %8943 = vmatprep.subr.mxu0 0.0
        %v8944 = vand.u32 %v8563, 4294901760
        %v8945 = vsub.f32 %v8563, %v8944
        %8946 = vmatpush1.msra.mxu0 %v8945
        %8947 = vmatprep.subr.mxu0 0.0
        %v8948 = vand.u32 %v8564, 4294901760
        %v8949 = vsub.f32 %v8564, %v8948
        %8950 = vmatpush1.msra.mxu0 %v8949
        %8951 = vmatprep.subr.mxu0 0.0
        %v8952 = vand.u32 %v8499, 4294901760
        %v8953 = vsub.f32 %v8499, %v8952
        %8954 = vmatpush1.msra.mxu0 %v8953
        %8955 = vmatprep.subr.mxu0 0.0
        %v8956 = vand.u32 %v8500, 4294901760
        %v8957 = vsub.f32 %v8500, %v8956
        %8958 = vmatpush1.msra.mxu0 %v8957
        %8959 = vmatprep.subr.mxu0 0.0
        %v8960 = vand.u32 %v8577, 4294901760
        %v8961 = vsub.f32 %v8577, %v8960
        %8962 = vmatpush1.msra.mxu0 %v8961
        %8963 = vmatprep.subr.mxu0 0.0
        %v8964 = vand.u32 %v8578, 4294901760
        %v8965 = vsub.f32 %v8578, %v8964
        %8966 = vmatpush1.msra.mxu0 %v8965
        %8967 = vmatprep.subr.mxu0 0.0
        %v8968 = vand.u32 %v8591, 4294901760
        %v8969 = vsub.f32 %v8591, %v8968
        %8970 = vmatpush1.msra.mxu0 %v8969
        %8971 = vmatprep.subr.mxu0 0.0
        %v8972 = vand.u32 %v8592, 4294901760
        %v8973 = vsub.f32 %v8592, %v8972
        %8974 = vmatpush1.msra.mxu0 %v8973
        %8975 = vmatprep.subr.mxu0 0.0
        %v8976 = vand.u32 %v8605, 4294901760
        %v8977 = vsub.f32 %v8605, %v8976
        %8978 = vmatpush1.msra.mxu0 %v8977
        %8979 = vmatprep.subr.mxu0 0.0
        %v8980 = vand.u32 %v8606, 4294901760
        %v8981 = vsub.f32 %v8606, %v8980
        %8982 = vmatpush1.msra.mxu0 %v8981
        %8983 = vmatprep.subr.mxu0 0.0
        %v8984 = vand.u32 %v8619, 4294901760
        %v8985 = vsub.f32 %v8619, %v8984
        %8986 = vmatpush1.msra.mxu0 %v8985
        %8987 = vmatprep.subr.mxu0 0.0
        %v8988 = vand.u32 %v8620, 4294901760
        %v8989 = vsub.f32 %v8620, %v8988
        %8990 = vmatpush1.msra.mxu0 %v8989
        %8991 = vmatprep.subr.mxu0 0.0
        %8992 = vmatpush1.msra.mxu0 0.0
        %8993 = vmatprep.subr.mxu0 0.0
        %8994 = vmatpush1.msra.mxu0 0.0
        %8995 = vmatprep.subr.mxu0 0.0
        %8996 = vmatpush1.msra.mxu0 0.0
        %8997 = vmatprep.subr.mxu0 0.0
        %8998 = vmatpush1.msra.mxu0 0.0
        %8999 = vmatprep.subr.mxu0 0.0
        %9000 = vmatpush1.msra.mxu0 0.0
        %9001 = vmatprep.subr.mxu0 0.0
        %9002 = vmatpush1.msra.mxu0 0.0
        %9003 = vmatprep.subr.mxu0 0.0
        %9004 = vmatpush1.msra.mxu0 0.0
        %9005 = vmatprep.subr.mxu0 0.0
        %9006 = vmatpush1.msra.mxu0 0.0
        %9007 = vmatprep.subr.mxu0 0.0
        %9008 = vmatpush1.msra.mxu0 0.0
        %9009 = vmatprep.subr.mxu0 0.0
        %9010 = vmatpush1.msra.mxu0 0.0
        %9011 = vmatprep.subr.mxu0 0.0
        %9012 = vmatpush1.msra.mxu0 0.0
        %9013 = vmatprep.subr.mxu0 0.0
        %9014 = vmatpush1.msra.mxu0 0.0
        %9015 = vmatprep.subr.mxu0 0.0
        %9016 = vmatpush1.msra.mxu0 0.0
        %9017 = vmatprep.subr.mxu0 0.0
        %9018 = vmatpush1.msra.mxu0 0.0
        %v9019 = vand.u32 %v8632, 4294901760
        %v9020 = vsub.f32 %v8632, %v9019
        %9021 = vmatprep.mubr.f32.mxu0 %v9020
        %v9022 = vand.u32 %v8501, 4294901760
        %v9023 = vsub.f32 %v8501, %v9022
        %9024 = vmatmul.mubr.f32.gmra.mrb[0].mxu0 %v9023
        %v9025 = vpop.f32.mrb[0].mxu0
        %v9026 = vadd.f32 %v8909, %v9025
        %v9027 = vpop.f32.mrb[0].mxu0
        %v9028 = vand.u32 %v8635, 4294901760
        %v9029 = vsub.f32 %v8635, %v9028
        %9030 = vmatprep.mubr.f32.mxu0 %v9029
        %v9031 = vand.u32 %v8503, 4294901760
        %v9032 = vsub.f32 %v8503, %v9031
        %9033 = vmatmul.mubr.f32.gmra.mrb[0].mxu0 %v9032
        %v9034 = vpop.f32.mrb[0].mxu0
        %v9035 = vadd.f32 %v8916, %v9034
        %v9036 = vpop.f32.mrb[0].mxu0
        %9037 = vdwg.mxu0
        %9038 = vmatprep.subr.mxu0 0.0
        %v9039 = vand.u32 %v8521, 4294901760
        %9040 = vmatpush1.msra.mxu0 %v9039
        %9041 = vmatprep.subr.mxu0 0.0
        %v9042 = vand.u32 %v8522, 4294901760
        %9043 = vmatpush1.msra.mxu0 %v9042
        %9044 = vmatprep.subr.mxu0 0.0
        %v9045 = vand.u32 %v8535, 4294901760
        %9046 = vmatpush1.msra.mxu0 %v9045
        %9047 = vmatprep.subr.mxu0 0.0
        %v9048 = vand.u32 %v8536, 4294901760
        %9049 = vmatpush1.msra.mxu0 %v9048
        %9050 = vmatprep.subr.mxu0 0.0
        %v9051 = vand.u32 %v8549, 4294901760
        %9052 = vmatpush1.msra.mxu0 %v9051
        %9053 = vmatprep.subr.mxu0 0.0
        %v9054 = vand.u32 %v8550, 4294901760
        %9055 = vmatpush1.msra.mxu0 %v9054
        %9056 = vmatprep.subr.mxu0 0.0
        %v9057 = vand.u32 %v8563, 4294901760
        %9058 = vmatpush1.msra.mxu0 %v9057
        %9059 = vmatprep.subr.mxu0 0.0
        %v9060 = vand.u32 %v8564, 4294901760
        %9061 = vmatpush1.msra.mxu0 %v9060
        %9062 = vmatprep.subr.mxu0 0.0
        %v9063 = vand.u32 %v8499, 4294901760
        %9064 = vmatpush1.msra.mxu0 %v9063
        %9065 = vmatprep.subr.mxu0 0.0
        %v9066 = vand.u32 %v8500, 4294901760
        %9067 = vmatpush1.msra.mxu0 %v9066
        %9068 = vmatprep.subr.mxu0 0.0
        %v9069 = vand.u32 %v8577, 4294901760
        %9070 = vmatpush1.msra.mxu0 %v9069
        %9071 = vmatprep.subr.mxu0 0.0
        %v9072 = vand.u32 %v8578, 4294901760
        %9073 = vmatpush1.msra.mxu0 %v9072
        %9074 = vmatprep.subr.mxu0 0.0
        %v9075 = vand.u32 %v8591, 4294901760
        %9076 = vmatpush1.msra.mxu0 %v9075
        %9077 = vmatprep.subr.mxu0 0.0
        %v9078 = vand.u32 %v8592, 4294901760
        %9079 = vmatpush1.msra.mxu0 %v9078
        %9080 = vmatprep.subr.mxu0 0.0
        %v9081 = vand.u32 %v8605, 4294901760
        %9082 = vmatpush1.msra.mxu0 %v9081
        %9083 = vmatprep.subr.mxu0 0.0
        %v9084 = vand.u32 %v8606, 4294901760
        %9085 = vmatpush1.msra.mxu0 %v9084
        %9086 = vmatprep.subr.mxu0 0.0
        %v9087 = vand.u32 %v8619, 4294901760
        %9088 = vmatpush1.msra.mxu0 %v9087
        %9089 = vmatprep.subr.mxu0 0.0
        %v9090 = vand.u32 %v8620, 4294901760
        %9091 = vmatpush1.msra.mxu0 %v9090
        %9092 = vmatprep.subr.mxu0 0.0
        %9093 = vmatpush1.msra.mxu0 0.0
        %9094 = vmatprep.subr.mxu0 0.0
        %9095 = vmatpush1.msra.mxu0 0.0
        %9096 = vmatprep.subr.mxu0 0.0
        %9097 = vmatpush1.msra.mxu0 0.0
        %9098 = vmatprep.subr.mxu0 0.0
        %9099 = vmatpush1.msra.mxu0 0.0
        %9100 = vmatprep.subr.mxu0 0.0
        %9101 = vmatpush1.msra.mxu0 0.0
        %9102 = vmatprep.subr.mxu0 0.0
        %9103 = vmatpush1.msra.mxu0 0.0
        %9104 = vmatprep.subr.mxu0 0.0
        %9105 = vmatpush1.msra.mxu0 0.0
        %9106 = vmatprep.subr.mxu0 0.0
        %9107 = vmatpush1.msra.mxu0 0.0
        %9108 = vmatprep.subr.mxu0 0.0
        %9109 = vmatpush1.msra.mxu0 0.0
        %9110 = vmatprep.subr.mxu0 0.0
        %9111 = vmatpush1.msra.mxu0 0.0
        %9112 = vmatprep.subr.mxu0 0.0
        %9113 = vmatpush1.msra.mxu0 0.0
        %9114 = vmatprep.subr.mxu0 0.0
        %9115 = vmatpush1.msra.mxu0 0.0
        %9116 = vmatprep.subr.mxu0 0.0
        %9117 = vmatpush1.msra.mxu0 0.0
        %9118 = vmatprep.subr.mxu0 0.0
        %9119 = vmatpush1.msra.mxu0 0.0
        %v9120 = vand.u32 %v8632, 4294901760
        %v9121 = vsub.f32 %v8632, %v9120
        %v9122 = vand.u32 %v9121, 4294901760
        %9123 = vmatprep.mubr.f32.mxu0 %v9122
        %v9124 = vand.u32 %v8501, 4294901760
        %v9125 = vsub.f32 %v8501, %v9124
        %v9126 = vand.u32 %v9125, 4294901760
        %9127 = vmatmul.mubr.f32.gmra.mrb[0].mxu0 %v9126
        %v9128 = vpop.f32.mrb[0].mxu0
        %v9129 = vadd.f32 %v9026, %v9128
        %v9130 = vpop.f32.mrb[0].mxu0
        %v9131 = vand.u32 %v8635, 4294901760
        %v9132 = vsub.f32 %v8635, %v9131
        %v9133 = vand.u32 %v9132, 4294901760
        %9134 = vmatprep.mubr.f32.mxu0 %v9133
        %v9135 = vand.u32 %v8503, 4294901760
        %v9136 = vsub.f32 %v8503, %v9135
        %v9137 = vand.u32 %v9136, 4294901760
        %9138 = vmatmul.mubr.f32.gmra.mrb[0].mxu0 %v9137
        %v9139 = vpop.f32.mrb[0].mxu0
        %v9140 = vadd.f32 %v9035, %v9139
        %v9141 = vpop.f32.mrb[0].mxu0
        %9142 = vdwg.mxu0
        %9143 = vmatprep.subr.mxu0 0.0
        %v9144 = vand.u32 %v8521, 4294901760
        %v9145 = vsub.f32 %v8521, %v9144
        %v9146 = vand.u32 %v9145, 4294901760
        %9147 = vmatpush1.msra.mxu0 %v9146
        %9148 = vmatprep.subr.mxu0 0.0
        %v9149 = vand.u32 %v8522, 4294901760
        %v9150 = vsub.f32 %v8522, %v9149
        %v9151 = vand.u32 %v9150, 4294901760
        %9152 = vmatpush1.msra.mxu0 %v9151
        %9153 = vmatprep.subr.mxu0 0.0
        %v9154 = vand.u32 %v8535, 4294901760
        %v9155 = vsub.f32 %v8535, %v9154
        %v9156 = vand.u32 %v9155, 4294901760
        %9157 = vmatpush1.msra.mxu0 %v9156
        %9158 = vmatprep.subr.mxu0 0.0
        %v9159 = vand.u32 %v8536, 4294901760
        %v9160 = vsub.f32 %v8536, %v9159
        %v9161 = vand.u32 %v9160, 4294901760
        %9162 = vmatpush1.msra.mxu0 %v9161
        %9163 = vmatprep.subr.mxu0 0.0
        %v9164 = vand.u32 %v8549, 4294901760
        %v9165 = vsub.f32 %v8549, %v9164
        %v9166 = vand.u32 %v9165, 4294901760
        %9167 = vmatpush1.msra.mxu0 %v9166
        %9168 = vmatprep.subr.mxu0 0.0
        %v9169 = vand.u32 %v8550, 4294901760
        %v9170 = vsub.f32 %v8550, %v9169
        %v9171 = vand.u32 %v9170, 4294901760
        %9172 = vmatpush1.msra.mxu0 %v9171
        %9173 = vmatprep.subr.mxu0 0.0
        %v9174 = vand.u32 %v8563, 4294901760
        %v9175 = vsub.f32 %v8563, %v9174
        %v9176 = vand.u32 %v9175, 4294901760
        %9177 = vmatpush1.msra.mxu0 %v9176
        %9178 = vmatprep.subr.mxu0 0.0
        %v9179 = vand.u32 %v8564, 4294901760
        %v9180 = vsub.f32 %v8564, %v9179
        %v9181 = vand.u32 %v9180, 4294901760
        %9182 = vmatpush1.msra.mxu0 %v9181
        %9183 = vmatprep.subr.mxu0 0.0
        %v9184 = vand.u32 %v8499, 4294901760
        %v9185 = vsub.f32 %v8499, %v9184
        %v9186 = vand.u32 %v9185, 4294901760
        %9187 = vmatpush1.msra.mxu0 %v9186
        %9188 = vmatprep.subr.mxu0 0.0
        %v9189 = vand.u32 %v8500, 4294901760
        %v9190 = vsub.f32 %v8500, %v9189
        %v9191 = vand.u32 %v9190, 4294901760
        %9192 = vmatpush1.msra.mxu0 %v9191
        %9193 = vmatprep.subr.mxu0 0.0
        %v9194 = vand.u32 %v8577, 4294901760
        %v9195 = vsub.f32 %v8577, %v9194
        %v9196 = vand.u32 %v9195, 4294901760
        %9197 = vmatpush1.msra.mxu0 %v9196
        %9198 = vmatprep.subr.mxu0 0.0
        %v9199 = vand.u32 %v8578, 4294901760
        %v9200 = vsub.f32 %v8578, %v9199
        %v9201 = vand.u32 %v9200, 4294901760
        %9202 = vmatpush1.msra.mxu0 %v9201
        %9203 = vmatprep.subr.mxu0 0.0
        %v9204 = vand.u32 %v8591, 4294901760
        %v9205 = vsub.f32 %v8591, %v9204
        %v9206 = vand.u32 %v9205, 4294901760
        %9207 = vmatpush1.msra.mxu0 %v9206
        %9208 = vmatprep.subr.mxu0 0.0
        %v9209 = vand.u32 %v8592, 4294901760
        %v9210 = vsub.f32 %v8592, %v9209
        %v9211 = vand.u32 %v9210, 4294901760
        %9212 = vmatpush1.msra.mxu0 %v9211
        %9213 = vmatprep.subr.mxu0 0.0
        %v9214 = vand.u32 %v8605, 4294901760
        %v9215 = vsub.f32 %v8605, %v9214
        %v9216 = vand.u32 %v9215, 4294901760
        %9217 = vmatpush1.msra.mxu0 %v9216
        %9218 = vmatprep.subr.mxu0 0.0
        %v9219 = vand.u32 %v8606, 4294901760
        %v9220 = vsub.f32 %v8606, %v9219
        %v9221 = vand.u32 %v9220, 4294901760
        %9222 = vmatpush1.msra.mxu0 %v9221
        %9223 = vmatprep.subr.mxu0 0.0
        %v9224 = vand.u32 %v8619, 4294901760
        %v9225 = vsub.f32 %v8619, %v9224
        %v9226 = vand.u32 %v9225, 4294901760
        %9227 = vmatpush1.msra.mxu0 %v9226
        %9228 = vmatprep.subr.mxu0 0.0
        %v9229 = vand.u32 %v8620, 4294901760
        %v9230 = vsub.f32 %v8620, %v9229
        %v9231 = vand.u32 %v9230, 4294901760
        %9232 = vmatpush1.msra.mxu0 %v9231
        %9233 = vmatprep.subr.mxu0 0.0
        %9234 = vmatpush1.msra.mxu0 0.0
        %9235 = vmatprep.subr.mxu0 0.0
        %9236 = vmatpush1.msra.mxu0 0.0
        %9237 = vmatprep.subr.mxu0 0.0
        %9238 = vmatpush1.msra.mxu0 0.0
        %9239 = vmatprep.subr.mxu0 0.0
        %9240 = vmatpush1.msra.mxu0 0.0
        %9241 = vmatprep.subr.mxu0 0.0
        %9242 = vmatpush1.msra.mxu0 0.0
        %9243 = vmatprep.subr.mxu0 0.0
        %9244 = vmatpush1.msra.mxu0 0.0
        %9245 = vmatprep.subr.mxu0 0.0
        %9246 = vmatpush1.msra.mxu0 0.0
        %9247 = vmatprep.subr.mxu0 0.0
        %9248 = vmatpush1.msra.mxu0 0.0
        %9249 = vmatprep.subr.mxu0 0.0
        %9250 = vmatpush1.msra.mxu0 0.0
        %9251 = vmatprep.subr.mxu0 0.0
        %9252 = vmatpush1.msra.mxu0 0.0
        %9253 = vmatprep.subr.mxu0 0.0
        %9254 = vmatpush1.msra.mxu0 0.0
        %9255 = vmatprep.subr.mxu0 0.0
        %9256 = vmatpush1.msra.mxu0 0.0
        %9257 = vmatprep.subr.mxu0 0.0
        %9258 = vmatpush1.msra.mxu0 0.0
        %9259 = vmatprep.subr.mxu0 0.0
        %9260 = vmatpush1.msra.mxu0 0.0
        %v9261 = vand.u32 %v8632, 4294901760
        %9262 = vmatprep.mubr.f32.mxu0 %v9261
        %v9263 = vand.u32 %v8501, 4294901760
        %9264 = vmatmul.mubr.f32.gmra.mrb[0].mxu0 %v9263
        %v9265 = vpop.f32.mrb[0].mxu0
        %v9266 = vadd.f32 %v9129, %v9265
        %v9267 = vpop.f32.mrb[0].mxu0
        %v9268 = vand.u32 %v8635, 4294901760
        %9269 = vmatprep.mubr.f32.mxu0 %v9268
        %v9270 = vand.u32 %v8503, 4294901760
        %9271 = vmatmul.mubr.f32.gmra.mrb[0].mxu0 %v9270
        %v9272 = vpop.f32.mrb[0].mxu0
        %v9273 = vadd.f32 %v9140, %v9272
        %v9274 = vpop.f32.mrb[0].mxu0
        %9275 = vdwg.mxu0
        %9276 = vmatprep.subr.mxu0 0.0
        %v9277 = vand.u32 %v8521, 4294901760
        %9278 = vmatpush1.msra.mxu0 %v9277
        %9279 = vmatprep.subr.mxu0 0.0
        %v9280 = vand.u32 %v8522, 4294901760
        %9281 = vmatpush1.msra.mxu0 %v9280
        %9282 = vmatprep.subr.mxu0 0.0
        %v9283 = vand.u32 %v8535, 4294901760
        %9284 = vmatpush1.msra.mxu0 %v9283
        %9285 = vmatprep.subr.mxu0 0.0
        %v9286 = vand.u32 %v8536, 4294901760
        %9287 = vmatpush1.msra.mxu0 %v9286
        %9288 = vmatprep.subr.mxu0 0.0
        %v9289 = vand.u32 %v8549, 4294901760
        %9290 = vmatpush1.msra.mxu0 %v9289
        %9291 = vmatprep.subr.mxu0 0.0
        %v9292 = vand.u32 %v8550, 4294901760
        %9293 = vmatpush1.msra.mxu0 %v9292
        %9294 = vmatprep.subr.mxu0 0.0
        %v9295 = vand.u32 %v8563, 4294901760
        %9296 = vmatpush1.msra.mxu0 %v9295
        %9297 = vmatprep.subr.mxu0 0.0
        %v9298 = vand.u32 %v8564, 4294901760
        %9299 = vmatpush1.msra.mxu0 %v9298
        %9300 = vmatprep.subr.mxu0 0.0
        %v9301 = vand.u32 %v8499, 4294901760
        %9302 = vmatpush1.msra.mxu0 %v9301
        %9303 = vmatprep.subr.mxu0 0.0
        %v9304 = vand.u32 %v8500, 4294901760
        %9305 = vmatpush1.msra.mxu0 %v9304
        %9306 = vmatprep.subr.mxu0 0.0
        %v9307 = vand.u32 %v8577, 4294901760
        %9308 = vmatpush1.msra.mxu0 %v9307
        %9309 = vmatprep.subr.mxu0 0.0
        %v9310 = vand.u32 %v8578, 4294901760
        %9311 = vmatpush1.msra.mxu0 %v9310
        %9312 = vmatprep.subr.mxu0 0.0
        %v9313 = vand.u32 %v8591, 4294901760
        %9314 = vmatpush1.msra.mxu0 %v9313
        %9315 = vmatprep.subr.mxu0 0.0
        %v9316 = vand.u32 %v8592, 4294901760
        %9317 = vmatpush1.msra.mxu0 %v9316
        %9318 = vmatprep.subr.mxu0 0.0
        %v9319 = vand.u32 %v8605, 4294901760
        %9320 = vmatpush1.msra.mxu0 %v9319
        %9321 = vmatprep.subr.mxu0 0.0
        %v9322 = vand.u32 %v8606, 4294901760
        %9323 = vmatpush1.msra.mxu0 %v9322
        %9324 = vmatprep.subr.mxu0 0.0
        %v9325 = vand.u32 %v8619, 4294901760
        %9326 = vmatpush1.msra.mxu0 %v9325
        %9327 = vmatprep.subr.mxu0 0.0
        %v9328 = vand.u32 %v8620, 4294901760
        %9329 = vmatpush1.msra.mxu0 %v9328
        %9330 = vmatprep.subr.mxu0 0.0
        %9331 = vmatpush1.msra.mxu0 0.0
        %9332 = vmatprep.subr.mxu0 0.0
        %9333 = vmatpush1.msra.mxu0 0.0
        %9334 = vmatprep.subr.mxu0 0.0
        %9335 = vmatpush1.msra.mxu0 0.0
        %9336 = vmatprep.subr.mxu0 0.0
        %9337 = vmatpush1.msra.mxu0 0.0
        %9338 = vmatprep.subr.mxu0 0.0
        %9339 = vmatpush1.msra.mxu0 0.0
        %9340 = vmatprep.subr.mxu0 0.0
        %9341 = vmatpush1.msra.mxu0 0.0
        %9342 = vmatprep.subr.mxu0 0.0
        %9343 = vmatpush1.msra.mxu0 0.0
        %9344 = vmatprep.subr.mxu0 0.0
        %9345 = vmatpush1.msra.mxu0 0.0
        %9346 = vmatprep.subr.mxu0 0.0
        %9347 = vmatpush1.msra.mxu0 0.0
        %9348 = vmatprep.subr.mxu0 0.0
        %9349 = vmatpush1.msra.mxu0 0.0
        %9350 = vmatprep.subr.mxu0 0.0
        %9351 = vmatpush1.msra.mxu0 0.0
        %9352 = vmatprep.subr.mxu0 0.0
        %9353 = vmatpush1.msra.mxu0 0.0
        %9354 = vmatprep.subr.mxu0 0.0
        %9355 = vmatpush1.msra.mxu0 0.0
        %9356 = vmatprep.subr.mxu0 0.0
        %9357 = vmatpush1.msra.mxu0 0.0
        %v9358 = vand.u32 %v8632, 4294901760
        %9359 = vmatprep.mubr.f32.mxu0 %v9358
        %v9360 = vand.u32 %v8501, 4294901760
        %9361 = vmatmul.mubr.f32.gmra.mrb[0].mxu0 %v9360
        %v9362 = vpop.f32.mrb[0].mxu0
        %v9363 = vadd.f32 %v9266, %v9362
        %v9364 = vpop.f32.mrb[0].mxu0
        %v9365 = vand.u32 %v8635, 4294901760
        %9366 = vmatprep.mubr.f32.mxu0 %v9365
        %v9367 = vand.u32 %v8503, 4294901760
        %9368 = vmatmul.mubr.f32.gmra.mrb[0].mxu0 %v9367
        %v9369 = vpop.f32.mrb[0].mxu0
        %v9370 = vadd.f32 %v9273, %v9369
        %v9371 = vpop.f32.mrb[0].mxu0
        %9372 = vdwg.mxu0
        %v9373 = vmax.f32 %v9363, 0.0
        %v9374 = vmax.f32 %v9370, 0.0
        %v9375 = vld [vmem:[%s17] sm:$0xff]
        %v9376 = vld [vmem:[%s17 + $0x8] sm:$0xff]
        %v9377 = vld [vmem:[%s17 + $0x10] sm:$0xff]
        %v9378 = vld [vmem:[%s17 + $0x18] sm:$0xff]
        %v9379 = vld [vmem:[%s17 + $0x20] sm:$0xff]
        %v9380 = vld [vmem:[%s17 + $0x28] sm:$0xff]
        %v9381 = vld [vmem:[%s17 + $0x30] sm:$0xff]
        %v9382 = vld [vmem:[%s17 + $0x38] sm:$0xff]
        %v9383 = vld [vmem:[%s17 + $0x40] sm:$0xff]
        %v9384 = vld [vmem:[%s17 + $0x48] sm:$0xff]
        %v9385 = vld [vmem:[%s17 + $0x50] sm:$0xff]
        %v9386 = vld [vmem:[%s17 + $0x58] sm:$0xff]
        %v9387 = vld [vmem:[%s17 + $0x60] sm:$0xf]
        %vm9388 = vcmask 818176
        %v9390 = vsel %vm9388, %v9373, 0
        %v9393 = vsel %vm9388, %v9374, 0
        %vm9395 = vcmask 1043456
        %v9397 = vsel %vm9395, %v9387, 0
        %9399 = vmatprep.subr.mxu0 0.0
        %v9400 = vand.u32 %v9375, 4294901760
        %9401 = vmatpush1.msra.mxu0 %v9400
        %9402 = vmatprep.subr.mxu0 0.0
        %v9403 = vand.u32 %v9376, 4294901760
        %9404 = vmatpush1.msra.mxu0 %v9403
        %9405 = vmatprep.subr.mxu0 0.0
        %v9406 = vand.u32 %v9377, 4294901760
        %9407 = vmatpush1.msra.mxu0 %v9406
        %9408 = vmatprep.subr.mxu0 0.0
        %v9409 = vand.u32 %v9378, 4294901760
        %9410 = vmatpush1.msra.mxu0 %v9409
        %9411 = vmatprep.subr.mxu0 0.0
        %v9412 = vand.u32 %v9379, 4294901760
        %9413 = vmatpush1.msra.mxu0 %v9412
        %9414 = vmatprep.subr.mxu0 0.0
        %v9415 = vand.u32 %v9380, 4294901760
        %9416 = vmatpush1.msra.mxu0 %v9415
        %9417 = vmatprep.subr.mxu0 0.0
        %v9418 = vand.u32 %v9381, 4294901760
        %9419 = vmatpush1.msra.mxu0 %v9418
        %9420 = vmatprep.subr.mxu0 0.0
        %v9421 = vand.u32 %v9382, 4294901760
        %9422 = vmatpush1.msra.mxu0 %v9421
        %9423 = vmatprep.subr.mxu0 0.0
        %v9424 = vand.u32 %v9383, 4294901760
        %9425 = vmatpush1.msra.mxu0 %v9424
        %9426 = vmatprep.subr.mxu0 0.0
        %v9427 = vand.u32 %v9384, 4294901760
        %9428 = vmatpush1.msra.mxu0 %v9427
        %9429 = vmatprep.subr.mxu0 0.0
        %v9430 = vand.u32 %v9385, 4294901760
        %9431 = vmatpush1.msra.mxu0 %v9430
        %9432 = vmatprep.subr.mxu0 0.0
        %v9433 = vand.u32 %v9386, 4294901760
        %9434 = vmatpush1.msra.mxu0 %v9433
        %9435 = vmatprep.subr.mxu0 0.0
        %v9436 = vand.u32 %v9397, 4294901760
        %9437 = vmatpush1.msra.mxu0 %v9436
        %9438 = vmatprep.subr.mxu0 0.0
        %9439 = vmatpush1.msra.mxu0 0.0
        %9440 = vmatprep.subr.mxu0 0.0
        %9441 = vmatpush1.msra.mxu0 0.0
        %9442 = vmatprep.subr.mxu0 0.0
        %9443 = vmatpush1.msra.mxu0 0.0
        %9444 = vmatprep.subr.mxu0 0.0
        %9445 = vmatpush1.msra.mxu0 0.0
        %9446 = vmatprep.subr.mxu0 0.0
        %9447 = vmatpush1.msra.mxu0 0.0
        %9448 = vmatprep.subr.mxu0 0.0
        %9449 = vmatpush1.msra.mxu0 0.0
        %9450 = vmatprep.subr.mxu0 0.0
        %9451 = vmatpush1.msra.mxu0 0.0
        %9452 = vmatprep.subr.mxu0 0.0
        %9453 = vmatpush1.msra.mxu0 0.0
        %9454 = vmatprep.subr.mxu0 0.0
        %9455 = vmatpush1.msra.mxu0 0.0
        %9456 = vmatprep.subr.mxu0 0.0
        %9457 = vmatpush1.msra.mxu0 0.0
        %9458 = vmatprep.subr.mxu0 0.0
        %9459 = vmatpush1.msra.mxu0 0.0
        %9460 = vmatprep.subr.mxu0 0.0
        %9461 = vmatpush1.msra.mxu0 0.0
        %9462 = vmatprep.subr.mxu0 0.0
        %9463 = vmatpush1.msra.mxu0 0.0
        %9464 = vmatprep.subr.mxu0 0.0
        %9465 = vmatpush1.msra.mxu0 0.0
        %9466 = vmatprep.subr.mxu0 0.0
        %9467 = vmatpush1.msra.mxu0 0.0
        %9468 = vmatprep.subr.mxu0 0.0
        %9469 = vmatpush1.msra.mxu0 0.0
        %9470 = vmatprep.subr.mxu0 0.0
        %9471 = vmatpush1.msra.mxu0 0.0
        %9472 = vmatprep.subr.mxu0 0.0
        %9473 = vmatpush1.msra.mxu0 0.0
        %9474 = vmatprep.subr.mxu0 0.0
        %9475 = vmatpush1.msra.mxu0 0.0
        %9476 = vmatprep.mubr.f32.mxu0 0.0
        %v9477 = vand.u32 %v9390, 4294901760
        %v9478 = vsub.f32 %v9390, %v9477
        %v9479 = vand.u32 %v9478, 4294901760
        %v9480 = vsub.f32 %v9478, %v9479
        %v9481 = vand.u32 %v9480, 4294901760
        %9482 = vmatmul.mubr.f32.gmra.mrb[0].mxu0 %v9481
        %v9483 = vpop.f32.mrb[0].mxu0
        %v9484 = vadd.f32 0.0, %v9483
        %v9485 = vpop.f32.mrb[0].mxu0
        %9486 = vmatprep.mubr.f32.mxu0 0.0
        %v9487 = vand.u32 %v9393, 4294901760
        %v9488 = vsub.f32 %v9393, %v9487
        %v9489 = vand.u32 %v9488, 4294901760
        %v9490 = vsub.f32 %v9488, %v9489
        %v9491 = vand.u32 %v9490, 4294901760
        %9492 = vmatmul.mubr.f32.gmra.mrb[0].mxu0 %v9491
        %v9493 = vpop.f32.mrb[0].mxu0
        %v9494 = vadd.f32 0.0, %v9493
        %v9495 = vpop.f32.mrb[0].mxu0
        %9496 = vdwg.mxu0
        %9497 = vmatprep.subr.mxu0 0.0
        %v9498 = vand.u32 %v9375, 4294901760
        %v9499 = vsub.f32 %v9375, %v9498
        %v9500 = vand.u32 %v9499, 4294901760
        %v9501 = vsub.f32 %v9499, %v9500
        %v9502 = vand.u32 %v9501, 4294901760
        %9503 = vmatpush1.msra.mxu0 %v9502
        %9504 = vmatprep.subr.mxu0 0.0
        %v9505 = vand.u32 %v9376, 4294901760
        %v9506 = vsub.f32 %v9376, %v9505
        %v9507 = vand.u32 %v9506, 4294901760
        %v9508 = vsub.f32 %v9506, %v9507
        %v9509 = vand.u32 %v9508, 4294901760
        %9510 = vmatpush1.msra.mxu0 %v9509
        %9511 = vmatprep.subr.mxu0 0.0
        %v9512 = vand.u32 %v9377, 4294901760
        %v9513 = vsub.f32 %v9377, %v9512
        %v9514 = vand.u32 %v9513, 4294901760
        %v9515 = vsub.f32 %v9513, %v9514
        %v9516 = vand.u32 %v9515, 4294901760
        %9517 = vmatpush1.msra.mxu0 %v9516
        %9518 = vmatprep.subr.mxu0 0.0
        %v9519 = vand.u32 %v9378, 4294901760
        %v9520 = vsub.f32 %v9378, %v9519
        %v9521 = vand.u32 %v9520, 4294901760
        %v9522 = vsub.f32 %v9520, %v9521
        %v9523 = vand.u32 %v9522, 4294901760
        %9524 = vmatpush1.msra.mxu0 %v9523
        %9525 = vmatprep.subr.mxu0 0.0
        %v9526 = vand.u32 %v9379, 4294901760
        %v9527 = vsub.f32 %v9379, %v9526
        %v9528 = vand.u32 %v9527, 4294901760
        %v9529 = vsub.f32 %v9527, %v9528
        %v9530 = vand.u32 %v9529, 4294901760
        %9531 = vmatpush1.msra.mxu0 %v9530
        %9532 = vmatprep.subr.mxu0 0.0
        %v9533 = vand.u32 %v9380, 4294901760
        %v9534 = vsub.f32 %v9380, %v9533
        %v9535 = vand.u32 %v9534, 4294901760
        %v9536 = vsub.f32 %v9534, %v9535
        %v9537 = vand.u32 %v9536, 4294901760
        %9538 = vmatpush1.msra.mxu0 %v9537
        %9539 = vmatprep.subr.mxu0 0.0
        %v9540 = vand.u32 %v9381, 4294901760
        %v9541 = vsub.f32 %v9381, %v9540
        %v9542 = vand.u32 %v9541, 4294901760
        %v9543 = vsub.f32 %v9541, %v9542
        %v9544 = vand.u32 %v9543, 4294901760
        %9545 = vmatpush1.msra.mxu0 %v9544
        %9546 = vmatprep.subr.mxu0 0.0
        %v9547 = vand.u32 %v9382, 4294901760
        %v9548 = vsub.f32 %v9382, %v9547
        %v9549 = vand.u32 %v9548, 4294901760
        %v9550 = vsub.f32 %v9548, %v9549
        %v9551 = vand.u32 %v9550, 4294901760
        %9552 = vmatpush1.msra.mxu0 %v9551
        %9553 = vmatprep.subr.mxu0 0.0
        %v9554 = vand.u32 %v9383, 4294901760
        %v9555 = vsub.f32 %v9383, %v9554
        %v9556 = vand.u32 %v9555, 4294901760
        %v9557 = vsub.f32 %v9555, %v9556
        %v9558 = vand.u32 %v9557, 4294901760
        %9559 = vmatpush1.msra.mxu0 %v9558
        %9560 = vmatprep.subr.mxu0 0.0
        %v9561 = vand.u32 %v9384, 4294901760
        %v9562 = vsub.f32 %v9384, %v9561
        %v9563 = vand.u32 %v9562, 4294901760
        %v9564 = vsub.f32 %v9562, %v9563
        %v9565 = vand.u32 %v9564, 4294901760
        %9566 = vmatpush1.msra.mxu0 %v9565
        %9567 = vmatprep.subr.mxu0 0.0
        %v9568 = vand.u32 %v9385, 4294901760
        %v9569 = vsub.f32 %v9385, %v9568
        %v9570 = vand.u32 %v9569, 4294901760
        %v9571 = vsub.f32 %v9569, %v9570
        %v9572 = vand.u32 %v9571, 4294901760
        %9573 = vmatpush1.msra.mxu0 %v9572
        %9574 = vmatprep.subr.mxu0 0.0
        %v9575 = vand.u32 %v9386, 4294901760
        %v9576 = vsub.f32 %v9386, %v9575
        %v9577 = vand.u32 %v9576, 4294901760
        %v9578 = vsub.f32 %v9576, %v9577
        %v9579 = vand.u32 %v9578, 4294901760
        %9580 = vmatpush1.msra.mxu0 %v9579
        %9581 = vmatprep.subr.mxu0 0.0
        %v9582 = vand.u32 %v9397, 4294901760
        %v9583 = vsub.f32 %v9397, %v9582
        %v9584 = vand.u32 %v9583, 4294901760
        %v9585 = vsub.f32 %v9583, %v9584
        %v9586 = vand.u32 %v9585, 4294901760
        %9587 = vmatpush1.msra.mxu0 %v9586
        %9588 = vmatprep.subr.mxu0 0.0
        %9589 = vmatpush1.msra.mxu0 0.0
        %9590 = vmatprep.subr.mxu0 0.0
        %9591 = vmatpush1.msra.mxu0 0.0
        %9592 = vmatprep.subr.mxu0 0.0
        %9593 = vmatpush1.msra.mxu0 0.0
        %9594 = vmatprep.subr.mxu0 0.0
        %9595 = vmatpush1.msra.mxu0 0.0
        %9596 = vmatprep.subr.mxu0 0.0
        %9597 = vmatpush1.msra.mxu0 0.0
        %9598 = vmatprep.subr.mxu0 0.0
        %9599 = vmatpush1.msra.mxu0 0.0
        %9600 = vmatprep.subr.mxu0 0.0
        %9601 = vmatpush1.msra.mxu0 0.0
        %9602 = vmatprep.subr.mxu0 0.0
        %9603 = vmatpush1.msra.mxu0 0.0
        %9604 = vmatprep.subr.mxu0 0.0
        %9605 = vmatpush1.msra.mxu0 0.0
        %9606 = vmatprep.subr.mxu0 0.0
        %9607 = vmatpush1.msra.mxu0 0.0
        %9608 = vmatprep.subr.mxu0 0.0
        %9609 = vmatpush1.msra.mxu0 0.0
        %9610 = vmatprep.subr.mxu0 0.0
        %9611 = vmatpush1.msra.mxu0 0.0
        %9612 = vmatprep.subr.mxu0 0.0
        %9613 = vmatpush1.msra.mxu0 0.0
        %9614 = vmatprep.subr.mxu0 0.0
        %9615 = vmatpush1.msra.mxu0 0.0
        %9616 = vmatprep.subr.mxu0 0.0
        %9617 = vmatpush1.msra.mxu0 0.0
        %9618 = vmatprep.subr.mxu0 0.0
        %9619 = vmatpush1.msra.mxu0 0.0
        %9620 = vmatprep.subr.mxu0 0.0
        %9621 = vmatpush1.msra.mxu0 0.0
        %9622 = vmatprep.subr.mxu0 0.0
        %9623 = vmatpush1.msra.mxu0 0.0
        %9624 = vmatprep.subr.mxu0 0.0
        %9625 = vmatpush1.msra.mxu0 0.0
        %9626 = vmatprep.mubr.f32.mxu0 0.0
        %v9627 = vand.u32 %v9390, 4294901760
        %9628 = vmatmul.mubr.f32.gmra.mrb[0].mxu0 %v9627
        %v9629 = vpop.f32.mrb[0].mxu0
        %v9630 = vadd.f32 %v9484, %v9629
        %v9631 = vpop.f32.mrb[0].mxu0
        %9632 = vmatprep.mubr.f32.mxu0 0.0
        %v9633 = vand.u32 %v9393, 4294901760
        %9634 = vmatmul.mubr.f32.gmra.mrb[0].mxu0 %v9633
        %v9635 = vpop.f32.mrb[0].mxu0
        %v9636 = vadd.f32 %v9494, %v9635
        %v9637 = vpop.f32.mrb[0].mxu0
        %9638 = vdwg.mxu0
        %9639 = vmatprep.subr.mxu0 0.0
        %v9640 = vand.u32 %v9375, 4294901760
        %v9641 = vsub.f32 %v9375, %v9640
        %9642 = vmatpush1.msra.mxu0 %v9641
        %9643 = vmatprep.subr.mxu0 0.0
        %v9644 = vand.u32 %v9376, 4294901760
        %v9645 = vsub.f32 %v9376, %v9644
        %9646 = vmatpush1.msra.mxu0 %v9645
        %9647 = vmatprep.subr.mxu0 0.0
        %v9648 = vand.u32 %v9377, 4294901760
        %v9649 = vsub.f32 %v9377, %v9648
        %9650 = vmatpush1.msra.mxu0 %v9649
        %9651 = vmatprep.subr.mxu0 0.0
        %v9652 = vand.u32 %v9378, 4294901760
        %v9653 = vsub.f32 %v9378, %v9652
        %9654 = vmatpush1.msra.mxu0 %v9653
        %9655 = vmatprep.subr.mxu0 0.0
        %v9656 = vand.u32 %v9379, 4294901760
        %v9657 = vsub.f32 %v9379, %v9656
        %9658 = vmatpush1.msra.mxu0 %v9657
        %9659 = vmatprep.subr.mxu0 0.0
        %v9660 = vand.u32 %v9380, 4294901760
        %v9661 = vsub.f32 %v9380, %v9660
        %9662 = vmatpush1.msra.mxu0 %v9661
        %9663 = vmatprep.subr.mxu0 0.0
        %v9664 = vand.u32 %v9381, 4294901760
        %v9665 = vsub.f32 %v9381, %v9664
        %9666 = vmatpush1.msra.mxu0 %v9665
        %9667 = vmatprep.subr.mxu0 0.0
        %v9668 = vand.u32 %v9382, 4294901760
        %v9669 = vsub.f32 %v9382, %v9668
        %9670 = vmatpush1.msra.mxu0 %v9669
        %9671 = vmatprep.subr.mxu0 0.0
        %v9672 = vand.u32 %v9383, 4294901760
        %v9673 = vsub.f32 %v9383, %v9672
        %9674 = vmatpush1.msra.mxu0 %v9673
        %9675 = vmatprep.subr.mxu0 0.0
        %v9676 = vand.u32 %v9384, 4294901760
        %v9677 = vsub.f32 %v9384, %v9676
        %9678 = vmatpush1.msra.mxu0 %v9677
        %9679 = vmatprep.subr.mxu0 0.0
        %v9680 = vand.u32 %v9385, 4294901760
        %v9681 = vsub.f32 %v9385, %v9680
        %9682 = vmatpush1.msra.mxu0 %v9681
        %9683 = vmatprep.subr.mxu0 0.0
        %v9684 = vand.u32 %v9386, 4294901760
        %v9685 = vsub.f32 %v9386, %v9684
        %9686 = vmatpush1.msra.mxu0 %v9685
        %9687 = vmatprep.subr.mxu0 0.0
        %v9688 = vand.u32 %v9397, 4294901760
        %v9689 = vsub.f32 %v9397, %v9688
        %9690 = vmatpush1.msra.mxu0 %v9689
        %9691 = vmatprep.subr.mxu0 0.0
        %9692 = vmatpush1.msra.mxu0 0.0
        %9693 = vmatprep.subr.mxu0 0.0
        %9694 = vmatpush1.msra.mxu0 0.0
        %9695 = vmatprep.subr.mxu0 0.0
        %9696 = vmatpush1.msra.mxu0 0.0
        %9697 = vmatprep.subr.mxu0 0.0
        %9698 = vmatpush1.msra.mxu0 0.0
        %9699 = vmatprep.subr.mxu0 0.0
        %9700 = vmatpush1.msra.mxu0 0.0
        %9701 = vmatprep.subr.mxu0 0.0
        %9702 = vmatpush1.msra.mxu0 0.0
        %9703 = vmatprep.subr.mxu0 0.0
        %9704 = vmatpush1.msra.mxu0 0.0
        %9705 = vmatprep.subr.mxu0 0.0
        %9706 = vmatpush1.msra.mxu0 0.0
        %9707 = vmatprep.subr.mxu0 0.0
        %9708 = vmatpush1.msra.mxu0 0.0
        %9709 = vmatprep.subr.mxu0 0.0
        %9710 = vmatpush1.msra.mxu0 0.0
        %9711 = vmatprep.subr.mxu0 0.0
        %9712 = vmatpush1.msra.mxu0 0.0
        %9713 = vmatprep.subr.mxu0 0.0
        %9714 = vmatpush1.msra.mxu0 0.0
        %9715 = vmatprep.subr.mxu0 0.0
        %9716 = vmatpush1.msra.mxu0 0.0
        %9717 = vmatprep.subr.mxu0 0.0
        %9718 = vmatpush1.msra.mxu0 0.0
        %9719 = vmatprep.subr.mxu0 0.0
        %9720 = vmatpush1.msra.mxu0 0.0
        %9721 = vmatprep.subr.mxu0 0.0
        %9722 = vmatpush1.msra.mxu0 0.0
        %9723 = vmatprep.subr.mxu0 0.0
        %9724 = vmatpush1.msra.mxu0 0.0
        %9725 = vmatprep.subr.mxu0 0.0
        %9726 = vmatpush1.msra.mxu0 0.0
        %9727 = vmatprep.subr.mxu0 0.0
        %9728 = vmatpush1.msra.mxu0 0.0
        %9729 = vmatprep.mubr.f32.mxu0 0.0
        %v9730 = vand.u32 %v9390, 4294901760
        %v9731 = vsub.f32 %v9390, %v9730
        %9732 = vmatmul.mubr.f32.gmra.mrb[0].mxu0 %v9731
        %v9733 = vpop.f32.mrb[0].mxu0
        %v9734 = vadd.f32 %v9630, %v9733
        %v9735 = vpop.f32.mrb[0].mxu0
        %9736 = vmatprep.mubr.f32.mxu0 0.0
        %v9737 = vand.u32 %v9393, 4294901760
        %v9738 = vsub.f32 %v9393, %v9737
        %9739 = vmatmul.mubr.f32.gmra.mrb[0].mxu0 %v9738
        %v9740 = vpop.f32.mrb[0].mxu0
        %v9741 = vadd.f32 %v9636, %v9740
        %v9742 = vpop.f32.mrb[0].mxu0
        %9743 = vdwg.mxu0
        %9744 = vmatprep.subr.mxu0 0.0
        %v9745 = vand.u32 %v9375, 4294901760
        %9746 = vmatpush1.msra.mxu0 %v9745
        %9747 = vmatprep.subr.mxu0 0.0
        %v9748 = vand.u32 %v9376, 4294901760
        %9749 = vmatpush1.msra.mxu0 %v9748
        %9750 = vmatprep.subr.mxu0 0.0
        %v9751 = vand.u32 %v9377, 4294901760
        %9752 = vmatpush1.msra.mxu0 %v9751
        %9753 = vmatprep.subr.mxu0 0.0
        %v9754 = vand.u32 %v9378, 4294901760
        %9755 = vmatpush1.msra.mxu0 %v9754
        %9756 = vmatprep.subr.mxu0 0.0
        %v9757 = vand.u32 %v9379, 4294901760
        %9758 = vmatpush1.msra.mxu0 %v9757
        %9759 = vmatprep.subr.mxu0 0.0
        %v9760 = vand.u32 %v9380, 4294901760
        %9761 = vmatpush1.msra.mxu0 %v9760
        %9762 = vmatprep.subr.mxu0 0.0
        %v9763 = vand.u32 %v9381, 4294901760
        %9764 = vmatpush1.msra.mxu0 %v9763
        %9765 = vmatprep.subr.mxu0 0.0
        %v9766 = vand.u32 %v9382, 4294901760
        %9767 = vmatpush1.msra.mxu0 %v9766
        %9768 = vmatprep.subr.mxu0 0.0
        %v9769 = vand.u32 %v9383, 4294901760
        %9770 = vmatpush1.msra.mxu0 %v9769
        %9771 = vmatprep.subr.mxu0 0.0
        %v9772 = vand.u32 %v9384, 4294901760
        %9773 = vmatpush1.msra.mxu0 %v9772
        %9774 = vmatprep.subr.mxu0 0.0
        %v9775 = vand.u32 %v9385, 4294901760
        %9776 = vmatpush1.msra.mxu0 %v9775
        %9777 = vmatprep.subr.mxu0 0.0
        %v9778 = vand.u32 %v9386, 4294901760
        %9779 = vmatpush1.msra.mxu0 %v9778
        %9780 = vmatprep.subr.mxu0 0.0
        %v9781 = vand.u32 %v9397, 4294901760
        %9782 = vmatpush1.msra.mxu0 %v9781
        %9783 = vmatprep.subr.mxu0 0.0
        %9784 = vmatpush1.msra.mxu0 0.0
        %9785 = vmatprep.subr.mxu0 0.0
        %9786 = vmatpush1.msra.mxu0 0.0
        %9787 = vmatprep.subr.mxu0 0.0
        %9788 = vmatpush1.msra.mxu0 0.0
        %9789 = vmatprep.subr.mxu0 0.0
        %9790 = vmatpush1.msra.mxu0 0.0
        %9791 = vmatprep.subr.mxu0 0.0
        %9792 = vmatpush1.msra.mxu0 0.0
        %9793 = vmatprep.subr.mxu0 0.0
        %9794 = vmatpush1.msra.mxu0 0.0
        %9795 = vmatprep.subr.mxu0 0.0
        %9796 = vmatpush1.msra.mxu0 0.0
        %9797 = vmatprep.subr.mxu0 0.0
        %9798 = vmatpush1.msra.mxu0 0.0
        %9799 = vmatprep.subr.mxu0 0.0
        %9800 = vmatpush1.msra.mxu0 0.0
        %9801 = vmatprep.subr.mxu0 0.0
        %9802 = vmatpush1.msra.mxu0 0.0
        %9803 = vmatprep.subr.mxu0 0.0
        %9804 = vmatpush1.msra.mxu0 0.0
        %9805 = vmatprep.subr.mxu0 0.0
        %9806 = vmatpush1.msra.mxu0 0.0
        %9807 = vmatprep.subr.mxu0 0.0
        %9808 = vmatpush1.msra.mxu0 0.0
        %9809 = vmatprep.subr.mxu0 0.0
        %9810 = vmatpush1.msra.mxu0 0.0
        %9811 = vmatprep.subr.mxu0 0.0
        %9812 = vmatpush1.msra.mxu0 0.0
        %9813 = vmatprep.subr.mxu0 0.0
        %9814 = vmatpush1.msra.mxu0 0.0
        %9815 = vmatprep.subr.mxu0 0.0
        %9816 = vmatpush1.msra.mxu0 0.0
        %9817 = vmatprep.subr.mxu0 0.0
        %9818 = vmatpush1.msra.mxu0 0.0
        %9819 = vmatprep.subr.mxu0 0.0
        %9820 = vmatpush1.msra.mxu0 0.0
        %9821 = vmatprep.mubr.f32.mxu0 0.0
        %v9822 = vand.u32 %v9390, 4294901760
        %v9823 = vsub.f32 %v9390, %v9822
        %v9824 = vand.u32 %v9823, 4294901760
        %9825 = vmatmul.mubr.f32.gmra.mrb[0].mxu0 %v9824
        %v9826 = vpop.f32.mrb[0].mxu0
        %v9827 = vadd.f32 %v9734, %v9826
        %v9828 = vpop.f32.mrb[0].mxu0
        %9829 = vmatprep.mubr.f32.mxu0 0.0
        %v9830 = vand.u32 %v9393, 4294901760
        %v9831 = vsub.f32 %v9393, %v9830
        %v9832 = vand.u32 %v9831, 4294901760
        %9833 = vmatmul.mubr.f32.gmra.mrb[0].mxu0 %v9832
        %v9834 = vpop.f32.mrb[0].mxu0
        %v9835 = vadd.f32 %v9741, %v9834
        %v9836 = vpop.f32.mrb[0].mxu0
        %9837 = vdwg.mxu0
        %9838 = vmatprep.subr.mxu0 0.0
        %v9839 = vand.u32 %v9375, 4294901760
        %v9840 = vsub.f32 %v9375, %v9839
        %v9841 = vand.u32 %v9840, 4294901760
        %9842 = vmatpush1.msra.mxu0 %v9841
        %9843 = vmatprep.subr.mxu0 0.0
        %v9844 = vand.u32 %v9376, 4294901760
        %v9845 = vsub.f32 %v9376, %v9844
        %v9846 = vand.u32 %v9845, 4294901760
        %9847 = vmatpush1.msra.mxu0 %v9846
        %9848 = vmatprep.subr.mxu0 0.0
        %v9849 = vand.u32 %v9377, 4294901760
        %v9850 = vsub.f32 %v9377, %v9849
        %v9851 = vand.u32 %v9850, 4294901760
        %9852 = vmatpush1.msra.mxu0 %v9851
        %9853 = vmatprep.subr.mxu0 0.0
        %v9854 = vand.u32 %v9378, 4294901760
        %v9855 = vsub.f32 %v9378, %v9854
        %v9856 = vand.u32 %v9855, 4294901760
        %9857 = vmatpush1.msra.mxu0 %v9856
        %9858 = vmatprep.subr.mxu0 0.0
        %v9859 = vand.u32 %v9379, 4294901760
        %v9860 = vsub.f32 %v9379, %v9859
        %v9861 = vand.u32 %v9860, 4294901760
        %9862 = vmatpush1.msra.mxu0 %v9861
        %9863 = vmatprep.subr.mxu0 0.0
        %v9864 = vand.u32 %v9380, 4294901760
        %v9865 = vsub.f32 %v9380, %v9864
        %v9866 = vand.u32 %v9865, 4294901760
        %9867 = vmatpush1.msra.mxu0 %v9866
        %9868 = vmatprep.subr.mxu0 0.0
        %v9869 = vand.u32 %v9381, 4294901760
        %v9870 = vsub.f32 %v9381, %v9869
        %v9871 = vand.u32 %v9870, 4294901760
        %9872 = vmatpush1.msra.mxu0 %v9871
        %9873 = vmatprep.subr.mxu0 0.0
        %v9874 = vand.u32 %v9382, 4294901760
        %v9875 = vsub.f32 %v9382, %v9874
        %v9876 = vand.u32 %v9875, 4294901760
        %9877 = vmatpush1.msra.mxu0 %v9876
        %9878 = vmatprep.subr.mxu0 0.0
        %v9879 = vand.u32 %v9383, 4294901760
        %v9880 = vsub.f32 %v9383, %v9879
        %v9881 = vand.u32 %v9880, 4294901760
        %9882 = vmatpush1.msra.mxu0 %v9881
        %9883 = vmatprep.subr.mxu0 0.0
        %v9884 = vand.u32 %v9384, 4294901760
        %v9885 = vsub.f32 %v9384, %v9884
        %v9886 = vand.u32 %v9885, 4294901760
        %9887 = vmatpush1.msra.mxu0 %v9886
        %9888 = vmatprep.subr.mxu0 0.0
        %v9889 = vand.u32 %v9385, 4294901760
        %v9890 = vsub.f32 %v9385, %v9889
        %v9891 = vand.u32 %v9890, 4294901760
        %9892 = vmatpush1.msra.mxu0 %v9891
        %9893 = vmatprep.subr.mxu0 0.0
        %v9894 = vand.u32 %v9386, 4294901760
        %v9895 = vsub.f32 %v9386, %v9894
        %v9896 = vand.u32 %v9895, 4294901760
        %9897 = vmatpush1.msra.mxu0 %v9896
        %9898 = vmatprep.subr.mxu0 0.0
        %v9899 = vand.u32 %v9397, 4294901760
        %v9900 = vsub.f32 %v9397, %v9899
        %v9901 = vand.u32 %v9900, 4294901760
        %9902 = vmatpush1.msra.mxu0 %v9901
        %9903 = vmatprep.subr.mxu0 0.0
        %9904 = vmatpush1.msra.mxu0 0.0
        %9905 = vmatprep.subr.mxu0 0.0
        %9906 = vmatpush1.msra.mxu0 0.0
        %9907 = vmatprep.subr.mxu0 0.0
        %9908 = vmatpush1.msra.mxu0 0.0
        %9909 = vmatprep.subr.mxu0 0.0
        %9910 = vmatpush1.msra.mxu0 0.0
        %9911 = vmatprep.subr.mxu0 0.0
        %9912 = vmatpush1.msra.mxu0 0.0
        %9913 = vmatprep.subr.mxu0 0.0
        %9914 = vmatpush1.msra.mxu0 0.0
        %9915 = vmatprep.subr.mxu0 0.0
        %9916 = vmatpush1.msra.mxu0 0.0
        %9917 = vmatprep.subr.mxu0 0.0
        %9918 = vmatpush1.msra.mxu0 0.0
        %9919 = vmatprep.subr.mxu0 0.0
        %9920 = vmatpush1.msra.mxu0 0.0
        %9921 = vmatprep.subr.mxu0 0.0
        %9922 = vmatpush1.msra.mxu0 0.0
        %9923 = vmatprep.subr.mxu0 0.0
        %9924 = vmatpush1.msra.mxu0 0.0
        %9925 = vmatprep.subr.mxu0 0.0
        %9926 = vmatpush1.msra.mxu0 0.0
        %9927 = vmatprep.subr.mxu0 0.0
        %9928 = vmatpush1.msra.mxu0 0.0
        %9929 = vmatprep.subr.mxu0 0.0
        %9930 = vmatpush1.msra.mxu0 0.0
        %9931 = vmatprep.subr.mxu0 0.0
        %9932 = vmatpush1.msra.mxu0 0.0
        %9933 = vmatprep.subr.mxu0 0.0
        %9934 = vmatpush1.msra.mxu0 0.0
        %9935 = vmatprep.subr.mxu0 0.0
        %9936 = vmatpush1.msra.mxu0 0.0
        %9937 = vmatprep.subr.mxu0 0.0
        %9938 = vmatpush1.msra.mxu0 0.0
        %9939 = vmatprep.subr.mxu0 0.0
        %9940 = vmatpush1.msra.mxu0 0.0
        %9941 = vmatprep.mubr.f32.mxu0 0.0
        %v9942 = vand.u32 %v9390, 4294901760
        %9943 = vmatmul.mubr.f32.gmra.mrb[0].mxu0 %v9942
        %v9944 = vpop.f32.mrb[0].mxu0
        %v9945 = vadd.f32 %v9827, %v9944
        %v9946 = vpop.f32.mrb[0].mxu0
        %9947 = vmatprep.mubr.f32.mxu0 0.0
        %v9948 = vand.u32 %v9393, 4294901760
        %9949 = vmatmul.mubr.f32.gmra.mrb[0].mxu0 %v9948
        %v9950 = vpop.f32.mrb[0].mxu0
        %v9951 = vadd.f32 %v9835, %v9950
        %v9952 = vpop.f32.mrb[0].mxu0
        %9953 = vdwg.mxu0
        %9954 = vmatprep.subr.mxu0 0.0
        %v9955 = vand.u32 %v9375, 4294901760
        %9956 = vmatpush1.msra.mxu0 %v9955
        %9957 = vmatprep.subr.mxu0 0.0
        %v9958 = vand.u32 %v9376, 4294901760
        %9959 = vmatpush1.msra.mxu0 %v9958
        %9960 = vmatprep.subr.mxu0 0.0
        %v9961 = vand.u32 %v9377, 4294901760
        %9962 = vmatpush1.msra.mxu0 %v9961
        %9963 = vmatprep.subr.mxu0 0.0
        %v9964 = vand.u32 %v9378, 4294901760
        %9965 = vmatpush1.msra.mxu0 %v9964
        %9966 = vmatprep.subr.mxu0 0.0
        %v9967 = vand.u32 %v9379, 4294901760
        %9968 = vmatpush1.msra.mxu0 %v9967
        %9969 = vmatprep.subr.mxu0 0.0
        %v9970 = vand.u32 %v9380, 4294901760
        %9971 = vmatpush1.msra.mxu0 %v9970
        %9972 = vmatprep.subr.mxu0 0.0
        %v9973 = vand.u32 %v9381, 4294901760
        %9974 = vmatpush1.msra.mxu0 %v9973
        %9975 = vmatprep.subr.mxu0 0.0
        %v9976 = vand.u32 %v9382, 4294901760
        %9977 = vmatpush1.msra.mxu0 %v9976
        %9978 = vmatprep.subr.mxu0 0.0
        %v9979 = vand.u32 %v9383, 4294901760
        %9980 = vmatpush1.msra.mxu0 %v9979
        %9981 = vmatprep.subr.mxu0 0.0
        %v9982 = vand.u32 %v9384, 4294901760
        %9983 = vmatpush1.msra.mxu0 %v9982
        %9984 = vmatprep.subr.mxu0 0.0
        %v9985 = vand.u32 %v9385, 4294901760
        %9986 = vmatpush1.msra.mxu0 %v9985
        %9987 = vmatprep.subr.mxu0 0.0
        %v9988 = vand.u32 %v9386, 4294901760
        %9989 = vmatpush1.msra.mxu0 %v9988
        %9990 = vmatprep.subr.mxu0 0.0
        %v9991 = vand.u32 %v9397, 4294901760
        %9992 = vmatpush1.msra.mxu0 %v9991
        %9993 = vmatprep.subr.mxu0 0.0
        %9994 = vmatpush1.msra.mxu0 0.0
        %9995 = vmatprep.subr.mxu0 0.0
        %9996 = vmatpush1.msra.mxu0 0.0
        %9997 = vmatprep.subr.mxu0 0.0
        %9998 = vmatpush1.msra.mxu0 0.0
        %9999 = vmatprep.subr.mxu0 0.0
        %10000 = vmatpush1.msra.mxu0 0.0
        %10001 = vmatprep.subr.mxu0 0.0
        %10002 = vmatpush1.msra.mxu0 0.0
        %10003 = vmatprep.subr.mxu0 0.0
        %10004 = vmatpush1.msra.mxu0 0.0
        %10005 = vmatprep.subr.mxu0 0.0
        %10006 = vmatpush1.msra.mxu0 0.0
        %10007 = vmatprep.subr.mxu0 0.0
        %10008 = vmatpush1.msra.mxu0 0.0
        %10009 = vmatprep.subr.mxu0 0.0
        %10010 = vmatpush1.msra.mxu0 0.0
        %10011 = vmatprep.subr.mxu0 0.0
        %10012 = vmatpush1.msra.mxu0 0.0
        %10013 = vmatprep.subr.mxu0 0.0
        %10014 = vmatpush1.msra.mxu0 0.0
        %10015 = vmatprep.subr.mxu0 0.0
        %10016 = vmatpush1.msra.mxu0 0.0
        %10017 = vmatprep.subr.mxu0 0.0
        %10018 = vmatpush1.msra.mxu0 0.0
        %10019 = vmatprep.subr.mxu0 0.0
        %10020 = vmatpush1.msra.mxu0 0.0
        %10021 = vmatprep.subr.mxu0 0.0
        %10022 = vmatpush1.msra.mxu0 0.0
        %10023 = vmatprep.subr.mxu0 0.0
        %10024 = vmatpush1.msra.mxu0 0.0
        %10025 = vmatprep.subr.mxu0 0.0
        %10026 = vmatpush1.msra.mxu0 0.0
        %10027 = vmatprep.subr.mxu0 0.0
        %10028 = vmatpush1.msra.mxu0 0.0
        %10029 = vmatprep.subr.mxu0 0.0
        %10030 = vmatpush1.msra.mxu0 0.0
        %10031 = vmatprep.mubr.f32.mxu0 0.0
        %v10032 = vand.u32 %v9390, 4294901760
        %10033 = vmatmul.mubr.f32.gmra.mrb[0].mxu0 %v10032
        %v10034 = vpop.f32.mrb[0].mxu0
        %v10035 = vadd.f32 %v9945, %v10034
        %v10036 = vpop.f32.mrb[0].mxu0
        %10037 = vmatprep.mubr.f32.mxu0 0.0
        %v10038 = vand.u32 %v9393, 4294901760
        %10039 = vmatmul.mubr.f32.gmra.mrb[0].mxu0 %v10038
        %v10040 = vpop.f32.mrb[0].mxu0
        %v10041 = vadd.f32 %v9951, %v10040
        %v10042 = vpop.f32.mrb[0].mxu0
        %10043 = vdwg.mxu0
        %10044 = vst.msk [vmem:[%s733] sm:$0xff] %vm1224, %v10035
        %10045 = vst.msk [vmem:[%s733 + $0x8] sm:$0xff] %vm1224, %v10041
        %s10046 = sand.u32 %s478, 1
        %s10047 = scalar_lea.sflag [#allocation4], %s10046
        %s10048 = sand.u32 %s478, 1
        %s10049 = smul.addr %s10048, 16
        %s10050 = scalar_lea.vmem [#allocation13], %s10049
        // Predicated region
        $region125: #{tpu_custom_call.1} parent=99 // pred_check
          %p10051 = pneg %p488
        $region126: #{tpu_custom_call.1} parent=99 // pred_check_branch
          %10053 = sbr.rel (%p10051) target = $region128
        $region127: #{tpu_custom_call.1} parent=99 // pred_region
          %s10055 = ssub.s32 256, 256
          %10056 = vsyncadd %s10047, %s10055
          %s10057 = smul.addr %s40, 2
          %s10058 = smul.addr %s10057, 128
          %s10059 = scalar_lea.hbm %s20, %s10058
          %s10060 = sshll.u32 %s10050, 4
          %s10061 = int_to_ptr.vmem [resolvable:$true] %s10060
          %10066 = dma.vmem_to_hbm [thread:$0]  %s10061, 256, %s10059, %s10047, 128, 128, 8
        $region128: #{tpu_custom_call.1} parent=99 // pred_fallthru
          _
      $region100: #{tpu_custom_call.1} parent=5 // pred_fallthru
        _
      %p10067 = scmp.le.s32.totalorder 2, %s35
      // Predicated region
      $region129: #{tpu_custom_call.1} parent=5 // pred_check
        %p10068 = pneg %p10067
      $region130: #{tpu_custom_call.1} parent=5 // pred_check_branch
        %10070 = sbr.rel (%p10068) target = $region132
      $region131: #{tpu_custom_call.1} parent=5 // pred_region
        %s10071 = ssub.s32 %s35, 2
        // Predicated region
        $region133: #{tpu_custom_call.1} parent=131 // pred_check
          %p10072 = pneg %p494
        $region134: #{tpu_custom_call.1} parent=131 // pred_check_branch
          %10074 = sbr.rel (%p10072) target = $region136
        $region135: #{tpu_custom_call.1} parent=131 // pred_region
          %s10075 = sand.u32 %s479, 1
          %s10076 = scalar_lea.sflag [#allocation4], %s10075
          %s10077 = sand.u32 %s479, 1
          %s10078 = smul.addr %s10077, 16
          %s10079 = scalar_lea.vmem [#allocation13], %s10078
          %10080 = dma.done %s10076, 256
        $region136: #{tpu_custom_call.1} parent=131 // pred_fallthru
          _
      $region132: #{tpu_custom_call.1} parent=5 // pred_fallthru
        _
    $region6: #{tpu_custom_call.1} parent=1 // loop_footer
      %s39 = sadd.s32 1, %s35
    $region7: #{tpu_custom_call.1} parent=1 // loop_footer_branch
      %34 = sbr.rel target = $region3
    $region8: #{tpu_custom_call.1} parent=1 // loop_exit
      _
    %10081 = vsyncpa [#allocation3], 1
    %s10082 = scalar_lea.sflag [#allocation3], 1
    %10083 = vsyncpa %s10082, 1
    %10084 = vsyncpa [#allocation6], 1
    %10085 = vsyncpa [#allocation9], 1
    %10086 = vsyncpa [#allocation12], 1
    %10087 = vsyncpa [#allocation4], 1
    %s10088 = scalar_lea.sflag [#allocation4], 1
    %10089 = vsyncpa %s10088, 1

</llo_original>
